<compile_context>
chip_gen: v7x
topology: tpu7x:2x2x1
jax: 0.10.0
libtpu: 0.0.40
codegen_flags: <defaults>
</compile_context>

<pallas_src>
import functools

import jax
import jax.numpy as jnp
from jax.experimental import pallas as pl
from jax.experimental.pallas import tpu as pltpu

BN_EPS = 1e-5
LANE = 128


def _round_up(x, m):
    return (x + m - 1) // m * m


# ---------------------------------------------------------------------------
# Kernel.  Grid = (batch tiles [parallel], spatial chunks [arbitrary]).
#   x_ref  : (TB, C, THW)  NCHW activations with spatial flattened on lanes
#   w1_ref : (C, Hp)       BN-folded Linear1 weight (Hp = 1000 -> 1024)
#   b1_ref : (1, Hp)       BN-folded Linear1 bias (f32)
#   w2_ref : (Hp, Kp)      Linear2 weight (Kp = num_classes -> mult. of 128)
#   b2_ref : (1, Kp)       f32
#   out_ref: (TB, Kp)      f32 logits (padded class lanes sliced in wrapper)
#   acc_ref: (TB, C)       f32 running spatial sum (VMEM scratch)
# ---------------------------------------------------------------------------
def _clssimp_kernel(x_ref, w1_ref, b1_ref, w2_ref, b2_ref, out_ref, acc_ref,
                    *, inv_hw, hw_chunk, hw_total, mask_tail):
    hw = pl.program_id(1)

    @pl.when(hw == 0)
    def _init():
        acc_ref[...] = jnp.zeros_like(acc_ref)

    # Spatial partial sum; always accumulate in f32 (x may arrive as bf16).
    x = x_ref[...].astype(jnp.float32)                        # (TB, C, THW)
    if mask_tail:  # last spatial chunk is ragged -> zero the OOB lanes
        lane = jax.lax.broadcasted_iota(jnp.int32, x.shape, 2)
        x = jnp.where(hw * hw_chunk + lane < hw_total, x, 0.0)
    acc_ref[...] += jnp.sum(x, axis=2)                        # (TB, C)

    @pl.when(hw == pl.num_programs(1) - 1)
    def _finalize():
        # AdaptiveAvgPool2d((1,1)) == sum * 1/(H*W) (compile-time constant).
        pooled = acc_ref[...] * inv_hw                        # (TB, C) f32
        # way1: Linear(ch, 1000) with eval-mode BatchNorm1d folded in, + ReLU.
        h = jnp.dot(pooled.astype(w1_ref.dtype), w1_ref[...],
                    preferred_element_type=jnp.float32) + b1_ref[...]
        h = jnp.maximum(h, 0.0)
        # cls: Linear(1000, num_classes) -> lane-dense padded store.
        out_ref[...] = jnp.dot(h.astype(w2_ref.dtype), w2_ref[...],
                               preferred_element_type=jnp.float32) + b2_ref[...]


# ---------------------------------------------------------------------------
# One-time parameter preparation (fold BN, transpose, pad, cast).  Cache the
# result; do NOT call this per forward pass.
# ---------------------------------------------------------------------------
def prepare_params(params, compute_dtype=jnp.bfloat16):
    w1 = jnp.asarray(params["w1"], jnp.float32)      # (hidden, ch) torch layout
    b1 = jnp.asarray(params["b1"], jnp.float32)
    w2 = jnp.asarray(params["w2"], jnp.float32)      # (num_classes, hidden)
    b2 = jnp.asarray(params["b2"], jnp.float32)
    hidden, ch = w1.shape
    num_classes = w2.shape[0]

    # Fold eval-mode BatchNorm1d into Linear1 (in f32, before any downcast).
    # TODO(synk): training-mode BN (per-batch statistics) not implemented.
    scale = params["bn_gamma"] * jax.lax.rsqrt(params["bn_var"] + BN_EPS)
    w1f = w1.T * scale[None, :]                                   # (ch, hidden)
    b1f = (b1 - params["bn_mean"]) * scale + params["bn_beta"]    # (hidden,)

    hp = _round_up(hidden, LANE)           # 1000 -> 1024
    kp = _round_up(num_classes, LANE)      # lane-dense logits store

    w1p = jnp.zeros((ch, hp), jnp.float32).at[:, :hidden].set(w1f)
    w2p = jnp.zeros((hp, kp), jnp.float32).at[:hidden, :num_classes].set(w2.T)
    b1p = jnp.zeros((1, hp), jnp.float32).at[0, :hidden].set(b1f)
    b2p = jnp.zeros((1, kp), jnp.float32).at[0, :num_classes].set(b2)

    return {
        # weights in compute_dtype (bf16: half the HBM/VMEM, native MXU on
        # v6e/v7x); biases stay f32 for a cheap exact add.
        "w1p": w1p.astype(compute_dtype), "b1p": b1p,
        "w2p": w2p.astype(compute_dtype), "b2p": b2p,
        "ch": ch, "hidden_pad": hp, "classes_pad": kp,
        "num_classes": num_classes,
    }


def _vmem_capacity_bytes():
    try:
        cap = getattr(pltpu.get_tpu_info(), "vmem_capacity_bytes", None)
        if cap:
            return int(cap)
    except Exception:
        pass
    return 64 << 20   # conservative fallback: v7x per-core VMEM


def _choose_tiles(batch, ch, hw, x_itemsize, kp, resident_bytes, vmem_budget):
    """Pick (TB, THW) so double-buffered x/out tiles + scratch fit next to the
    (single-buffered) resident weights inside the per-core VMEM budget."""
    avail = max(vmem_budget - resident_bytes, 2 << 20)

    def stream_bytes(tb, thw):
        return (2 * tb * ch * thw * x_itemsize      # double-buffered x tile
                + 2 * tb * kp * 4                   # double-buffered out tile
                + tb * ch * 4)                      # pooled f32 accumulator

    # Larger batch tiles amortize per-grid-step overhead; allow 256 only when
    # VMEM is large (v5e/v6e), otherwise cap at 128 (v7x).
    tb_cap = 256 if vmem_budget >= (96 << 20) else 128
    if batch <= 8:
        tb = batch                                  # full dim, no 8-alignment needed
    else:
        tb = min(tb_cap, _round_up(batch, 8))
        # >=2 batch tiles so the "parallel" axis can shard across v7x's cores.
        if pl.cdiv(batch, tb) < 2:
            tb = max(8, _round_up(pl.cdiv(batch, 2), 8))

    thw = hw
    while tb > 8 and stream_bytes(tb, thw) > avail:
        tb = max(8, _round_up(tb // 2, 8))

    # Still too big (huge C*H*W): stream the spatial axis in 128-lane chunks.
    if stream_bytes(tb, thw) > avail and hw > LANE:
        fixed = 2 * tb * kp * 4 + tb * ch * 4
        per_col = 2 * tb * ch * x_itemsize
        thw = max(avail - fixed, per_col * LANE) // per_col // LANE * LANE
        thw = max(LANE, min(thw, hw))
    return tb, thw


# ---------------------------------------------------------------------------
# Forward wrapper.  x: (B, C, H, W) f32/bf16 NCHW -> logits (B, num_classes).
# ---------------------------------------------------------------------------
def clssimp_forward(x, prepped, *, hw_chunk=None):
    B, C, H, W = x.shape
    assert C == prepped["ch"], "channel mismatch with prepared params"
    HW = H * W
    Hp, Kp = prepped["hidden_pad"], prepped["classes_pad"]
    w_itemsize = jnp.dtype(prepped["w1p"].dtype).itemsize
    x_itemsize = jnp.dtype(x.dtype).itemsize

    # Free layout change only (no transpose, no jnp.pad): x is read exactly
    # once, by the kernel's streaming DMA.
    x3 = x.reshape(B, C, HW)

    vmem_budget = int(_vmem_capacity_bytes() * 0.85)
    resident = (C * Hp + Hp * Kp) * w_itemsize + (Hp + Kp) * 4
    TB, THW = _choose_tiles(B, C, HW, x_itemsize, Kp, resident, vmem_budget)
    if hw_chunk is not None:                 # explicit override (tests / tuning)
        assert hw_chunk == HW or hw_chunk % LANE == 0
        THW = hw_chunk
    n_b, n_hw = pl.cdiv(B, TB), pl.cdiv(HW, THW)
    mask_tail = (HW % THW) != 0

    stream = 2 * TB * C * THW * x_itemsize + 2 * TB * Kp * 4 + TB * C * 4
    vmem_limit = int(min(max(2 * resident + stream + (4 << 20), 32 << 20),
                         vmem_budget))

    kernel = functools.partial(_clssimp_kernel, inv_hw=1.0 / HW, hw_chunk=THW,
                               hw_total=HW, mask_tail=mask_tail)

    def run(single_buffer_weights):
        def wspec(shape):
            if single_buffer_weights:
                # Constant blocks never change: one VMEM buffer is enough,
                # freeing VMEM for bigger x tiles (matters on v7x's 64 MiB).
                return pl.BlockSpec(shape, lambda b, h: (0,) * len(shape),
                                    pipeline_mode=pl.Buffered(buffer_count=1))
            return pl.BlockSpec(shape, lambda b, h: (0,) * len(shape))

        return pl.pallas_call(
            kernel,
            out_shape=jax.ShapeDtypeStruct((B, Kp), jnp.float32),
            grid=(n_b, n_hw),
            in_specs=[
                pl.BlockSpec((TB, C, THW), lambda b, h: (b, 0, h)),  # streamed
                wspec((C, Hp)),                                      # resident
                wspec((1, Hp)),
                wspec((Hp, Kp)),
                wspec((1, Kp)),
            ],
            out_specs=pl.BlockSpec((TB, Kp), lambda b, h: (b, 0)),
            scratch_shapes=[pltpu.VMEM((TB, C), jnp.float32)],
            compiler_params=pltpu.CompilerParams(
                dimension_semantics=("parallel", "arbitrary"),
                vmem_limit_bytes=vmem_limit),
        )(x3, prepped["w1p"], prepped["b1p"], prepped["w2p"], prepped["b2p"])

    try:
        out = run(True)
    except Exception:
        # pipeline_mode=pl.Buffered(1) unsupported here -> default buffering.
        out = run(False)

    return out[:, :prepped["num_classes"]]


# ---------------------------------------------------------------------------
# Init + pure-JAX reference (un-folded, eval-mode BN) for validation.
# ---------------------------------------------------------------------------
def init_params(key, ch, hidden, num_classes):
    k1, k2, k3, k4, k5, k6, k7, k8 = jax.random.split(key, 8)
    return {
        "w1": jax.random.normal(k1, (hidden, ch), jnp.float32) * 0.02,
        "b1": jax.random.normal(k2, (hidden,), jnp.float32) * 0.02,
        "bn_gamma": 1.0 + 0.1 * jax.random.normal(k5, (hidden,), jnp.float32),
        "bn_beta": 0.1 * jax.random.normal(k6, (hidden,), jnp.float32),
        "bn_mean": 0.1 * jax.random.normal(k7, (hidden,), jnp.float32),
        "bn_var": jax.random.uniform(k8, (hidden,), jnp.float32, 0.5, 1.5),
        "w2": jax.random.normal(k3, (num_classes, hidden), jnp.float32) * 0.02,
        "b2": jax.random.normal(k4, (num_classes,), jnp.float32) * 0.02,
    }


def reference_forward(x, params):
    pooled = jnp.mean(x, axis=(2, 3))
    h = pooled @ params["w1"].T + params["b1"]
    h = (h - params["bn_mean"]) / jnp.sqrt(params["bn_var"] + BN_EPS)
    h = h * params["bn_gamma"] + params["bn_beta"]
    h = jnp.maximum(h, 0.0)
    return h @ params["w2"].T + params["b2"]


if __name__ == "__main__":
    HIDDEN, NUM_CLASSES = 1000, 20            # module fixes hidden=1000
    key = jax.random.PRNGKey(0)
    k_x1, k_p1, k_x2, k_p2 = jax.random.split(key, 4)

    # --- small case: single spatial chunk, batch smaller than a tile --------
    B, C, H, W = 2, 256, 8, 8
    x = jax.random.normal(k_x1, (B, C, H, W), jnp.float32)
    params = init_params(k_p1, C, HIDDEN, NUM_CLASSES)
    ref = reference_forward(x, params)

    # f32 weights (tight check)
    out_f32 = clssimp_forward(x, prepare_params(params, jnp.float32))
    jax.block_until_ready(out_f32)
    assert out_f32.shape == (B, NUM_CLASSES)
    assert jnp.allclose(out_f32, ref, atol=5e-4, rtol=2e-3), "f32 mismatch"

    # bf16 weights / MXU (default perf config); pool still accumulates in f32.
    out_bf16 = clssimp_forward(x, prepare_params(params, jnp.bfloat16))
    jax.block_until_ready(out_bf16)
    assert jnp.allclose(out_bf16, ref, atol=5e-3, rtol=5e-2), "bf16 mismatch"

    # --- ragged case: 2 batch tiles (partial tail) + masked spatial chunks --
    B2, C2, H2, W2 = 12, 128, 17, 16          # HW = 272 -> chunks 128,128,16
    x2 = jax.random.normal(k_x2, (B2, C2, H2, W2), jnp.float32)
    params2 = init_params(k_p2, C2, HIDDEN, NUM_CLASSES)
    out2 = clssimp_forward(x2, prepare_params(params2, jnp.float32),
                           hw_chunk=128)
    jax.block_until_ready(out2)
    ref2 = reference_forward(x2, params2)
    assert out2.shape == (B2, NUM_CLASSES)
    assert jnp.allclose(out2, ref2, atol=5e-4, rtol=2e-3), "hw-tiled mismatch"

    print("KERNEL_OK")
</pallas_src>

<mosaic_0001>
module attributes {stable_mosaic.version = 11 : i64} {
  func.func @_clssimp_kernel(%arg0: i32, %arg1: i32, %arg2: memref<2x256x64xf32, #tpu.memory_space<vmem>>, %arg3: memref<256x1024xf32, #tpu.memory_space<vmem>>, %arg4: memref<1x1024xf32, #tpu.memory_space<vmem>>, %arg5: memref<1024x128xf32, #tpu.memory_space<vmem>>, %arg6: memref<1x128xf32, #tpu.memory_space<vmem>>, %arg7: memref<2x128xf32, #tpu.memory_space<vmem>>, %arg8: memref<2x256xf32, #tpu.memory_space<vmem>>) attributes {dimension_semantics = [#tpu.dimension_semantics<parallel>, #tpu.dimension_semantics<arbitrary>], iteration_bounds = array<i64: 1, 1>, scalar_prefetch = 0 : i64, scratch_operands = 1 : i64, tpu.core_type = #tpu.core_type<tc>, window_params = [{transform_indices = @transform_0, window_bounds = array<i64: 2, 256, 64>}, {pipeline_mode = #tpu.pipeline_mode<synchronous>, transform_indices = @transform_1, window_bounds = array<i64: 256, 1024>}, {pipeline_mode = #tpu.pipeline_mode<synchronous>, transform_indices = @transform_2, window_bounds = array<i64: 1, 1024>}, {pipeline_mode = #tpu.pipeline_mode<synchronous>, transform_indices = @transform_3, window_bounds = array<i64: 1024, 128>}, {pipeline_mode = #tpu.pipeline_mode<synchronous>, transform_indices = @transform_4, window_bounds = array<i64: 1, 128>}, {transform_indices = @transform_5, window_bounds = array<i64: 2, 128>}]} {
    %c0_i32 = arith.constant 0 : i32
    %0 = arith.cmpi eq, %arg1, %c0_i32 : i32
    %1 = arith.extui %0 : i1 to i32
    %c0_i32_0 = arith.constant 0 : i32
    %2 = arith.cmpi ne, %1, %c0_i32_0 : i32
    scf.if %2 {
      %cst_9 = arith.constant 0.000000e+00 : f32
      %11 = vector.broadcast %cst_9 : f32 to vector<2x256xf32>
      %c0_10 = arith.constant 0 : index
      %c0_11 = arith.constant 0 : index
      %12 = vector.load %arg8[%c0_10, %c0_11] : memref<2x256xf32, #tpu.memory_space<vmem>>, vector<2x256xf32>
      tpu.vector_store %arg8[%c0_10, %c0_11], %11 {strides = array<i32>} : memref<2x256xf32, #tpu.memory_space<vmem>>, vector<2x256xf32>,
    } else {
    }
    %c0 = arith.constant 0 : index
    %c0_1 = arith.constant 0 : index
    %c0_2 = arith.constant 0 : index
    %3 = vector.load %arg2[%c0, %c0_1, %c0_2] : memref<2x256x64xf32, #tpu.memory_space<vmem>>, vector<2x256x64xf32>
    %c0_3 = arith.constant 0 : index
    %c0_4 = arith.constant 0 : index
    %4 = vector.load %arg8[%c0_3, %c0_4] : memref<2x256xf32, #tpu.memory_space<vmem>>, vector<2x256xf32>
    %cst = arith.constant dense<0.000000e+00> : vector<2x256xf32>
    %5 = vector.multi_reduction <add>, %3, %cst [2] : vector<2x256x64xf32> to vector<2x256xf32>
    %6 = arith.addf %4, %5 : vector<2x256xf32>
    %c0_5 = arith.constant 0 : index
    %c0_6 = arith.constant 0 : index
    %7 = vector.load %arg8[%c0_5, %c0_6] : memref<2x256xf32, #tpu.memory_space<vmem>>, vector<2x256xf32>
    tpu.vector_store %arg8[%c0_5, %c0_6], %6 {strides = array<i32>} : memref<2x256xf32, #tpu.memory_space<vmem>>, vector<2x256xf32>,
    %c0_i32_7 = arith.constant 0 : i32
    %8 = arith.cmpi eq, %arg1, %c0_i32_7 : i32
    %9 = arith.extui %8 : i1 to i32
    %c0_i32_8 = arith.constant 0 : i32
    %10 = arith.cmpi ne, %9, %c0_i32_8 : i32
    scf.if %10 {
      %c0_9 = arith.constant 0 : index
      %c0_10 = arith.constant 0 : index
      %11 = vector.load %arg8[%c0_9, %c0_10] : memref<2x256xf32, #tpu.memory_space<vmem>>, vector<2x256xf32>
      %cst_11 = arith.constant 1.562500e-02 : f32
      %12 = vector.broadcast %cst_11 : f32 to vector<2x256xf32>
      %13 = arith.mulf %11, %12 : vector<2x256xf32>
      %c0_12 = arith.constant 0 : index
      %c0_13 = arith.constant 0 : index
      %14 = vector.load %arg3[%c0_12, %c0_13] : memref<256x1024xf32, #tpu.memory_space<vmem>>, vector<256x1024xf32>
      %cst_14 = arith.constant dense<0.000000e+00> : vector<2x1024xf32>
      %15 = tpu.matmul %13, %14, %cst_14 {dimension_numbers = #tpu.dot_dimension_numbers<[1], [0], [0], [1], [0, 0, 1, 1], [], []>} : vector<2x256xf32>, vector<256x1024xf32>, vector<2x1024xf32> -> vector<2x1024xf32>
      %c0_15 = arith.constant 0 : index
      %c0_16 = arith.constant 0 : index
      %16 = vector.load %arg4[%c0_15, %c0_16] : memref<1x1024xf32, #tpu.memory_space<vmem>>, vector<1x1024xf32>
      %17 = vector.broadcast %16 : vector<1x1024xf32> to vector<2x1024xf32>
      %18 = arith.addf %15, %17 : vector<2x1024xf32>
      %cst_17 = arith.constant 0.000000e+00 : f32
      %19 = vector.broadcast %cst_17 : f32 to vector<2x1024xf32>
      %20 = arith.maximumf %18, %19 : vector<2x1024xf32>
      %c0_18 = arith.constant 0 : index
      %c0_19 = arith.constant 0 : index
      %21 = vector.load %arg5[%c0_18, %c0_19] : memref<1024x128xf32, #tpu.memory_space<vmem>>, vector<1024x128xf32>
      %cst_20 = arith.constant dense<0.000000e+00> : vector<2x128xf32>
      %22 = tpu.matmul %20, %21, %cst_20 {dimension_numbers = #tpu.dot_dimension_numbers<[1], [0], [0], [1], [0, 0, 1, 1], [], []>} : vector<2x1024xf32>, vector<1024x128xf32>, vector<2x128xf32> -> vector<2x128xf32>
      %c0_21 = arith.constant 0 : index
      %c0_22 = arith.constant 0 : index
      %23 = vector.load %arg6[%c0_21, %c0_22] : memref<1x128xf32, #tpu.memory_space<vmem>>, vector<1x128xf32>
      %24 = vector.broadcast %23 : vector<1x128xf32> to vector<2x128xf32>
      %25 = arith.addf %22, %24 : vector<2x128xf32>
      %c0_23 = arith.constant 0 : index
      %c0_24 = arith.constant 0 : index
      %26 = vector.load %arg7[%c0_23, %c0_24] : memref<2x128xf32, #tpu.memory_space<vmem>>, vector<2x128xf32>
      tpu.vector_store %arg7[%c0_23, %c0_24], %25 {strides = array<i32>} : memref<2x128xf32, #tpu.memory_space<vmem>>, vector<2x128xf32>,
    } else {
    }
    return
  }
  func.func @transform_0(%arg0: i32, %arg1: i32) -> (i32, i32, i32) {
    %c0_i32 = arith.constant 0 : i32
    %c0_i32_0 = arith.constant 0 : i32
    return %arg0, %c0_i32, %arg1 : i32, i32, i32
  }
  func.func @transform_1(%arg0: i32, %arg1: i32) -> (i32, i32) {
    %c0_i32 = arith.constant 0 : i32
    %c0_i32_0 = arith.constant 0 : i32
    %c0_i32_1 = arith.constant 0 : i32
    return %c0_i32, %c0_i32_0 : i32, i32
  }
  func.func @transform_2(%arg0: i32, %arg1: i32) -> (i32, i32) {
    %c0_i32 = arith.constant 0 : i32
    %c0_i32_0 = arith.constant 0 : i32
    %c0_i32_1 = arith.constant 0 : i32
    return %c0_i32, %c0_i32_0 : i32, i32
  }
  func.func @transform_3(%arg0: i32, %arg1: i32) -> (i32, i32) {
    %c0_i32 = arith.constant 0 : i32
    %c0_i32_0 = arith.constant 0 : i32
    %c0_i32_1 = arith.constant 0 : i32
    return %c0_i32, %c0_i32_0 : i32, i32
  }
  func.func @transform_4(%arg0: i32, %arg1: i32) -> (i32, i32) {
    %c0_i32 = arith.constant 0 : i32
    %c0_i32_0 = arith.constant 0 : i32
    %c0_i32_1 = arith.constant 0 : i32
    return %c0_i32, %c0_i32_0 : i32, i32
  }
  func.func @transform_5(%arg0: i32, %arg1: i32) -> (i32, i32) {
    %c0_i32 = arith.constant 0 : i32
    %c0_i32_0 = arith.constant 0 : i32
    return %arg0, %c0_i32 : i32, i32
  }
}

module attributes {stable_mosaic.version = 11 : i64} {
  func.func @_clssimp_kernel(%arg0: i32, %arg1: i32, %arg2: memref<2x256x64xf32, #tpu.memory_space<vmem>>, %arg3: memref<256x1024xf32, #tpu.memory_space<vmem>>, %arg4: memref<1x1024xf32, #tpu.memory_space<vmem>>, %arg5: memref<1024x128xf32, #tpu.memory_space<vmem>>, %arg6: memref<1x128xf32, #tpu.memory_space<vmem>>, %arg7: memref<2x128xf32, #tpu.memory_space<vmem>>, %arg8: memref<2x256xf32, #tpu.memory_space<vmem>>) attributes {dimension_semantics = [#tpu.dimension_semantics<parallel>, #tpu.dimension_semantics<arbitrary>], iteration_bounds = array<i64: 1, 1>, scalar_prefetch = 0 : i64, scratch_operands = 1 : i64, tpu.core_type = #tpu.core_type<tc>, window_params = [{transform_indices = @transform_0, window_bounds = array<i64: 2, 256, 64>}, {pipeline_mode = #tpu.pipeline_mode<synchronous>, transform_indices = @transform_1, window_bounds = array<i64: 256, 1024>}, {pipeline_mode = #tpu.pipeline_mode<synchronous>, transform_indices = @transform_2, window_bounds = array<i64: 1, 1024>}, {pipeline_mode = #tpu.pipeline_mode<synchronous>, transform_indices = @transform_3, window_bounds = array<i64: 1024, 128>}, {pipeline_mode = #tpu.pipeline_mode<synchronous>, transform_indices = @transform_4, window_bounds = array<i64: 1, 128>}, {transform_indices = @transform_5, window_bounds = array<i64: 2, 128>}]} {
    %c0_i32 = arith.constant 0 : i32
    %0 = arith.cmpi eq, %arg1, %c0_i32 : i32
    %1 = arith.extui %0 : i1 to i32
    %c0_i32_0 = arith.constant 0 : i32
    %2 = arith.cmpi ne, %1, %c0_i32_0 : i32
    scf.if %2 {
      %cst_9 = arith.constant 0.000000e+00 : f32
      %11 = vector.broadcast %cst_9 : f32 to vector<2x256xf32>
      %c0_10 = arith.constant 0 : index
      %c0_11 = arith.constant 0 : index
      %12 = vector.load %arg8[%c0_10, %c0_11] : memref<2x256xf32, #tpu.memory_space<vmem>>, vector<2x256xf32>
      tpu.vector_store %arg8[%c0_10, %c0_11], %11 {strides = array<i32>} : memref<2x256xf32, #tpu.memory_space<vmem>>, vector<2x256xf32>,
    } else {
    }
    %c0 = arith.constant 0 : index
    %c0_1 = arith.constant 0 : index
    %c0_2 = arith.constant 0 : index
    %3 = vector.load %arg2[%c0, %c0_1, %c0_2] : memref<2x256x64xf32, #tpu.memory_space<vmem>>, vector<2x256x64xf32>
    %c0_3 = arith.constant 0 : index
    %c0_4 = arith.constant 0 : index
    %4 = vector.load %arg8[%c0_3, %c0_4] : memref<2x256xf32, #tpu.memory_space<vmem>>, vector<2x256xf32>
    %cst = arith.constant dense<0.000000e+00> : vector<2x256xf32>
    %5 = vector.multi_reduction <add>, %3, %cst [2] : vector<2x256x64xf32> to vector<2x256xf32>
    %6 = arith.addf %4, %5 : vector<2x256xf32>
    %c0_5 = arith.constant 0 : index
    %c0_6 = arith.constant 0 : index
    %7 = vector.load %arg8[%c0_5, %c0_6] : memref<2x256xf32, #tpu.memory_space<vmem>>, vector<2x256xf32>
    tpu.vector_store %arg8[%c0_5, %c0_6], %6 {strides = array<i32>} : memref<2x256xf32, #tpu.memory_space<vmem>>, vector<2x256xf32>,
    %c0_i32_7 = arith.constant 0 : i32
    %8 = arith.cmpi eq, %arg1, %c0_i32_7 : i32
    %9 = arith.extui %8 : i1 to i32
    %c0_i32_8 = arith.constant 0 : i32
    %10 = arith.cmpi ne, %9, %c0_i32_8 : i32
    scf.if %10 {
      %c0_9 = arith.constant 0 : index
      %c0_10 = arith.constant 0 : index
      %11 = vector.load %arg8[%c0_9, %c0_10] : memref<2x256xf32, #tpu.memory_space<vmem>>, vector<2x256xf32>
      %cst_11 = arith.constant 1.562500e-02 : f32
      %12 = vector.broadcast %cst_11 : f32 to vector<2x256xf32>
      %13 = arith.mulf %11, %12 : vector<2x256xf32>
      %c0_12 = arith.constant 0 : index
      %c0_13 = arith.constant 0 : index
      %14 = vector.load %arg3[%c0_12, %c0_13] : memref<256x1024xf32, #tpu.memory_space<vmem>>, vector<256x1024xf32>
      %cst_14 = arith.constant dense<0.000000e+00> : vector<2x1024xf32>
      %15 = tpu.matmul %13, %14, %cst_14 {dimension_numbers = #tpu.dot_dimension_numbers<[1], [0], [0], [1], [0, 0, 1, 1], [], []>} : vector<2x256xf32>, vector<256x1024xf32>, vector<2x1024xf32> -> vector<2x1024xf32>
      %c0_15 = arith.constant 0 : index
      %c0_16 = arith.constant 0 : index
      %16 = vector.load %arg4[%c0_15, %c0_16] : memref<1x1024xf32, #tpu.memory_space<vmem>>, vector<1x1024xf32>
      %17 = vector.broadcast %16 : vector<1x1024xf32> to vector<2x1024xf32>
      %18 = arith.addf %15, %17 : vector<2x1024xf32>
      %cst_17 = arith.constant 0.000000e+00 : f32
      %19 = vector.broadcast %cst_17 : f32 to vector<2x1024xf32>
      %20 = arith.maximumf %18, %19 : vector<2x1024xf32>
      %c0_18 = arith.constant 0 : index
      %c0_19 = arith.constant 0 : index
      %21 = vector.load %arg5[%c0_18, %c0_19] : memref<1024x128xf32, #tpu.memory_space<vmem>>, vector<1024x128xf32>
      %cst_20 = arith.constant dense<0.000000e+00> : vector<2x128xf32>
      %22 = tpu.matmul %20, %21, %cst_20 {dimension_numbers = #tpu.dot_dimension_numbers<[1], [0], [0], [1], [0, 0, 1, 1], [], []>} : vector<2x1024xf32>, vector<1024x128xf32>, vector<2x128xf32> -> vector<2x128xf32>
      %c0_21 = arith.constant 0 : index
      %c0_22 = arith.constant 0 : index
      %23 = vector.load %arg6[%c0_21, %c0_22] : memref<1x128xf32, #tpu.memory_space<vmem>>, vector<1x128xf32>
      %24 = vector.broadcast %23 : vector<1x128xf32> to vector<2x128xf32>
      %25 = arith.addf %22, %24 : vector<2x128xf32>
      %c0_23 = arith.constant 0 : index
      %c0_24 = arith.constant 0 : index
      %26 = vector.load %arg7[%c0_23, %c0_24] : memref<2x128xf32, #tpu.memory_space<vmem>>, vector<2x128xf32>
      tpu.vector_store %arg7[%c0_23, %c0_24], %25 {strides = array<i32>} : memref<2x128xf32, #tpu.memory_space<vmem>>, vector<2x128xf32>,
    } else {
    }
    return
  }
  func.func @transform_0(%arg0: i32, %arg1: i32) -> (i32, i32, i32) {
    %c0_i32 = arith.constant 0 : i32
    %c0_i32_0 = arith.constant 0 : i32
    return %arg0, %c0_i32, %arg1 : i32, i32, i32
  }
  func.func @transform_1(%arg0: i32, %arg1: i32) -> (i32, i32) {
    %c0_i32 = arith.constant 0 : i32
    %c0_i32_0 = arith.constant 0 : i32
    %c0_i32_1 = arith.constant 0 : i32
    return %c0_i32, %c0_i32_0 : i32, i32
  }
  func.func @transform_2(%arg0: i32, %arg1: i32) -> (i32, i32) {
    %c0_i32 = arith.constant 0 : i32
    %c0_i32_0 = arith.constant 0 : i32
    %c0_i32_1 = arith.constant 0 : i32
    return %c0_i32, %c0_i32_0 : i32, i32
  }
  func.func @transform_3(%arg0: i32, %arg1: i32) -> (i32, i32) {
    %c0_i32 = arith.constant 0 : i32
    %c0_i32_0 = arith.constant 0 : i32
    %c0_i32_1 = arith.constant 0 : i32
    return %c0_i32, %c0_i32_0 : i32, i32
  }
  func.func @transform_4(%arg0: i32, %arg1: i32) -> (i32, i32) {
    %c0_i32 = arith.constant 0 : i32
    %c0_i32_0 = arith.constant 0 : i32
    %c0_i32_1 = arith.constant 0 : i32
    return %c0_i32, %c0_i32_0 : i32, i32
  }
  func.func @transform_5(%arg0: i32, %arg1: i32) -> (i32, i32) {
    %c0_i32 = arith.constant 0 : i32
    %c0_i32_0 = arith.constant 0 : i32
    return %arg0, %c0_i32 : i32, i32
  }
}

</mosaic_0001>

<llo_original>
// kernel: tpu_custom_call.1
$region0: #{tpu_custom_call.1}
  #allocation0 [shape = 'u32[]', space=smem, size = 0x4, offset = 0x4, fixed_abs, tag = 'smem constant byte address 0x4 - core index']
  #allocation1 [shape = 'u32[144,128]{1,0:T(1,128)}', space=vmem, size = 0x12000, scoped, tag = 'internal scratch']
  #allocation2 [shape = 'f32[2,256]{1,0:T(2,128)}', space=vmem, size = 0x800, scoped, tag = 'scratch operand']
  %s0 = inlined_call_operand.vmem [shape: f32[2,256,64], index: 0, kind: input, shape index: {}]
  %s1 = inlined_call_operand.hbm [shape: f32[256,1024], index: 1, kind: input, shape index: {}]
  %s2 = inlined_call_operand.vmem [shape: f32[1,1024], index: 2, kind: input, shape index: {}]
  %s3 = inlined_call_operand.hbm [shape: f32[1024,128], index: 3, kind: input, shape index: {}]
  %s4 = inlined_call_operand.vmem [shape: f32[1,128], index: 4, kind: input, shape index: {}]
  %s5 = inlined_call_operand.hbm [shape: f32[2,128], index: 5, kind: output, shape index: {}]
  %s6 = sld [smem:[#allocation0]]
  $region46: #{tpu_custom_call.1} parent=0
    _
  %s8 = ssub.s32 1, %s6
  %s9 = scalar_select 0, %s8, %s6
  $region1: #{tpu_custom_call.1} parent=0
    #allocation3 [shape = 'u8[1048576]{0}', space=vmem, size = 0x100000, scoped, tag = 'input window, operand 1, single buffered']
    #allocation4 [shape = 's32[1]{0}', space=sflag, size = 0x4, scoped, tag = 'scoped memory for tpu_custom_call.1']
    #allocation5 [shape = 's32[1]{0}', space=sflag, size = 0x4, scoped, tag = 'scoped memory for tpu_custom_call.1']
    #allocation6 [shape = 'u8[524288]{0}', space=vmem, size = 0x80000, scoped, tag = 'input window, operand 3, single buffered']
    #allocation7 [shape = 's32[1]{0}', space=sflag, size = 0x4, scoped, tag = 'scoped memory for tpu_custom_call.1']
    #allocation8 [shape = 'u8[1024]{0}', space=vmem, size = 0x400, scoped, tag = 'output window, operand 0, single buffered']
    %10 = vsyncpa [#allocation4], 0
    %11 = vsyncpa [#allocation7], 0
    %12 = vsyncpa [#allocation5], 0
    // Predicated region
    $region2: #{tpu_custom_call.1} parent=1 // pred_check
      _
    $region3: #{tpu_custom_call.1} parent=1 // pred_check_branch
      %14 = sbr.rel (0) target = $region5
    $region4: #{tpu_custom_call.1} parent=1 // pred_region
      _
    $region5: #{tpu_custom_call.1} parent=1 // pred_fallthru
      _
    // Predicated region
    $region6: #{tpu_custom_call.1} parent=1 // pred_check
      _
    $region7: #{tpu_custom_call.1} parent=1 // pred_check_branch
      %16 = sbr.rel (0) target = $region9
    $region8: #{tpu_custom_call.1} parent=1 // pred_region
      %s18 = ssub.s32 32768, 32768
      %19 = vsyncadd [#allocation4], %s18
      %s20 = sshll.u32 [#allocation3], 4
      %s21 = int_to_ptr.vmem [resolvable:$true] %s20
      %26 = dma.hbm_to_vmem [thread:$0]  %s1, 32768, %s21, [#allocation4], 1024, 1024, 64
    $region9: #{tpu_custom_call.1} parent=1 // pred_fallthru
      _
    // Predicated region
    $region10: #{tpu_custom_call.1} parent=1 // pred_check
      _
    $region11: #{tpu_custom_call.1} parent=1 // pred_check_branch
      %28 = sbr.rel (0) target = $region13
    $region12: #{tpu_custom_call.1} parent=1 // pred_region
      _
    $region13: #{tpu_custom_call.1} parent=1 // pred_fallthru
      _
    // Predicated region
    $region14: #{tpu_custom_call.1} parent=1 // pred_check
      _
    $region15: #{tpu_custom_call.1} parent=1 // pred_check_branch
      %30 = sbr.rel (0) target = $region17
    $region16: #{tpu_custom_call.1} parent=1 // pred_region
      %s32 = ssub.s32 16384, 16384
      %33 = vsyncadd [#allocation7], %s32
      %s34 = sshll.u32 [#allocation6], 4
      %s35 = int_to_ptr.vmem [resolvable:$true] %s34
      %40 = dma.hbm_to_vmem [thread:$0]  %s3, 16384, %s35, [#allocation7], 128, 128, 8
    $region17: #{tpu_custom_call.1} parent=1 // pred_fallthru
      _
    // Predicated region
    $region18: #{tpu_custom_call.1} parent=1 // pred_check
      _
    $region19: #{tpu_custom_call.1} parent=1 // pred_check_branch
      %42 = sbr.rel (0) target = $region21
    $region20: #{tpu_custom_call.1} parent=1 // pred_region
      _
    $region21: #{tpu_custom_call.1} parent=1 // pred_fallthru
      _
    // Predicated region
    $region22: #{tpu_custom_call.1} parent=1 // pred_check
      _
    $region23: #{tpu_custom_call.1} parent=1 // pred_check_branch
      %44 = sbr.rel (0) target = $region25
    $region24: #{tpu_custom_call.1} parent=1 // pred_region
      %45 = dma.done [#allocation4], 32768
    $region25: #{tpu_custom_call.1} parent=1 // pred_fallthru
      _
    // Predicated region
    $region26: #{tpu_custom_call.1} parent=1 // pred_check
      _
    $region27: #{tpu_custom_call.1} parent=1 // pred_check_branch
      %47 = sbr.rel (0) target = $region29
    $region28: #{tpu_custom_call.1} parent=1 // pred_region
      %48 = dma.done [#allocation7], 16384
    $region29: #{tpu_custom_call.1} parent=1 // pred_fallthru
      _
    %p49 = scmp.eq.s32.totalorder 0, 0
    // Predicated region
    $region30: #{tpu_custom_call.1} parent=1 // pred_check
      %p50 = pneg %p49
    $region31: #{tpu_custom_call.1} parent=1 // pred_check_branch
      %52 = sbr.rel (%p50) target = $region33
    $region32: #{tpu_custom_call.1} parent=1 // pred_region
      %53 = vst [vmem:[#allocation2] sm:$0xf] 0.0
    $region33: #{tpu_custom_call.1} parent=1 // pred_fallthru
      _
    %v54 = vld [vmem:[%s0] sm:$0xff]
    %v55 = vld [vmem:[%s0 + $0x8] sm:$0xff]
    %v56 = vld [vmem:[%s0 + $0x10] sm:$0xff]
    %v57 = vld [vmem:[%s0 + $0x18] sm:$0xff]
    %v58 = vld [vmem:[%s0 + $0x20] sm:$0xff]
    %v59 = vld [vmem:[%s0 + $0x28] sm:$0xff]
    %v60 = vld [vmem:[%s0 + $0x30] sm:$0xff]
    %v61 = vld [vmem:[%s0 + $0x38] sm:$0xff]
    %v62 = vld [vmem:[%s0 + $0x40] sm:$0xff]
    %v63 = vld [vmem:[%s0 + $0x48] sm:$0xff]
    %v64 = vld [vmem:[%s0 + $0x50] sm:$0xff]
    %v65 = vld [vmem:[%s0 + $0x58] sm:$0xff]
    %v66 = vld [vmem:[%s0 + $0x60] sm:$0xff]
    %v67 = vld [vmem:[%s0 + $0x68] sm:$0xff]
    %v68 = vld [vmem:[%s0 + $0x70] sm:$0xff]
    %v69 = vld [vmem:[%s0 + $0x78] sm:$0xff]
    %v70 = vld [vmem:[%s0 + $0x80] sm:$0xff]
    %v71 = vld [vmem:[%s0 + $0x88] sm:$0xff]
    %v72 = vld [vmem:[%s0 + $0x90] sm:$0xff]
    %v73 = vld [vmem:[%s0 + $0x98] sm:$0xff]
    %v74 = vld [vmem:[%s0 + $0xa0] sm:$0xff]
    %v75 = vld [vmem:[%s0 + $0xa8] sm:$0xff]
    %v76 = vld [vmem:[%s0 + $0xb0] sm:$0xff]
    %v77 = vld [vmem:[%s0 + $0xb8] sm:$0xff]
    %v78 = vld [vmem:[%s0 + $0xc0] sm:$0xff]
    %v79 = vld [vmem:[%s0 + $0xc8] sm:$0xff]
    %v80 = vld [vmem:[%s0 + $0xd0] sm:$0xff]
    %v81 = vld [vmem:[%s0 + $0xd8] sm:$0xff]
    %v82 = vld [vmem:[%s0 + $0xe0] sm:$0xff]
    %v83 = vld [vmem:[%s0 + $0xe8] sm:$0xff]
    %v84 = vld [vmem:[%s0 + $0xf0] sm:$0xff]
    %v85 = vld [vmem:[%s0 + $0xf8] sm:$0xff]
    %v86 = vld [vmem:[%s0 + $0x100] sm:$0xff]
    %v87 = vld [vmem:[%s0 + $0x108] sm:$0xff]
    %v88 = vld [vmem:[%s0 + $0x110] sm:$0xff]
    %v89 = vld [vmem:[%s0 + $0x118] sm:$0xff]
    %v90 = vld [vmem:[%s0 + $0x120] sm:$0xff]
    %v91 = vld [vmem:[%s0 + $0x128] sm:$0xff]
    %v92 = vld [vmem:[%s0 + $0x130] sm:$0xff]
    %v93 = vld [vmem:[%s0 + $0x138] sm:$0xff]
    %v94 = vld [vmem:[%s0 + $0x140] sm:$0xff]
    %v95 = vld [vmem:[%s0 + $0x148] sm:$0xff]
    %v96 = vld [vmem:[%s0 + $0x150] sm:$0xff]
    %v97 = vld [vmem:[%s0 + $0x158] sm:$0xff]
    %v98 = vld [vmem:[%s0 + $0x160] sm:$0xff]
    %v99 = vld [vmem:[%s0 + $0x168] sm:$0xff]
    %v100 = vld [vmem:[%s0 + $0x170] sm:$0xff]
    %v101 = vld [vmem:[%s0 + $0x178] sm:$0xff]
    %v102 = vld [vmem:[%s0 + $0x180] sm:$0xff]
    %v103 = vld [vmem:[%s0 + $0x188] sm:$0xff]
    %v104 = vld [vmem:[%s0 + $0x190] sm:$0xff]
    %v105 = vld [vmem:[%s0 + $0x198] sm:$0xff]
    %v106 = vld [vmem:[%s0 + $0x1a0] sm:$0xff]
    %v107 = vld [vmem:[%s0 + $0x1a8] sm:$0xff]
    %v108 = vld [vmem:[%s0 + $0x1b0] sm:$0xff]
    %v109 = vld [vmem:[%s0 + $0x1b8] sm:$0xff]
    %v110 = vld [vmem:[%s0 + $0x1c0] sm:$0xff]
    %v111 = vld [vmem:[%s0 + $0x1c8] sm:$0xff]
    %v112 = vld [vmem:[%s0 + $0x1d0] sm:$0xff]
    %v113 = vld [vmem:[%s0 + $0x1d8] sm:$0xff]
    %v114 = vld [vmem:[%s0 + $0x1e0] sm:$0xff]
    %v115 = vld [vmem:[%s0 + $0x1e8] sm:$0xff]
    %v116 = vld [vmem:[%s0 + $0x1f0] sm:$0xff]
    %v117 = vld [vmem:[%s0 + $0x1f8] sm:$0xff]
    %v118 = vld [vmem:[#allocation2] sm:$0xf]
    %vm119 = vcmask 523264
    %v120 = vsel %vm119, %v54, 0.0
    %121 = vadd.xlane.f32.xlu0 %v120
    %v122 = vpop.xlane.xlu0 %121
    %v123 = vsel %vm119, %v55, 0.0
    %124 = vadd.xlane.f32.xlu0 %v123
    %v125 = vpop.xlane.xlu0 %124
    %v126 = vsel %vm119, %v56, 0.0
    %127 = vadd.xlane.f32.xlu0 %v126
    %v128 = vpop.xlane.xlu0 %127
    %v129 = vsel %vm119, %v57, 0.0
    %130 = vadd.xlane.f32.xlu0 %v129
    %v131 = vpop.xlane.xlu0 %130
    %v132 = vsel %vm119, %v58, 0.0
    %133 = vadd.xlane.f32.xlu0 %v132
    %v134 = vpop.xlane.xlu0 %133
    %v135 = vsel %vm119, %v59, 0.0
    %136 = vadd.xlane.f32.xlu0 %v135
    %v137 = vpop.xlane.xlu0 %136
    %v138 = vsel %vm119, %v60, 0.0
    %139 = vadd.xlane.f32.xlu0 %v138
    %v140 = vpop.xlane.xlu0 %139
    %v141 = vsel %vm119, %v61, 0.0
    %142 = vadd.xlane.f32.xlu0 %v141
    %v143 = vpop.xlane.xlu0 %142
    %v144 = vsel %vm119, %v62, 0.0
    %145 = vadd.xlane.f32.xlu0 %v144
    %v146 = vpop.xlane.xlu0 %145
    %v147 = vsel %vm119, %v63, 0.0
    %148 = vadd.xlane.f32.xlu0 %v147
    %v149 = vpop.xlane.xlu0 %148
    %v150 = vsel %vm119, %v64, 0.0
    %151 = vadd.xlane.f32.xlu0 %v150
    %v152 = vpop.xlane.xlu0 %151
    %v153 = vsel %vm119, %v65, 0.0
    %154 = vadd.xlane.f32.xlu0 %v153
    %v155 = vpop.xlane.xlu0 %154
    %v156 = vsel %vm119, %v66, 0.0
    %157 = vadd.xlane.f32.xlu0 %v156
    %v158 = vpop.xlane.xlu0 %157
    %v159 = vsel %vm119, %v67, 0.0
    %160 = vadd.xlane.f32.xlu0 %v159
    %v161 = vpop.xlane.xlu0 %160
    %v162 = vsel %vm119, %v68, 0.0
    %163 = vadd.xlane.f32.xlu0 %v162
    %v164 = vpop.xlane.xlu0 %163
    %v165 = vsel %vm119, %v69, 0.0
    %166 = vadd.xlane.f32.xlu0 %v165
    %v167 = vpop.xlane.xlu0 %166
    %v168 = vsel %vm119, %v70, 0.0
    %169 = vadd.xlane.f32.xlu0 %v168
    %v170 = vpop.xlane.xlu0 %169
    %v171 = vsel %vm119, %v71, 0.0
    %172 = vadd.xlane.f32.xlu0 %v171
    %v173 = vpop.xlane.xlu0 %172
    %v174 = vsel %vm119, %v72, 0.0
    %175 = vadd.xlane.f32.xlu0 %v174
    %v176 = vpop.xlane.xlu0 %175
    %v177 = vsel %vm119, %v73, 0.0
    %178 = vadd.xlane.f32.xlu0 %v177
    %v179 = vpop.xlane.xlu0 %178
    %v180 = vsel %vm119, %v74, 0.0
    %181 = vadd.xlane.f32.xlu0 %v180
    %v182 = vpop.xlane.xlu0 %181
    %v183 = vsel %vm119, %v75, 0.0
    %184 = vadd.xlane.f32.xlu0 %v183
    %v185 = vpop.xlane.xlu0 %184
    %v186 = vsel %vm119, %v76, 0.0
    %187 = vadd.xlane.f32.xlu0 %v186
    %v188 = vpop.xlane.xlu0 %187
    %v189 = vsel %vm119, %v77, 0.0
    %190 = vadd.xlane.f32.xlu0 %v189
    %v191 = vpop.xlane.xlu0 %190
    %v192 = vsel %vm119, %v78, 0.0
    %193 = vadd.xlane.f32.xlu0 %v192
    %v194 = vpop.xlane.xlu0 %193
    %v195 = vsel %vm119, %v79, 0.0
    %196 = vadd.xlane.f32.xlu0 %v195
    %v197 = vpop.xlane.xlu0 %196
    %v198 = vsel %vm119, %v80, 0.0
    %199 = vadd.xlane.f32.xlu0 %v198
    %v200 = vpop.xlane.xlu0 %199
    %v201 = vsel %vm119, %v81, 0.0
    %202 = vadd.xlane.f32.xlu0 %v201
    %v203 = vpop.xlane.xlu0 %202
    %v204 = vsel %vm119, %v82, 0.0
    %205 = vadd.xlane.f32.xlu0 %v204
    %v206 = vpop.xlane.xlu0 %205
    %v207 = vsel %vm119, %v83, 0.0
    %208 = vadd.xlane.f32.xlu0 %v207
    %v209 = vpop.xlane.xlu0 %208
    %v210 = vsel %vm119, %v84, 0.0
    %211 = vadd.xlane.f32.xlu0 %v210
    %v212 = vpop.xlane.xlu0 %211
    %v213 = vsel %vm119, %v85, 0.0
    %214 = vadd.xlane.f32.xlu0 %v213
    %v215 = vpop.xlane.xlu0 %214
    %v216 = vsel %vm119, %v86, 0.0
    %217 = vadd.xlane.f32.xlu0 %v216
    %v218 = vpop.xlane.xlu0 %217
    %v219 = vsel %vm119, %v87, 0.0
    %220 = vadd.xlane.f32.xlu0 %v219
    %v221 = vpop.xlane.xlu0 %220
    %v222 = vsel %vm119, %v88, 0.0
    %223 = vadd.xlane.f32.xlu0 %v222
    %v224 = vpop.xlane.xlu0 %223
    %v225 = vsel %vm119, %v89, 0.0
    %226 = vadd.xlane.f32.xlu0 %v225
    %v227 = vpop.xlane.xlu0 %226
    %v228 = vsel %vm119, %v90, 0.0
    %229 = vadd.xlane.f32.xlu0 %v228
    %v230 = vpop.xlane.xlu0 %229
    %v231 = vsel %vm119, %v91, 0.0
    %232 = vadd.xlane.f32.xlu0 %v231
    %v233 = vpop.xlane.xlu0 %232
    %v234 = vsel %vm119, %v92, 0.0
    %235 = vadd.xlane.f32.xlu0 %v234
    %v236 = vpop.xlane.xlu0 %235
    %v237 = vsel %vm119, %v93, 0.0
    %238 = vadd.xlane.f32.xlu0 %v237
    %v239 = vpop.xlane.xlu0 %238
    %v240 = vsel %vm119, %v94, 0.0
    %241 = vadd.xlane.f32.xlu0 %v240
    %v242 = vpop.xlane.xlu0 %241
    %v243 = vsel %vm119, %v95, 0.0
    %244 = vadd.xlane.f32.xlu0 %v243
    %v245 = vpop.xlane.xlu0 %244
    %v246 = vsel %vm119, %v96, 0.0
    %247 = vadd.xlane.f32.xlu0 %v246
    %v248 = vpop.xlane.xlu0 %247
    %v249 = vsel %vm119, %v97, 0.0
    %250 = vadd.xlane.f32.xlu0 %v249
    %v251 = vpop.xlane.xlu0 %250
    %v252 = vsel %vm119, %v98, 0.0
    %253 = vadd.xlane.f32.xlu0 %v252
    %v254 = vpop.xlane.xlu0 %253
    %v255 = vsel %vm119, %v99, 0.0
    %256 = vadd.xlane.f32.xlu0 %v255
    %v257 = vpop.xlane.xlu0 %256
    %v258 = vsel %vm119, %v100, 0.0
    %259 = vadd.xlane.f32.xlu0 %v258
    %v260 = vpop.xlane.xlu0 %259
    %v261 = vsel %vm119, %v101, 0.0
    %262 = vadd.xlane.f32.xlu0 %v261
    %v263 = vpop.xlane.xlu0 %262
    %v264 = vsel %vm119, %v102, 0.0
    %265 = vadd.xlane.f32.xlu0 %v264
    %v266 = vpop.xlane.xlu0 %265
    %v267 = vsel %vm119, %v103, 0.0
    %268 = vadd.xlane.f32.xlu0 %v267
    %v269 = vpop.xlane.xlu0 %268
    %v270 = vsel %vm119, %v104, 0.0
    %271 = vadd.xlane.f32.xlu0 %v270
    %v272 = vpop.xlane.xlu0 %271
    %v273 = vsel %vm119, %v105, 0.0
    %274 = vadd.xlane.f32.xlu0 %v273
    %v275 = vpop.xlane.xlu0 %274
    %v276 = vsel %vm119, %v106, 0.0
    %277 = vadd.xlane.f32.xlu0 %v276
    %v278 = vpop.xlane.xlu0 %277
    %v279 = vsel %vm119, %v107, 0.0
    %280 = vadd.xlane.f32.xlu0 %v279
    %v281 = vpop.xlane.xlu0 %280
    %v282 = vsel %vm119, %v108, 0.0
    %283 = vadd.xlane.f32.xlu0 %v282
    %v284 = vpop.xlane.xlu0 %283
    %v285 = vsel %vm119, %v109, 0.0
    %286 = vadd.xlane.f32.xlu0 %v285
    %v287 = vpop.xlane.xlu0 %286
    %v288 = vsel %vm119, %v110, 0.0
    %289 = vadd.xlane.f32.xlu0 %v288
    %v290 = vpop.xlane.xlu0 %289
    %v291 = vsel %vm119, %v111, 0.0
    %292 = vadd.xlane.f32.xlu0 %v291
    %v293 = vpop.xlane.xlu0 %292
    %v294 = vsel %vm119, %v112, 0.0
    %295 = vadd.xlane.f32.xlu0 %v294
    %v296 = vpop.xlane.xlu0 %295
    %v297 = vsel %vm119, %v113, 0.0
    %298 = vadd.xlane.f32.xlu0 %v297
    %v299 = vpop.xlane.xlu0 %298
    %v300 = vsel %vm119, %v114, 0.0
    %301 = vadd.xlane.f32.xlu0 %v300
    %v302 = vpop.xlane.xlu0 %301
    %v303 = vsel %vm119, %v115, 0.0
    %304 = vadd.xlane.f32.xlu0 %v303
    %v305 = vpop.xlane.xlu0 %304
    %v306 = vsel %vm119, %v116, 0.0
    %307 = vadd.xlane.f32.xlu0 %v306
    %v308 = vpop.xlane.xlu0 %307
    %v309 = vsel %vm119, %v117, 0.0
    %310 = vadd.xlane.f32.xlu0 %v309
    %v311 = vpop.xlane.xlu0 %310
    %v377 = vunpack.c.l.s4 269488144
    %v378 = vunpack.c.0.s8 %v377
    %v379 = vlaneseq
    %v380 = vshrl.u32 %v379, 7
    %v381 = vsub.s32 %v378, %v380
    %v382 = vrot.slane %v122, %v381
    %v384 = vunpack.c.l.s4 842150450
    %v385 = vunpack.c.0.s8 %v384
    %v386 = vlaneseq
    %v387 = vshrl.u32 %v386, 7
    %v388 = vsub.s32 %v385, %v387
    %v389 = vrot.slane %v122, %v388
    %v391 = vunpack.c.l.s4 1414812756
    %v392 = vunpack.c.0.s8 %v391
    %v393 = vlaneseq
    %v394 = vshrl.u32 %v393, 7
    %v395 = vsub.s32 %v392, %v394
    %v396 = vrot.slane %v122, %v395
    %v398 = vunpack.c.l.s4 1987475062
    %v399 = vunpack.c.0.s8 %v398
    %v400 = vlaneseq
    %v401 = vshrl.u32 %v400, 7
    %v402 = vsub.s32 %v399, %v401
    %v403 = vrot.slane %v122, %v402
    %v405 = vunpack.c.l.s4 269488144
    %v406 = vunpack.c.0.s8 %v405
    %v407 = vlaneseq
    %v408 = vshrl.u32 %v407, 7
    %v409 = vsub.s32 %v406, %v408
    %v410 = vrot.slane %v125, %v409
    %v412 = vunpack.c.l.s4 842150450
    %v413 = vunpack.c.0.s8 %v412
    %v414 = vlaneseq
    %v415 = vshrl.u32 %v414, 7
    %v416 = vsub.s32 %v413, %v415
    %v417 = vrot.slane %v125, %v416
    %v419 = vunpack.c.l.s4 1414812756
    %v420 = vunpack.c.0.s8 %v419
    %v421 = vlaneseq
    %v422 = vshrl.u32 %v421, 7
    %v423 = vsub.s32 %v420, %v422
    %v424 = vrot.slane %v125, %v423
    %v426 = vunpack.c.l.s4 1987475062
    %v427 = vunpack.c.0.s8 %v426
    %v428 = vlaneseq
    %v429 = vshrl.u32 %v428, 7
    %v430 = vsub.s32 %v427, %v429
    %v431 = vrot.slane %v125, %v430
    %v433 = vunpack.c.l.s4 269488144
    %v434 = vunpack.c.0.s8 %v433
    %v435 = vlaneseq
    %v436 = vshrl.u32 %v435, 7
    %v437 = vsub.s32 %v434, %v436
    %v438 = vrot.slane %v128, %v437
    %v440 = vunpack.c.l.s4 842150450
    %v441 = vunpack.c.0.s8 %v440
    %v442 = vlaneseq
    %v443 = vshrl.u32 %v442, 7
    %v444 = vsub.s32 %v441, %v443
    %v445 = vrot.slane %v128, %v444
    %v447 = vunpack.c.l.s4 1414812756
    %v448 = vunpack.c.0.s8 %v447
    %v449 = vlaneseq
    %v450 = vshrl.u32 %v449, 7
    %v451 = vsub.s32 %v448, %v450
    %v452 = vrot.slane %v128, %v451
    %v454 = vunpack.c.l.s4 1987475062
    %v455 = vunpack.c.0.s8 %v454
    %v456 = vlaneseq
    %v457 = vshrl.u32 %v456, 7
    %v458 = vsub.s32 %v455, %v457
    %v459 = vrot.slane %v128, %v458
    %v461 = vunpack.c.l.s4 269488144
    %v462 = vunpack.c.0.s8 %v461
    %v463 = vlaneseq
    %v464 = vshrl.u32 %v463, 7
    %v465 = vsub.s32 %v462, %v464
    %v466 = vrot.slane %v131, %v465
    %v468 = vunpack.c.l.s4 842150450
    %v469 = vunpack.c.0.s8 %v468
    %v470 = vlaneseq
    %v471 = vshrl.u32 %v470, 7
    %v472 = vsub.s32 %v469, %v471
    %v473 = vrot.slane %v131, %v472
    %v475 = vunpack.c.l.s4 1414812756
    %v476 = vunpack.c.0.s8 %v475
    %v477 = vlaneseq
    %v478 = vshrl.u32 %v477, 7
    %v479 = vsub.s32 %v476, %v478
    %v480 = vrot.slane %v131, %v479
    %v482 = vunpack.c.l.s4 1987475062
    %v483 = vunpack.c.0.s8 %v482
    %v484 = vlaneseq
    %v485 = vshrl.u32 %v484, 7
    %v486 = vsub.s32 %v483, %v485
    %v487 = vrot.slane %v131, %v486
    %v489 = vunpack.c.l.s4 269488144
    %v490 = vunpack.c.0.s8 %v489
    %v491 = vlaneseq
    %v492 = vshrl.u32 %v491, 7
    %v493 = vsub.s32 %v490, %v492
    %v494 = vrot.slane %v134, %v493
    %v496 = vunpack.c.l.s4 842150450
    %v497 = vunpack.c.0.s8 %v496
    %v498 = vlaneseq
    %v499 = vshrl.u32 %v498, 7
    %v500 = vsub.s32 %v497, %v499
    %v501 = vrot.slane %v134, %v500
    %v503 = vunpack.c.l.s4 1414812756
    %v504 = vunpack.c.0.s8 %v503
    %v505 = vlaneseq
    %v506 = vshrl.u32 %v505, 7
    %v507 = vsub.s32 %v504, %v506
    %v508 = vrot.slane %v134, %v507
    %v510 = vunpack.c.l.s4 1987475062
    %v511 = vunpack.c.0.s8 %v510
    %v512 = vlaneseq
    %v513 = vshrl.u32 %v512, 7
    %v514 = vsub.s32 %v511, %v513
    %v515 = vrot.slane %v134, %v514
    %v517 = vunpack.c.l.s4 269488144
    %v518 = vunpack.c.0.s8 %v517
    %v519 = vlaneseq
    %v520 = vshrl.u32 %v519, 7
    %v521 = vsub.s32 %v518, %v520
    %v522 = vrot.slane %v137, %v521
    %v524 = vunpack.c.l.s4 842150450
    %v525 = vunpack.c.0.s8 %v524
    %v526 = vlaneseq
    %v527 = vshrl.u32 %v526, 7
    %v528 = vsub.s32 %v525, %v527
    %v529 = vrot.slane %v137, %v528
    %v531 = vunpack.c.l.s4 1414812756
    %v532 = vunpack.c.0.s8 %v531
    %v533 = vlaneseq
    %v534 = vshrl.u32 %v533, 7
    %v535 = vsub.s32 %v532, %v534
    %v536 = vrot.slane %v137, %v535
    %v538 = vunpack.c.l.s4 1987475062
    %v539 = vunpack.c.0.s8 %v538
    %v540 = vlaneseq
    %v541 = vshrl.u32 %v540, 7
    %v542 = vsub.s32 %v539, %v541
    %v543 = vrot.slane %v137, %v542
    %v545 = vunpack.c.l.s4 269488144
    %v546 = vunpack.c.0.s8 %v545
    %v547 = vlaneseq
    %v548 = vshrl.u32 %v547, 7
    %v549 = vsub.s32 %v546, %v548
    %v550 = vrot.slane %v140, %v549
    %v552 = vunpack.c.l.s4 842150450
    %v553 = vunpack.c.0.s8 %v552
    %v554 = vlaneseq
    %v555 = vshrl.u32 %v554, 7
    %v556 = vsub.s32 %v553, %v555
    %v557 = vrot.slane %v140, %v556
    %v559 = vunpack.c.l.s4 1414812756
    %v560 = vunpack.c.0.s8 %v559
    %v561 = vlaneseq
    %v562 = vshrl.u32 %v561, 7
    %v563 = vsub.s32 %v560, %v562
    %v564 = vrot.slane %v140, %v563
    %v566 = vunpack.c.l.s4 1987475062
    %v567 = vunpack.c.0.s8 %v566
    %v568 = vlaneseq
    %v569 = vshrl.u32 %v568, 7
    %v570 = vsub.s32 %v567, %v569
    %v571 = vrot.slane %v140, %v570
    %v573 = vunpack.c.l.s4 269488144
    %v574 = vunpack.c.0.s8 %v573
    %v575 = vlaneseq
    %v576 = vshrl.u32 %v575, 7
    %v577 = vsub.s32 %v574, %v576
    %v578 = vrot.slane %v143, %v577
    %v580 = vunpack.c.l.s4 842150450
    %v581 = vunpack.c.0.s8 %v580
    %v582 = vlaneseq
    %v583 = vshrl.u32 %v582, 7
    %v584 = vsub.s32 %v581, %v583
    %v585 = vrot.slane %v143, %v584
    %v587 = vunpack.c.l.s4 1414812756
    %v588 = vunpack.c.0.s8 %v587
    %v589 = vlaneseq
    %v590 = vshrl.u32 %v589, 7
    %v591 = vsub.s32 %v588, %v590
    %v592 = vrot.slane %v143, %v591
    %v594 = vunpack.c.l.s4 1987475062
    %v595 = vunpack.c.0.s8 %v594
    %v596 = vlaneseq
    %v597 = vshrl.u32 %v596, 7
    %v598 = vsub.s32 %v595, %v597
    %v599 = vrot.slane %v143, %v598
    %v601 = vunpack.c.l.s4 269488144
    %v602 = vunpack.c.0.s8 %v601
    %v603 = vlaneseq
    %v604 = vshrl.u32 %v603, 7
    %v605 = vsub.s32 %v602, %v604
    %v606 = vrot.slane %v146, %v605
    %v608 = vunpack.c.l.s4 842150450
    %v609 = vunpack.c.0.s8 %v608
    %v610 = vlaneseq
    %v611 = vshrl.u32 %v610, 7
    %v612 = vsub.s32 %v609, %v611
    %v613 = vrot.slane %v146, %v612
    %v615 = vunpack.c.l.s4 1414812756
    %v616 = vunpack.c.0.s8 %v615
    %v617 = vlaneseq
    %v618 = vshrl.u32 %v617, 7
    %v619 = vsub.s32 %v616, %v618
    %v620 = vrot.slane %v146, %v619
    %v622 = vunpack.c.l.s4 1987475062
    %v623 = vunpack.c.0.s8 %v622
    %v624 = vlaneseq
    %v625 = vshrl.u32 %v624, 7
    %v626 = vsub.s32 %v623, %v625
    %v627 = vrot.slane %v146, %v626
    %v629 = vunpack.c.l.s4 269488144
    %v630 = vunpack.c.0.s8 %v629
    %v631 = vlaneseq
    %v632 = vshrl.u32 %v631, 7
    %v633 = vsub.s32 %v630, %v632
    %v634 = vrot.slane %v149, %v633
    %v636 = vunpack.c.l.s4 842150450
    %v637 = vunpack.c.0.s8 %v636
    %v638 = vlaneseq
    %v639 = vshrl.u32 %v638, 7
    %v640 = vsub.s32 %v637, %v639
    %v641 = vrot.slane %v149, %v640
    %v643 = vunpack.c.l.s4 1414812756
    %v644 = vunpack.c.0.s8 %v643
    %v645 = vlaneseq
    %v646 = vshrl.u32 %v645, 7
    %v647 = vsub.s32 %v644, %v646
    %v648 = vrot.slane %v149, %v647
    %v650 = vunpack.c.l.s4 1987475062
    %v651 = vunpack.c.0.s8 %v650
    %v652 = vlaneseq
    %v653 = vshrl.u32 %v652, 7
    %v654 = vsub.s32 %v651, %v653
    %v655 = vrot.slane %v149, %v654
    %v657 = vunpack.c.l.s4 269488144
    %v658 = vunpack.c.0.s8 %v657
    %v659 = vlaneseq
    %v660 = vshrl.u32 %v659, 7
    %v661 = vsub.s32 %v658, %v660
    %v662 = vrot.slane %v152, %v661
    %v664 = vunpack.c.l.s4 842150450
    %v665 = vunpack.c.0.s8 %v664
    %v666 = vlaneseq
    %v667 = vshrl.u32 %v666, 7
    %v668 = vsub.s32 %v665, %v667
    %v669 = vrot.slane %v152, %v668
    %v671 = vunpack.c.l.s4 1414812756
    %v672 = vunpack.c.0.s8 %v671
    %v673 = vlaneseq
    %v674 = vshrl.u32 %v673, 7
    %v675 = vsub.s32 %v672, %v674
    %v676 = vrot.slane %v152, %v675
    %v678 = vunpack.c.l.s4 1987475062
    %v679 = vunpack.c.0.s8 %v678
    %v680 = vlaneseq
    %v681 = vshrl.u32 %v680, 7
    %v682 = vsub.s32 %v679, %v681
    %v683 = vrot.slane %v152, %v682
    %v685 = vunpack.c.l.s4 269488144
    %v686 = vunpack.c.0.s8 %v685
    %v687 = vlaneseq
    %v688 = vshrl.u32 %v687, 7
    %v689 = vsub.s32 %v686, %v688
    %v690 = vrot.slane %v155, %v689
    %v692 = vunpack.c.l.s4 842150450
    %v693 = vunpack.c.0.s8 %v692
    %v694 = vlaneseq
    %v695 = vshrl.u32 %v694, 7
    %v696 = vsub.s32 %v693, %v695
    %v697 = vrot.slane %v155, %v696
    %v699 = vunpack.c.l.s4 1414812756
    %v700 = vunpack.c.0.s8 %v699
    %v701 = vlaneseq
    %v702 = vshrl.u32 %v701, 7
    %v703 = vsub.s32 %v700, %v702
    %v704 = vrot.slane %v155, %v703
    %v706 = vunpack.c.l.s4 1987475062
    %v707 = vunpack.c.0.s8 %v706
    %v708 = vlaneseq
    %v709 = vshrl.u32 %v708, 7
    %v710 = vsub.s32 %v707, %v709
    %v711 = vrot.slane %v155, %v710
    %v713 = vunpack.c.l.s4 269488144
    %v714 = vunpack.c.0.s8 %v713
    %v715 = vlaneseq
    %v716 = vshrl.u32 %v715, 7
    %v717 = vsub.s32 %v714, %v716
    %v718 = vrot.slane %v158, %v717
    %v720 = vunpack.c.l.s4 842150450
    %v721 = vunpack.c.0.s8 %v720
    %v722 = vlaneseq
    %v723 = vshrl.u32 %v722, 7
    %v724 = vsub.s32 %v721, %v723
    %v725 = vrot.slane %v158, %v724
    %v727 = vunpack.c.l.s4 1414812756
    %v728 = vunpack.c.0.s8 %v727
    %v729 = vlaneseq
    %v730 = vshrl.u32 %v729, 7
    %v731 = vsub.s32 %v728, %v730
    %v732 = vrot.slane %v158, %v731
    %v734 = vunpack.c.l.s4 1987475062
    %v735 = vunpack.c.0.s8 %v734
    %v736 = vlaneseq
    %v737 = vshrl.u32 %v736, 7
    %v738 = vsub.s32 %v735, %v737
    %v739 = vrot.slane %v158, %v738
    %v741 = vunpack.c.l.s4 269488144
    %v742 = vunpack.c.0.s8 %v741
    %v743 = vlaneseq
    %v744 = vshrl.u32 %v743, 7
    %v745 = vsub.s32 %v742, %v744
    %v746 = vrot.slane %v161, %v745
    %v748 = vunpack.c.l.s4 842150450
    %v749 = vunpack.c.0.s8 %v748
    %v750 = vlaneseq
    %v751 = vshrl.u32 %v750, 7
    %v752 = vsub.s32 %v749, %v751
    %v753 = vrot.slane %v161, %v752
    %v755 = vunpack.c.l.s4 1414812756
    %v756 = vunpack.c.0.s8 %v755
    %v757 = vlaneseq
    %v758 = vshrl.u32 %v757, 7
    %v759 = vsub.s32 %v756, %v758
    %v760 = vrot.slane %v161, %v759
    %v762 = vunpack.c.l.s4 1987475062
    %v763 = vunpack.c.0.s8 %v762
    %v764 = vlaneseq
    %v765 = vshrl.u32 %v764, 7
    %v766 = vsub.s32 %v763, %v765
    %v767 = vrot.slane %v161, %v766
    %v769 = vunpack.c.l.s4 269488144
    %v770 = vunpack.c.0.s8 %v769
    %v771 = vlaneseq
    %v772 = vshrl.u32 %v771, 7
    %v773 = vsub.s32 %v770, %v772
    %v774 = vrot.slane %v164, %v773
    %v776 = vunpack.c.l.s4 842150450
    %v777 = vunpack.c.0.s8 %v776
    %v778 = vlaneseq
    %v779 = vshrl.u32 %v778, 7
    %v780 = vsub.s32 %v777, %v779
    %v781 = vrot.slane %v164, %v780
    %v783 = vunpack.c.l.s4 1414812756
    %v784 = vunpack.c.0.s8 %v783
    %v785 = vlaneseq
    %v786 = vshrl.u32 %v785, 7
    %v787 = vsub.s32 %v784, %v786
    %v788 = vrot.slane %v164, %v787
    %v790 = vunpack.c.l.s4 1987475062
    %v791 = vunpack.c.0.s8 %v790
    %v792 = vlaneseq
    %v793 = vshrl.u32 %v792, 7
    %v794 = vsub.s32 %v791, %v793
    %v795 = vrot.slane %v164, %v794
    %v797 = vunpack.c.l.s4 269488144
    %v798 = vunpack.c.0.s8 %v797
    %v799 = vlaneseq
    %v800 = vshrl.u32 %v799, 7
    %v801 = vsub.s32 %v798, %v800
    %v802 = vrot.slane %v167, %v801
    %v804 = vunpack.c.l.s4 842150450
    %v805 = vunpack.c.0.s8 %v804
    %v806 = vlaneseq
    %v807 = vshrl.u32 %v806, 7
    %v808 = vsub.s32 %v805, %v807
    %v809 = vrot.slane %v167, %v808
    %v811 = vunpack.c.l.s4 1414812756
    %v812 = vunpack.c.0.s8 %v811
    %v813 = vlaneseq
    %v814 = vshrl.u32 %v813, 7
    %v815 = vsub.s32 %v812, %v814
    %v816 = vrot.slane %v167, %v815
    %v818 = vunpack.c.l.s4 1987475062
    %v819 = vunpack.c.0.s8 %v818
    %v820 = vlaneseq
    %v821 = vshrl.u32 %v820, 7
    %v822 = vsub.s32 %v819, %v821
    %v823 = vrot.slane %v167, %v822
    %v825 = vunpack.c.l.s4 269488144
    %v826 = vunpack.c.0.s8 %v825
    %v827 = vlaneseq
    %v828 = vshrl.u32 %v827, 7
    %v829 = vsub.s32 %v826, %v828
    %v830 = vrot.slane %v170, %v829
    %v832 = vunpack.c.l.s4 842150450
    %v833 = vunpack.c.0.s8 %v832
    %v834 = vlaneseq
    %v835 = vshrl.u32 %v834, 7
    %v836 = vsub.s32 %v833, %v835
    %v837 = vrot.slane %v170, %v836
    %v839 = vunpack.c.l.s4 1414812756
    %v840 = vunpack.c.0.s8 %v839
    %v841 = vlaneseq
    %v842 = vshrl.u32 %v841, 7
    %v843 = vsub.s32 %v840, %v842
    %v844 = vrot.slane %v170, %v843
    %v846 = vunpack.c.l.s4 1987475062
    %v847 = vunpack.c.0.s8 %v846
    %v848 = vlaneseq
    %v849 = vshrl.u32 %v848, 7
    %v850 = vsub.s32 %v847, %v849
    %v851 = vrot.slane %v170, %v850
    %v853 = vunpack.c.l.s4 269488144
    %v854 = vunpack.c.0.s8 %v853
    %v855 = vlaneseq
    %v856 = vshrl.u32 %v855, 7
    %v857 = vsub.s32 %v854, %v856
    %v858 = vrot.slane %v173, %v857
    %v860 = vunpack.c.l.s4 842150450
    %v861 = vunpack.c.0.s8 %v860
    %v862 = vlaneseq
    %v863 = vshrl.u32 %v862, 7
    %v864 = vsub.s32 %v861, %v863
    %v865 = vrot.slane %v173, %v864
    %v867 = vunpack.c.l.s4 1414812756
    %v868 = vunpack.c.0.s8 %v867
    %v869 = vlaneseq
    %v870 = vshrl.u32 %v869, 7
    %v871 = vsub.s32 %v868, %v870
    %v872 = vrot.slane %v173, %v871
    %v874 = vunpack.c.l.s4 1987475062
    %v875 = vunpack.c.0.s8 %v874
    %v876 = vlaneseq
    %v877 = vshrl.u32 %v876, 7
    %v878 = vsub.s32 %v875, %v877
    %v879 = vrot.slane %v173, %v878
    %v881 = vunpack.c.l.s4 269488144
    %v882 = vunpack.c.0.s8 %v881
    %v883 = vlaneseq
    %v884 = vshrl.u32 %v883, 7
    %v885 = vsub.s32 %v882, %v884
    %v886 = vrot.slane %v176, %v885
    %v888 = vunpack.c.l.s4 842150450
    %v889 = vunpack.c.0.s8 %v888
    %v890 = vlaneseq
    %v891 = vshrl.u32 %v890, 7
    %v892 = vsub.s32 %v889, %v891
    %v893 = vrot.slane %v176, %v892
    %v895 = vunpack.c.l.s4 1414812756
    %v896 = vunpack.c.0.s8 %v895
    %v897 = vlaneseq
    %v898 = vshrl.u32 %v897, 7
    %v899 = vsub.s32 %v896, %v898
    %v900 = vrot.slane %v176, %v899
    %v902 = vunpack.c.l.s4 1987475062
    %v903 = vunpack.c.0.s8 %v902
    %v904 = vlaneseq
    %v905 = vshrl.u32 %v904, 7
    %v906 = vsub.s32 %v903, %v905
    %v907 = vrot.slane %v176, %v906
    %v909 = vunpack.c.l.s4 269488144
    %v910 = vunpack.c.0.s8 %v909
    %v911 = vlaneseq
    %v912 = vshrl.u32 %v911, 7
    %v913 = vsub.s32 %v910, %v912
    %v914 = vrot.slane %v179, %v913
    %v916 = vunpack.c.l.s4 842150450
    %v917 = vunpack.c.0.s8 %v916
    %v918 = vlaneseq
    %v919 = vshrl.u32 %v918, 7
    %v920 = vsub.s32 %v917, %v919
    %v921 = vrot.slane %v179, %v920
    %v923 = vunpack.c.l.s4 1414812756
    %v924 = vunpack.c.0.s8 %v923
    %v925 = vlaneseq
    %v926 = vshrl.u32 %v925, 7
    %v927 = vsub.s32 %v924, %v926
    %v928 = vrot.slane %v179, %v927
    %v930 = vunpack.c.l.s4 1987475062
    %v931 = vunpack.c.0.s8 %v930
    %v932 = vlaneseq
    %v933 = vshrl.u32 %v932, 7
    %v934 = vsub.s32 %v931, %v933
    %v935 = vrot.slane %v179, %v934
    %v937 = vunpack.c.l.s4 269488144
    %v938 = vunpack.c.0.s8 %v937
    %v939 = vlaneseq
    %v940 = vshrl.u32 %v939, 7
    %v941 = vsub.s32 %v938, %v940
    %v942 = vrot.slane %v182, %v941
    %v944 = vunpack.c.l.s4 842150450
    %v945 = vunpack.c.0.s8 %v944
    %v946 = vlaneseq
    %v947 = vshrl.u32 %v946, 7
    %v948 = vsub.s32 %v945, %v947
    %v949 = vrot.slane %v182, %v948
    %v951 = vunpack.c.l.s4 1414812756
    %v952 = vunpack.c.0.s8 %v951
    %v953 = vlaneseq
    %v954 = vshrl.u32 %v953, 7
    %v955 = vsub.s32 %v952, %v954
    %v956 = vrot.slane %v182, %v955
    %v958 = vunpack.c.l.s4 1987475062
    %v959 = vunpack.c.0.s8 %v958
    %v960 = vlaneseq
    %v961 = vshrl.u32 %v960, 7
    %v962 = vsub.s32 %v959, %v961
    %v963 = vrot.slane %v182, %v962
    %v965 = vunpack.c.l.s4 269488144
    %v966 = vunpack.c.0.s8 %v965
    %v967 = vlaneseq
    %v968 = vshrl.u32 %v967, 7
    %v969 = vsub.s32 %v966, %v968
    %v970 = vrot.slane %v185, %v969
    %v972 = vunpack.c.l.s4 842150450
    %v973 = vunpack.c.0.s8 %v972
    %v974 = vlaneseq
    %v975 = vshrl.u32 %v974, 7
    %v976 = vsub.s32 %v973, %v975
    %v977 = vrot.slane %v185, %v976
    %v979 = vunpack.c.l.s4 1414812756
    %v980 = vunpack.c.0.s8 %v979
    %v981 = vlaneseq
    %v982 = vshrl.u32 %v981, 7
    %v983 = vsub.s32 %v980, %v982
    %v984 = vrot.slane %v185, %v983
    %v986 = vunpack.c.l.s4 1987475062
    %v987 = vunpack.c.0.s8 %v986
    %v988 = vlaneseq
    %v989 = vshrl.u32 %v988, 7
    %v990 = vsub.s32 %v987, %v989
    %v991 = vrot.slane %v185, %v990
    %v993 = vunpack.c.l.s4 269488144
    %v994 = vunpack.c.0.s8 %v993
    %v995 = vlaneseq
    %v996 = vshrl.u32 %v995, 7
    %v997 = vsub.s32 %v994, %v996
    %v998 = vrot.slane %v188, %v997
    %v1000 = vunpack.c.l.s4 842150450
    %v1001 = vunpack.c.0.s8 %v1000
    %v1002 = vlaneseq
    %v1003 = vshrl.u32 %v1002, 7
    %v1004 = vsub.s32 %v1001, %v1003
    %v1005 = vrot.slane %v188, %v1004
    %v1007 = vunpack.c.l.s4 1414812756
    %v1008 = vunpack.c.0.s8 %v1007
    %v1009 = vlaneseq
    %v1010 = vshrl.u32 %v1009, 7
    %v1011 = vsub.s32 %v1008, %v1010
    %v1012 = vrot.slane %v188, %v1011
    %v1014 = vunpack.c.l.s4 1987475062
    %v1015 = vunpack.c.0.s8 %v1014
    %v1016 = vlaneseq
    %v1017 = vshrl.u32 %v1016, 7
    %v1018 = vsub.s32 %v1015, %v1017
    %v1019 = vrot.slane %v188, %v1018
    %v1021 = vunpack.c.l.s4 269488144
    %v1022 = vunpack.c.0.s8 %v1021
    %v1023 = vlaneseq
    %v1024 = vshrl.u32 %v1023, 7
    %v1025 = vsub.s32 %v1022, %v1024
    %v1026 = vrot.slane %v191, %v1025
    %v1028 = vunpack.c.l.s4 842150450
    %v1029 = vunpack.c.0.s8 %v1028
    %v1030 = vlaneseq
    %v1031 = vshrl.u32 %v1030, 7
    %v1032 = vsub.s32 %v1029, %v1031
    %v1033 = vrot.slane %v191, %v1032
    %v1035 = vunpack.c.l.s4 1414812756
    %v1036 = vunpack.c.0.s8 %v1035
    %v1037 = vlaneseq
    %v1038 = vshrl.u32 %v1037, 7
    %v1039 = vsub.s32 %v1036, %v1038
    %v1040 = vrot.slane %v191, %v1039
    %v1042 = vunpack.c.l.s4 1987475062
    %v1043 = vunpack.c.0.s8 %v1042
    %v1044 = vlaneseq
    %v1045 = vshrl.u32 %v1044, 7
    %v1046 = vsub.s32 %v1043, %v1045
    %v1047 = vrot.slane %v191, %v1046
    %v1049 = vunpack.c.l.s4 269488144
    %v1050 = vunpack.c.0.s8 %v1049
    %v1051 = vlaneseq
    %v1052 = vshrl.u32 %v1051, 7
    %v1053 = vsub.s32 %v1050, %v1052
    %v1054 = vrot.slane %v194, %v1053
    %v1056 = vunpack.c.l.s4 842150450
    %v1057 = vunpack.c.0.s8 %v1056
    %v1058 = vlaneseq
    %v1059 = vshrl.u32 %v1058, 7
    %v1060 = vsub.s32 %v1057, %v1059
    %v1061 = vrot.slane %v194, %v1060
    %v1063 = vunpack.c.l.s4 1414812756
    %v1064 = vunpack.c.0.s8 %v1063
    %v1065 = vlaneseq
    %v1066 = vshrl.u32 %v1065, 7
    %v1067 = vsub.s32 %v1064, %v1066
    %v1068 = vrot.slane %v194, %v1067
    %v1070 = vunpack.c.l.s4 1987475062
    %v1071 = vunpack.c.0.s8 %v1070
    %v1072 = vlaneseq
    %v1073 = vshrl.u32 %v1072, 7
    %v1074 = vsub.s32 %v1071, %v1073
    %v1075 = vrot.slane %v194, %v1074
    %v1077 = vunpack.c.l.s4 269488144
    %v1078 = vunpack.c.0.s8 %v1077
    %v1079 = vlaneseq
    %v1080 = vshrl.u32 %v1079, 7
    %v1081 = vsub.s32 %v1078, %v1080
    %v1082 = vrot.slane %v197, %v1081
    %v1084 = vunpack.c.l.s4 842150450
    %v1085 = vunpack.c.0.s8 %v1084
    %v1086 = vlaneseq
    %v1087 = vshrl.u32 %v1086, 7
    %v1088 = vsub.s32 %v1085, %v1087
    %v1089 = vrot.slane %v197, %v1088
    %v1091 = vunpack.c.l.s4 1414812756
    %v1092 = vunpack.c.0.s8 %v1091
    %v1093 = vlaneseq
    %v1094 = vshrl.u32 %v1093, 7
    %v1095 = vsub.s32 %v1092, %v1094
    %v1096 = vrot.slane %v197, %v1095
    %v1098 = vunpack.c.l.s4 1987475062
    %v1099 = vunpack.c.0.s8 %v1098
    %v1100 = vlaneseq
    %v1101 = vshrl.u32 %v1100, 7
    %v1102 = vsub.s32 %v1099, %v1101
    %v1103 = vrot.slane %v197, %v1102
    %v1105 = vunpack.c.l.s4 269488144
    %v1106 = vunpack.c.0.s8 %v1105
    %v1107 = vlaneseq
    %v1108 = vshrl.u32 %v1107, 7
    %v1109 = vsub.s32 %v1106, %v1108
    %v1110 = vrot.slane %v200, %v1109
    %v1112 = vunpack.c.l.s4 842150450
    %v1113 = vunpack.c.0.s8 %v1112
    %v1114 = vlaneseq
    %v1115 = vshrl.u32 %v1114, 7
    %v1116 = vsub.s32 %v1113, %v1115
    %v1117 = vrot.slane %v200, %v1116
    %v1119 = vunpack.c.l.s4 1414812756
    %v1120 = vunpack.c.0.s8 %v1119
    %v1121 = vlaneseq
    %v1122 = vshrl.u32 %v1121, 7
    %v1123 = vsub.s32 %v1120, %v1122
    %v1124 = vrot.slane %v200, %v1123
    %v1126 = vunpack.c.l.s4 1987475062
    %v1127 = vunpack.c.0.s8 %v1126
    %v1128 = vlaneseq
    %v1129 = vshrl.u32 %v1128, 7
    %v1130 = vsub.s32 %v1127, %v1129
    %v1131 = vrot.slane %v200, %v1130
    %v1133 = vunpack.c.l.s4 269488144
    %v1134 = vunpack.c.0.s8 %v1133
    %v1135 = vlaneseq
    %v1136 = vshrl.u32 %v1135, 7
    %v1137 = vsub.s32 %v1134, %v1136
    %v1138 = vrot.slane %v203, %v1137
    %v1140 = vunpack.c.l.s4 842150450
    %v1141 = vunpack.c.0.s8 %v1140
    %v1142 = vlaneseq
    %v1143 = vshrl.u32 %v1142, 7
    %v1144 = vsub.s32 %v1141, %v1143
    %v1145 = vrot.slane %v203, %v1144
    %v1147 = vunpack.c.l.s4 1414812756
    %v1148 = vunpack.c.0.s8 %v1147
    %v1149 = vlaneseq
    %v1150 = vshrl.u32 %v1149, 7
    %v1151 = vsub.s32 %v1148, %v1150
    %v1152 = vrot.slane %v203, %v1151
    %v1154 = vunpack.c.l.s4 1987475062
    %v1155 = vunpack.c.0.s8 %v1154
    %v1156 = vlaneseq
    %v1157 = vshrl.u32 %v1156, 7
    %v1158 = vsub.s32 %v1155, %v1157
    %v1159 = vrot.slane %v203, %v1158
    %v1161 = vunpack.c.l.s4 269488144
    %v1162 = vunpack.c.0.s8 %v1161
    %v1163 = vlaneseq
    %v1164 = vshrl.u32 %v1163, 7
    %v1165 = vsub.s32 %v1162, %v1164
    %v1166 = vrot.slane %v206, %v1165
    %v1168 = vunpack.c.l.s4 842150450
    %v1169 = vunpack.c.0.s8 %v1168
    %v1170 = vlaneseq
    %v1171 = vshrl.u32 %v1170, 7
    %v1172 = vsub.s32 %v1169, %v1171
    %v1173 = vrot.slane %v206, %v1172
    %v1175 = vunpack.c.l.s4 1414812756
    %v1176 = vunpack.c.0.s8 %v1175
    %v1177 = vlaneseq
    %v1178 = vshrl.u32 %v1177, 7
    %v1179 = vsub.s32 %v1176, %v1178
    %v1180 = vrot.slane %v206, %v1179
    %v1182 = vunpack.c.l.s4 1987475062
    %v1183 = vunpack.c.0.s8 %v1182
    %v1184 = vlaneseq
    %v1185 = vshrl.u32 %v1184, 7
    %v1186 = vsub.s32 %v1183, %v1185
    %v1187 = vrot.slane %v206, %v1186
    %v1189 = vunpack.c.l.s4 269488144
    %v1190 = vunpack.c.0.s8 %v1189
    %v1191 = vlaneseq
    %v1192 = vshrl.u32 %v1191, 7
    %v1193 = vsub.s32 %v1190, %v1192
    %v1194 = vrot.slane %v209, %v1193
    %v1196 = vunpack.c.l.s4 842150450
    %v1197 = vunpack.c.0.s8 %v1196
    %v1198 = vlaneseq
    %v1199 = vshrl.u32 %v1198, 7
    %v1200 = vsub.s32 %v1197, %v1199
    %v1201 = vrot.slane %v209, %v1200
    %v1203 = vunpack.c.l.s4 1414812756
    %v1204 = vunpack.c.0.s8 %v1203
    %v1205 = vlaneseq
    %v1206 = vshrl.u32 %v1205, 7
    %v1207 = vsub.s32 %v1204, %v1206
    %v1208 = vrot.slane %v209, %v1207
    %v1210 = vunpack.c.l.s4 1987475062
    %v1211 = vunpack.c.0.s8 %v1210
    %v1212 = vlaneseq
    %v1213 = vshrl.u32 %v1212, 7
    %v1214 = vsub.s32 %v1211, %v1213
    %v1215 = vrot.slane %v209, %v1214
    %v1217 = vunpack.c.l.s4 269488144
    %v1218 = vunpack.c.0.s8 %v1217
    %v1219 = vlaneseq
    %v1220 = vshrl.u32 %v1219, 7
    %v1221 = vsub.s32 %v1218, %v1220
    %v1222 = vrot.slane %v212, %v1221
    %v1224 = vunpack.c.l.s4 842150450
    %v1225 = vunpack.c.0.s8 %v1224
    %v1226 = vlaneseq
    %v1227 = vshrl.u32 %v1226, 7
    %v1228 = vsub.s32 %v1225, %v1227
    %v1229 = vrot.slane %v212, %v1228
    %v1231 = vunpack.c.l.s4 1414812756
    %v1232 = vunpack.c.0.s8 %v1231
    %v1233 = vlaneseq
    %v1234 = vshrl.u32 %v1233, 7
    %v1235 = vsub.s32 %v1232, %v1234
    %v1236 = vrot.slane %v212, %v1235
    %v1238 = vunpack.c.l.s4 1987475062
    %v1239 = vunpack.c.0.s8 %v1238
    %v1240 = vlaneseq
    %v1241 = vshrl.u32 %v1240, 7
    %v1242 = vsub.s32 %v1239, %v1241
    %v1243 = vrot.slane %v212, %v1242
    %v1245 = vunpack.c.l.s4 269488144
    %v1246 = vunpack.c.0.s8 %v1245
    %v1247 = vlaneseq
    %v1248 = vshrl.u32 %v1247, 7
    %v1249 = vsub.s32 %v1246, %v1248
    %v1250 = vrot.slane %v215, %v1249
    %v1252 = vunpack.c.l.s4 842150450
    %v1253 = vunpack.c.0.s8 %v1252
    %v1254 = vlaneseq
    %v1255 = vshrl.u32 %v1254, 7
    %v1256 = vsub.s32 %v1253, %v1255
    %v1257 = vrot.slane %v215, %v1256
    %v1259 = vunpack.c.l.s4 1414812756
    %v1260 = vunpack.c.0.s8 %v1259
    %v1261 = vlaneseq
    %v1262 = vshrl.u32 %v1261, 7
    %v1263 = vsub.s32 %v1260, %v1262
    %v1264 = vrot.slane %v215, %v1263
    %v1266 = vunpack.c.l.s4 1987475062
    %v1267 = vunpack.c.0.s8 %v1266
    %v1268 = vlaneseq
    %v1269 = vshrl.u32 %v1268, 7
    %v1270 = vsub.s32 %v1267, %v1269
    %v1271 = vrot.slane %v215, %v1270
    %v1273 = vunpack.c.l.s4 269488144
    %v1274 = vunpack.c.0.s8 %v1273
    %v1275 = vlaneseq
    %v1276 = vshrl.u32 %v1275, 7
    %v1277 = vsub.s32 %v1274, %v1276
    %v1278 = vrot.slane %v218, %v1277
    %v1280 = vunpack.c.l.s4 842150450
    %v1281 = vunpack.c.0.s8 %v1280
    %v1282 = vlaneseq
    %v1283 = vshrl.u32 %v1282, 7
    %v1284 = vsub.s32 %v1281, %v1283
    %v1285 = vrot.slane %v218, %v1284
    %v1287 = vunpack.c.l.s4 1414812756
    %v1288 = vunpack.c.0.s8 %v1287
    %v1289 = vlaneseq
    %v1290 = vshrl.u32 %v1289, 7
    %v1291 = vsub.s32 %v1288, %v1290
    %v1292 = vrot.slane %v218, %v1291
    %v1294 = vunpack.c.l.s4 1987475062
    %v1295 = vunpack.c.0.s8 %v1294
    %v1296 = vlaneseq
    %v1297 = vshrl.u32 %v1296, 7
    %v1298 = vsub.s32 %v1295, %v1297
    %v1299 = vrot.slane %v218, %v1298
    %v1301 = vunpack.c.l.s4 269488144
    %v1302 = vunpack.c.0.s8 %v1301
    %v1303 = vlaneseq
    %v1304 = vshrl.u32 %v1303, 7
    %v1305 = vsub.s32 %v1302, %v1304
    %v1306 = vrot.slane %v221, %v1305
    %v1308 = vunpack.c.l.s4 842150450
    %v1309 = vunpack.c.0.s8 %v1308
    %v1310 = vlaneseq
    %v1311 = vshrl.u32 %v1310, 7
    %v1312 = vsub.s32 %v1309, %v1311
    %v1313 = vrot.slane %v221, %v1312
    %v1315 = vunpack.c.l.s4 1414812756
    %v1316 = vunpack.c.0.s8 %v1315
    %v1317 = vlaneseq
    %v1318 = vshrl.u32 %v1317, 7
    %v1319 = vsub.s32 %v1316, %v1318
    %v1320 = vrot.slane %v221, %v1319
    %v1322 = vunpack.c.l.s4 1987475062
    %v1323 = vunpack.c.0.s8 %v1322
    %v1324 = vlaneseq
    %v1325 = vshrl.u32 %v1324, 7
    %v1326 = vsub.s32 %v1323, %v1325
    %v1327 = vrot.slane %v221, %v1326
    %v1329 = vunpack.c.l.s4 269488144
    %v1330 = vunpack.c.0.s8 %v1329
    %v1331 = vlaneseq
    %v1332 = vshrl.u32 %v1331, 7
    %v1333 = vsub.s32 %v1330, %v1332
    %v1334 = vrot.slane %v224, %v1333
    %v1336 = vunpack.c.l.s4 842150450
    %v1337 = vunpack.c.0.s8 %v1336
    %v1338 = vlaneseq
    %v1339 = vshrl.u32 %v1338, 7
    %v1340 = vsub.s32 %v1337, %v1339
    %v1341 = vrot.slane %v224, %v1340
    %v1343 = vunpack.c.l.s4 1414812756
    %v1344 = vunpack.c.0.s8 %v1343
    %v1345 = vlaneseq
    %v1346 = vshrl.u32 %v1345, 7
    %v1347 = vsub.s32 %v1344, %v1346
    %v1348 = vrot.slane %v224, %v1347
    %v1350 = vunpack.c.l.s4 1987475062
    %v1351 = vunpack.c.0.s8 %v1350
    %v1352 = vlaneseq
    %v1353 = vshrl.u32 %v1352, 7
    %v1354 = vsub.s32 %v1351, %v1353
    %v1355 = vrot.slane %v224, %v1354
    %v1357 = vunpack.c.l.s4 269488144
    %v1358 = vunpack.c.0.s8 %v1357
    %v1359 = vlaneseq
    %v1360 = vshrl.u32 %v1359, 7
    %v1361 = vsub.s32 %v1358, %v1360
    %v1362 = vrot.slane %v227, %v1361
    %v1364 = vunpack.c.l.s4 842150450
    %v1365 = vunpack.c.0.s8 %v1364
    %v1366 = vlaneseq
    %v1367 = vshrl.u32 %v1366, 7
    %v1368 = vsub.s32 %v1365, %v1367
    %v1369 = vrot.slane %v227, %v1368
    %v1371 = vunpack.c.l.s4 1414812756
    %v1372 = vunpack.c.0.s8 %v1371
    %v1373 = vlaneseq
    %v1374 = vshrl.u32 %v1373, 7
    %v1375 = vsub.s32 %v1372, %v1374
    %v1376 = vrot.slane %v227, %v1375
    %v1378 = vunpack.c.l.s4 1987475062
    %v1379 = vunpack.c.0.s8 %v1378
    %v1380 = vlaneseq
    %v1381 = vshrl.u32 %v1380, 7
    %v1382 = vsub.s32 %v1379, %v1381
    %v1383 = vrot.slane %v227, %v1382
    %v1385 = vunpack.c.l.s4 269488144
    %v1386 = vunpack.c.0.s8 %v1385
    %v1387 = vlaneseq
    %v1388 = vshrl.u32 %v1387, 7
    %v1389 = vsub.s32 %v1386, %v1388
    %v1390 = vrot.slane %v230, %v1389
    %v1392 = vunpack.c.l.s4 842150450
    %v1393 = vunpack.c.0.s8 %v1392
    %v1394 = vlaneseq
    %v1395 = vshrl.u32 %v1394, 7
    %v1396 = vsub.s32 %v1393, %v1395
    %v1397 = vrot.slane %v230, %v1396
    %v1399 = vunpack.c.l.s4 1414812756
    %v1400 = vunpack.c.0.s8 %v1399
    %v1401 = vlaneseq
    %v1402 = vshrl.u32 %v1401, 7
    %v1403 = vsub.s32 %v1400, %v1402
    %v1404 = vrot.slane %v230, %v1403
    %v1406 = vunpack.c.l.s4 1987475062
    %v1407 = vunpack.c.0.s8 %v1406
    %v1408 = vlaneseq
    %v1409 = vshrl.u32 %v1408, 7
    %v1410 = vsub.s32 %v1407, %v1409
    %v1411 = vrot.slane %v230, %v1410
    %v1413 = vunpack.c.l.s4 269488144
    %v1414 = vunpack.c.0.s8 %v1413
    %v1415 = vlaneseq
    %v1416 = vshrl.u32 %v1415, 7
    %v1417 = vsub.s32 %v1414, %v1416
    %v1418 = vrot.slane %v233, %v1417
    %v1420 = vunpack.c.l.s4 842150450
    %v1421 = vunpack.c.0.s8 %v1420
    %v1422 = vlaneseq
    %v1423 = vshrl.u32 %v1422, 7
    %v1424 = vsub.s32 %v1421, %v1423
    %v1425 = vrot.slane %v233, %v1424
    %v1427 = vunpack.c.l.s4 1414812756
    %v1428 = vunpack.c.0.s8 %v1427
    %v1429 = vlaneseq
    %v1430 = vshrl.u32 %v1429, 7
    %v1431 = vsub.s32 %v1428, %v1430
    %v1432 = vrot.slane %v233, %v1431
    %v1434 = vunpack.c.l.s4 1987475062
    %v1435 = vunpack.c.0.s8 %v1434
    %v1436 = vlaneseq
    %v1437 = vshrl.u32 %v1436, 7
    %v1438 = vsub.s32 %v1435, %v1437
    %v1439 = vrot.slane %v233, %v1438
    %v1441 = vunpack.c.l.s4 269488144
    %v1442 = vunpack.c.0.s8 %v1441
    %v1443 = vlaneseq
    %v1444 = vshrl.u32 %v1443, 7
    %v1445 = vsub.s32 %v1442, %v1444
    %v1446 = vrot.slane %v236, %v1445
    %v1448 = vunpack.c.l.s4 842150450
    %v1449 = vunpack.c.0.s8 %v1448
    %v1450 = vlaneseq
    %v1451 = vshrl.u32 %v1450, 7
    %v1452 = vsub.s32 %v1449, %v1451
    %v1453 = vrot.slane %v236, %v1452
    %v1455 = vunpack.c.l.s4 1414812756
    %v1456 = vunpack.c.0.s8 %v1455
    %v1457 = vlaneseq
    %v1458 = vshrl.u32 %v1457, 7
    %v1459 = vsub.s32 %v1456, %v1458
    %v1460 = vrot.slane %v236, %v1459
    %v1462 = vunpack.c.l.s4 1987475062
    %v1463 = vunpack.c.0.s8 %v1462
    %v1464 = vlaneseq
    %v1465 = vshrl.u32 %v1464, 7
    %v1466 = vsub.s32 %v1463, %v1465
    %v1467 = vrot.slane %v236, %v1466
    %v1469 = vunpack.c.l.s4 269488144
    %v1470 = vunpack.c.0.s8 %v1469
    %v1471 = vlaneseq
    %v1472 = vshrl.u32 %v1471, 7
    %v1473 = vsub.s32 %v1470, %v1472
    %v1474 = vrot.slane %v239, %v1473
    %v1476 = vunpack.c.l.s4 842150450
    %v1477 = vunpack.c.0.s8 %v1476
    %v1478 = vlaneseq
    %v1479 = vshrl.u32 %v1478, 7
    %v1480 = vsub.s32 %v1477, %v1479
    %v1481 = vrot.slane %v239, %v1480
    %v1483 = vunpack.c.l.s4 1414812756
    %v1484 = vunpack.c.0.s8 %v1483
    %v1485 = vlaneseq
    %v1486 = vshrl.u32 %v1485, 7
    %v1487 = vsub.s32 %v1484, %v1486
    %v1488 = vrot.slane %v239, %v1487
    %v1490 = vunpack.c.l.s4 1987475062
    %v1491 = vunpack.c.0.s8 %v1490
    %v1492 = vlaneseq
    %v1493 = vshrl.u32 %v1492, 7
    %v1494 = vsub.s32 %v1491, %v1493
    %v1495 = vrot.slane %v239, %v1494
    %v1497 = vunpack.c.l.s4 269488144
    %v1498 = vunpack.c.0.s8 %v1497
    %v1499 = vlaneseq
    %v1500 = vshrl.u32 %v1499, 7
    %v1501 = vsub.s32 %v1498, %v1500
    %v1502 = vrot.slane %v242, %v1501
    %v1504 = vunpack.c.l.s4 842150450
    %v1505 = vunpack.c.0.s8 %v1504
    %v1506 = vlaneseq
    %v1507 = vshrl.u32 %v1506, 7
    %v1508 = vsub.s32 %v1505, %v1507
    %v1509 = vrot.slane %v242, %v1508
    %v1511 = vunpack.c.l.s4 1414812756
    %v1512 = vunpack.c.0.s8 %v1511
    %v1513 = vlaneseq
    %v1514 = vshrl.u32 %v1513, 7
    %v1515 = vsub.s32 %v1512, %v1514
    %v1516 = vrot.slane %v242, %v1515
    %v1518 = vunpack.c.l.s4 1987475062
    %v1519 = vunpack.c.0.s8 %v1518
    %v1520 = vlaneseq
    %v1521 = vshrl.u32 %v1520, 7
    %v1522 = vsub.s32 %v1519, %v1521
    %v1523 = vrot.slane %v242, %v1522
    %v1525 = vunpack.c.l.s4 269488144
    %v1526 = vunpack.c.0.s8 %v1525
    %v1527 = vlaneseq
    %v1528 = vshrl.u32 %v1527, 7
    %v1529 = vsub.s32 %v1526, %v1528
    %v1530 = vrot.slane %v245, %v1529
    %v1532 = vunpack.c.l.s4 842150450
    %v1533 = vunpack.c.0.s8 %v1532
    %v1534 = vlaneseq
    %v1535 = vshrl.u32 %v1534, 7
    %v1536 = vsub.s32 %v1533, %v1535
    %v1537 = vrot.slane %v245, %v1536
    %v1539 = vunpack.c.l.s4 1414812756
    %v1540 = vunpack.c.0.s8 %v1539
    %v1541 = vlaneseq
    %v1542 = vshrl.u32 %v1541, 7
    %v1543 = vsub.s32 %v1540, %v1542
    %v1544 = vrot.slane %v245, %v1543
    %v1546 = vunpack.c.l.s4 1987475062
    %v1547 = vunpack.c.0.s8 %v1546
    %v1548 = vlaneseq
    %v1549 = vshrl.u32 %v1548, 7
    %v1550 = vsub.s32 %v1547, %v1549
    %v1551 = vrot.slane %v245, %v1550
    %v1553 = vunpack.c.l.s4 269488144
    %v1554 = vunpack.c.0.s8 %v1553
    %v1555 = vlaneseq
    %v1556 = vshrl.u32 %v1555, 7
    %v1557 = vsub.s32 %v1554, %v1556
    %v1558 = vrot.slane %v248, %v1557
    %v1560 = vunpack.c.l.s4 842150450
    %v1561 = vunpack.c.0.s8 %v1560
    %v1562 = vlaneseq
    %v1563 = vshrl.u32 %v1562, 7
    %v1564 = vsub.s32 %v1561, %v1563
    %v1565 = vrot.slane %v248, %v1564
    %v1567 = vunpack.c.l.s4 1414812756
    %v1568 = vunpack.c.0.s8 %v1567
    %v1569 = vlaneseq
    %v1570 = vshrl.u32 %v1569, 7
    %v1571 = vsub.s32 %v1568, %v1570
    %v1572 = vrot.slane %v248, %v1571
    %v1574 = vunpack.c.l.s4 1987475062
    %v1575 = vunpack.c.0.s8 %v1574
    %v1576 = vlaneseq
    %v1577 = vshrl.u32 %v1576, 7
    %v1578 = vsub.s32 %v1575, %v1577
    %v1579 = vrot.slane %v248, %v1578
    %v1581 = vunpack.c.l.s4 269488144
    %v1582 = vunpack.c.0.s8 %v1581
    %v1583 = vlaneseq
    %v1584 = vshrl.u32 %v1583, 7
    %v1585 = vsub.s32 %v1582, %v1584
    %v1586 = vrot.slane %v251, %v1585
    %v1588 = vunpack.c.l.s4 842150450
    %v1589 = vunpack.c.0.s8 %v1588
    %v1590 = vlaneseq
    %v1591 = vshrl.u32 %v1590, 7
    %v1592 = vsub.s32 %v1589, %v1591
    %v1593 = vrot.slane %v251, %v1592
    %v1595 = vunpack.c.l.s4 1414812756
    %v1596 = vunpack.c.0.s8 %v1595
    %v1597 = vlaneseq
    %v1598 = vshrl.u32 %v1597, 7
    %v1599 = vsub.s32 %v1596, %v1598
    %v1600 = vrot.slane %v251, %v1599
    %v1602 = vunpack.c.l.s4 1987475062
    %v1603 = vunpack.c.0.s8 %v1602
    %v1604 = vlaneseq
    %v1605 = vshrl.u32 %v1604, 7
    %v1606 = vsub.s32 %v1603, %v1605
    %v1607 = vrot.slane %v251, %v1606
    %v1609 = vunpack.c.l.s4 269488144
    %v1610 = vunpack.c.0.s8 %v1609
    %v1611 = vlaneseq
    %v1612 = vshrl.u32 %v1611, 7
    %v1613 = vsub.s32 %v1610, %v1612
    %v1614 = vrot.slane %v254, %v1613
    %v1616 = vunpack.c.l.s4 842150450
    %v1617 = vunpack.c.0.s8 %v1616
    %v1618 = vlaneseq
    %v1619 = vshrl.u32 %v1618, 7
    %v1620 = vsub.s32 %v1617, %v1619
    %v1621 = vrot.slane %v254, %v1620
    %v1623 = vunpack.c.l.s4 1414812756
    %v1624 = vunpack.c.0.s8 %v1623
    %v1625 = vlaneseq
    %v1626 = vshrl.u32 %v1625, 7
    %v1627 = vsub.s32 %v1624, %v1626
    %v1628 = vrot.slane %v254, %v1627
    %v1630 = vunpack.c.l.s4 1987475062
    %v1631 = vunpack.c.0.s8 %v1630
    %v1632 = vlaneseq
    %v1633 = vshrl.u32 %v1632, 7
    %v1634 = vsub.s32 %v1631, %v1633
    %v1635 = vrot.slane %v254, %v1634
    %v1637 = vunpack.c.l.s4 269488144
    %v1638 = vunpack.c.0.s8 %v1637
    %v1639 = vlaneseq
    %v1640 = vshrl.u32 %v1639, 7
    %v1641 = vsub.s32 %v1638, %v1640
    %v1642 = vrot.slane %v257, %v1641
    %v1644 = vunpack.c.l.s4 842150450
    %v1645 = vunpack.c.0.s8 %v1644
    %v1646 = vlaneseq
    %v1647 = vshrl.u32 %v1646, 7
    %v1648 = vsub.s32 %v1645, %v1647
    %v1649 = vrot.slane %v257, %v1648
    %v1651 = vunpack.c.l.s4 1414812756
    %v1652 = vunpack.c.0.s8 %v1651
    %v1653 = vlaneseq
    %v1654 = vshrl.u32 %v1653, 7
    %v1655 = vsub.s32 %v1652, %v1654
    %v1656 = vrot.slane %v257, %v1655
    %v1658 = vunpack.c.l.s4 1987475062
    %v1659 = vunpack.c.0.s8 %v1658
    %v1660 = vlaneseq
    %v1661 = vshrl.u32 %v1660, 7
    %v1662 = vsub.s32 %v1659, %v1661
    %v1663 = vrot.slane %v257, %v1662
    %v1665 = vunpack.c.l.s4 269488144
    %v1666 = vunpack.c.0.s8 %v1665
    %v1667 = vlaneseq
    %v1668 = vshrl.u32 %v1667, 7
    %v1669 = vsub.s32 %v1666, %v1668
    %v1670 = vrot.slane %v260, %v1669
    %v1672 = vunpack.c.l.s4 842150450
    %v1673 = vunpack.c.0.s8 %v1672
    %v1674 = vlaneseq
    %v1675 = vshrl.u32 %v1674, 7
    %v1676 = vsub.s32 %v1673, %v1675
    %v1677 = vrot.slane %v260, %v1676
    %v1679 = vunpack.c.l.s4 1414812756
    %v1680 = vunpack.c.0.s8 %v1679
    %v1681 = vlaneseq
    %v1682 = vshrl.u32 %v1681, 7
    %v1683 = vsub.s32 %v1680, %v1682
    %v1684 = vrot.slane %v260, %v1683
    %v1686 = vunpack.c.l.s4 1987475062
    %v1687 = vunpack.c.0.s8 %v1686
    %v1688 = vlaneseq
    %v1689 = vshrl.u32 %v1688, 7
    %v1690 = vsub.s32 %v1687, %v1689
    %v1691 = vrot.slane %v260, %v1690
    %v1693 = vunpack.c.l.s4 269488144
    %v1694 = vunpack.c.0.s8 %v1693
    %v1695 = vlaneseq
    %v1696 = vshrl.u32 %v1695, 7
    %v1697 = vsub.s32 %v1694, %v1696
    %v1698 = vrot.slane %v263, %v1697
    %v1700 = vunpack.c.l.s4 842150450
    %v1701 = vunpack.c.0.s8 %v1700
    %v1702 = vlaneseq
    %v1703 = vshrl.u32 %v1702, 7
    %v1704 = vsub.s32 %v1701, %v1703
    %v1705 = vrot.slane %v263, %v1704
    %v1707 = vunpack.c.l.s4 1414812756
    %v1708 = vunpack.c.0.s8 %v1707
    %v1709 = vlaneseq
    %v1710 = vshrl.u32 %v1709, 7
    %v1711 = vsub.s32 %v1708, %v1710
    %v1712 = vrot.slane %v263, %v1711
    %v1714 = vunpack.c.l.s4 1987475062
    %v1715 = vunpack.c.0.s8 %v1714
    %v1716 = vlaneseq
    %v1717 = vshrl.u32 %v1716, 7
    %v1718 = vsub.s32 %v1715, %v1717
    %v1719 = vrot.slane %v263, %v1718
    %v1721 = vunpack.c.l.s4 269488144
    %v1722 = vunpack.c.0.s8 %v1721
    %v1723 = vlaneseq
    %v1724 = vshrl.u32 %v1723, 7
    %v1725 = vsub.s32 %v1722, %v1724
    %v1726 = vrot.slane %v266, %v1725
    %v1728 = vunpack.c.l.s4 842150450
    %v1729 = vunpack.c.0.s8 %v1728
    %v1730 = vlaneseq
    %v1731 = vshrl.u32 %v1730, 7
    %v1732 = vsub.s32 %v1729, %v1731
    %v1733 = vrot.slane %v266, %v1732
    %v1735 = vunpack.c.l.s4 1414812756
    %v1736 = vunpack.c.0.s8 %v1735
    %v1737 = vlaneseq
    %v1738 = vshrl.u32 %v1737, 7
    %v1739 = vsub.s32 %v1736, %v1738
    %v1740 = vrot.slane %v266, %v1739
    %v1742 = vunpack.c.l.s4 1987475062
    %v1743 = vunpack.c.0.s8 %v1742
    %v1744 = vlaneseq
    %v1745 = vshrl.u32 %v1744, 7
    %v1746 = vsub.s32 %v1743, %v1745
    %v1747 = vrot.slane %v266, %v1746
    %v1749 = vunpack.c.l.s4 269488144
    %v1750 = vunpack.c.0.s8 %v1749
    %v1751 = vlaneseq
    %v1752 = vshrl.u32 %v1751, 7
    %v1753 = vsub.s32 %v1750, %v1752
    %v1754 = vrot.slane %v269, %v1753
    %v1756 = vunpack.c.l.s4 842150450
    %v1757 = vunpack.c.0.s8 %v1756
    %v1758 = vlaneseq
    %v1759 = vshrl.u32 %v1758, 7
    %v1760 = vsub.s32 %v1757, %v1759
    %v1761 = vrot.slane %v269, %v1760
    %v1763 = vunpack.c.l.s4 1414812756
    %v1764 = vunpack.c.0.s8 %v1763
    %v1765 = vlaneseq
    %v1766 = vshrl.u32 %v1765, 7
    %v1767 = vsub.s32 %v1764, %v1766
    %v1768 = vrot.slane %v269, %v1767
    %v1770 = vunpack.c.l.s4 1987475062
    %v1771 = vunpack.c.0.s8 %v1770
    %v1772 = vlaneseq
    %v1773 = vshrl.u32 %v1772, 7
    %v1774 = vsub.s32 %v1771, %v1773
    %v1775 = vrot.slane %v269, %v1774
    %v1777 = vunpack.c.l.s4 269488144
    %v1778 = vunpack.c.0.s8 %v1777
    %v1779 = vlaneseq
    %v1780 = vshrl.u32 %v1779, 7
    %v1781 = vsub.s32 %v1778, %v1780
    %v1782 = vrot.slane %v272, %v1781
    %v1784 = vunpack.c.l.s4 842150450
    %v1785 = vunpack.c.0.s8 %v1784
    %v1786 = vlaneseq
    %v1787 = vshrl.u32 %v1786, 7
    %v1788 = vsub.s32 %v1785, %v1787
    %v1789 = vrot.slane %v272, %v1788
    %v1791 = vunpack.c.l.s4 1414812756
    %v1792 = vunpack.c.0.s8 %v1791
    %v1793 = vlaneseq
    %v1794 = vshrl.u32 %v1793, 7
    %v1795 = vsub.s32 %v1792, %v1794
    %v1796 = vrot.slane %v272, %v1795
    %v1798 = vunpack.c.l.s4 1987475062
    %v1799 = vunpack.c.0.s8 %v1798
    %v1800 = vlaneseq
    %v1801 = vshrl.u32 %v1800, 7
    %v1802 = vsub.s32 %v1799, %v1801
    %v1803 = vrot.slane %v272, %v1802
    %v1805 = vunpack.c.l.s4 269488144
    %v1806 = vunpack.c.0.s8 %v1805
    %v1807 = vlaneseq
    %v1808 = vshrl.u32 %v1807, 7
    %v1809 = vsub.s32 %v1806, %v1808
    %v1810 = vrot.slane %v275, %v1809
    %v1812 = vunpack.c.l.s4 842150450
    %v1813 = vunpack.c.0.s8 %v1812
    %v1814 = vlaneseq
    %v1815 = vshrl.u32 %v1814, 7
    %v1816 = vsub.s32 %v1813, %v1815
    %v1817 = vrot.slane %v275, %v1816
    %v1819 = vunpack.c.l.s4 1414812756
    %v1820 = vunpack.c.0.s8 %v1819
    %v1821 = vlaneseq
    %v1822 = vshrl.u32 %v1821, 7
    %v1823 = vsub.s32 %v1820, %v1822
    %v1824 = vrot.slane %v275, %v1823
    %v1826 = vunpack.c.l.s4 1987475062
    %v1827 = vunpack.c.0.s8 %v1826
    %v1828 = vlaneseq
    %v1829 = vshrl.u32 %v1828, 7
    %v1830 = vsub.s32 %v1827, %v1829
    %v1831 = vrot.slane %v275, %v1830
    %v1833 = vunpack.c.l.s4 269488144
    %v1834 = vunpack.c.0.s8 %v1833
    %v1835 = vlaneseq
    %v1836 = vshrl.u32 %v1835, 7
    %v1837 = vsub.s32 %v1834, %v1836
    %v1838 = vrot.slane %v278, %v1837
    %v1840 = vunpack.c.l.s4 842150450
    %v1841 = vunpack.c.0.s8 %v1840
    %v1842 = vlaneseq
    %v1843 = vshrl.u32 %v1842, 7
    %v1844 = vsub.s32 %v1841, %v1843
    %v1845 = vrot.slane %v278, %v1844
    %v1847 = vunpack.c.l.s4 1414812756
    %v1848 = vunpack.c.0.s8 %v1847
    %v1849 = vlaneseq
    %v1850 = vshrl.u32 %v1849, 7
    %v1851 = vsub.s32 %v1848, %v1850
    %v1852 = vrot.slane %v278, %v1851
    %v1854 = vunpack.c.l.s4 1987475062
    %v1855 = vunpack.c.0.s8 %v1854
    %v1856 = vlaneseq
    %v1857 = vshrl.u32 %v1856, 7
    %v1858 = vsub.s32 %v1855, %v1857
    %v1859 = vrot.slane %v278, %v1858
    %v1861 = vunpack.c.l.s4 269488144
    %v1862 = vunpack.c.0.s8 %v1861
    %v1863 = vlaneseq
    %v1864 = vshrl.u32 %v1863, 7
    %v1865 = vsub.s32 %v1862, %v1864
    %v1866 = vrot.slane %v281, %v1865
    %v1868 = vunpack.c.l.s4 842150450
    %v1869 = vunpack.c.0.s8 %v1868
    %v1870 = vlaneseq
    %v1871 = vshrl.u32 %v1870, 7
    %v1872 = vsub.s32 %v1869, %v1871
    %v1873 = vrot.slane %v281, %v1872
    %v1875 = vunpack.c.l.s4 1414812756
    %v1876 = vunpack.c.0.s8 %v1875
    %v1877 = vlaneseq
    %v1878 = vshrl.u32 %v1877, 7
    %v1879 = vsub.s32 %v1876, %v1878
    %v1880 = vrot.slane %v281, %v1879
    %v1882 = vunpack.c.l.s4 1987475062
    %v1883 = vunpack.c.0.s8 %v1882
    %v1884 = vlaneseq
    %v1885 = vshrl.u32 %v1884, 7
    %v1886 = vsub.s32 %v1883, %v1885
    %v1887 = vrot.slane %v281, %v1886
    %v1889 = vunpack.c.l.s4 269488144
    %v1890 = vunpack.c.0.s8 %v1889
    %v1891 = vlaneseq
    %v1892 = vshrl.u32 %v1891, 7
    %v1893 = vsub.s32 %v1890, %v1892
    %v1894 = vrot.slane %v284, %v1893
    %v1896 = vunpack.c.l.s4 842150450
    %v1897 = vunpack.c.0.s8 %v1896
    %v1898 = vlaneseq
    %v1899 = vshrl.u32 %v1898, 7
    %v1900 = vsub.s32 %v1897, %v1899
    %v1901 = vrot.slane %v284, %v1900
    %v1903 = vunpack.c.l.s4 1414812756
    %v1904 = vunpack.c.0.s8 %v1903
    %v1905 = vlaneseq
    %v1906 = vshrl.u32 %v1905, 7
    %v1907 = vsub.s32 %v1904, %v1906
    %v1908 = vrot.slane %v284, %v1907
    %v1910 = vunpack.c.l.s4 1987475062
    %v1911 = vunpack.c.0.s8 %v1910
    %v1912 = vlaneseq
    %v1913 = vshrl.u32 %v1912, 7
    %v1914 = vsub.s32 %v1911, %v1913
    %v1915 = vrot.slane %v284, %v1914
    %v1917 = vunpack.c.l.s4 269488144
    %v1918 = vunpack.c.0.s8 %v1917
    %v1919 = vlaneseq
    %v1920 = vshrl.u32 %v1919, 7
    %v1921 = vsub.s32 %v1918, %v1920
    %v1922 = vrot.slane %v287, %v1921
    %v1924 = vunpack.c.l.s4 842150450
    %v1925 = vunpack.c.0.s8 %v1924
    %v1926 = vlaneseq
    %v1927 = vshrl.u32 %v1926, 7
    %v1928 = vsub.s32 %v1925, %v1927
    %v1929 = vrot.slane %v287, %v1928
    %v1931 = vunpack.c.l.s4 1414812756
    %v1932 = vunpack.c.0.s8 %v1931
    %v1933 = vlaneseq
    %v1934 = vshrl.u32 %v1933, 7
    %v1935 = vsub.s32 %v1932, %v1934
    %v1936 = vrot.slane %v287, %v1935
    %v1938 = vunpack.c.l.s4 1987475062
    %v1939 = vunpack.c.0.s8 %v1938
    %v1940 = vlaneseq
    %v1941 = vshrl.u32 %v1940, 7
    %v1942 = vsub.s32 %v1939, %v1941
    %v1943 = vrot.slane %v287, %v1942
    %v1945 = vunpack.c.l.s4 269488144
    %v1946 = vunpack.c.0.s8 %v1945
    %v1947 = vlaneseq
    %v1948 = vshrl.u32 %v1947, 7
    %v1949 = vsub.s32 %v1946, %v1948
    %v1950 = vrot.slane %v290, %v1949
    %v1952 = vunpack.c.l.s4 842150450
    %v1953 = vunpack.c.0.s8 %v1952
    %v1954 = vlaneseq
    %v1955 = vshrl.u32 %v1954, 7
    %v1956 = vsub.s32 %v1953, %v1955
    %v1957 = vrot.slane %v290, %v1956
    %v1959 = vunpack.c.l.s4 1414812756
    %v1960 = vunpack.c.0.s8 %v1959
    %v1961 = vlaneseq
    %v1962 = vshrl.u32 %v1961, 7
    %v1963 = vsub.s32 %v1960, %v1962
    %v1964 = vrot.slane %v290, %v1963
    %v1966 = vunpack.c.l.s4 1987475062
    %v1967 = vunpack.c.0.s8 %v1966
    %v1968 = vlaneseq
    %v1969 = vshrl.u32 %v1968, 7
    %v1970 = vsub.s32 %v1967, %v1969
    %v1971 = vrot.slane %v290, %v1970
    %v1973 = vunpack.c.l.s4 269488144
    %v1974 = vunpack.c.0.s8 %v1973
    %v1975 = vlaneseq
    %v1976 = vshrl.u32 %v1975, 7
    %v1977 = vsub.s32 %v1974, %v1976
    %v1978 = vrot.slane %v293, %v1977
    %v1980 = vunpack.c.l.s4 842150450
    %v1981 = vunpack.c.0.s8 %v1980
    %v1982 = vlaneseq
    %v1983 = vshrl.u32 %v1982, 7
    %v1984 = vsub.s32 %v1981, %v1983
    %v1985 = vrot.slane %v293, %v1984
    %v1987 = vunpack.c.l.s4 1414812756
    %v1988 = vunpack.c.0.s8 %v1987
    %v1989 = vlaneseq
    %v1990 = vshrl.u32 %v1989, 7
    %v1991 = vsub.s32 %v1988, %v1990
    %v1992 = vrot.slane %v293, %v1991
    %v1994 = vunpack.c.l.s4 1987475062
    %v1995 = vunpack.c.0.s8 %v1994
    %v1996 = vlaneseq
    %v1997 = vshrl.u32 %v1996, 7
    %v1998 = vsub.s32 %v1995, %v1997
    %v1999 = vrot.slane %v293, %v1998
    %v2001 = vunpack.c.l.s4 269488144
    %v2002 = vunpack.c.0.s8 %v2001
    %v2003 = vlaneseq
    %v2004 = vshrl.u32 %v2003, 7
    %v2005 = vsub.s32 %v2002, %v2004
    %v2006 = vrot.slane %v296, %v2005
    %v2008 = vunpack.c.l.s4 842150450
    %v2009 = vunpack.c.0.s8 %v2008
    %v2010 = vlaneseq
    %v2011 = vshrl.u32 %v2010, 7
    %v2012 = vsub.s32 %v2009, %v2011
    %v2013 = vrot.slane %v296, %v2012
    %v2015 = vunpack.c.l.s4 1414812756
    %v2016 = vunpack.c.0.s8 %v2015
    %v2017 = vlaneseq
    %v2018 = vshrl.u32 %v2017, 7
    %v2019 = vsub.s32 %v2016, %v2018
    %v2020 = vrot.slane %v296, %v2019
    %v2022 = vunpack.c.l.s4 1987475062
    %v2023 = vunpack.c.0.s8 %v2022
    %v2024 = vlaneseq
    %v2025 = vshrl.u32 %v2024, 7
    %v2026 = vsub.s32 %v2023, %v2025
    %v2027 = vrot.slane %v296, %v2026
    %v2029 = vunpack.c.l.s4 269488144
    %v2030 = vunpack.c.0.s8 %v2029
    %v2031 = vlaneseq
    %v2032 = vshrl.u32 %v2031, 7
    %v2033 = vsub.s32 %v2030, %v2032
    %v2034 = vrot.slane %v299, %v2033
    %v2036 = vunpack.c.l.s4 842150450
    %v2037 = vunpack.c.0.s8 %v2036
    %v2038 = vlaneseq
    %v2039 = vshrl.u32 %v2038, 7
    %v2040 = vsub.s32 %v2037, %v2039
    %v2041 = vrot.slane %v299, %v2040
    %v2043 = vunpack.c.l.s4 1414812756
    %v2044 = vunpack.c.0.s8 %v2043
    %v2045 = vlaneseq
    %v2046 = vshrl.u32 %v2045, 7
    %v2047 = vsub.s32 %v2044, %v2046
    %v2048 = vrot.slane %v299, %v2047
    %v2050 = vunpack.c.l.s4 1987475062
    %v2051 = vunpack.c.0.s8 %v2050
    %v2052 = vlaneseq
    %v2053 = vshrl.u32 %v2052, 7
    %v2054 = vsub.s32 %v2051, %v2053
    %v2055 = vrot.slane %v299, %v2054
    %v2057 = vunpack.c.l.s4 269488144
    %v2058 = vunpack.c.0.s8 %v2057
    %v2059 = vlaneseq
    %v2060 = vshrl.u32 %v2059, 7
    %v2061 = vsub.s32 %v2058, %v2060
    %v2062 = vrot.slane %v302, %v2061
    %v2064 = vunpack.c.l.s4 842150450
    %v2065 = vunpack.c.0.s8 %v2064
    %v2066 = vlaneseq
    %v2067 = vshrl.u32 %v2066, 7
    %v2068 = vsub.s32 %v2065, %v2067
    %v2069 = vrot.slane %v302, %v2068
    %v2071 = vunpack.c.l.s4 1414812756
    %v2072 = vunpack.c.0.s8 %v2071
    %v2073 = vlaneseq
    %v2074 = vshrl.u32 %v2073, 7
    %v2075 = vsub.s32 %v2072, %v2074
    %v2076 = vrot.slane %v302, %v2075
    %v2078 = vunpack.c.l.s4 1987475062
    %v2079 = vunpack.c.0.s8 %v2078
    %v2080 = vlaneseq
    %v2081 = vshrl.u32 %v2080, 7
    %v2082 = vsub.s32 %v2079, %v2081
    %v2083 = vrot.slane %v302, %v2082
    %v2085 = vunpack.c.l.s4 269488144
    %v2086 = vunpack.c.0.s8 %v2085
    %v2087 = vlaneseq
    %v2088 = vshrl.u32 %v2087, 7
    %v2089 = vsub.s32 %v2086, %v2088
    %v2090 = vrot.slane %v305, %v2089
    %v2092 = vunpack.c.l.s4 842150450
    %v2093 = vunpack.c.0.s8 %v2092
    %v2094 = vlaneseq
    %v2095 = vshrl.u32 %v2094, 7
    %v2096 = vsub.s32 %v2093, %v2095
    %v2097 = vrot.slane %v305, %v2096
    %v2099 = vunpack.c.l.s4 1414812756
    %v2100 = vunpack.c.0.s8 %v2099
    %v2101 = vlaneseq
    %v2102 = vshrl.u32 %v2101, 7
    %v2103 = vsub.s32 %v2100, %v2102
    %v2104 = vrot.slane %v305, %v2103
    %v2106 = vunpack.c.l.s4 1987475062
    %v2107 = vunpack.c.0.s8 %v2106
    %v2108 = vlaneseq
    %v2109 = vshrl.u32 %v2108, 7
    %v2110 = vsub.s32 %v2107, %v2109
    %v2111 = vrot.slane %v305, %v2110
    %v2113 = vunpack.c.l.s4 269488144
    %v2114 = vunpack.c.0.s8 %v2113
    %v2115 = vlaneseq
    %v2116 = vshrl.u32 %v2115, 7
    %v2117 = vsub.s32 %v2114, %v2116
    %v2118 = vrot.slane %v308, %v2117
    %v2120 = vunpack.c.l.s4 842150450
    %v2121 = vunpack.c.0.s8 %v2120
    %v2122 = vlaneseq
    %v2123 = vshrl.u32 %v2122, 7
    %v2124 = vsub.s32 %v2121, %v2123
    %v2125 = vrot.slane %v308, %v2124
    %v2127 = vunpack.c.l.s4 1414812756
    %v2128 = vunpack.c.0.s8 %v2127
    %v2129 = vlaneseq
    %v2130 = vshrl.u32 %v2129, 7
    %v2131 = vsub.s32 %v2128, %v2130
    %v2132 = vrot.slane %v308, %v2131
    %v2134 = vunpack.c.l.s4 1987475062
    %v2135 = vunpack.c.0.s8 %v2134
    %v2136 = vlaneseq
    %v2137 = vshrl.u32 %v2136, 7
    %v2138 = vsub.s32 %v2135, %v2137
    %v2139 = vrot.slane %v308, %v2138
    %v2141 = vunpack.c.l.s4 269488144
    %v2142 = vunpack.c.0.s8 %v2141
    %v2143 = vlaneseq
    %v2144 = vshrl.u32 %v2143, 7
    %v2145 = vsub.s32 %v2142, %v2144
    %v2146 = vrot.slane %v311, %v2145
    %v2148 = vunpack.c.l.s4 842150450
    %v2149 = vunpack.c.0.s8 %v2148
    %v2150 = vlaneseq
    %v2151 = vshrl.u32 %v2150, 7
    %v2152 = vsub.s32 %v2149, %v2151
    %v2153 = vrot.slane %v311, %v2152
    %v2155 = vunpack.c.l.s4 1414812756
    %v2156 = vunpack.c.0.s8 %v2155
    %v2157 = vlaneseq
    %v2158 = vshrl.u32 %v2157, 7
    %v2159 = vsub.s32 %v2156, %v2158
    %v2160 = vrot.slane %v311, %v2159
    %v2162 = vunpack.c.l.s4 1987475062
    %v2163 = vunpack.c.0.s8 %v2162
    %v2164 = vlaneseq
    %v2165 = vshrl.u32 %v2164, 7
    %v2166 = vsub.s32 %v2163, %v2165
    %v2167 = vrot.slane %v311, %v2166
    %v2168 = vcombine.low %v382, %v389
    %v2169 = vcombine.low %v396, %v403
    %v2171 = vunpack.c.l.s4 1983009808
    %v2172 = vunpack.c.0.s8 %v2171
    %v2173 = vlaneseq
    %v2174 = vshrl.u32 %v2173, 7
    %v2175 = vsub.s32 %v2172, %v2174
    %v2176 = vrot.slane %v2168, %v2175
    %v2178 = vunpack.c.l.s4 1983009808
    %v2179 = vunpack.c.0.s8 %v2178
    %v2180 = vlaneseq
    %v2181 = vshrl.u32 %v2180, 7
    %v2182 = vsub.s32 %v2179, %v2181
    %v2183 = vrot.slane %v2169, %v2182
    %v2184 = vcombine.low %v2176, %v2183
    %v2185 = vcombine.low %v410, %v417
    %v2186 = vcombine.low %v424, %v431
    %v2188 = vunpack.c.l.s4 1983009808
    %v2189 = vunpack.c.0.s8 %v2188
    %v2190 = vlaneseq
    %v2191 = vshrl.u32 %v2190, 7
    %v2192 = vsub.s32 %v2189, %v2191
    %v2193 = vrot.slane %v2185, %v2192
    %v2195 = vunpack.c.l.s4 1983009808
    %v2196 = vunpack.c.0.s8 %v2195
    %v2197 = vlaneseq
    %v2198 = vshrl.u32 %v2197, 7
    %v2199 = vsub.s32 %v2196, %v2198
    %v2200 = vrot.slane %v2186, %v2199
    %v2201 = vcombine.low %v2193, %v2200
    %v2202 = vcombine.low %v438, %v445
    %v2203 = vcombine.low %v452, %v459
    %v2205 = vunpack.c.l.s4 1983009808
    %v2206 = vunpack.c.0.s8 %v2205
    %v2207 = vlaneseq
    %v2208 = vshrl.u32 %v2207, 7
    %v2209 = vsub.s32 %v2206, %v2208
    %v2210 = vrot.slane %v2202, %v2209
    %v2212 = vunpack.c.l.s4 1983009808
    %v2213 = vunpack.c.0.s8 %v2212
    %v2214 = vlaneseq
    %v2215 = vshrl.u32 %v2214, 7
    %v2216 = vsub.s32 %v2213, %v2215
    %v2217 = vrot.slane %v2203, %v2216
    %v2218 = vcombine.low %v2210, %v2217
    %v2219 = vcombine.low %v466, %v473
    %v2220 = vcombine.low %v480, %v487
    %v2222 = vunpack.c.l.s4 1983009808
    %v2223 = vunpack.c.0.s8 %v2222
    %v2224 = vlaneseq
    %v2225 = vshrl.u32 %v2224, 7
    %v2226 = vsub.s32 %v2223, %v2225
    %v2227 = vrot.slane %v2219, %v2226
    %v2229 = vunpack.c.l.s4 1983009808
    %v2230 = vunpack.c.0.s8 %v2229
    %v2231 = vlaneseq
    %v2232 = vshrl.u32 %v2231, 7
    %v2233 = vsub.s32 %v2230, %v2232
    %v2234 = vrot.slane %v2220, %v2233
    %v2235 = vcombine.low %v2227, %v2234
    %v2236 = vcombine.low %v494, %v501
    %v2237 = vcombine.low %v508, %v515
    %v2239 = vunpack.c.l.s4 1983009808
    %v2240 = vunpack.c.0.s8 %v2239
    %v2241 = vlaneseq
    %v2242 = vshrl.u32 %v2241, 7
    %v2243 = vsub.s32 %v2240, %v2242
    %v2244 = vrot.slane %v2236, %v2243
    %v2246 = vunpack.c.l.s4 1983009808
    %v2247 = vunpack.c.0.s8 %v2246
    %v2248 = vlaneseq
    %v2249 = vshrl.u32 %v2248, 7
    %v2250 = vsub.s32 %v2247, %v2249
    %v2251 = vrot.slane %v2237, %v2250
    %v2252 = vcombine.low %v2244, %v2251
    %v2253 = vcombine.low %v522, %v529
    %v2254 = vcombine.low %v536, %v543
    %v2256 = vunpack.c.l.s4 1983009808
    %v2257 = vunpack.c.0.s8 %v2256
    %v2258 = vlaneseq
    %v2259 = vshrl.u32 %v2258, 7
    %v2260 = vsub.s32 %v2257, %v2259
    %v2261 = vrot.slane %v2253, %v2260
    %v2263 = vunpack.c.l.s4 1983009808
    %v2264 = vunpack.c.0.s8 %v2263
    %v2265 = vlaneseq
    %v2266 = vshrl.u32 %v2265, 7
    %v2267 = vsub.s32 %v2264, %v2266
    %v2268 = vrot.slane %v2254, %v2267
    %v2269 = vcombine.low %v2261, %v2268
    %v2270 = vcombine.low %v550, %v557
    %v2271 = vcombine.low %v564, %v571
    %v2273 = vunpack.c.l.s4 1983009808
    %v2274 = vunpack.c.0.s8 %v2273
    %v2275 = vlaneseq
    %v2276 = vshrl.u32 %v2275, 7
    %v2277 = vsub.s32 %v2274, %v2276
    %v2278 = vrot.slane %v2270, %v2277
    %v2280 = vunpack.c.l.s4 1983009808
    %v2281 = vunpack.c.0.s8 %v2280
    %v2282 = vlaneseq
    %v2283 = vshrl.u32 %v2282, 7
    %v2284 = vsub.s32 %v2281, %v2283
    %v2285 = vrot.slane %v2271, %v2284
    %v2286 = vcombine.low %v2278, %v2285
    %v2287 = vcombine.low %v578, %v585
    %v2288 = vcombine.low %v592, %v599
    %v2290 = vunpack.c.l.s4 1983009808
    %v2291 = vunpack.c.0.s8 %v2290
    %v2292 = vlaneseq
    %v2293 = vshrl.u32 %v2292, 7
    %v2294 = vsub.s32 %v2291, %v2293
    %v2295 = vrot.slane %v2287, %v2294
    %v2297 = vunpack.c.l.s4 1983009808
    %v2298 = vunpack.c.0.s8 %v2297
    %v2299 = vlaneseq
    %v2300 = vshrl.u32 %v2299, 7
    %v2301 = vsub.s32 %v2298, %v2300
    %v2302 = vrot.slane %v2288, %v2301
    %v2303 = vcombine.low %v2295, %v2302
    %v2304 = vcombine.low %v606, %v613
    %v2305 = vcombine.low %v620, %v627
    %v2307 = vunpack.c.l.s4 1983009808
    %v2308 = vunpack.c.0.s8 %v2307
    %v2309 = vlaneseq
    %v2310 = vshrl.u32 %v2309, 7
    %v2311 = vsub.s32 %v2308, %v2310
    %v2312 = vrot.slane %v2304, %v2311
    %v2314 = vunpack.c.l.s4 1983009808
    %v2315 = vunpack.c.0.s8 %v2314
    %v2316 = vlaneseq
    %v2317 = vshrl.u32 %v2316, 7
    %v2318 = vsub.s32 %v2315, %v2317
    %v2319 = vrot.slane %v2305, %v2318
    %v2320 = vcombine.low %v2312, %v2319
    %v2321 = vcombine.low %v634, %v641
    %v2322 = vcombine.low %v648, %v655
    %v2324 = vunpack.c.l.s4 1983009808
    %v2325 = vunpack.c.0.s8 %v2324
    %v2326 = vlaneseq
    %v2327 = vshrl.u32 %v2326, 7
    %v2328 = vsub.s32 %v2325, %v2327
    %v2329 = vrot.slane %v2321, %v2328
    %v2331 = vunpack.c.l.s4 1983009808
    %v2332 = vunpack.c.0.s8 %v2331
    %v2333 = vlaneseq
    %v2334 = vshrl.u32 %v2333, 7
    %v2335 = vsub.s32 %v2332, %v2334
    %v2336 = vrot.slane %v2322, %v2335
    %v2337 = vcombine.low %v2329, %v2336
    %v2338 = vcombine.low %v662, %v669
    %v2339 = vcombine.low %v676, %v683
    %v2341 = vunpack.c.l.s4 1983009808
    %v2342 = vunpack.c.0.s8 %v2341
    %v2343 = vlaneseq
    %v2344 = vshrl.u32 %v2343, 7
    %v2345 = vsub.s32 %v2342, %v2344
    %v2346 = vrot.slane %v2338, %v2345
    %v2348 = vunpack.c.l.s4 1983009808
    %v2349 = vunpack.c.0.s8 %v2348
    %v2350 = vlaneseq
    %v2351 = vshrl.u32 %v2350, 7
    %v2352 = vsub.s32 %v2349, %v2351
    %v2353 = vrot.slane %v2339, %v2352
    %v2354 = vcombine.low %v2346, %v2353
    %v2355 = vcombine.low %v690, %v697
    %v2356 = vcombine.low %v704, %v711
    %v2358 = vunpack.c.l.s4 1983009808
    %v2359 = vunpack.c.0.s8 %v2358
    %v2360 = vlaneseq
    %v2361 = vshrl.u32 %v2360, 7
    %v2362 = vsub.s32 %v2359, %v2361
    %v2363 = vrot.slane %v2355, %v2362
    %v2365 = vunpack.c.l.s4 1983009808
    %v2366 = vunpack.c.0.s8 %v2365
    %v2367 = vlaneseq
    %v2368 = vshrl.u32 %v2367, 7
    %v2369 = vsub.s32 %v2366, %v2368
    %v2370 = vrot.slane %v2356, %v2369
    %v2371 = vcombine.low %v2363, %v2370
    %v2372 = vcombine.low %v718, %v725
    %v2373 = vcombine.low %v732, %v739
    %v2375 = vunpack.c.l.s4 1983009808
    %v2376 = vunpack.c.0.s8 %v2375
    %v2377 = vlaneseq
    %v2378 = vshrl.u32 %v2377, 7
    %v2379 = vsub.s32 %v2376, %v2378
    %v2380 = vrot.slane %v2372, %v2379
    %v2382 = vunpack.c.l.s4 1983009808
    %v2383 = vunpack.c.0.s8 %v2382
    %v2384 = vlaneseq
    %v2385 = vshrl.u32 %v2384, 7
    %v2386 = vsub.s32 %v2383, %v2385
    %v2387 = vrot.slane %v2373, %v2386
    %v2388 = vcombine.low %v2380, %v2387
    %v2389 = vcombine.low %v746, %v753
    %v2390 = vcombine.low %v760, %v767
    %v2392 = vunpack.c.l.s4 1983009808
    %v2393 = vunpack.c.0.s8 %v2392
    %v2394 = vlaneseq
    %v2395 = vshrl.u32 %v2394, 7
    %v2396 = vsub.s32 %v2393, %v2395
    %v2397 = vrot.slane %v2389, %v2396
    %v2399 = vunpack.c.l.s4 1983009808
    %v2400 = vunpack.c.0.s8 %v2399
    %v2401 = vlaneseq
    %v2402 = vshrl.u32 %v2401, 7
    %v2403 = vsub.s32 %v2400, %v2402
    %v2404 = vrot.slane %v2390, %v2403
    %v2405 = vcombine.low %v2397, %v2404
    %v2406 = vcombine.low %v774, %v781
    %v2407 = vcombine.low %v788, %v795
    %v2409 = vunpack.c.l.s4 1983009808
    %v2410 = vunpack.c.0.s8 %v2409
    %v2411 = vlaneseq
    %v2412 = vshrl.u32 %v2411, 7
    %v2413 = vsub.s32 %v2410, %v2412
    %v2414 = vrot.slane %v2406, %v2413
    %v2416 = vunpack.c.l.s4 1983009808
    %v2417 = vunpack.c.0.s8 %v2416
    %v2418 = vlaneseq
    %v2419 = vshrl.u32 %v2418, 7
    %v2420 = vsub.s32 %v2417, %v2419
    %v2421 = vrot.slane %v2407, %v2420
    %v2422 = vcombine.low %v2414, %v2421
    %v2423 = vcombine.low %v802, %v809
    %v2424 = vcombine.low %v816, %v823
    %v2426 = vunpack.c.l.s4 1983009808
    %v2427 = vunpack.c.0.s8 %v2426
    %v2428 = vlaneseq
    %v2429 = vshrl.u32 %v2428, 7
    %v2430 = vsub.s32 %v2427, %v2429
    %v2431 = vrot.slane %v2423, %v2430
    %v2433 = vunpack.c.l.s4 1983009808
    %v2434 = vunpack.c.0.s8 %v2433
    %v2435 = vlaneseq
    %v2436 = vshrl.u32 %v2435, 7
    %v2437 = vsub.s32 %v2434, %v2436
    %v2438 = vrot.slane %v2424, %v2437
    %v2439 = vcombine.low %v2431, %v2438
    %v2440 = vcombine.low %v830, %v837
    %v2441 = vcombine.low %v844, %v851
    %v2443 = vunpack.c.l.s4 1983009808
    %v2444 = vunpack.c.0.s8 %v2443
    %v2445 = vlaneseq
    %v2446 = vshrl.u32 %v2445, 7
    %v2447 = vsub.s32 %v2444, %v2446
    %v2448 = vrot.slane %v2440, %v2447
    %v2450 = vunpack.c.l.s4 1983009808
    %v2451 = vunpack.c.0.s8 %v2450
    %v2452 = vlaneseq
    %v2453 = vshrl.u32 %v2452, 7
    %v2454 = vsub.s32 %v2451, %v2453
    %v2455 = vrot.slane %v2441, %v2454
    %v2456 = vcombine.low %v2448, %v2455
    %v2457 = vcombine.low %v858, %v865
    %v2458 = vcombine.low %v872, %v879
    %v2460 = vunpack.c.l.s4 1983009808
    %v2461 = vunpack.c.0.s8 %v2460
    %v2462 = vlaneseq
    %v2463 = vshrl.u32 %v2462, 7
    %v2464 = vsub.s32 %v2461, %v2463
    %v2465 = vrot.slane %v2457, %v2464
    %v2467 = vunpack.c.l.s4 1983009808
    %v2468 = vunpack.c.0.s8 %v2467
    %v2469 = vlaneseq
    %v2470 = vshrl.u32 %v2469, 7
    %v2471 = vsub.s32 %v2468, %v2470
    %v2472 = vrot.slane %v2458, %v2471
    %v2473 = vcombine.low %v2465, %v2472
    %v2474 = vcombine.low %v886, %v893
    %v2475 = vcombine.low %v900, %v907
    %v2477 = vunpack.c.l.s4 1983009808
    %v2478 = vunpack.c.0.s8 %v2477
    %v2479 = vlaneseq
    %v2480 = vshrl.u32 %v2479, 7
    %v2481 = vsub.s32 %v2478, %v2480
    %v2482 = vrot.slane %v2474, %v2481
    %v2484 = vunpack.c.l.s4 1983009808
    %v2485 = vunpack.c.0.s8 %v2484
    %v2486 = vlaneseq
    %v2487 = vshrl.u32 %v2486, 7
    %v2488 = vsub.s32 %v2485, %v2487
    %v2489 = vrot.slane %v2475, %v2488
    %v2490 = vcombine.low %v2482, %v2489
    %v2491 = vcombine.low %v914, %v921
    %v2492 = vcombine.low %v928, %v935
    %v2494 = vunpack.c.l.s4 1983009808
    %v2495 = vunpack.c.0.s8 %v2494
    %v2496 = vlaneseq
    %v2497 = vshrl.u32 %v2496, 7
    %v2498 = vsub.s32 %v2495, %v2497
    %v2499 = vrot.slane %v2491, %v2498
    %v2501 = vunpack.c.l.s4 1983009808
    %v2502 = vunpack.c.0.s8 %v2501
    %v2503 = vlaneseq
    %v2504 = vshrl.u32 %v2503, 7
    %v2505 = vsub.s32 %v2502, %v2504
    %v2506 = vrot.slane %v2492, %v2505
    %v2507 = vcombine.low %v2499, %v2506
    %v2508 = vcombine.low %v942, %v949
    %v2509 = vcombine.low %v956, %v963
    %v2511 = vunpack.c.l.s4 1983009808
    %v2512 = vunpack.c.0.s8 %v2511
    %v2513 = vlaneseq
    %v2514 = vshrl.u32 %v2513, 7
    %v2515 = vsub.s32 %v2512, %v2514
    %v2516 = vrot.slane %v2508, %v2515
    %v2518 = vunpack.c.l.s4 1983009808
    %v2519 = vunpack.c.0.s8 %v2518
    %v2520 = vlaneseq
    %v2521 = vshrl.u32 %v2520, 7
    %v2522 = vsub.s32 %v2519, %v2521
    %v2523 = vrot.slane %v2509, %v2522
    %v2524 = vcombine.low %v2516, %v2523
    %v2525 = vcombine.low %v970, %v977
    %v2526 = vcombine.low %v984, %v991
    %v2528 = vunpack.c.l.s4 1983009808
    %v2529 = vunpack.c.0.s8 %v2528
    %v2530 = vlaneseq
    %v2531 = vshrl.u32 %v2530, 7
    %v2532 = vsub.s32 %v2529, %v2531
    %v2533 = vrot.slane %v2525, %v2532
    %v2535 = vunpack.c.l.s4 1983009808
    %v2536 = vunpack.c.0.s8 %v2535
    %v2537 = vlaneseq
    %v2538 = vshrl.u32 %v2537, 7
    %v2539 = vsub.s32 %v2536, %v2538
    %v2540 = vrot.slane %v2526, %v2539
    %v2541 = vcombine.low %v2533, %v2540
    %v2542 = vcombine.low %v998, %v1005
    %v2543 = vcombine.low %v1012, %v1019
    %v2545 = vunpack.c.l.s4 1983009808
    %v2546 = vunpack.c.0.s8 %v2545
    %v2547 = vlaneseq
    %v2548 = vshrl.u32 %v2547, 7
    %v2549 = vsub.s32 %v2546, %v2548
    %v2550 = vrot.slane %v2542, %v2549
    %v2552 = vunpack.c.l.s4 1983009808
    %v2553 = vunpack.c.0.s8 %v2552
    %v2554 = vlaneseq
    %v2555 = vshrl.u32 %v2554, 7
    %v2556 = vsub.s32 %v2553, %v2555
    %v2557 = vrot.slane %v2543, %v2556
    %v2558 = vcombine.low %v2550, %v2557
    %v2559 = vcombine.low %v1026, %v1033
    %v2560 = vcombine.low %v1040, %v1047
    %v2562 = vunpack.c.l.s4 1983009808
    %v2563 = vunpack.c.0.s8 %v2562
    %v2564 = vlaneseq
    %v2565 = vshrl.u32 %v2564, 7
    %v2566 = vsub.s32 %v2563, %v2565
    %v2567 = vrot.slane %v2559, %v2566
    %v2569 = vunpack.c.l.s4 1983009808
    %v2570 = vunpack.c.0.s8 %v2569
    %v2571 = vlaneseq
    %v2572 = vshrl.u32 %v2571, 7
    %v2573 = vsub.s32 %v2570, %v2572
    %v2574 = vrot.slane %v2560, %v2573
    %v2575 = vcombine.low %v2567, %v2574
    %v2576 = vcombine.low %v1054, %v1061
    %v2577 = vcombine.low %v1068, %v1075
    %v2579 = vunpack.c.l.s4 1983009808
    %v2580 = vunpack.c.0.s8 %v2579
    %v2581 = vlaneseq
    %v2582 = vshrl.u32 %v2581, 7
    %v2583 = vsub.s32 %v2580, %v2582
    %v2584 = vrot.slane %v2576, %v2583
    %v2586 = vunpack.c.l.s4 1983009808
    %v2587 = vunpack.c.0.s8 %v2586
    %v2588 = vlaneseq
    %v2589 = vshrl.u32 %v2588, 7
    %v2590 = vsub.s32 %v2587, %v2589
    %v2591 = vrot.slane %v2577, %v2590
    %v2592 = vcombine.low %v2584, %v2591
    %v2593 = vcombine.low %v1082, %v1089
    %v2594 = vcombine.low %v1096, %v1103
    %v2596 = vunpack.c.l.s4 1983009808
    %v2597 = vunpack.c.0.s8 %v2596
    %v2598 = vlaneseq
    %v2599 = vshrl.u32 %v2598, 7
    %v2600 = vsub.s32 %v2597, %v2599
    %v2601 = vrot.slane %v2593, %v2600
    %v2603 = vunpack.c.l.s4 1983009808
    %v2604 = vunpack.c.0.s8 %v2603
    %v2605 = vlaneseq
    %v2606 = vshrl.u32 %v2605, 7
    %v2607 = vsub.s32 %v2604, %v2606
    %v2608 = vrot.slane %v2594, %v2607
    %v2609 = vcombine.low %v2601, %v2608
    %v2610 = vcombine.low %v1110, %v1117
    %v2611 = vcombine.low %v1124, %v1131
    %v2613 = vunpack.c.l.s4 1983009808
    %v2614 = vunpack.c.0.s8 %v2613
    %v2615 = vlaneseq
    %v2616 = vshrl.u32 %v2615, 7
    %v2617 = vsub.s32 %v2614, %v2616
    %v2618 = vrot.slane %v2610, %v2617
    %v2620 = vunpack.c.l.s4 1983009808
    %v2621 = vunpack.c.0.s8 %v2620
    %v2622 = vlaneseq
    %v2623 = vshrl.u32 %v2622, 7
    %v2624 = vsub.s32 %v2621, %v2623
    %v2625 = vrot.slane %v2611, %v2624
    %v2626 = vcombine.low %v2618, %v2625
    %v2627 = vcombine.low %v1138, %v1145
    %v2628 = vcombine.low %v1152, %v1159
    %v2630 = vunpack.c.l.s4 1983009808
    %v2631 = vunpack.c.0.s8 %v2630
    %v2632 = vlaneseq
    %v2633 = vshrl.u32 %v2632, 7
    %v2634 = vsub.s32 %v2631, %v2633
    %v2635 = vrot.slane %v2627, %v2634
    %v2637 = vunpack.c.l.s4 1983009808
    %v2638 = vunpack.c.0.s8 %v2637
    %v2639 = vlaneseq
    %v2640 = vshrl.u32 %v2639, 7
    %v2641 = vsub.s32 %v2638, %v2640
    %v2642 = vrot.slane %v2628, %v2641
    %v2643 = vcombine.low %v2635, %v2642
    %v2644 = vcombine.low %v1166, %v1173
    %v2645 = vcombine.low %v1180, %v1187
    %v2647 = vunpack.c.l.s4 1983009808
    %v2648 = vunpack.c.0.s8 %v2647
    %v2649 = vlaneseq
    %v2650 = vshrl.u32 %v2649, 7
    %v2651 = vsub.s32 %v2648, %v2650
    %v2652 = vrot.slane %v2644, %v2651
    %v2654 = vunpack.c.l.s4 1983009808
    %v2655 = vunpack.c.0.s8 %v2654
    %v2656 = vlaneseq
    %v2657 = vshrl.u32 %v2656, 7
    %v2658 = vsub.s32 %v2655, %v2657
    %v2659 = vrot.slane %v2645, %v2658
    %v2660 = vcombine.low %v2652, %v2659
    %v2661 = vcombine.low %v1194, %v1201
    %v2662 = vcombine.low %v1208, %v1215
    %v2664 = vunpack.c.l.s4 1983009808
    %v2665 = vunpack.c.0.s8 %v2664
    %v2666 = vlaneseq
    %v2667 = vshrl.u32 %v2666, 7
    %v2668 = vsub.s32 %v2665, %v2667
    %v2669 = vrot.slane %v2661, %v2668
    %v2671 = vunpack.c.l.s4 1983009808
    %v2672 = vunpack.c.0.s8 %v2671
    %v2673 = vlaneseq
    %v2674 = vshrl.u32 %v2673, 7
    %v2675 = vsub.s32 %v2672, %v2674
    %v2676 = vrot.slane %v2662, %v2675
    %v2677 = vcombine.low %v2669, %v2676
    %v2678 = vcombine.low %v1222, %v1229
    %v2679 = vcombine.low %v1236, %v1243
    %v2681 = vunpack.c.l.s4 1983009808
    %v2682 = vunpack.c.0.s8 %v2681
    %v2683 = vlaneseq
    %v2684 = vshrl.u32 %v2683, 7
    %v2685 = vsub.s32 %v2682, %v2684
    %v2686 = vrot.slane %v2678, %v2685
    %v2688 = vunpack.c.l.s4 1983009808
    %v2689 = vunpack.c.0.s8 %v2688
    %v2690 = vlaneseq
    %v2691 = vshrl.u32 %v2690, 7
    %v2692 = vsub.s32 %v2689, %v2691
    %v2693 = vrot.slane %v2679, %v2692
    %v2694 = vcombine.low %v2686, %v2693
    %v2695 = vcombine.low %v1250, %v1257
    %v2696 = vcombine.low %v1264, %v1271
    %v2698 = vunpack.c.l.s4 1983009808
    %v2699 = vunpack.c.0.s8 %v2698
    %v2700 = vlaneseq
    %v2701 = vshrl.u32 %v2700, 7
    %v2702 = vsub.s32 %v2699, %v2701
    %v2703 = vrot.slane %v2695, %v2702
    %v2705 = vunpack.c.l.s4 1983009808
    %v2706 = vunpack.c.0.s8 %v2705
    %v2707 = vlaneseq
    %v2708 = vshrl.u32 %v2707, 7
    %v2709 = vsub.s32 %v2706, %v2708
    %v2710 = vrot.slane %v2696, %v2709
    %v2711 = vcombine.low %v2703, %v2710
    %v2712 = vcombine.low %v1278, %v1285
    %v2713 = vcombine.low %v1292, %v1299
    %v2715 = vunpack.c.l.s4 1983009808
    %v2716 = vunpack.c.0.s8 %v2715
    %v2717 = vlaneseq
    %v2718 = vshrl.u32 %v2717, 7
    %v2719 = vsub.s32 %v2716, %v2718
    %v2720 = vrot.slane %v2712, %v2719
    %v2722 = vunpack.c.l.s4 1983009808
    %v2723 = vunpack.c.0.s8 %v2722
    %v2724 = vlaneseq
    %v2725 = vshrl.u32 %v2724, 7
    %v2726 = vsub.s32 %v2723, %v2725
    %v2727 = vrot.slane %v2713, %v2726
    %v2728 = vcombine.low %v2720, %v2727
    %v2729 = vcombine.low %v1306, %v1313
    %v2730 = vcombine.low %v1320, %v1327
    %v2732 = vunpack.c.l.s4 1983009808
    %v2733 = vunpack.c.0.s8 %v2732
    %v2734 = vlaneseq
    %v2735 = vshrl.u32 %v2734, 7
    %v2736 = vsub.s32 %v2733, %v2735
    %v2737 = vrot.slane %v2729, %v2736
    %v2739 = vunpack.c.l.s4 1983009808
    %v2740 = vunpack.c.0.s8 %v2739
    %v2741 = vlaneseq
    %v2742 = vshrl.u32 %v2741, 7
    %v2743 = vsub.s32 %v2740, %v2742
    %v2744 = vrot.slane %v2730, %v2743
    %v2745 = vcombine.low %v2737, %v2744
    %v2746 = vcombine.low %v1334, %v1341
    %v2747 = vcombine.low %v1348, %v1355
    %v2749 = vunpack.c.l.s4 1983009808
    %v2750 = vunpack.c.0.s8 %v2749
    %v2751 = vlaneseq
    %v2752 = vshrl.u32 %v2751, 7
    %v2753 = vsub.s32 %v2750, %v2752
    %v2754 = vrot.slane %v2746, %v2753
    %v2756 = vunpack.c.l.s4 1983009808
    %v2757 = vunpack.c.0.s8 %v2756
    %v2758 = vlaneseq
    %v2759 = vshrl.u32 %v2758, 7
    %v2760 = vsub.s32 %v2757, %v2759
    %v2761 = vrot.slane %v2747, %v2760
    %v2762 = vcombine.low %v2754, %v2761
    %v2763 = vcombine.low %v1362, %v1369
    %v2764 = vcombine.low %v1376, %v1383
    %v2766 = vunpack.c.l.s4 1983009808
    %v2767 = vunpack.c.0.s8 %v2766
    %v2768 = vlaneseq
    %v2769 = vshrl.u32 %v2768, 7
    %v2770 = vsub.s32 %v2767, %v2769
    %v2771 = vrot.slane %v2763, %v2770
    %v2773 = vunpack.c.l.s4 1983009808
    %v2774 = vunpack.c.0.s8 %v2773
    %v2775 = vlaneseq
    %v2776 = vshrl.u32 %v2775, 7
    %v2777 = vsub.s32 %v2774, %v2776
    %v2778 = vrot.slane %v2764, %v2777
    %v2779 = vcombine.low %v2771, %v2778
    %v2780 = vcombine.low %v1390, %v1397
    %v2781 = vcombine.low %v1404, %v1411
    %v2783 = vunpack.c.l.s4 1983009808
    %v2784 = vunpack.c.0.s8 %v2783
    %v2785 = vlaneseq
    %v2786 = vshrl.u32 %v2785, 7
    %v2787 = vsub.s32 %v2784, %v2786
    %v2788 = vrot.slane %v2780, %v2787
    %v2790 = vunpack.c.l.s4 1983009808
    %v2791 = vunpack.c.0.s8 %v2790
    %v2792 = vlaneseq
    %v2793 = vshrl.u32 %v2792, 7
    %v2794 = vsub.s32 %v2791, %v2793
    %v2795 = vrot.slane %v2781, %v2794
    %v2796 = vcombine.low %v2788, %v2795
    %v2797 = vcombine.low %v1418, %v1425
    %v2798 = vcombine.low %v1432, %v1439
    %v2800 = vunpack.c.l.s4 1983009808
    %v2801 = vunpack.c.0.s8 %v2800
    %v2802 = vlaneseq
    %v2803 = vshrl.u32 %v2802, 7
    %v2804 = vsub.s32 %v2801, %v2803
    %v2805 = vrot.slane %v2797, %v2804
    %v2807 = vunpack.c.l.s4 1983009808
    %v2808 = vunpack.c.0.s8 %v2807
    %v2809 = vlaneseq
    %v2810 = vshrl.u32 %v2809, 7
    %v2811 = vsub.s32 %v2808, %v2810
    %v2812 = vrot.slane %v2798, %v2811
    %v2813 = vcombine.low %v2805, %v2812
    %v2814 = vcombine.low %v1446, %v1453
    %v2815 = vcombine.low %v1460, %v1467
    %v2817 = vunpack.c.l.s4 1983009808
    %v2818 = vunpack.c.0.s8 %v2817
    %v2819 = vlaneseq
    %v2820 = vshrl.u32 %v2819, 7
    %v2821 = vsub.s32 %v2818, %v2820
    %v2822 = vrot.slane %v2814, %v2821
    %v2824 = vunpack.c.l.s4 1983009808
    %v2825 = vunpack.c.0.s8 %v2824
    %v2826 = vlaneseq
    %v2827 = vshrl.u32 %v2826, 7
    %v2828 = vsub.s32 %v2825, %v2827
    %v2829 = vrot.slane %v2815, %v2828
    %v2830 = vcombine.low %v2822, %v2829
    %v2831 = vcombine.low %v1474, %v1481
    %v2832 = vcombine.low %v1488, %v1495
    %v2834 = vunpack.c.l.s4 1983009808
    %v2835 = vunpack.c.0.s8 %v2834
    %v2836 = vlaneseq
    %v2837 = vshrl.u32 %v2836, 7
    %v2838 = vsub.s32 %v2835, %v2837
    %v2839 = vrot.slane %v2831, %v2838
    %v2841 = vunpack.c.l.s4 1983009808
    %v2842 = vunpack.c.0.s8 %v2841
    %v2843 = vlaneseq
    %v2844 = vshrl.u32 %v2843, 7
    %v2845 = vsub.s32 %v2842, %v2844
    %v2846 = vrot.slane %v2832, %v2845
    %v2847 = vcombine.low %v2839, %v2846
    %v2848 = vcombine.low %v1502, %v1509
    %v2849 = vcombine.low %v1516, %v1523
    %v2851 = vunpack.c.l.s4 1983009808
    %v2852 = vunpack.c.0.s8 %v2851
    %v2853 = vlaneseq
    %v2854 = vshrl.u32 %v2853, 7
    %v2855 = vsub.s32 %v2852, %v2854
    %v2856 = vrot.slane %v2848, %v2855
    %v2858 = vunpack.c.l.s4 1983009808
    %v2859 = vunpack.c.0.s8 %v2858
    %v2860 = vlaneseq
    %v2861 = vshrl.u32 %v2860, 7
    %v2862 = vsub.s32 %v2859, %v2861
    %v2863 = vrot.slane %v2849, %v2862
    %v2864 = vcombine.low %v2856, %v2863
    %v2865 = vcombine.low %v1530, %v1537
    %v2866 = vcombine.low %v1544, %v1551
    %v2868 = vunpack.c.l.s4 1983009808
    %v2869 = vunpack.c.0.s8 %v2868
    %v2870 = vlaneseq
    %v2871 = vshrl.u32 %v2870, 7
    %v2872 = vsub.s32 %v2869, %v2871
    %v2873 = vrot.slane %v2865, %v2872
    %v2875 = vunpack.c.l.s4 1983009808
    %v2876 = vunpack.c.0.s8 %v2875
    %v2877 = vlaneseq
    %v2878 = vshrl.u32 %v2877, 7
    %v2879 = vsub.s32 %v2876, %v2878
    %v2880 = vrot.slane %v2866, %v2879
    %v2881 = vcombine.low %v2873, %v2880
    %v2882 = vcombine.low %v1558, %v1565
    %v2883 = vcombine.low %v1572, %v1579
    %v2885 = vunpack.c.l.s4 1983009808
    %v2886 = vunpack.c.0.s8 %v2885
    %v2887 = vlaneseq
    %v2888 = vshrl.u32 %v2887, 7
    %v2889 = vsub.s32 %v2886, %v2888
    %v2890 = vrot.slane %v2882, %v2889
    %v2892 = vunpack.c.l.s4 1983009808
    %v2893 = vunpack.c.0.s8 %v2892
    %v2894 = vlaneseq
    %v2895 = vshrl.u32 %v2894, 7
    %v2896 = vsub.s32 %v2893, %v2895
    %v2897 = vrot.slane %v2883, %v2896
    %v2898 = vcombine.low %v2890, %v2897
    %v2899 = vcombine.low %v1586, %v1593
    %v2900 = vcombine.low %v1600, %v1607
    %v2902 = vunpack.c.l.s4 1983009808
    %v2903 = vunpack.c.0.s8 %v2902
    %v2904 = vlaneseq
    %v2905 = vshrl.u32 %v2904, 7
    %v2906 = vsub.s32 %v2903, %v2905
    %v2907 = vrot.slane %v2899, %v2906
    %v2909 = vunpack.c.l.s4 1983009808
    %v2910 = vunpack.c.0.s8 %v2909
    %v2911 = vlaneseq
    %v2912 = vshrl.u32 %v2911, 7
    %v2913 = vsub.s32 %v2910, %v2912
    %v2914 = vrot.slane %v2900, %v2913
    %v2915 = vcombine.low %v2907, %v2914
    %v2916 = vcombine.low %v1614, %v1621
    %v2917 = vcombine.low %v1628, %v1635
    %v2919 = vunpack.c.l.s4 1983009808
    %v2920 = vunpack.c.0.s8 %v2919
    %v2921 = vlaneseq
    %v2922 = vshrl.u32 %v2921, 7
    %v2923 = vsub.s32 %v2920, %v2922
    %v2924 = vrot.slane %v2916, %v2923
    %v2926 = vunpack.c.l.s4 1983009808
    %v2927 = vunpack.c.0.s8 %v2926
    %v2928 = vlaneseq
    %v2929 = vshrl.u32 %v2928, 7
    %v2930 = vsub.s32 %v2927, %v2929
    %v2931 = vrot.slane %v2917, %v2930
    %v2932 = vcombine.low %v2924, %v2931
    %v2933 = vcombine.low %v1642, %v1649
    %v2934 = vcombine.low %v1656, %v1663
    %v2936 = vunpack.c.l.s4 1983009808
    %v2937 = vunpack.c.0.s8 %v2936
    %v2938 = vlaneseq
    %v2939 = vshrl.u32 %v2938, 7
    %v2940 = vsub.s32 %v2937, %v2939
    %v2941 = vrot.slane %v2933, %v2940
    %v2943 = vunpack.c.l.s4 1983009808
    %v2944 = vunpack.c.0.s8 %v2943
    %v2945 = vlaneseq
    %v2946 = vshrl.u32 %v2945, 7
    %v2947 = vsub.s32 %v2944, %v2946
    %v2948 = vrot.slane %v2934, %v2947
    %v2949 = vcombine.low %v2941, %v2948
    %v2950 = vcombine.low %v1670, %v1677
    %v2951 = vcombine.low %v1684, %v1691
    %v2953 = vunpack.c.l.s4 1983009808
    %v2954 = vunpack.c.0.s8 %v2953
    %v2955 = vlaneseq
    %v2956 = vshrl.u32 %v2955, 7
    %v2957 = vsub.s32 %v2954, %v2956
    %v2958 = vrot.slane %v2950, %v2957
    %v2960 = vunpack.c.l.s4 1983009808
    %v2961 = vunpack.c.0.s8 %v2960
    %v2962 = vlaneseq
    %v2963 = vshrl.u32 %v2962, 7
    %v2964 = vsub.s32 %v2961, %v2963
    %v2965 = vrot.slane %v2951, %v2964
    %v2966 = vcombine.low %v2958, %v2965
    %v2967 = vcombine.low %v1698, %v1705
    %v2968 = vcombine.low %v1712, %v1719
    %v2970 = vunpack.c.l.s4 1983009808
    %v2971 = vunpack.c.0.s8 %v2970
    %v2972 = vlaneseq
    %v2973 = vshrl.u32 %v2972, 7
    %v2974 = vsub.s32 %v2971, %v2973
    %v2975 = vrot.slane %v2967, %v2974
    %v2977 = vunpack.c.l.s4 1983009808
    %v2978 = vunpack.c.0.s8 %v2977
    %v2979 = vlaneseq
    %v2980 = vshrl.u32 %v2979, 7
    %v2981 = vsub.s32 %v2978, %v2980
    %v2982 = vrot.slane %v2968, %v2981
    %v2983 = vcombine.low %v2975, %v2982
    %v2984 = vcombine.low %v1726, %v1733
    %v2985 = vcombine.low %v1740, %v1747
    %v2987 = vunpack.c.l.s4 1983009808
    %v2988 = vunpack.c.0.s8 %v2987
    %v2989 = vlaneseq
    %v2990 = vshrl.u32 %v2989, 7
    %v2991 = vsub.s32 %v2988, %v2990
    %v2992 = vrot.slane %v2984, %v2991
    %v2994 = vunpack.c.l.s4 1983009808
    %v2995 = vunpack.c.0.s8 %v2994
    %v2996 = vlaneseq
    %v2997 = vshrl.u32 %v2996, 7
    %v2998 = vsub.s32 %v2995, %v2997
    %v2999 = vrot.slane %v2985, %v2998
    %v3000 = vcombine.low %v2992, %v2999
    %v3001 = vcombine.low %v1754, %v1761
    %v3002 = vcombine.low %v1768, %v1775
    %v3004 = vunpack.c.l.s4 1983009808
    %v3005 = vunpack.c.0.s8 %v3004
    %v3006 = vlaneseq
    %v3007 = vshrl.u32 %v3006, 7
    %v3008 = vsub.s32 %v3005, %v3007
    %v3009 = vrot.slane %v3001, %v3008
    %v3011 = vunpack.c.l.s4 1983009808
    %v3012 = vunpack.c.0.s8 %v3011
    %v3013 = vlaneseq
    %v3014 = vshrl.u32 %v3013, 7
    %v3015 = vsub.s32 %v3012, %v3014
    %v3016 = vrot.slane %v3002, %v3015
    %v3017 = vcombine.low %v3009, %v3016
    %v3018 = vcombine.low %v1782, %v1789
    %v3019 = vcombine.low %v1796, %v1803
    %v3021 = vunpack.c.l.s4 1983009808
    %v3022 = vunpack.c.0.s8 %v3021
    %v3023 = vlaneseq
    %v3024 = vshrl.u32 %v3023, 7
    %v3025 = vsub.s32 %v3022, %v3024
    %v3026 = vrot.slane %v3018, %v3025
    %v3028 = vunpack.c.l.s4 1983009808
    %v3029 = vunpack.c.0.s8 %v3028
    %v3030 = vlaneseq
    %v3031 = vshrl.u32 %v3030, 7
    %v3032 = vsub.s32 %v3029, %v3031
    %v3033 = vrot.slane %v3019, %v3032
    %v3034 = vcombine.low %v3026, %v3033
    %v3035 = vcombine.low %v1810, %v1817
    %v3036 = vcombine.low %v1824, %v1831
    %v3038 = vunpack.c.l.s4 1983009808
    %v3039 = vunpack.c.0.s8 %v3038
    %v3040 = vlaneseq
    %v3041 = vshrl.u32 %v3040, 7
    %v3042 = vsub.s32 %v3039, %v3041
    %v3043 = vrot.slane %v3035, %v3042
    %v3045 = vunpack.c.l.s4 1983009808
    %v3046 = vunpack.c.0.s8 %v3045
    %v3047 = vlaneseq
    %v3048 = vshrl.u32 %v3047, 7
    %v3049 = vsub.s32 %v3046, %v3048
    %v3050 = vrot.slane %v3036, %v3049
    %v3051 = vcombine.low %v3043, %v3050
    %v3052 = vcombine.low %v1838, %v1845
    %v3053 = vcombine.low %v1852, %v1859
    %v3055 = vunpack.c.l.s4 1983009808
    %v3056 = vunpack.c.0.s8 %v3055
    %v3057 = vlaneseq
    %v3058 = vshrl.u32 %v3057, 7
    %v3059 = vsub.s32 %v3056, %v3058
    %v3060 = vrot.slane %v3052, %v3059
    %v3062 = vunpack.c.l.s4 1983009808
    %v3063 = vunpack.c.0.s8 %v3062
    %v3064 = vlaneseq
    %v3065 = vshrl.u32 %v3064, 7
    %v3066 = vsub.s32 %v3063, %v3065
    %v3067 = vrot.slane %v3053, %v3066
    %v3068 = vcombine.low %v3060, %v3067
    %v3069 = vcombine.low %v1866, %v1873
    %v3070 = vcombine.low %v1880, %v1887
    %v3072 = vunpack.c.l.s4 1983009808
    %v3073 = vunpack.c.0.s8 %v3072
    %v3074 = vlaneseq
    %v3075 = vshrl.u32 %v3074, 7
    %v3076 = vsub.s32 %v3073, %v3075
    %v3077 = vrot.slane %v3069, %v3076
    %v3079 = vunpack.c.l.s4 1983009808
    %v3080 = vunpack.c.0.s8 %v3079
    %v3081 = vlaneseq
    %v3082 = vshrl.u32 %v3081, 7
    %v3083 = vsub.s32 %v3080, %v3082
    %v3084 = vrot.slane %v3070, %v3083
    %v3085 = vcombine.low %v3077, %v3084
    %v3086 = vcombine.low %v1894, %v1901
    %v3087 = vcombine.low %v1908, %v1915
    %v3089 = vunpack.c.l.s4 1983009808
    %v3090 = vunpack.c.0.s8 %v3089
    %v3091 = vlaneseq
    %v3092 = vshrl.u32 %v3091, 7
    %v3093 = vsub.s32 %v3090, %v3092
    %v3094 = vrot.slane %v3086, %v3093
    %v3096 = vunpack.c.l.s4 1983009808
    %v3097 = vunpack.c.0.s8 %v3096
    %v3098 = vlaneseq
    %v3099 = vshrl.u32 %v3098, 7
    %v3100 = vsub.s32 %v3097, %v3099
    %v3101 = vrot.slane %v3087, %v3100
    %v3102 = vcombine.low %v3094, %v3101
    %v3103 = vcombine.low %v1922, %v1929
    %v3104 = vcombine.low %v1936, %v1943
    %v3106 = vunpack.c.l.s4 1983009808
    %v3107 = vunpack.c.0.s8 %v3106
    %v3108 = vlaneseq
    %v3109 = vshrl.u32 %v3108, 7
    %v3110 = vsub.s32 %v3107, %v3109
    %v3111 = vrot.slane %v3103, %v3110
    %v3113 = vunpack.c.l.s4 1983009808
    %v3114 = vunpack.c.0.s8 %v3113
    %v3115 = vlaneseq
    %v3116 = vshrl.u32 %v3115, 7
    %v3117 = vsub.s32 %v3114, %v3116
    %v3118 = vrot.slane %v3104, %v3117
    %v3119 = vcombine.low %v3111, %v3118
    %v3120 = vcombine.low %v1950, %v1957
    %v3121 = vcombine.low %v1964, %v1971
    %v3123 = vunpack.c.l.s4 1983009808
    %v3124 = vunpack.c.0.s8 %v3123
    %v3125 = vlaneseq
    %v3126 = vshrl.u32 %v3125, 7
    %v3127 = vsub.s32 %v3124, %v3126
    %v3128 = vrot.slane %v3120, %v3127
    %v3130 = vunpack.c.l.s4 1983009808
    %v3131 = vunpack.c.0.s8 %v3130
    %v3132 = vlaneseq
    %v3133 = vshrl.u32 %v3132, 7
    %v3134 = vsub.s32 %v3131, %v3133
    %v3135 = vrot.slane %v3121, %v3134
    %v3136 = vcombine.low %v3128, %v3135
    %v3137 = vcombine.low %v1978, %v1985
    %v3138 = vcombine.low %v1992, %v1999
    %v3140 = vunpack.c.l.s4 1983009808
    %v3141 = vunpack.c.0.s8 %v3140
    %v3142 = vlaneseq
    %v3143 = vshrl.u32 %v3142, 7
    %v3144 = vsub.s32 %v3141, %v3143
    %v3145 = vrot.slane %v3137, %v3144
    %v3147 = vunpack.c.l.s4 1983009808
    %v3148 = vunpack.c.0.s8 %v3147
    %v3149 = vlaneseq
    %v3150 = vshrl.u32 %v3149, 7
    %v3151 = vsub.s32 %v3148, %v3150
    %v3152 = vrot.slane %v3138, %v3151
    %v3153 = vcombine.low %v3145, %v3152
    %v3154 = vcombine.low %v2006, %v2013
    %v3155 = vcombine.low %v2020, %v2027
    %v3157 = vunpack.c.l.s4 1983009808
    %v3158 = vunpack.c.0.s8 %v3157
    %v3159 = vlaneseq
    %v3160 = vshrl.u32 %v3159, 7
    %v3161 = vsub.s32 %v3158, %v3160
    %v3162 = vrot.slane %v3154, %v3161
    %v3164 = vunpack.c.l.s4 1983009808
    %v3165 = vunpack.c.0.s8 %v3164
    %v3166 = vlaneseq
    %v3167 = vshrl.u32 %v3166, 7
    %v3168 = vsub.s32 %v3165, %v3167
    %v3169 = vrot.slane %v3155, %v3168
    %v3170 = vcombine.low %v3162, %v3169
    %v3171 = vcombine.low %v2034, %v2041
    %v3172 = vcombine.low %v2048, %v2055
    %v3174 = vunpack.c.l.s4 1983009808
    %v3175 = vunpack.c.0.s8 %v3174
    %v3176 = vlaneseq
    %v3177 = vshrl.u32 %v3176, 7
    %v3178 = vsub.s32 %v3175, %v3177
    %v3179 = vrot.slane %v3171, %v3178
    %v3181 = vunpack.c.l.s4 1983009808
    %v3182 = vunpack.c.0.s8 %v3181
    %v3183 = vlaneseq
    %v3184 = vshrl.u32 %v3183, 7
    %v3185 = vsub.s32 %v3182, %v3184
    %v3186 = vrot.slane %v3172, %v3185
    %v3187 = vcombine.low %v3179, %v3186
    %v3188 = vcombine.low %v2062, %v2069
    %v3189 = vcombine.low %v2076, %v2083
    %v3191 = vunpack.c.l.s4 1983009808
    %v3192 = vunpack.c.0.s8 %v3191
    %v3193 = vlaneseq
    %v3194 = vshrl.u32 %v3193, 7
    %v3195 = vsub.s32 %v3192, %v3194
    %v3196 = vrot.slane %v3188, %v3195
    %v3198 = vunpack.c.l.s4 1983009808
    %v3199 = vunpack.c.0.s8 %v3198
    %v3200 = vlaneseq
    %v3201 = vshrl.u32 %v3200, 7
    %v3202 = vsub.s32 %v3199, %v3201
    %v3203 = vrot.slane %v3189, %v3202
    %v3204 = vcombine.low %v3196, %v3203
    %v3205 = vcombine.low %v2090, %v2097
    %v3206 = vcombine.low %v2104, %v2111
    %v3208 = vunpack.c.l.s4 1983009808
    %v3209 = vunpack.c.0.s8 %v3208
    %v3210 = vlaneseq
    %v3211 = vshrl.u32 %v3210, 7
    %v3212 = vsub.s32 %v3209, %v3211
    %v3213 = vrot.slane %v3205, %v3212
    %v3215 = vunpack.c.l.s4 1983009808
    %v3216 = vunpack.c.0.s8 %v3215
    %v3217 = vlaneseq
    %v3218 = vshrl.u32 %v3217, 7
    %v3219 = vsub.s32 %v3216, %v3218
    %v3220 = vrot.slane %v3206, %v3219
    %v3221 = vcombine.low %v3213, %v3220
    %v3222 = vcombine.low %v2118, %v2125
    %v3223 = vcombine.low %v2132, %v2139
    %v3225 = vunpack.c.l.s4 1983009808
    %v3226 = vunpack.c.0.s8 %v3225
    %v3227 = vlaneseq
    %v3228 = vshrl.u32 %v3227, 7
    %v3229 = vsub.s32 %v3226, %v3228
    %v3230 = vrot.slane %v3222, %v3229
    %v3232 = vunpack.c.l.s4 1983009808
    %v3233 = vunpack.c.0.s8 %v3232
    %v3234 = vlaneseq
    %v3235 = vshrl.u32 %v3234, 7
    %v3236 = vsub.s32 %v3233, %v3235
    %v3237 = vrot.slane %v3223, %v3236
    %v3238 = vcombine.low %v3230, %v3237
    %v3239 = vcombine.low %v2146, %v2153
    %v3240 = vcombine.low %v2160, %v2167
    %v3242 = vunpack.c.l.s4 1983009808
    %v3243 = vunpack.c.0.s8 %v3242
    %v3244 = vlaneseq
    %v3245 = vshrl.u32 %v3244, 7
    %v3246 = vsub.s32 %v3243, %v3245
    %v3247 = vrot.slane %v3239, %v3246
    %v3249 = vunpack.c.l.s4 1983009808
    %v3250 = vunpack.c.0.s8 %v3249
    %v3251 = vlaneseq
    %v3252 = vshrl.u32 %v3251, 7
    %v3253 = vsub.s32 %v3250, %v3252
    %v3254 = vrot.slane %v3240, %v3253
    %v3255 = vcombine.low %v3247, %v3254
    %3256 = vset.pattern.permute.xlu0 0
    %3257 = vperm.xlu0 %3256, %v2184
    %v3258 = vpop.permute.xlu0 %3257
    %3259 = vset.pattern.permute.xlu0 0
    %3260 = vperm.xlu0 %3259, %v2201
    %v3261 = vpop.permute.xlu0 %3260
    %3262 = vset.pattern.permute.xlu0 0
    %3263 = vperm.xlu0 %3262, %v2218
    %v3264 = vpop.permute.xlu0 %3263
    %3265 = vset.pattern.permute.xlu0 0
    %3266 = vperm.xlu0 %3265, %v2235
    %v3267 = vpop.permute.xlu0 %3266
    %3268 = vset.pattern.permute.xlu0 0
    %3269 = vperm.xlu0 %3268, %v2252
    %v3270 = vpop.permute.xlu0 %3269
    %3271 = vset.pattern.permute.xlu0 0
    %3272 = vperm.xlu0 %3271, %v2269
    %v3273 = vpop.permute.xlu0 %3272
    %3274 = vset.pattern.permute.xlu0 0
    %3275 = vperm.xlu0 %3274, %v2286
    %v3276 = vpop.permute.xlu0 %3275
    %3277 = vset.pattern.permute.xlu0 0
    %3278 = vperm.xlu0 %3277, %v2303
    %v3279 = vpop.permute.xlu0 %3278
    %3280 = vset.pattern.permute.xlu0 0
    %3281 = vperm.xlu0 %3280, %v2320
    %v3282 = vpop.permute.xlu0 %3281
    %3283 = vset.pattern.permute.xlu0 0
    %3284 = vperm.xlu0 %3283, %v2337
    %v3285 = vpop.permute.xlu0 %3284
    %3286 = vset.pattern.permute.xlu0 0
    %3287 = vperm.xlu0 %3286, %v2354
    %v3288 = vpop.permute.xlu0 %3287
    %3289 = vset.pattern.permute.xlu0 0
    %3290 = vperm.xlu0 %3289, %v2371
    %v3291 = vpop.permute.xlu0 %3290
    %3292 = vset.pattern.permute.xlu0 0
    %3293 = vperm.xlu0 %3292, %v2388
    %v3294 = vpop.permute.xlu0 %3293
    %3295 = vset.pattern.permute.xlu0 0
    %3296 = vperm.xlu0 %3295, %v2405
    %v3297 = vpop.permute.xlu0 %3296
    %3298 = vset.pattern.permute.xlu0 0
    %3299 = vperm.xlu0 %3298, %v2422
    %v3300 = vpop.permute.xlu0 %3299
    %3301 = vset.pattern.permute.xlu0 0
    %3302 = vperm.xlu0 %3301, %v2439
    %v3303 = vpop.permute.xlu0 %3302
    %3304 = vset.pattern.permute.xlu0 0
    %3305 = vperm.xlu0 %3304, %v2456
    %v3306 = vpop.permute.xlu0 %3305
    %3307 = vset.pattern.permute.xlu0 0
    %3308 = vperm.xlu0 %3307, %v2473
    %v3309 = vpop.permute.xlu0 %3308
    %3310 = vset.pattern.permute.xlu0 0
    %3311 = vperm.xlu0 %3310, %v2490
    %v3312 = vpop.permute.xlu0 %3311
    %3313 = vset.pattern.permute.xlu0 0
    %3314 = vperm.xlu0 %3313, %v2507
    %v3315 = vpop.permute.xlu0 %3314
    %3316 = vset.pattern.permute.xlu0 0
    %3317 = vperm.xlu0 %3316, %v2524
    %v3318 = vpop.permute.xlu0 %3317
    %3319 = vset.pattern.permute.xlu0 0
    %3320 = vperm.xlu0 %3319, %v2541
    %v3321 = vpop.permute.xlu0 %3320
    %3322 = vset.pattern.permute.xlu0 0
    %3323 = vperm.xlu0 %3322, %v2558
    %v3324 = vpop.permute.xlu0 %3323
    %3325 = vset.pattern.permute.xlu0 0
    %3326 = vperm.xlu0 %3325, %v2575
    %v3327 = vpop.permute.xlu0 %3326
    %3328 = vset.pattern.permute.xlu0 0
    %3329 = vperm.xlu0 %3328, %v2592
    %v3330 = vpop.permute.xlu0 %3329
    %3331 = vset.pattern.permute.xlu0 0
    %3332 = vperm.xlu0 %3331, %v2609
    %v3333 = vpop.permute.xlu0 %3332
    %3334 = vset.pattern.permute.xlu0 0
    %3335 = vperm.xlu0 %3334, %v2626
    %v3336 = vpop.permute.xlu0 %3335
    %3337 = vset.pattern.permute.xlu0 0
    %3338 = vperm.xlu0 %3337, %v2643
    %v3339 = vpop.permute.xlu0 %3338
    %3340 = vset.pattern.permute.xlu0 0
    %3341 = vperm.xlu0 %3340, %v2660
    %v3342 = vpop.permute.xlu0 %3341
    %3343 = vset.pattern.permute.xlu0 0
    %3344 = vperm.xlu0 %3343, %v2677
    %v3345 = vpop.permute.xlu0 %3344
    %3346 = vset.pattern.permute.xlu0 0
    %3347 = vperm.xlu0 %3346, %v2694
    %v3348 = vpop.permute.xlu0 %3347
    %3349 = vset.pattern.permute.xlu0 0
    %3350 = vperm.xlu0 %3349, %v2711
    %v3351 = vpop.permute.xlu0 %3350
    %3352 = vset.pattern.permute.xlu0 0
    %3353 = vperm.xlu0 %3352, %v2728
    %v3354 = vpop.permute.xlu0 %3353
    %3355 = vset.pattern.permute.xlu0 0
    %3356 = vperm.xlu0 %3355, %v2745
    %v3357 = vpop.permute.xlu0 %3356
    %3358 = vset.pattern.permute.xlu0 0
    %3359 = vperm.xlu0 %3358, %v2762
    %v3360 = vpop.permute.xlu0 %3359
    %3361 = vset.pattern.permute.xlu0 0
    %3362 = vperm.xlu0 %3361, %v2779
    %v3363 = vpop.permute.xlu0 %3362
    %3364 = vset.pattern.permute.xlu0 0
    %3365 = vperm.xlu0 %3364, %v2796
    %v3366 = vpop.permute.xlu0 %3365
    %3367 = vset.pattern.permute.xlu0 0
    %3368 = vperm.xlu0 %3367, %v2813
    %v3369 = vpop.permute.xlu0 %3368
    %3370 = vset.pattern.permute.xlu0 0
    %3371 = vperm.xlu0 %3370, %v2830
    %v3372 = vpop.permute.xlu0 %3371
    %3373 = vset.pattern.permute.xlu0 0
    %3374 = vperm.xlu0 %3373, %v2847
    %v3375 = vpop.permute.xlu0 %3374
    %3376 = vset.pattern.permute.xlu0 0
    %3377 = vperm.xlu0 %3376, %v2864
    %v3378 = vpop.permute.xlu0 %3377
    %3379 = vset.pattern.permute.xlu0 0
    %3380 = vperm.xlu0 %3379, %v2881
    %v3381 = vpop.permute.xlu0 %3380
    %3382 = vset.pattern.permute.xlu0 0
    %3383 = vperm.xlu0 %3382, %v2898
    %v3384 = vpop.permute.xlu0 %3383
    %3385 = vset.pattern.permute.xlu0 0
    %3386 = vperm.xlu0 %3385, %v2915
    %v3387 = vpop.permute.xlu0 %3386
    %3388 = vset.pattern.permute.xlu0 0
    %3389 = vperm.xlu0 %3388, %v2932
    %v3390 = vpop.permute.xlu0 %3389
    %3391 = vset.pattern.permute.xlu0 0
    %3392 = vperm.xlu0 %3391, %v2949
    %v3393 = vpop.permute.xlu0 %3392
    %3394 = vset.pattern.permute.xlu0 0
    %3395 = vperm.xlu0 %3394, %v2966
    %v3396 = vpop.permute.xlu0 %3395
    %3397 = vset.pattern.permute.xlu0 0
    %3398 = vperm.xlu0 %3397, %v2983
    %v3399 = vpop.permute.xlu0 %3398
    %3400 = vset.pattern.permute.xlu0 0
    %3401 = vperm.xlu0 %3400, %v3000
    %v3402 = vpop.permute.xlu0 %3401
    %3403 = vset.pattern.permute.xlu0 0
    %3404 = vperm.xlu0 %3403, %v3017
    %v3405 = vpop.permute.xlu0 %3404
    %3406 = vset.pattern.permute.xlu0 0
    %3407 = vperm.xlu0 %3406, %v3034
    %v3408 = vpop.permute.xlu0 %3407
    %3409 = vset.pattern.permute.xlu0 0
    %3410 = vperm.xlu0 %3409, %v3051
    %v3411 = vpop.permute.xlu0 %3410
    %3412 = vset.pattern.permute.xlu0 0
    %3413 = vperm.xlu0 %3412, %v3068
    %v3414 = vpop.permute.xlu0 %3413
    %3415 = vset.pattern.permute.xlu0 0
    %3416 = vperm.xlu0 %3415, %v3085
    %v3417 = vpop.permute.xlu0 %3416
    %3418 = vset.pattern.permute.xlu0 0
    %3419 = vperm.xlu0 %3418, %v3102
    %v3420 = vpop.permute.xlu0 %3419
    %3421 = vset.pattern.permute.xlu0 0
    %3422 = vperm.xlu0 %3421, %v3119
    %v3423 = vpop.permute.xlu0 %3422
    %3424 = vset.pattern.permute.xlu0 0
    %3425 = vperm.xlu0 %3424, %v3136
    %v3426 = vpop.permute.xlu0 %3425
    %3427 = vset.pattern.permute.xlu0 0
    %3428 = vperm.xlu0 %3427, %v3153
    %v3429 = vpop.permute.xlu0 %3428
    %3430 = vset.pattern.permute.xlu0 0
    %3431 = vperm.xlu0 %3430, %v3170
    %v3432 = vpop.permute.xlu0 %3431
    %3433 = vset.pattern.permute.xlu0 0
    %3434 = vperm.xlu0 %3433, %v3187
    %v3435 = vpop.permute.xlu0 %3434
    %3436 = vset.pattern.permute.xlu0 0
    %3437 = vperm.xlu0 %3436, %v3204
    %v3438 = vpop.permute.xlu0 %3437
    %3439 = vset.pattern.permute.xlu0 0
    %3440 = vperm.xlu0 %3439, %v3221
    %v3441 = vpop.permute.xlu0 %3440
    %3442 = vset.pattern.permute.xlu0 0
    %3443 = vperm.xlu0 %3442, %v3238
    %v3444 = vpop.permute.xlu0 %3443
    %3445 = vset.pattern.permute.xlu0 0
    %3446 = vperm.xlu0 %3445, %v3255
    %v3447 = vpop.permute.xlu0 %3446
    %v3448 = vlaneseq
    %v3449 = vand.u32 %v3448, 127
    %v3450 = vlaneseq
    %v3451 = vshrl.u32 %v3450, 7
    %v3452 = vsub.s32 %v3449, %v3451
    %v3453 = vrot.slane %v3258, %v3452
    %v3454 = vadd.s32 %v3449, 4294967288
    %v3455 = vlaneseq
    %v3456 = vshrl.u32 %v3455, 7
    %v3457 = vsub.s32 %v3454, %v3456
    %v3458 = vrot.slane %v3261, %v3457
    %vm3459 = vcmask 130112
    %v3460 = vsel %vm3459, %v3458, %v3453
    %v3461 = vadd.s32 %v3449, 4294967280
    %v3462 = vlaneseq
    %v3463 = vshrl.u32 %v3462, 7
    %v3464 = vsub.s32 %v3461, %v3463
    %v3465 = vrot.slane %v3264, %v3464
    %vm3466 = vcmask 195712
    %v3467 = vsel %vm3466, %v3465, %v3460
    %v3468 = vadd.s32 %v3449, 4294967272
    %v3469 = vlaneseq
    %v3470 = vshrl.u32 %v3469, 7
    %v3471 = vsub.s32 %v3468, %v3470
    %v3472 = vrot.slane %v3267, %v3471
    %vm3473 = vcmask 261312
    %v3474 = vsel %vm3473, %v3472, %v3467
    %v3475 = vadd.s32 %v3449, 4294967264
    %v3476 = vlaneseq
    %v3477 = vshrl.u32 %v3476, 7
    %v3478 = vsub.s32 %v3475, %v3477
    %v3479 = vrot.slane %v3270, %v3478
    %vm3480 = vcmask 326912
    %v3481 = vsel %vm3480, %v3479, %v3474
    %v3482 = vadd.s32 %v3449, 4294967256
    %v3483 = vlaneseq
    %v3484 = vshrl.u32 %v3483, 7
    %v3485 = vsub.s32 %v3482, %v3484
    %v3486 = vrot.slane %v3273, %v3485
    %vm3487 = vcmask 392512
    %v3488 = vsel %vm3487, %v3486, %v3481
    %v3489 = vadd.s32 %v3449, 4294967248
    %v3490 = vlaneseq
    %v3491 = vshrl.u32 %v3490, 7
    %v3492 = vsub.s32 %v3489, %v3491
    %v3493 = vrot.slane %v3276, %v3492
    %vm3494 = vcmask 458112
    %v3495 = vsel %vm3494, %v3493, %v3488
    %v3496 = vadd.s32 %v3449, 4294967240
    %v3497 = vlaneseq
    %v3498 = vshrl.u32 %v3497, 7
    %v3499 = vsub.s32 %v3496, %v3498
    %v3500 = vrot.slane %v3279, %v3499
    %vm3501 = vcmask 523712
    %v3502 = vsel %vm3501, %v3500, %v3495
    %v3503 = vadd.s32 %v3449, 4294967232
    %v3504 = vlaneseq
    %v3505 = vshrl.u32 %v3504, 7
    %v3506 = vsub.s32 %v3503, %v3505
    %v3507 = vrot.slane %v3282, %v3506
    %vm3508 = vcmask 589312
    %v3509 = vsel %vm3508, %v3507, %v3502
    %v3510 = vadd.s32 %v3449, 4294967224
    %v3511 = vlaneseq
    %v3512 = vshrl.u32 %v3511, 7
    %v3513 = vsub.s32 %v3510, %v3512
    %v3514 = vrot.slane %v3285, %v3513
    %vm3515 = vcmask 654912
    %v3516 = vsel %vm3515, %v3514, %v3509
    %v3517 = vadd.s32 %v3449, 4294967216
    %v3518 = vlaneseq
    %v3519 = vshrl.u32 %v3518, 7
    %v3520 = vsub.s32 %v3517, %v3519
    %v3521 = vrot.slane %v3288, %v3520
    %vm3522 = vcmask 720512
    %v3523 = vsel %vm3522, %v3521, %v3516
    %v3524 = vadd.s32 %v3449, 4294967208
    %v3525 = vlaneseq
    %v3526 = vshrl.u32 %v3525, 7
    %v3527 = vsub.s32 %v3524, %v3526
    %v3528 = vrot.slane %v3291, %v3527
    %vm3529 = vcmask 786112
    %v3530 = vsel %vm3529, %v3528, %v3523
    %v3531 = vadd.s32 %v3449, 4294967200
    %v3532 = vlaneseq
    %v3533 = vshrl.u32 %v3532, 7
    %v3534 = vsub.s32 %v3531, %v3533
    %v3535 = vrot.slane %v3294, %v3534
    %vm3536 = vcmask 851712
    %v3537 = vsel %vm3536, %v3535, %v3530
    %v3538 = vadd.s32 %v3449, 4294967192
    %v3539 = vlaneseq
    %v3540 = vshrl.u32 %v3539, 7
    %v3541 = vsub.s32 %v3538, %v3540
    %v3542 = vrot.slane %v3297, %v3541
    %vm3543 = vcmask 917312
    %v3544 = vsel %vm3543, %v3542, %v3537
    %v3545 = vadd.s32 %v3449, 4294967184
    %v3546 = vlaneseq
    %v3547 = vshrl.u32 %v3546, 7
    %v3548 = vsub.s32 %v3545, %v3547
    %v3549 = vrot.slane %v3300, %v3548
    %vm3550 = vcmask 982912
    %v3551 = vsel %vm3550, %v3549, %v3544
    %v3552 = vadd.s32 %v3449, 4294967176
    %v3553 = vlaneseq
    %v3554 = vshrl.u32 %v3553, 7
    %v3555 = vsub.s32 %v3552, %v3554
    %v3556 = vrot.slane %v3303, %v3555
    %vm3557 = vcmask 1048512
    %v3558 = vsel %vm3557, %v3556, %v3551
    %v3559 = vlaneseq
    %v3560 = vshrl.u32 %v3559, 7
    %v3561 = vsub.s32 %v3449, %v3560
    %v3562 = vrot.slane %v3306, %v3561
    %v3563 = vlaneseq
    %v3564 = vshrl.u32 %v3563, 7
    %v3565 = vsub.s32 %v3454, %v3564
    %v3566 = vrot.slane %v3309, %v3565
    %v3567 = vsel %vm3459, %v3566, %v3562
    %v3568 = vlaneseq
    %v3569 = vshrl.u32 %v3568, 7
    %v3570 = vsub.s32 %v3461, %v3569
    %v3571 = vrot.slane %v3312, %v3570
    %v3572 = vsel %vm3466, %v3571, %v3567
    %v3573 = vlaneseq
    %v3574 = vshrl.u32 %v3573, 7
    %v3575 = vsub.s32 %v3468, %v3574
    %v3576 = vrot.slane %v3315, %v3575
    %v3577 = vsel %vm3473, %v3576, %v3572
    %v3578 = vlaneseq
    %v3579 = vshrl.u32 %v3578, 7
    %v3580 = vsub.s32 %v3475, %v3579
    %v3581 = vrot.slane %v3318, %v3580
    %v3582 = vsel %vm3480, %v3581, %v3577
    %v3583 = vlaneseq
    %v3584 = vshrl.u32 %v3583, 7
    %v3585 = vsub.s32 %v3482, %v3584
    %v3586 = vrot.slane %v3321, %v3585
    %v3587 = vsel %vm3487, %v3586, %v3582
    %v3588 = vlaneseq
    %v3589 = vshrl.u32 %v3588, 7
    %v3590 = vsub.s32 %v3489, %v3589
    %v3591 = vrot.slane %v3324, %v3590
    %v3592 = vsel %vm3494, %v3591, %v3587
    %v3593 = vlaneseq
    %v3594 = vshrl.u32 %v3593, 7
    %v3595 = vsub.s32 %v3496, %v3594
    %v3596 = vrot.slane %v3327, %v3595
    %v3597 = vsel %vm3501, %v3596, %v3592
    %v3598 = vlaneseq
    %v3599 = vshrl.u32 %v3598, 7
    %v3600 = vsub.s32 %v3503, %v3599
    %v3601 = vrot.slane %v3330, %v3600
    %v3602 = vsel %vm3508, %v3601, %v3597
    %v3603 = vlaneseq
    %v3604 = vshrl.u32 %v3603, 7
    %v3605 = vsub.s32 %v3510, %v3604
    %v3606 = vrot.slane %v3333, %v3605
    %v3607 = vsel %vm3515, %v3606, %v3602
    %v3608 = vlaneseq
    %v3609 = vshrl.u32 %v3608, 7
    %v3610 = vsub.s32 %v3517, %v3609
    %v3611 = vrot.slane %v3336, %v3610
    %v3612 = vsel %vm3522, %v3611, %v3607
    %v3613 = vlaneseq
    %v3614 = vshrl.u32 %v3613, 7
    %v3615 = vsub.s32 %v3524, %v3614
    %v3616 = vrot.slane %v3339, %v3615
    %v3617 = vsel %vm3529, %v3616, %v3612
    %v3618 = vlaneseq
    %v3619 = vshrl.u32 %v3618, 7
    %v3620 = vsub.s32 %v3531, %v3619
    %v3621 = vrot.slane %v3342, %v3620
    %v3622 = vsel %vm3536, %v3621, %v3617
    %v3623 = vlaneseq
    %v3624 = vshrl.u32 %v3623, 7
    %v3625 = vsub.s32 %v3538, %v3624
    %v3626 = vrot.slane %v3345, %v3625
    %v3627 = vsel %vm3543, %v3626, %v3622
    %v3628 = vlaneseq
    %v3629 = vshrl.u32 %v3628, 7
    %v3630 = vsub.s32 %v3545, %v3629
    %v3631 = vrot.slane %v3348, %v3630
    %v3632 = vsel %vm3550, %v3631, %v3627
    %v3633 = vlaneseq
    %v3634 = vshrl.u32 %v3633, 7
    %v3635 = vsub.s32 %v3552, %v3634
    %v3636 = vrot.slane %v3351, %v3635
    %v3637 = vsel %vm3557, %v3636, %v3632
    %v3638 = vlaneseq
    %v3639 = vshrl.u32 %v3638, 7
    %v3640 = vsub.s32 %v3449, %v3639
    %v3641 = vrot.slane %v3354, %v3640
    %v3642 = vlaneseq
    %v3643 = vshrl.u32 %v3642, 7
    %v3644 = vsub.s32 %v3454, %v3643
    %v3645 = vrot.slane %v3357, %v3644
    %v3646 = vsel %vm3459, %v3645, %v3641
    %v3647 = vlaneseq
    %v3648 = vshrl.u32 %v3647, 7
    %v3649 = vsub.s32 %v3461, %v3648
    %v3650 = vrot.slane %v3360, %v3649
    %v3651 = vsel %vm3466, %v3650, %v3646
    %v3652 = vlaneseq
    %v3653 = vshrl.u32 %v3652, 7
    %v3654 = vsub.s32 %v3468, %v3653
    %v3655 = vrot.slane %v3363, %v3654
    %v3656 = vsel %vm3473, %v3655, %v3651
    %v3657 = vlaneseq
    %v3658 = vshrl.u32 %v3657, 7
    %v3659 = vsub.s32 %v3475, %v3658
    %v3660 = vrot.slane %v3366, %v3659
    %v3661 = vsel %vm3480, %v3660, %v3656
    %v3662 = vlaneseq
    %v3663 = vshrl.u32 %v3662, 7
    %v3664 = vsub.s32 %v3482, %v3663
    %v3665 = vrot.slane %v3369, %v3664
    %v3666 = vsel %vm3487, %v3665, %v3661
    %v3667 = vlaneseq
    %v3668 = vshrl.u32 %v3667, 7
    %v3669 = vsub.s32 %v3489, %v3668
    %v3670 = vrot.slane %v3372, %v3669
    %v3671 = vsel %vm3494, %v3670, %v3666
    %v3672 = vlaneseq
    %v3673 = vshrl.u32 %v3672, 7
    %v3674 = vsub.s32 %v3496, %v3673
    %v3675 = vrot.slane %v3375, %v3674
    %v3676 = vsel %vm3501, %v3675, %v3671
    %v3677 = vlaneseq
    %v3678 = vshrl.u32 %v3677, 7
    %v3679 = vsub.s32 %v3503, %v3678
    %v3680 = vrot.slane %v3378, %v3679
    %v3681 = vsel %vm3508, %v3680, %v3676
    %v3682 = vlaneseq
    %v3683 = vshrl.u32 %v3682, 7
    %v3684 = vsub.s32 %v3510, %v3683
    %v3685 = vrot.slane %v3381, %v3684
    %v3686 = vsel %vm3515, %v3685, %v3681
    %v3687 = vlaneseq
    %v3688 = vshrl.u32 %v3687, 7
    %v3689 = vsub.s32 %v3517, %v3688
    %v3690 = vrot.slane %v3384, %v3689
    %v3691 = vsel %vm3522, %v3690, %v3686
    %v3692 = vlaneseq
    %v3693 = vshrl.u32 %v3692, 7
    %v3694 = vsub.s32 %v3524, %v3693
    %v3695 = vrot.slane %v3387, %v3694
    %v3696 = vsel %vm3529, %v3695, %v3691
    %v3697 = vlaneseq
    %v3698 = vshrl.u32 %v3697, 7
    %v3699 = vsub.s32 %v3531, %v3698
    %v3700 = vrot.slane %v3390, %v3699
    %v3701 = vsel %vm3536, %v3700, %v3696
    %v3702 = vlaneseq
    %v3703 = vshrl.u32 %v3702, 7
    %v3704 = vsub.s32 %v3538, %v3703
    %v3705 = vrot.slane %v3393, %v3704
    %v3706 = vsel %vm3543, %v3705, %v3701
    %v3707 = vlaneseq
    %v3708 = vshrl.u32 %v3707, 7
    %v3709 = vsub.s32 %v3545, %v3708
    %v3710 = vrot.slane %v3396, %v3709
    %v3711 = vsel %vm3550, %v3710, %v3706
    %v3712 = vlaneseq
    %v3713 = vshrl.u32 %v3712, 7
    %v3714 = vsub.s32 %v3552, %v3713
    %v3715 = vrot.slane %v3399, %v3714
    %v3716 = vsel %vm3557, %v3715, %v3711
    %v3717 = vlaneseq
    %v3718 = vshrl.u32 %v3717, 7
    %v3719 = vsub.s32 %v3449, %v3718
    %v3720 = vrot.slane %v3402, %v3719
    %v3721 = vlaneseq
    %v3722 = vshrl.u32 %v3721, 7
    %v3723 = vsub.s32 %v3454, %v3722
    %v3724 = vrot.slane %v3405, %v3723
    %v3725 = vsel %vm3459, %v3724, %v3720
    %v3726 = vlaneseq
    %v3727 = vshrl.u32 %v3726, 7
    %v3728 = vsub.s32 %v3461, %v3727
    %v3729 = vrot.slane %v3408, %v3728
    %v3730 = vsel %vm3466, %v3729, %v3725
    %v3731 = vlaneseq
    %v3732 = vshrl.u32 %v3731, 7
    %v3733 = vsub.s32 %v3468, %v3732
    %v3734 = vrot.slane %v3411, %v3733
    %v3735 = vsel %vm3473, %v3734, %v3730
    %v3736 = vlaneseq
    %v3737 = vshrl.u32 %v3736, 7
    %v3738 = vsub.s32 %v3475, %v3737
    %v3739 = vrot.slane %v3414, %v3738
    %v3740 = vsel %vm3480, %v3739, %v3735
    %v3741 = vlaneseq
    %v3742 = vshrl.u32 %v3741, 7
    %v3743 = vsub.s32 %v3482, %v3742
    %v3744 = vrot.slane %v3417, %v3743
    %v3745 = vsel %vm3487, %v3744, %v3740
    %v3746 = vlaneseq
    %v3747 = vshrl.u32 %v3746, 7
    %v3748 = vsub.s32 %v3489, %v3747
    %v3749 = vrot.slane %v3420, %v3748
    %v3750 = vsel %vm3494, %v3749, %v3745
    %v3751 = vlaneseq
    %v3752 = vshrl.u32 %v3751, 7
    %v3753 = vsub.s32 %v3496, %v3752
    %v3754 = vrot.slane %v3423, %v3753
    %v3755 = vsel %vm3501, %v3754, %v3750
    %v3756 = vlaneseq
    %v3757 = vshrl.u32 %v3756, 7
    %v3758 = vsub.s32 %v3503, %v3757
    %v3759 = vrot.slane %v3426, %v3758
    %v3760 = vsel %vm3508, %v3759, %v3755
    %v3761 = vlaneseq
    %v3762 = vshrl.u32 %v3761, 7
    %v3763 = vsub.s32 %v3510, %v3762
    %v3764 = vrot.slane %v3429, %v3763
    %v3765 = vsel %vm3515, %v3764, %v3760
    %v3766 = vlaneseq
    %v3767 = vshrl.u32 %v3766, 7
    %v3768 = vsub.s32 %v3517, %v3767
    %v3769 = vrot.slane %v3432, %v3768
    %v3770 = vsel %vm3522, %v3769, %v3765
    %v3771 = vlaneseq
    %v3772 = vshrl.u32 %v3771, 7
    %v3773 = vsub.s32 %v3524, %v3772
    %v3774 = vrot.slane %v3435, %v3773
    %v3775 = vsel %vm3529, %v3774, %v3770
    %v3776 = vlaneseq
    %v3777 = vshrl.u32 %v3776, 7
    %v3778 = vsub.s32 %v3531, %v3777
    %v3779 = vrot.slane %v3438, %v3778
    %v3780 = vsel %vm3536, %v3779, %v3775
    %v3781 = vlaneseq
    %v3782 = vshrl.u32 %v3781, 7
    %v3783 = vsub.s32 %v3538, %v3782
    %v3784 = vrot.slane %v3441, %v3783
    %v3785 = vsel %vm3543, %v3784, %v3780
    %v3786 = vlaneseq
    %v3787 = vshrl.u32 %v3786, 7
    %v3788 = vsub.s32 %v3545, %v3787
    %v3789 = vrot.slane %v3444, %v3788
    %v3790 = vsel %vm3550, %v3789, %v3785
    %v3791 = vlaneseq
    %v3792 = vshrl.u32 %v3791, 7
    %v3793 = vsub.s32 %v3552, %v3792
    %v3794 = vrot.slane %v3447, %v3793
    %v3795 = vsel %vm3557, %v3794, %v3790
    %vm3796 = vcmask 1041409
    %v3797 = vsel %vm3796, %v3716, %v3558
    %v3798 = vsel %vm3796, %v3795, %v3637
    %v3799 = vcombine.low %v3797, %v3798
    %v3801 = vunpack.c.l.s4 1983009808
    %v3802 = vunpack.c.0.s8 %v3801
    %v3803 = vlaneseq
    %v3804 = vshrl.u32 %v3803, 7
    %v3805 = vsub.s32 %v3802, %v3804
    %v3806 = vrot.slane %v3799, %v3805
    %v3808 = vadd.f32 %v118, %v3806
    %3809 = vst [vmem:[#allocation2] sm:$0xf] %v3808
    // Predicated region
    $region34: #{tpu_custom_call.1} parent=1 // pred_check
      %p3810 = pneg %p49
    $region35: #{tpu_custom_call.1} parent=1 // pred_check_branch
      %3812 = sbr.rel (%p3810) target = $region37
    $region36: #{tpu_custom_call.1} parent=1 // pred_region
      %v3813 = vld [vmem:[#allocation2] sm:$0xf]
      %v3814 = vmul.f32 %v3813, 0.015625
      %v3815 = vld [vmem:[#allocation3] sm:$0xff]
      %v3816 = vld [vmem:[#allocation3 + $0x8] sm:$0xff]
      %v3817 = vld [vmem:[#allocation3 + $0x10] sm:$0xff]
      %v3818 = vld [vmem:[#allocation3 + $0x18] sm:$0xff]
      %v3819 = vld [vmem:[#allocation3 + $0x20] sm:$0xff]
      %v3820 = vld [vmem:[#allocation3 + $0x28] sm:$0xff]
      %v3821 = vld [vmem:[#allocation3 + $0x30] sm:$0xff]
      %v3822 = vld [vmem:[#allocation3 + $0x38] sm:$0xff]
      %v3823 = vld [vmem:[#allocation3 + $0x40] sm:$0xff]
      %v3824 = vld [vmem:[#allocation3 + $0x48] sm:$0xff]
      %v3825 = vld [vmem:[#allocation3 + $0x50] sm:$0xff]
      %v3826 = vld [vmem:[#allocation3 + $0x58] sm:$0xff]
      %v3827 = vld [vmem:[#allocation3 + $0x60] sm:$0xff]
      %v3828 = vld [vmem:[#allocation3 + $0x68] sm:$0xff]
      %v3829 = vld [vmem:[#allocation3 + $0x70] sm:$0xff]
      %v3830 = vld [vmem:[#allocation3 + $0x78] sm:$0xff]
      %v3831 = vld [vmem:[#allocation3 + $0x80] sm:$0xff]
      %v3832 = vld [vmem:[#allocation3 + $0x88] sm:$0xff]
      %v3833 = vld [vmem:[#allocation3 + $0x90] sm:$0xff]
      %v3834 = vld [vmem:[#allocation3 + $0x98] sm:$0xff]
      %v3835 = vld [vmem:[#allocation3 + $0xa0] sm:$0xff]
      %v3836 = vld [vmem:[#allocation3 + $0xa8] sm:$0xff]
      %v3837 = vld [vmem:[#allocation3 + $0xb0] sm:$0xff]
      %v3838 = vld [vmem:[#allocation3 + $0xb8] sm:$0xff]
      %v3839 = vld [vmem:[#allocation3 + $0xc0] sm:$0xff]
      %v3840 = vld [vmem:[#allocation3 + $0xc8] sm:$0xff]
      %v3841 = vld [vmem:[#allocation3 + $0xd0] sm:$0xff]
      %v3842 = vld [vmem:[#allocation3 + $0xd8] sm:$0xff]
      %v3843 = vld [vmem:[#allocation3 + $0xe0] sm:$0xff]
      %v3844 = vld [vmem:[#allocation3 + $0xe8] sm:$0xff]
      %v3845 = vld [vmem:[#allocation3 + $0xf0] sm:$0xff]
      %v3846 = vld [vmem:[#allocation3 + $0xf8] sm:$0xff]
      %v3847 = vld [vmem:[#allocation3 + $0x100] sm:$0xff]
      %v3848 = vld [vmem:[#allocation3 + $0x108] sm:$0xff]
      %v3849 = vld [vmem:[#allocation3 + $0x110] sm:$0xff]
      %v3850 = vld [vmem:[#allocation3 + $0x118] sm:$0xff]
      %v3851 = vld [vmem:[#allocation3 + $0x120] sm:$0xff]
      %v3852 = vld [vmem:[#allocation3 + $0x128] sm:$0xff]
      %v3853 = vld [vmem:[#allocation3 + $0x130] sm:$0xff]
      %v3854 = vld [vmem:[#allocation3 + $0x138] sm:$0xff]
      %v3855 = vld [vmem:[#allocation3 + $0x140] sm:$0xff]
      %v3856 = vld [vmem:[#allocation3 + $0x148] sm:$0xff]
      %v3857 = vld [vmem:[#allocation3 + $0x150] sm:$0xff]
      %v3858 = vld [vmem:[#allocation3 + $0x158] sm:$0xff]
      %v3859 = vld [vmem:[#allocation3 + $0x160] sm:$0xff]
      %v3860 = vld [vmem:[#allocation3 + $0x168] sm:$0xff]
      %v3861 = vld [vmem:[#allocation3 + $0x170] sm:$0xff]
      %v3862 = vld [vmem:[#allocation3 + $0x178] sm:$0xff]
      %v3863 = vld [vmem:[#allocation3 + $0x180] sm:$0xff]
      %v3864 = vld [vmem:[#allocation3 + $0x188] sm:$0xff]
      %v3865 = vld [vmem:[#allocation3 + $0x190] sm:$0xff]
      %v3866 = vld [vmem:[#allocation3 + $0x198] sm:$0xff]
      %v3867 = vld [vmem:[#allocation3 + $0x1a0] sm:$0xff]
      %v3868 = vld [vmem:[#allocation3 + $0x1a8] sm:$0xff]
      %v3869 = vld [vmem:[#allocation3 + $0x1b0] sm:$0xff]
      %v3870 = vld [vmem:[#allocation3 + $0x1b8] sm:$0xff]
      %v3871 = vld [vmem:[#allocation3 + $0x1c0] sm:$0xff]
      %v3872 = vld [vmem:[#allocation3 + $0x1c8] sm:$0xff]
      %v3873 = vld [vmem:[#allocation3 + $0x1d0] sm:$0xff]
      %v3874 = vld [vmem:[#allocation3 + $0x1d8] sm:$0xff]
      %v3875 = vld [vmem:[#allocation3 + $0x1e0] sm:$0xff]
      %v3876 = vld [vmem:[#allocation3 + $0x1e8] sm:$0xff]
      %v3877 = vld [vmem:[#allocation3 + $0x1f0] sm:$0xff]
      %v3878 = vld [vmem:[#allocation3 + $0x1f8] sm:$0xff]
      %v3879 = vld [vmem:[#allocation3 + $0x200] sm:$0xff]
      %v3880 = vld [vmem:[#allocation3 + $0x208] sm:$0xff]
      %v3881 = vld [vmem:[#allocation3 + $0x210] sm:$0xff]
      %v3882 = vld [vmem:[#allocation3 + $0x218] sm:$0xff]
      %v3883 = vld [vmem:[#allocation3 + $0x220] sm:$0xff]
      %v3884 = vld [vmem:[#allocation3 + $0x228] sm:$0xff]
      %v3885 = vld [vmem:[#allocation3 + $0x230] sm:$0xff]
      %v3886 = vld [vmem:[#allocation3 + $0x238] sm:$0xff]
      %v3887 = vld [vmem:[#allocation3 + $0x240] sm:$0xff]
      %v3888 = vld [vmem:[#allocation3 + $0x248] sm:$0xff]
      %v3889 = vld [vmem:[#allocation3 + $0x250] sm:$0xff]
      %v3890 = vld [vmem:[#allocation3 + $0x258] sm:$0xff]
      %v3891 = vld [vmem:[#allocation3 + $0x260] sm:$0xff]
      %v3892 = vld [vmem:[#allocation3 + $0x268] sm:$0xff]
      %v3893 = vld [vmem:[#allocation3 + $0x270] sm:$0xff]
      %v3894 = vld [vmem:[#allocation3 + $0x278] sm:$0xff]
      %v3895 = vld [vmem:[#allocation3 + $0x280] sm:$0xff]
      %v3896 = vld [vmem:[#allocation3 + $0x288] sm:$0xff]
      %v3897 = vld [vmem:[#allocation3 + $0x290] sm:$0xff]
      %v3898 = vld [vmem:[#allocation3 + $0x298] sm:$0xff]
      %v3899 = vld [vmem:[#allocation3 + $0x2a0] sm:$0xff]
      %v3900 = vld [vmem:[#allocation3 + $0x2a8] sm:$0xff]
      %v3901 = vld [vmem:[#allocation3 + $0x2b0] sm:$0xff]
      %v3902 = vld [vmem:[#allocation3 + $0x2b8] sm:$0xff]
      %v3903 = vld [vmem:[#allocation3 + $0x2c0] sm:$0xff]
      %v3904 = vld [vmem:[#allocation3 + $0x2c8] sm:$0xff]
      %v3905 = vld [vmem:[#allocation3 + $0x2d0] sm:$0xff]
      %v3906 = vld [vmem:[#allocation3 + $0x2d8] sm:$0xff]
      %v3907 = vld [vmem:[#allocation3 + $0x2e0] sm:$0xff]
      %v3908 = vld [vmem:[#allocation3 + $0x2e8] sm:$0xff]
      %v3909 = vld [vmem:[#allocation3 + $0x2f0] sm:$0xff]
      %v3910 = vld [vmem:[#allocation3 + $0x2f8] sm:$0xff]
      %v3911 = vld [vmem:[#allocation3 + $0x300] sm:$0xff]
      %v3912 = vld [vmem:[#allocation3 + $0x308] sm:$0xff]
      %v3913 = vld [vmem:[#allocation3 + $0x310] sm:$0xff]
      %v3914 = vld [vmem:[#allocation3 + $0x318] sm:$0xff]
      %v3915 = vld [vmem:[#allocation3 + $0x320] sm:$0xff]
      %v3916 = vld [vmem:[#allocation3 + $0x328] sm:$0xff]
      %v3917 = vld [vmem:[#allocation3 + $0x330] sm:$0xff]
      %v3918 = vld [vmem:[#allocation3 + $0x338] sm:$0xff]
      %v3919 = vld [vmem:[#allocation3 + $0x340] sm:$0xff]
      %v3920 = vld [vmem:[#allocation3 + $0x348] sm:$0xff]
      %v3921 = vld [vmem:[#allocation3 + $0x350] sm:$0xff]
      %v3922 = vld [vmem:[#allocation3 + $0x358] sm:$0xff]
      %v3923 = vld [vmem:[#allocation3 + $0x360] sm:$0xff]
      %v3924 = vld [vmem:[#allocation3 + $0x368] sm:$0xff]
      %v3925 = vld [vmem:[#allocation3 + $0x370] sm:$0xff]
      %v3926 = vld [vmem:[#allocation3 + $0x378] sm:$0xff]
      %v3927 = vld [vmem:[#allocation3 + $0x380] sm:$0xff]
      %v3928 = vld [vmem:[#allocation3 + $0x388] sm:$0xff]
      %v3929 = vld [vmem:[#allocation3 + $0x390] sm:$0xff]
      %v3930 = vld [vmem:[#allocation3 + $0x398] sm:$0xff]
      %v3931 = vld [vmem:[#allocation3 + $0x3a0] sm:$0xff]
      %v3932 = vld [vmem:[#allocation3 + $0x3a8] sm:$0xff]
      %v3933 = vld [vmem:[#allocation3 + $0x3b0] sm:$0xff]
      %v3934 = vld [vmem:[#allocation3 + $0x3b8] sm:$0xff]
      %v3935 = vld [vmem:[#allocation3 + $0x3c0] sm:$0xff]
      %v3936 = vld [vmem:[#allocation3 + $0x3c8] sm:$0xff]
      %v3937 = vld [vmem:[#allocation3 + $0x3d0] sm:$0xff]
      %v3938 = vld [vmem:[#allocation3 + $0x3d8] sm:$0xff]
      %v3939 = vld [vmem:[#allocation3 + $0x3e0] sm:$0xff]
      %v3940 = vld [vmem:[#allocation3 + $0x3e8] sm:$0xff]
      %v3941 = vld [vmem:[#allocation3 + $0x3f0] sm:$0xff]
      %v3942 = vld [vmem:[#allocation3 + $0x3f8] sm:$0xff]
      %v3943 = vld [vmem:[#allocation3 + $0x400] sm:$0xff]
      %v3944 = vld [vmem:[#allocation3 + $0x408] sm:$0xff]
      %v3945 = vld [vmem:[#allocation3 + $0x410] sm:$0xff]
      %v3946 = vld [vmem:[#allocation3 + $0x418] sm:$0xff]
      %v3947 = vld [vmem:[#allocation3 + $0x420] sm:$0xff]
      %v3948 = vld [vmem:[#allocation3 + $0x428] sm:$0xff]
      %v3949 = vld [vmem:[#allocation3 + $0x430] sm:$0xff]
      %v3950 = vld [vmem:[#allocation3 + $0x438] sm:$0xff]
      %v3951 = vld [vmem:[#allocation3 + $0x440] sm:$0xff]
      %v3952 = vld [vmem:[#allocation3 + $0x448] sm:$0xff]
      %v3953 = vld [vmem:[#allocation3 + $0x450] sm:$0xff]
      %v3954 = vld [vmem:[#allocation3 + $0x458] sm:$0xff]
      %v3955 = vld [vmem:[#allocation3 + $0x460] sm:$0xff]
      %v3956 = vld [vmem:[#allocation3 + $0x468] sm:$0xff]
      %v3957 = vld [vmem:[#allocation3 + $0x470] sm:$0xff]
      %v3958 = vld [vmem:[#allocation3 + $0x478] sm:$0xff]
      %v3959 = vld [vmem:[#allocation3 + $0x480] sm:$0xff]
      %v3960 = vld [vmem:[#allocation3 + $0x488] sm:$0xff]
      %v3961 = vld [vmem:[#allocation3 + $0x490] sm:$0xff]
      %v3962 = vld [vmem:[#allocation3 + $0x498] sm:$0xff]
      %v3963 = vld [vmem:[#allocation3 + $0x4a0] sm:$0xff]
      %v3964 = vld [vmem:[#allocation3 + $0x4a8] sm:$0xff]
      %v3965 = vld [vmem:[#allocation3 + $0x4b0] sm:$0xff]
      %v3966 = vld [vmem:[#allocation3 + $0x4b8] sm:$0xff]
      %v3967 = vld [vmem:[#allocation3 + $0x4c0] sm:$0xff]
      %v3968 = vld [vmem:[#allocation3 + $0x4c8] sm:$0xff]
      %v3969 = vld [vmem:[#allocation3 + $0x4d0] sm:$0xff]
      %v3970 = vld [vmem:[#allocation3 + $0x4d8] sm:$0xff]
      %v3971 = vld [vmem:[#allocation3 + $0x4e0] sm:$0xff]
      %v3972 = vld [vmem:[#allocation3 + $0x4e8] sm:$0xff]
      %v3973 = vld [vmem:[#allocation3 + $0x4f0] sm:$0xff]
      %v3974 = vld [vmem:[#allocation3 + $0x4f8] sm:$0xff]
      %v3975 = vld [vmem:[#allocation3 + $0x500] sm:$0xff]
      %v3976 = vld [vmem:[#allocation3 + $0x508] sm:$0xff]
      %v3977 = vld [vmem:[#allocation3 + $0x510] sm:$0xff]
      %v3978 = vld [vmem:[#allocation3 + $0x518] sm:$0xff]
      %v3979 = vld [vmem:[#allocation3 + $0x520] sm:$0xff]
      %v3980 = vld [vmem:[#allocation3 + $0x528] sm:$0xff]
      %v3981 = vld [vmem:[#allocation3 + $0x530] sm:$0xff]
      %v3982 = vld [vmem:[#allocation3 + $0x538] sm:$0xff]
      %v3983 = vld [vmem:[#allocation3 + $0x540] sm:$0xff]
      %v3984 = vld [vmem:[#allocation3 + $0x548] sm:$0xff]
      %v3985 = vld [vmem:[#allocation3 + $0x550] sm:$0xff]
      %v3986 = vld [vmem:[#allocation3 + $0x558] sm:$0xff]
      %v3987 = vld [vmem:[#allocation3 + $0x560] sm:$0xff]
      %v3988 = vld [vmem:[#allocation3 + $0x568] sm:$0xff]
      %v3989 = vld [vmem:[#allocation3 + $0x570] sm:$0xff]
      %v3990 = vld [vmem:[#allocation3 + $0x578] sm:$0xff]
      %v3991 = vld [vmem:[#allocation3 + $0x580] sm:$0xff]
      %v3992 = vld [vmem:[#allocation3 + $0x588] sm:$0xff]
      %v3993 = vld [vmem:[#allocation3 + $0x590] sm:$0xff]
      %v3994 = vld [vmem:[#allocation3 + $0x598] sm:$0xff]
      %v3995 = vld [vmem:[#allocation3 + $0x5a0] sm:$0xff]
      %v3996 = vld [vmem:[#allocation3 + $0x5a8] sm:$0xff]
      %v3997 = vld [vmem:[#allocation3 + $0x5b0] sm:$0xff]
      %v3998 = vld [vmem:[#allocation3 + $0x5b8] sm:$0xff]
      %v3999 = vld [vmem:[#allocation3 + $0x5c0] sm:$0xff]
      %v4000 = vld [vmem:[#allocation3 + $0x5c8] sm:$0xff]
      %v4001 = vld [vmem:[#allocation3 + $0x5d0] sm:$0xff]
      %v4002 = vld [vmem:[#allocation3 + $0x5d8] sm:$0xff]
      %v4003 = vld [vmem:[#allocation3 + $0x5e0] sm:$0xff]
      %v4004 = vld [vmem:[#allocation3 + $0x5e8] sm:$0xff]
      %v4005 = vld [vmem:[#allocation3 + $0x5f0] sm:$0xff]
      %v4006 = vld [vmem:[#allocation3 + $0x5f8] sm:$0xff]
      %v4007 = vld [vmem:[#allocation3 + $0x600] sm:$0xff]
      %v4008 = vld [vmem:[#allocation3 + $0x608] sm:$0xff]
      %v4009 = vld [vmem:[#allocation3 + $0x610] sm:$0xff]
      %v4010 = vld [vmem:[#allocation3 + $0x618] sm:$0xff]
      %v4011 = vld [vmem:[#allocation3 + $0x620] sm:$0xff]
      %v4012 = vld [vmem:[#allocation3 + $0x628] sm:$0xff]
      %v4013 = vld [vmem:[#allocation3 + $0x630] sm:$0xff]
      %v4014 = vld [vmem:[#allocation3 + $0x638] sm:$0xff]
      %v4015 = vld [vmem:[#allocation3 + $0x640] sm:$0xff]
      %v4016 = vld [vmem:[#allocation3 + $0x648] sm:$0xff]
      %v4017 = vld [vmem:[#allocation3 + $0x650] sm:$0xff]
      %v4018 = vld [vmem:[#allocation3 + $0x658] sm:$0xff]
      %v4019 = vld [vmem:[#allocation3 + $0x660] sm:$0xff]
      %v4020 = vld [vmem:[#allocation3 + $0x668] sm:$0xff]
      %v4021 = vld [vmem:[#allocation3 + $0x670] sm:$0xff]
      %v4022 = vld [vmem:[#allocation3 + $0x678] sm:$0xff]
      %v4023 = vld [vmem:[#allocation3 + $0x680] sm:$0xff]
      %v4024 = vld [vmem:[#allocation3 + $0x688] sm:$0xff]
      %v4025 = vld [vmem:[#allocation3 + $0x690] sm:$0xff]
      %v4026 = vld [vmem:[#allocation3 + $0x698] sm:$0xff]
      %v4027 = vld [vmem:[#allocation3 + $0x6a0] sm:$0xff]
      %v4028 = vld [vmem:[#allocation3 + $0x6a8] sm:$0xff]
      %v4029 = vld [vmem:[#allocation3 + $0x6b0] sm:$0xff]
      %v4030 = vld [vmem:[#allocation3 + $0x6b8] sm:$0xff]
      %v4031 = vld [vmem:[#allocation3 + $0x6c0] sm:$0xff]
      %v4032 = vld [vmem:[#allocation3 + $0x6c8] sm:$0xff]
      %v4033 = vld [vmem:[#allocation3 + $0x6d0] sm:$0xff]
      %v4034 = vld [vmem:[#allocation3 + $0x6d8] sm:$0xff]
      %v4035 = vld [vmem:[#allocation3 + $0x6e0] sm:$0xff]
      %v4036 = vld [vmem:[#allocation3 + $0x6e8] sm:$0xff]
      %v4037 = vld [vmem:[#allocation3 + $0x6f0] sm:$0xff]
      %v4038 = vld [vmem:[#allocation3 + $0x6f8] sm:$0xff]
      %v4039 = vld [vmem:[#allocation3 + $0x700] sm:$0xff]
      %v4040 = vld [vmem:[#allocation3 + $0x708] sm:$0xff]
      %v4041 = vld [vmem:[#allocation3 + $0x710] sm:$0xff]
      %v4042 = vld [vmem:[#allocation3 + $0x718] sm:$0xff]
      %v4043 = vld [vmem:[#allocation3 + $0x720] sm:$0xff]
      %v4044 = vld [vmem:[#allocation3 + $0x728] sm:$0xff]
      %v4045 = vld [vmem:[#allocation3 + $0x730] sm:$0xff]
      %v4046 = vld [vmem:[#allocation3 + $0x738] sm:$0xff]
      %v4047 = vld [vmem:[#allocation3 + $0x740] sm:$0xff]
      %v4048 = vld [vmem:[#allocation3 + $0x748] sm:$0xff]
      %v4049 = vld [vmem:[#allocation3 + $0x750] sm:$0xff]
      %v4050 = vld [vmem:[#allocation3 + $0x758] sm:$0xff]
      %v4051 = vld [vmem:[#allocation3 + $0x760] sm:$0xff]
      %v4052 = vld [vmem:[#allocation3 + $0x768] sm:$0xff]
      %v4053 = vld [vmem:[#allocation3 + $0x770] sm:$0xff]
      %v4054 = vld [vmem:[#allocation3 + $0x778] sm:$0xff]
      %v4055 = vld [vmem:[#allocation3 + $0x780] sm:$0xff]
      %v4056 = vld [vmem:[#allocation3 + $0x788] sm:$0xff]
      %v4057 = vld [vmem:[#allocation3 + $0x790] sm:$0xff]
      %v4058 = vld [vmem:[#allocation3 + $0x798] sm:$0xff]
      %v4059 = vld [vmem:[#allocation3 + $0x7a0] sm:$0xff]
      %v4060 = vld [vmem:[#allocation3 + $0x7a8] sm:$0xff]
      %v4061 = vld [vmem:[#allocation3 + $0x7b0] sm:$0xff]
      %v4062 = vld [vmem:[#allocation3 + $0x7b8] sm:$0xff]
      %v4063 = vld [vmem:[#allocation3 + $0x7c0] sm:$0xff]
      %v4064 = vld [vmem:[#allocation3 + $0x7c8] sm:$0xff]
      %v4065 = vld [vmem:[#allocation3 + $0x7d0] sm:$0xff]
      %v4066 = vld [vmem:[#allocation3 + $0x7d8] sm:$0xff]
      %v4067 = vld [vmem:[#allocation3 + $0x7e0] sm:$0xff]
      %v4068 = vld [vmem:[#allocation3 + $0x7e8] sm:$0xff]
      %v4069 = vld [vmem:[#allocation3 + $0x7f0] sm:$0xff]
      %v4070 = vld [vmem:[#allocation3 + $0x7f8] sm:$0xff]
      %v4071 = vld [vmem:[%s2] sm:$0xff]
      %v4073 = vlaneseq
      %v4074 = vshrl.u32 %v4073, 7
      %v4075 = vsub.s32 0, %v4074
      %v4076 = vrot.slane %v4071, %v4075
      %v4077 = vlaneseq
      %v4078 = vshrl.u32 %v4077, 7
      %v4079 = vsub.s32 1, %v4078
      %v4080 = vrot.slane %v4071, %v4079
      %v4081 = vlaneseq
      %v4082 = vshrl.u32 %v4081, 7
      %v4083 = vsub.s32 2, %v4082
      %v4084 = vrot.slane %v4071, %v4083
      %v4085 = vlaneseq
      %v4086 = vshrl.u32 %v4085, 7
      %v4087 = vsub.s32 3, %v4086
      %v4088 = vrot.slane %v4071, %v4087
      %v4089 = vlaneseq
      %v4090 = vshrl.u32 %v4089, 7
      %v4091 = vsub.s32 4, %v4090
      %v4092 = vrot.slane %v4071, %v4091
      %v4093 = vlaneseq
      %v4094 = vshrl.u32 %v4093, 7
      %v4095 = vsub.s32 5, %v4094
      %v4096 = vrot.slane %v4071, %v4095
      %v4097 = vlaneseq
      %v4098 = vshrl.u32 %v4097, 7
      %v4099 = vsub.s32 6, %v4098
      %v4100 = vrot.slane %v4071, %v4099
      %v4101 = vlaneseq
      %v4102 = vshrl.u32 %v4101, 7
      %v4103 = vsub.s32 7, %v4102
      %v4104 = vrot.slane %v4071, %v4103
      %v4115 = vunpack.c.l.s4 1983009808
      %v4116 = vunpack.c.0.s8 %v4115
      %v4117 = vlaneseq
      %v4118 = vshrl.u32 %v4117, 7
      %v4119 = vsub.s32 %v4116, %v4118
      %v4120 = vrot.slane %v3814, %v4119
      %v4121 = vcombine.high %v4120, %v4120
      %4124 = vmatprep.subr.mxu0 %v3816
      %4125 = vmatpush1.msra.mxu0 %v3815
      %4126 = vmatprep.subr.mxu0 %v3824
      %4127 = vmatpush1.msra.mxu0 %v3823
      %4128 = vmatprep.subr.mxu0 %v3832
      %4129 = vmatpush1.msra.mxu0 %v3831
      %4130 = vmatprep.subr.mxu0 %v3840
      %4131 = vmatpush1.msra.mxu0 %v3839
      %4132 = vmatprep.subr.mxu0 %v3848
      %4133 = vmatpush1.msra.mxu0 %v3847
      %4134 = vmatprep.subr.mxu0 %v3856
      %4135 = vmatpush1.msra.mxu0 %v3855
      %4136 = vmatprep.subr.mxu0 %v3864
      %4137 = vmatpush1.msra.mxu0 %v3863
      %4138 = vmatprep.subr.mxu0 %v3872
      %4139 = vmatpush1.msra.mxu0 %v3871
      %4140 = vmatprep.subr.mxu0 %v3880
      %4141 = vmatpush1.msra.mxu0 %v3879
      %4142 = vmatprep.subr.mxu0 %v3888
      %4143 = vmatpush1.msra.mxu0 %v3887
      %4144 = vmatprep.subr.mxu0 %v3896
      %4145 = vmatpush1.msra.mxu0 %v3895
      %4146 = vmatprep.subr.mxu0 %v3904
      %4147 = vmatpush1.msra.mxu0 %v3903
      %4148 = vmatprep.subr.mxu0 %v3912
      %4149 = vmatpush1.msra.mxu0 %v3911
      %4150 = vmatprep.subr.mxu0 %v3920
      %4151 = vmatpush1.msra.mxu0 %v3919
      %4152 = vmatprep.subr.mxu0 %v3928
      %4153 = vmatpush1.msra.mxu0 %v3927
      %4154 = vmatprep.subr.mxu0 %v3936
      %4155 = vmatpush1.msra.mxu0 %v3935
      %4156 = vmatprep.subr.mxu0 %v3944
      %4157 = vmatpush1.msra.mxu0 %v3943
      %4158 = vmatprep.subr.mxu0 %v3952
      %4159 = vmatpush1.msra.mxu0 %v3951
      %4160 = vmatprep.subr.mxu0 %v3960
      %4161 = vmatpush1.msra.mxu0 %v3959
      %4162 = vmatprep.subr.mxu0 %v3968
      %4163 = vmatpush1.msra.mxu0 %v3967
      %4164 = vmatprep.subr.mxu0 %v3976
      %4165 = vmatpush1.msra.mxu0 %v3975
      %4166 = vmatprep.subr.mxu0 %v3984
      %4167 = vmatpush1.msra.mxu0 %v3983
      %4168 = vmatprep.subr.mxu0 %v3992
      %4169 = vmatpush1.msra.mxu0 %v3991
      %4170 = vmatprep.subr.mxu0 %v4000
      %4171 = vmatpush1.msra.mxu0 %v3999
      %4172 = vmatprep.subr.mxu0 %v4008
      %4173 = vmatpush1.msra.mxu0 %v4007
      %4174 = vmatprep.subr.mxu0 %v4016
      %4175 = vmatpush1.msra.mxu0 %v4015
      %4176 = vmatprep.subr.mxu0 %v4024
      %4177 = vmatpush1.msra.mxu0 %v4023
      %4178 = vmatprep.subr.mxu0 %v4032
      %4179 = vmatpush1.msra.mxu0 %v4031
      %4180 = vmatprep.subr.mxu0 %v4040
      %4181 = vmatpush1.msra.mxu0 %v4039
      %4182 = vmatprep.subr.mxu0 %v4048
      %4183 = vmatpush1.msra.mxu0 %v4047
      %4184 = vmatprep.subr.mxu0 %v4056
      %4185 = vmatpush1.msra.mxu0 %v4055
      %4186 = vmatprep.subr.mxu0 %v4064
      %4187 = vmatpush1.msra.mxu0 %v4063
      %4188 = vmatprep.mubr.f32.mxu0 %v4121
      %4189 = vmatmul.mubr.f32.gmra.mrb[0].mxu0 %v4120
      %v4190 = vpop.f32.mrb[0].mxu0
      %v4191 = vadd.f32 %v4076, %v4190
      %v4192 = vpop.f32.mrb[0].mxu0
      %v4193 = vadd.f32 %v4080, %v4192
      %4194 = vdwg.mxu0
      %4195 = vmatprep.subr.mxu0 %v3818
      %4196 = vmatpush1.msra.mxu0 %v3817
      %4197 = vmatprep.subr.mxu0 %v3826
      %4198 = vmatpush1.msra.mxu0 %v3825
      %4199 = vmatprep.subr.mxu0 %v3834
      %4200 = vmatpush1.msra.mxu0 %v3833
      %4201 = vmatprep.subr.mxu0 %v3842
      %4202 = vmatpush1.msra.mxu0 %v3841
      %4203 = vmatprep.subr.mxu0 %v3850
      %4204 = vmatpush1.msra.mxu0 %v3849
      %4205 = vmatprep.subr.mxu0 %v3858
      %4206 = vmatpush1.msra.mxu0 %v3857
      %4207 = vmatprep.subr.mxu0 %v3866
      %4208 = vmatpush1.msra.mxu0 %v3865
      %4209 = vmatprep.subr.mxu0 %v3874
      %4210 = vmatpush1.msra.mxu0 %v3873
      %4211 = vmatprep.subr.mxu0 %v3882
      %4212 = vmatpush1.msra.mxu0 %v3881
      %4213 = vmatprep.subr.mxu0 %v3890
      %4214 = vmatpush1.msra.mxu0 %v3889
      %4215 = vmatprep.subr.mxu0 %v3898
      %4216 = vmatpush1.msra.mxu0 %v3897
      %4217 = vmatprep.subr.mxu0 %v3906
      %4218 = vmatpush1.msra.mxu0 %v3905
      %4219 = vmatprep.subr.mxu0 %v3914
      %4220 = vmatpush1.msra.mxu0 %v3913
      %4221 = vmatprep.subr.mxu0 %v3922
      %4222 = vmatpush1.msra.mxu0 %v3921
      %4223 = vmatprep.subr.mxu0 %v3930
      %4224 = vmatpush1.msra.mxu0 %v3929
      %4225 = vmatprep.subr.mxu0 %v3938
      %4226 = vmatpush1.msra.mxu0 %v3937
      %4227 = vmatprep.subr.mxu0 %v3946
      %4228 = vmatpush1.msra.mxu0 %v3945
      %4229 = vmatprep.subr.mxu0 %v3954
      %4230 = vmatpush1.msra.mxu0 %v3953
      %4231 = vmatprep.subr.mxu0 %v3962
      %4232 = vmatpush1.msra.mxu0 %v3961
      %4233 = vmatprep.subr.mxu0 %v3970
      %4234 = vmatpush1.msra.mxu0 %v3969
      %4235 = vmatprep.subr.mxu0 %v3978
      %4236 = vmatpush1.msra.mxu0 %v3977
      %4237 = vmatprep.subr.mxu0 %v3986
      %4238 = vmatpush1.msra.mxu0 %v3985
      %4239 = vmatprep.subr.mxu0 %v3994
      %4240 = vmatpush1.msra.mxu0 %v3993
      %4241 = vmatprep.subr.mxu0 %v4002
      %4242 = vmatpush1.msra.mxu0 %v4001
      %4243 = vmatprep.subr.mxu0 %v4010
      %4244 = vmatpush1.msra.mxu0 %v4009
      %4245 = vmatprep.subr.mxu0 %v4018
      %4246 = vmatpush1.msra.mxu0 %v4017
      %4247 = vmatprep.subr.mxu0 %v4026
      %4248 = vmatpush1.msra.mxu0 %v4025
      %4249 = vmatprep.subr.mxu0 %v4034
      %4250 = vmatpush1.msra.mxu0 %v4033
      %4251 = vmatprep.subr.mxu0 %v4042
      %4252 = vmatpush1.msra.mxu0 %v4041
      %4253 = vmatprep.subr.mxu0 %v4050
      %4254 = vmatpush1.msra.mxu0 %v4049
      %4255 = vmatprep.subr.mxu0 %v4058
      %4256 = vmatpush1.msra.mxu0 %v4057
      %4257 = vmatprep.subr.mxu0 %v4066
      %4258 = vmatpush1.msra.mxu0 %v4065
      %4259 = vmatprep.mubr.f32.mxu0 %v4121
      %4260 = vmatmul.mubr.f32.gmra.mrb[0].mxu0 %v4120
      %v4261 = vpop.f32.mrb[0].mxu0
      %v4262 = vadd.f32 %v4084, %v4261
      %v4263 = vpop.f32.mrb[0].mxu0
      %v4264 = vadd.f32 %v4088, %v4263
      %4265 = vdwg.mxu0
      %4266 = vmatprep.subr.mxu0 %v3820
      %4267 = vmatpush1.msra.mxu0 %v3819
      %4268 = vmatprep.subr.mxu0 %v3828
      %4269 = vmatpush1.msra.mxu0 %v3827
      %4270 = vmatprep.subr.mxu0 %v3836
      %4271 = vmatpush1.msra.mxu0 %v3835
      %4272 = vmatprep.subr.mxu0 %v3844
      %4273 = vmatpush1.msra.mxu0 %v3843
      %4274 = vmatprep.subr.mxu0 %v3852
      %4275 = vmatpush1.msra.mxu0 %v3851
      %4276 = vmatprep.subr.mxu0 %v3860
      %4277 = vmatpush1.msra.mxu0 %v3859
      %4278 = vmatprep.subr.mxu0 %v3868
      %4279 = vmatpush1.msra.mxu0 %v3867
      %4280 = vmatprep.subr.mxu0 %v3876
      %4281 = vmatpush1.msra.mxu0 %v3875
      %4282 = vmatprep.subr.mxu0 %v3884
      %4283 = vmatpush1.msra.mxu0 %v3883
      %4284 = vmatprep.subr.mxu0 %v3892
      %4285 = vmatpush1.msra.mxu0 %v3891
      %4286 = vmatprep.subr.mxu0 %v3900
      %4287 = vmatpush1.msra.mxu0 %v3899
      %4288 = vmatprep.subr.mxu0 %v3908
      %4289 = vmatpush1.msra.mxu0 %v3907
      %4290 = vmatprep.subr.mxu0 %v3916
      %4291 = vmatpush1.msra.mxu0 %v3915
      %4292 = vmatprep.subr.mxu0 %v3924
      %4293 = vmatpush1.msra.mxu0 %v3923
      %4294 = vmatprep.subr.mxu0 %v3932
      %4295 = vmatpush1.msra.mxu0 %v3931
      %4296 = vmatprep.subr.mxu0 %v3940
      %4297 = vmatpush1.msra.mxu0 %v3939
      %4298 = vmatprep.subr.mxu0 %v3948
      %4299 = vmatpush1.msra.mxu0 %v3947
      %4300 = vmatprep.subr.mxu0 %v3956
      %4301 = vmatpush1.msra.mxu0 %v3955
      %4302 = vmatprep.subr.mxu0 %v3964
      %4303 = vmatpush1.msra.mxu0 %v3963
      %4304 = vmatprep.subr.mxu0 %v3972
      %4305 = vmatpush1.msra.mxu0 %v3971
      %4306 = vmatprep.subr.mxu0 %v3980
      %4307 = vmatpush1.msra.mxu0 %v3979
      %4308 = vmatprep.subr.mxu0 %v3988
      %4309 = vmatpush1.msra.mxu0 %v3987
      %4310 = vmatprep.subr.mxu0 %v3996
      %4311 = vmatpush1.msra.mxu0 %v3995
      %4312 = vmatprep.subr.mxu0 %v4004
      %4313 = vmatpush1.msra.mxu0 %v4003
      %4314 = vmatprep.subr.mxu0 %v4012
      %4315 = vmatpush1.msra.mxu0 %v4011
      %4316 = vmatprep.subr.mxu0 %v4020
      %4317 = vmatpush1.msra.mxu0 %v4019
      %4318 = vmatprep.subr.mxu0 %v4028
      %4319 = vmatpush1.msra.mxu0 %v4027
      %4320 = vmatprep.subr.mxu0 %v4036
      %4321 = vmatpush1.msra.mxu0 %v4035
      %4322 = vmatprep.subr.mxu0 %v4044
      %4323 = vmatpush1.msra.mxu0 %v4043
      %4324 = vmatprep.subr.mxu0 %v4052
      %4325 = vmatpush1.msra.mxu0 %v4051
      %4326 = vmatprep.subr.mxu0 %v4060
      %4327 = vmatpush1.msra.mxu0 %v4059
      %4328 = vmatprep.subr.mxu0 %v4068
      %4329 = vmatpush1.msra.mxu0 %v4067
      %4330 = vmatprep.mubr.f32.mxu0 %v4121
      %4331 = vmatmul.mubr.f32.gmra.mrb[0].mxu0 %v4120
      %v4332 = vpop.f32.mrb[0].mxu0
      %v4333 = vadd.f32 %v4092, %v4332
      %v4334 = vpop.f32.mrb[0].mxu0
      %v4335 = vadd.f32 %v4096, %v4334
      %4336 = vdwg.mxu0
      %4337 = vmatprep.subr.mxu0 %v3822
      %4338 = vmatpush1.msra.mxu0 %v3821
      %4339 = vmatprep.subr.mxu0 %v3830
      %4340 = vmatpush1.msra.mxu0 %v3829
      %4341 = vmatprep.subr.mxu0 %v3838
      %4342 = vmatpush1.msra.mxu0 %v3837
      %4343 = vmatprep.subr.mxu0 %v3846
      %4344 = vmatpush1.msra.mxu0 %v3845
      %4345 = vmatprep.subr.mxu0 %v3854
      %4346 = vmatpush1.msra.mxu0 %v3853
      %4347 = vmatprep.subr.mxu0 %v3862
      %4348 = vmatpush1.msra.mxu0 %v3861
      %4349 = vmatprep.subr.mxu0 %v3870
      %4350 = vmatpush1.msra.mxu0 %v3869
      %4351 = vmatprep.subr.mxu0 %v3878
      %4352 = vmatpush1.msra.mxu0 %v3877
      %4353 = vmatprep.subr.mxu0 %v3886
      %4354 = vmatpush1.msra.mxu0 %v3885
      %4355 = vmatprep.subr.mxu0 %v3894
      %4356 = vmatpush1.msra.mxu0 %v3893
      %4357 = vmatprep.subr.mxu0 %v3902
      %4358 = vmatpush1.msra.mxu0 %v3901
      %4359 = vmatprep.subr.mxu0 %v3910
      %4360 = vmatpush1.msra.mxu0 %v3909
      %4361 = vmatprep.subr.mxu0 %v3918
      %4362 = vmatpush1.msra.mxu0 %v3917
      %4363 = vmatprep.subr.mxu0 %v3926
      %4364 = vmatpush1.msra.mxu0 %v3925
      %4365 = vmatprep.subr.mxu0 %v3934
      %4366 = vmatpush1.msra.mxu0 %v3933
      %4367 = vmatprep.subr.mxu0 %v3942
      %4368 = vmatpush1.msra.mxu0 %v3941
      %4369 = vmatprep.subr.mxu0 %v3950
      %4370 = vmatpush1.msra.mxu0 %v3949
      %4371 = vmatprep.subr.mxu0 %v3958
      %4372 = vmatpush1.msra.mxu0 %v3957
      %4373 = vmatprep.subr.mxu0 %v3966
      %4374 = vmatpush1.msra.mxu0 %v3965
      %4375 = vmatprep.subr.mxu0 %v3974
      %4376 = vmatpush1.msra.mxu0 %v3973
      %4377 = vmatprep.subr.mxu0 %v3982
      %4378 = vmatpush1.msra.mxu0 %v3981
      %4379 = vmatprep.subr.mxu0 %v3990
      %4380 = vmatpush1.msra.mxu0 %v3989
      %4381 = vmatprep.subr.mxu0 %v3998
      %4382 = vmatpush1.msra.mxu0 %v3997
      %4383 = vmatprep.subr.mxu0 %v4006
      %4384 = vmatpush1.msra.mxu0 %v4005
      %4385 = vmatprep.subr.mxu0 %v4014
      %4386 = vmatpush1.msra.mxu0 %v4013
      %4387 = vmatprep.subr.mxu0 %v4022
      %4388 = vmatpush1.msra.mxu0 %v4021
      %4389 = vmatprep.subr.mxu0 %v4030
      %4390 = vmatpush1.msra.mxu0 %v4029
      %4391 = vmatprep.subr.mxu0 %v4038
      %4392 = vmatpush1.msra.mxu0 %v4037
      %4393 = vmatprep.subr.mxu0 %v4046
      %4394 = vmatpush1.msra.mxu0 %v4045
      %4395 = vmatprep.subr.mxu0 %v4054
      %4396 = vmatpush1.msra.mxu0 %v4053
      %4397 = vmatprep.subr.mxu0 %v4062
      %4398 = vmatpush1.msra.mxu0 %v4061
      %4399 = vmatprep.subr.mxu0 %v4070
      %4400 = vmatpush1.msra.mxu0 %v4069
      %4401 = vmatprep.mubr.f32.mxu0 %v4121
      %4402 = vmatmul.mubr.f32.gmra.mrb[0].mxu0 %v4120
      %v4403 = vpop.f32.mrb[0].mxu0
      %v4404 = vadd.f32 %v4100, %v4403
      %v4405 = vpop.f32.mrb[0].mxu0
      %v4406 = vadd.f32 %v4104, %v4405
      %4407 = vdwg.mxu0
      %v4408 = vmax.f32 %v4191, 0.0
      %v4409 = vmax.f32 %v4193, 0.0
      %v4410 = vmax.f32 %v4262, 0.0
      %v4411 = vmax.f32 %v4264, 0.0
      %v4412 = vmax.f32 %v4333, 0.0
      %v4413 = vmax.f32 %v4335, 0.0
      %v4414 = vmax.f32 %v4404, 0.0
      %v4415 = vmax.f32 %v4406, 0.0
      %v4416 = vld [vmem:[#allocation6] sm:$0xff]
      %v4417 = vld [vmem:[#allocation6 + $0x8] sm:$0xff]
      %v4418 = vld [vmem:[#allocation6 + $0x10] sm:$0xff]
      %v4419 = vld [vmem:[#allocation6 + $0x18] sm:$0xff]
      %v4420 = vld [vmem:[#allocation6 + $0x20] sm:$0xff]
      %v4421 = vld [vmem:[#allocation6 + $0x28] sm:$0xff]
      %v4422 = vld [vmem:[#allocation6 + $0x30] sm:$0xff]
      %v4423 = vld [vmem:[#allocation6 + $0x38] sm:$0xff]
      %v4424 = vld [vmem:[#allocation6 + $0x40] sm:$0xff]
      %v4425 = vld [vmem:[#allocation6 + $0x48] sm:$0xff]
      %v4426 = vld [vmem:[#allocation6 + $0x50] sm:$0xff]
      %v4427 = vld [vmem:[#allocation6 + $0x58] sm:$0xff]
      %v4428 = vld [vmem:[#allocation6 + $0x60] sm:$0xff]
      %v4429 = vld [vmem:[#allocation6 + $0x68] sm:$0xff]
      %v4430 = vld [vmem:[#allocation6 + $0x70] sm:$0xff]
      %v4431 = vld [vmem:[#allocation6 + $0x78] sm:$0xff]
      %v4432 = vld [vmem:[#allocation6 + $0x80] sm:$0xff]
      %v4433 = vld [vmem:[#allocation6 + $0x88] sm:$0xff]
      %v4434 = vld [vmem:[#allocation6 + $0x90] sm:$0xff]
      %v4435 = vld [vmem:[#allocation6 + $0x98] sm:$0xff]
      %v4436 = vld [vmem:[#allocation6 + $0xa0] sm:$0xff]
      %v4437 = vld [vmem:[#allocation6 + $0xa8] sm:$0xff]
      %v4438 = vld [vmem:[#allocation6 + $0xb0] sm:$0xff]
      %v4439 = vld [vmem:[#allocation6 + $0xb8] sm:$0xff]
      %v4440 = vld [vmem:[#allocation6 + $0xc0] sm:$0xff]
      %v4441 = vld [vmem:[#allocation6 + $0xc8] sm:$0xff]
      %v4442 = vld [vmem:[#allocation6 + $0xd0] sm:$0xff]
      %v4443 = vld [vmem:[#allocation6 + $0xd8] sm:$0xff]
      %v4444 = vld [vmem:[#allocation6 + $0xe0] sm:$0xff]
      %v4445 = vld [vmem:[#allocation6 + $0xe8] sm:$0xff]
      %v4446 = vld [vmem:[#allocation6 + $0xf0] sm:$0xff]
      %v4447 = vld [vmem:[#allocation6 + $0xf8] sm:$0xff]
      %v4448 = vld [vmem:[#allocation6 + $0x100] sm:$0xff]
      %v4449 = vld [vmem:[#allocation6 + $0x108] sm:$0xff]
      %v4450 = vld [vmem:[#allocation6 + $0x110] sm:$0xff]
      %v4451 = vld [vmem:[#allocation6 + $0x118] sm:$0xff]
      %v4452 = vld [vmem:[#allocation6 + $0x120] sm:$0xff]
      %v4453 = vld [vmem:[#allocation6 + $0x128] sm:$0xff]
      %v4454 = vld [vmem:[#allocation6 + $0x130] sm:$0xff]
      %v4455 = vld [vmem:[#allocation6 + $0x138] sm:$0xff]
      %v4456 = vld [vmem:[#allocation6 + $0x140] sm:$0xff]
      %v4457 = vld [vmem:[#allocation6 + $0x148] sm:$0xff]
      %v4458 = vld [vmem:[#allocation6 + $0x150] sm:$0xff]
      %v4459 = vld [vmem:[#allocation6 + $0x158] sm:$0xff]
      %v4460 = vld [vmem:[#allocation6 + $0x160] sm:$0xff]
      %v4461 = vld [vmem:[#allocation6 + $0x168] sm:$0xff]
      %v4462 = vld [vmem:[#allocation6 + $0x170] sm:$0xff]
      %v4463 = vld [vmem:[#allocation6 + $0x178] sm:$0xff]
      %v4464 = vld [vmem:[#allocation6 + $0x180] sm:$0xff]
      %v4465 = vld [vmem:[#allocation6 + $0x188] sm:$0xff]
      %v4466 = vld [vmem:[#allocation6 + $0x190] sm:$0xff]
      %v4467 = vld [vmem:[#allocation6 + $0x198] sm:$0xff]
      %v4468 = vld [vmem:[#allocation6 + $0x1a0] sm:$0xff]
      %v4469 = vld [vmem:[#allocation6 + $0x1a8] sm:$0xff]
      %v4470 = vld [vmem:[#allocation6 + $0x1b0] sm:$0xff]
      %v4471 = vld [vmem:[#allocation6 + $0x1b8] sm:$0xff]
      %v4472 = vld [vmem:[#allocation6 + $0x1c0] sm:$0xff]
      %v4473 = vld [vmem:[#allocation6 + $0x1c8] sm:$0xff]
      %v4474 = vld [vmem:[#allocation6 + $0x1d0] sm:$0xff]
      %v4475 = vld [vmem:[#allocation6 + $0x1d8] sm:$0xff]
      %v4476 = vld [vmem:[#allocation6 + $0x1e0] sm:$0xff]
      %v4477 = vld [vmem:[#allocation6 + $0x1e8] sm:$0xff]
      %v4478 = vld [vmem:[#allocation6 + $0x1f0] sm:$0xff]
      %v4479 = vld [vmem:[#allocation6 + $0x1f8] sm:$0xff]
      %v4480 = vld [vmem:[#allocation6 + $0x200] sm:$0xff]
      %v4481 = vld [vmem:[#allocation6 + $0x208] sm:$0xff]
      %v4482 = vld [vmem:[#allocation6 + $0x210] sm:$0xff]
      %v4483 = vld [vmem:[#allocation6 + $0x218] sm:$0xff]
      %v4484 = vld [vmem:[#allocation6 + $0x220] sm:$0xff]
      %v4485 = vld [vmem:[#allocation6 + $0x228] sm:$0xff]
      %v4486 = vld [vmem:[#allocation6 + $0x230] sm:$0xff]
      %v4487 = vld [vmem:[#allocation6 + $0x238] sm:$0xff]
      %v4488 = vld [vmem:[#allocation6 + $0x240] sm:$0xff]
      %v4489 = vld [vmem:[#allocation6 + $0x248] sm:$0xff]
      %v4490 = vld [vmem:[#allocation6 + $0x250] sm:$0xff]
      %v4491 = vld [vmem:[#allocation6 + $0x258] sm:$0xff]
      %v4492 = vld [vmem:[#allocation6 + $0x260] sm:$0xff]
      %v4493 = vld [vmem:[#allocation6 + $0x268] sm:$0xff]
      %v4494 = vld [vmem:[#allocation6 + $0x270] sm:$0xff]
      %v4495 = vld [vmem:[#allocation6 + $0x278] sm:$0xff]
      %v4496 = vld [vmem:[#allocation6 + $0x280] sm:$0xff]
      %v4497 = vld [vmem:[#allocation6 + $0x288] sm:$0xff]
      %v4498 = vld [vmem:[#allocation6 + $0x290] sm:$0xff]
      %v4499 = vld [vmem:[#allocation6 + $0x298] sm:$0xff]
      %v4500 = vld [vmem:[#allocation6 + $0x2a0] sm:$0xff]
      %v4501 = vld [vmem:[#allocation6 + $0x2a8] sm:$0xff]
      %v4502 = vld [vmem:[#allocation6 + $0x2b0] sm:$0xff]
      %v4503 = vld [vmem:[#allocation6 + $0x2b8] sm:$0xff]
      %v4504 = vld [vmem:[#allocation6 + $0x2c0] sm:$0xff]
      %v4505 = vld [vmem:[#allocation6 + $0x2c8] sm:$0xff]
      %v4506 = vld [vmem:[#allocation6 + $0x2d0] sm:$0xff]
      %v4507 = vld [vmem:[#allocation6 + $0x2d8] sm:$0xff]
      %v4508 = vld [vmem:[#allocation6 + $0x2e0] sm:$0xff]
      %v4509 = vld [vmem:[#allocation6 + $0x2e8] sm:$0xff]
      %v4510 = vld [vmem:[#allocation6 + $0x2f0] sm:$0xff]
      %v4511 = vld [vmem:[#allocation6 + $0x2f8] sm:$0xff]
      %v4512 = vld [vmem:[#allocation6 + $0x300] sm:$0xff]
      %v4513 = vld [vmem:[#allocation6 + $0x308] sm:$0xff]
      %v4514 = vld [vmem:[#allocation6 + $0x310] sm:$0xff]
      %v4515 = vld [vmem:[#allocation6 + $0x318] sm:$0xff]
      %v4516 = vld [vmem:[#allocation6 + $0x320] sm:$0xff]
      %v4517 = vld [vmem:[#allocation6 + $0x328] sm:$0xff]
      %v4518 = vld [vmem:[#allocation6 + $0x330] sm:$0xff]
      %v4519 = vld [vmem:[#allocation6 + $0x338] sm:$0xff]
      %v4520 = vld [vmem:[#allocation6 + $0x340] sm:$0xff]
      %v4521 = vld [vmem:[#allocation6 + $0x348] sm:$0xff]
      %v4522 = vld [vmem:[#allocation6 + $0x350] sm:$0xff]
      %v4523 = vld [vmem:[#allocation6 + $0x358] sm:$0xff]
      %v4524 = vld [vmem:[#allocation6 + $0x360] sm:$0xff]
      %v4525 = vld [vmem:[#allocation6 + $0x368] sm:$0xff]
      %v4526 = vld [vmem:[#allocation6 + $0x370] sm:$0xff]
      %v4527 = vld [vmem:[#allocation6 + $0x378] sm:$0xff]
      %v4528 = vld [vmem:[#allocation6 + $0x380] sm:$0xff]
      %v4529 = vld [vmem:[#allocation6 + $0x388] sm:$0xff]
      %v4530 = vld [vmem:[#allocation6 + $0x390] sm:$0xff]
      %v4531 = vld [vmem:[#allocation6 + $0x398] sm:$0xff]
      %v4532 = vld [vmem:[#allocation6 + $0x3a0] sm:$0xff]
      %v4533 = vld [vmem:[#allocation6 + $0x3a8] sm:$0xff]
      %v4534 = vld [vmem:[#allocation6 + $0x3b0] sm:$0xff]
      %v4535 = vld [vmem:[#allocation6 + $0x3b8] sm:$0xff]
      %v4536 = vld [vmem:[#allocation6 + $0x3c0] sm:$0xff]
      %v4537 = vld [vmem:[#allocation6 + $0x3c8] sm:$0xff]
      %v4538 = vld [vmem:[#allocation6 + $0x3d0] sm:$0xff]
      %v4539 = vld [vmem:[#allocation6 + $0x3d8] sm:$0xff]
      %v4540 = vld [vmem:[#allocation6 + $0x3e0] sm:$0xff]
      %v4541 = vld [vmem:[#allocation6 + $0x3e8] sm:$0xff]
      %v4542 = vld [vmem:[#allocation6 + $0x3f0] sm:$0xff]
      %v4543 = vld [vmem:[#allocation6 + $0x3f8] sm:$0xff]
      %v4544 = vld [vmem:[%s4] sm:$0x1]
      %v4546 = vlaneseq
      %v4547 = vshrl.u32 %v4546, 7
      %v4548 = vsub.s32 0, %v4547
      %v4549 = vrot.slane %v4544, %v4548
      %4551 = vmatprep.subr.mxu0 0.0
      %4552 = vmatpush1.msra.mxu0 %v4416
      %4553 = vmatprep.subr.mxu0 0.0
      %4554 = vmatpush1.msra.mxu0 %v4417
      %4555 = vmatprep.subr.mxu0 0.0
      %4556 = vmatpush1.msra.mxu0 %v4418
      %4557 = vmatprep.subr.mxu0 0.0
      %4558 = vmatpush1.msra.mxu0 %v4419
      %4559 = vmatprep.subr.mxu0 0.0
      %4560 = vmatpush1.msra.mxu0 %v4420
      %4561 = vmatprep.subr.mxu0 0.0
      %4562 = vmatpush1.msra.mxu0 %v4421
      %4563 = vmatprep.subr.mxu0 0.0
      %4564 = vmatpush1.msra.mxu0 %v4422
      %4565 = vmatprep.subr.mxu0 0.0
      %4566 = vmatpush1.msra.mxu0 %v4423
      %4567 = vmatprep.subr.mxu0 0.0
      %4568 = vmatpush1.msra.mxu0 %v4424
      %4569 = vmatprep.subr.mxu0 0.0
      %4570 = vmatpush1.msra.mxu0 %v4425
      %4571 = vmatprep.subr.mxu0 0.0
      %4572 = vmatpush1.msra.mxu0 %v4426
      %4573 = vmatprep.subr.mxu0 0.0
      %4574 = vmatpush1.msra.mxu0 %v4427
      %4575 = vmatprep.subr.mxu0 0.0
      %4576 = vmatpush1.msra.mxu0 %v4428
      %4577 = vmatprep.subr.mxu0 0.0
      %4578 = vmatpush1.msra.mxu0 %v4429
      %4579 = vmatprep.subr.mxu0 0.0
      %4580 = vmatpush1.msra.mxu0 %v4430
      %4581 = vmatprep.subr.mxu0 0.0
      %4582 = vmatpush1.msra.mxu0 %v4431
      %4583 = vmatprep.subr.mxu0 0.0
      %4584 = vmatpush1.msra.mxu0 %v4432
      %4585 = vmatprep.subr.mxu0 0.0
      %4586 = vmatpush1.msra.mxu0 %v4433
      %4587 = vmatprep.subr.mxu0 0.0
      %4588 = vmatpush1.msra.mxu0 %v4434
      %4589 = vmatprep.subr.mxu0 0.0
      %4590 = vmatpush1.msra.mxu0 %v4435
      %4591 = vmatprep.subr.mxu0 0.0
      %4592 = vmatpush1.msra.mxu0 %v4436
      %4593 = vmatprep.subr.mxu0 0.0
      %4594 = vmatpush1.msra.mxu0 %v4437
      %4595 = vmatprep.subr.mxu0 0.0
      %4596 = vmatpush1.msra.mxu0 %v4438
      %4597 = vmatprep.subr.mxu0 0.0
      %4598 = vmatpush1.msra.mxu0 %v4439
      %4599 = vmatprep.subr.mxu0 0.0
      %4600 = vmatpush1.msra.mxu0 %v4440
      %4601 = vmatprep.subr.mxu0 0.0
      %4602 = vmatpush1.msra.mxu0 %v4441
      %4603 = vmatprep.subr.mxu0 0.0
      %4604 = vmatpush1.msra.mxu0 %v4442
      %4605 = vmatprep.subr.mxu0 0.0
      %4606 = vmatpush1.msra.mxu0 %v4443
      %4607 = vmatprep.subr.mxu0 0.0
      %4608 = vmatpush1.msra.mxu0 %v4444
      %4609 = vmatprep.subr.mxu0 0.0
      %4610 = vmatpush1.msra.mxu0 %v4445
      %4611 = vmatprep.subr.mxu0 0.0
      %4612 = vmatpush1.msra.mxu0 %v4446
      %4613 = vmatprep.subr.mxu0 0.0
      %4614 = vmatpush1.msra.mxu0 %v4447
      %4615 = vmatprep.mubr.f32.mxu0 %v4409
      %4616 = vmatmul.mubr.f32.gmra.mrb[0].mxu0 %v4408
      %v4617 = vpop.f32.mrb[0].mxu0
      %v4618 = vadd.f32 %v4549, %v4617
      %v4619 = vpop.f32.mrb[0].mxu0
      %4620 = vdwg.mxu0
      %4621 = vmatprep.subr.mxu0 0.0
      %4622 = vmatpush1.msra.mxu0 %v4448
      %4623 = vmatprep.subr.mxu0 0.0
      %4624 = vmatpush1.msra.mxu0 %v4449
      %4625 = vmatprep.subr.mxu0 0.0
      %4626 = vmatpush1.msra.mxu0 %v4450
      %4627 = vmatprep.subr.mxu0 0.0
      %4628 = vmatpush1.msra.mxu0 %v4451
      %4629 = vmatprep.subr.mxu0 0.0
      %4630 = vmatpush1.msra.mxu0 %v4452
      %4631 = vmatprep.subr.mxu0 0.0
      %4632 = vmatpush1.msra.mxu0 %v4453
      %4633 = vmatprep.subr.mxu0 0.0
      %4634 = vmatpush1.msra.mxu0 %v4454
      %4635 = vmatprep.subr.mxu0 0.0
      %4636 = vmatpush1.msra.mxu0 %v4455
      %4637 = vmatprep.subr.mxu0 0.0
      %4638 = vmatpush1.msra.mxu0 %v4456
      %4639 = vmatprep.subr.mxu0 0.0
      %4640 = vmatpush1.msra.mxu0 %v4457
      %4641 = vmatprep.subr.mxu0 0.0
      %4642 = vmatpush1.msra.mxu0 %v4458
      %4643 = vmatprep.subr.mxu0 0.0
      %4644 = vmatpush1.msra.mxu0 %v4459
      %4645 = vmatprep.subr.mxu0 0.0
      %4646 = vmatpush1.msra.mxu0 %v4460
      %4647 = vmatprep.subr.mxu0 0.0
      %4648 = vmatpush1.msra.mxu0 %v4461
      %4649 = vmatprep.subr.mxu0 0.0
      %4650 = vmatpush1.msra.mxu0 %v4462
      %4651 = vmatprep.subr.mxu0 0.0
      %4652 = vmatpush1.msra.mxu0 %v4463
      %4653 = vmatprep.subr.mxu0 0.0
      %4654 = vmatpush1.msra.mxu0 %v4464
      %4655 = vmatprep.subr.mxu0 0.0
      %4656 = vmatpush1.msra.mxu0 %v4465
      %4657 = vmatprep.subr.mxu0 0.0
      %4658 = vmatpush1.msra.mxu0 %v4466
      %4659 = vmatprep.subr.mxu0 0.0
      %4660 = vmatpush1.msra.mxu0 %v4467
      %4661 = vmatprep.subr.mxu0 0.0
      %4662 = vmatpush1.msra.mxu0 %v4468
      %4663 = vmatprep.subr.mxu0 0.0
      %4664 = vmatpush1.msra.mxu0 %v4469
      %4665 = vmatprep.subr.mxu0 0.0
      %4666 = vmatpush1.msra.mxu0 %v4470
      %4667 = vmatprep.subr.mxu0 0.0
      %4668 = vmatpush1.msra.mxu0 %v4471
      %4669 = vmatprep.subr.mxu0 0.0
      %4670 = vmatpush1.msra.mxu0 %v4472
      %4671 = vmatprep.subr.mxu0 0.0
      %4672 = vmatpush1.msra.mxu0 %v4473
      %4673 = vmatprep.subr.mxu0 0.0
      %4674 = vmatpush1.msra.mxu0 %v4474
      %4675 = vmatprep.subr.mxu0 0.0
      %4676 = vmatpush1.msra.mxu0 %v4475
      %4677 = vmatprep.subr.mxu0 0.0
      %4678 = vmatpush1.msra.mxu0 %v4476
      %4679 = vmatprep.subr.mxu0 0.0
      %4680 = vmatpush1.msra.mxu0 %v4477
      %4681 = vmatprep.subr.mxu0 0.0
      %4682 = vmatpush1.msra.mxu0 %v4478
      %4683 = vmatprep.subr.mxu0 0.0
      %4684 = vmatpush1.msra.mxu0 %v4479
      %4685 = vmatprep.mubr.f32.mxu0 %v4411
      %4686 = vmatmul.mubr.f32.gmra.mrb[0].mxu0 %v4410
      %v4687 = vpop.f32.mrb[0].mxu0
      %v4688 = vadd.f32 %v4618, %v4687
      %v4689 = vpop.f32.mrb[0].mxu0
      %4690 = vdwg.mxu0
      %4691 = vmatprep.subr.mxu0 0.0
      %4692 = vmatpush1.msra.mxu0 %v4480
      %4693 = vmatprep.subr.mxu0 0.0
      %4694 = vmatpush1.msra.mxu0 %v4481
      %4695 = vmatprep.subr.mxu0 0.0
      %4696 = vmatpush1.msra.mxu0 %v4482
      %4697 = vmatprep.subr.mxu0 0.0
      %4698 = vmatpush1.msra.mxu0 %v4483
      %4699 = vmatprep.subr.mxu0 0.0
      %4700 = vmatpush1.msra.mxu0 %v4484
      %4701 = vmatprep.subr.mxu0 0.0
      %4702 = vmatpush1.msra.mxu0 %v4485
      %4703 = vmatprep.subr.mxu0 0.0
      %4704 = vmatpush1.msra.mxu0 %v4486
      %4705 = vmatprep.subr.mxu0 0.0
      %4706 = vmatpush1.msra.mxu0 %v4487
      %4707 = vmatprep.subr.mxu0 0.0
      %4708 = vmatpush1.msra.mxu0 %v4488
      %4709 = vmatprep.subr.mxu0 0.0
      %4710 = vmatpush1.msra.mxu0 %v4489
      %4711 = vmatprep.subr.mxu0 0.0
      %4712 = vmatpush1.msra.mxu0 %v4490
      %4713 = vmatprep.subr.mxu0 0.0
      %4714 = vmatpush1.msra.mxu0 %v4491
      %4715 = vmatprep.subr.mxu0 0.0
      %4716 = vmatpush1.msra.mxu0 %v4492
      %4717 = vmatprep.subr.mxu0 0.0
      %4718 = vmatpush1.msra.mxu0 %v4493
      %4719 = vmatprep.subr.mxu0 0.0
      %4720 = vmatpush1.msra.mxu0 %v4494
      %4721 = vmatprep.subr.mxu0 0.0
      %4722 = vmatpush1.msra.mxu0 %v4495
      %4723 = vmatprep.subr.mxu0 0.0
      %4724 = vmatpush1.msra.mxu0 %v4496
      %4725 = vmatprep.subr.mxu0 0.0
      %4726 = vmatpush1.msra.mxu0 %v4497
      %4727 = vmatprep.subr.mxu0 0.0
      %4728 = vmatpush1.msra.mxu0 %v4498
      %4729 = vmatprep.subr.mxu0 0.0
      %4730 = vmatpush1.msra.mxu0 %v4499
      %4731 = vmatprep.subr.mxu0 0.0
      %4732 = vmatpush1.msra.mxu0 %v4500
      %4733 = vmatprep.subr.mxu0 0.0
      %4734 = vmatpush1.msra.mxu0 %v4501
      %4735 = vmatprep.subr.mxu0 0.0
      %4736 = vmatpush1.msra.mxu0 %v4502
      %4737 = vmatprep.subr.mxu0 0.0
      %4738 = vmatpush1.msra.mxu0 %v4503
      %4739 = vmatprep.subr.mxu0 0.0
      %4740 = vmatpush1.msra.mxu0 %v4504
      %4741 = vmatprep.subr.mxu0 0.0
      %4742 = vmatpush1.msra.mxu0 %v4505
      %4743 = vmatprep.subr.mxu0 0.0
      %4744 = vmatpush1.msra.mxu0 %v4506
      %4745 = vmatprep.subr.mxu0 0.0
      %4746 = vmatpush1.msra.mxu0 %v4507
      %4747 = vmatprep.subr.mxu0 0.0
      %4748 = vmatpush1.msra.mxu0 %v4508
      %4749 = vmatprep.subr.mxu0 0.0
      %4750 = vmatpush1.msra.mxu0 %v4509
      %4751 = vmatprep.subr.mxu0 0.0
      %4752 = vmatpush1.msra.mxu0 %v4510
      %4753 = vmatprep.subr.mxu0 0.0
      %4754 = vmatpush1.msra.mxu0 %v4511
      %4755 = vmatprep.mubr.f32.mxu0 %v4413
      %4756 = vmatmul.mubr.f32.gmra.mrb[0].mxu0 %v4412
      %v4757 = vpop.f32.mrb[0].mxu0
      %v4758 = vadd.f32 %v4688, %v4757
      %v4759 = vpop.f32.mrb[0].mxu0
      %4760 = vdwg.mxu0
      %4761 = vmatprep.subr.mxu0 0.0
      %4762 = vmatpush1.msra.mxu0 %v4512
      %4763 = vmatprep.subr.mxu0 0.0
      %4764 = vmatpush1.msra.mxu0 %v4513
      %4765 = vmatprep.subr.mxu0 0.0
      %4766 = vmatpush1.msra.mxu0 %v4514
      %4767 = vmatprep.subr.mxu0 0.0
      %4768 = vmatpush1.msra.mxu0 %v4515
      %4769 = vmatprep.subr.mxu0 0.0
      %4770 = vmatpush1.msra.mxu0 %v4516
      %4771 = vmatprep.subr.mxu0 0.0
      %4772 = vmatpush1.msra.mxu0 %v4517
      %4773 = vmatprep.subr.mxu0 0.0
      %4774 = vmatpush1.msra.mxu0 %v4518
      %4775 = vmatprep.subr.mxu0 0.0
      %4776 = vmatpush1.msra.mxu0 %v4519
      %4777 = vmatprep.subr.mxu0 0.0
      %4778 = vmatpush1.msra.mxu0 %v4520
      %4779 = vmatprep.subr.mxu0 0.0
      %4780 = vmatpush1.msra.mxu0 %v4521
      %4781 = vmatprep.subr.mxu0 0.0
      %4782 = vmatpush1.msra.mxu0 %v4522
      %4783 = vmatprep.subr.mxu0 0.0
      %4784 = vmatpush1.msra.mxu0 %v4523
      %4785 = vmatprep.subr.mxu0 0.0
      %4786 = vmatpush1.msra.mxu0 %v4524
      %4787 = vmatprep.subr.mxu0 0.0
      %4788 = vmatpush1.msra.mxu0 %v4525
      %4789 = vmatprep.subr.mxu0 0.0
      %4790 = vmatpush1.msra.mxu0 %v4526
      %4791 = vmatprep.subr.mxu0 0.0
      %4792 = vmatpush1.msra.mxu0 %v4527
      %4793 = vmatprep.subr.mxu0 0.0
      %4794 = vmatpush1.msra.mxu0 %v4528
      %4795 = vmatprep.subr.mxu0 0.0
      %4796 = vmatpush1.msra.mxu0 %v4529
      %4797 = vmatprep.subr.mxu0 0.0
      %4798 = vmatpush1.msra.mxu0 %v4530
      %4799 = vmatprep.subr.mxu0 0.0
      %4800 = vmatpush1.msra.mxu0 %v4531
      %4801 = vmatprep.subr.mxu0 0.0
      %4802 = vmatpush1.msra.mxu0 %v4532
      %4803 = vmatprep.subr.mxu0 0.0
      %4804 = vmatpush1.msra.mxu0 %v4533
      %4805 = vmatprep.subr.mxu0 0.0
      %4806 = vmatpush1.msra.mxu0 %v4534
      %4807 = vmatprep.subr.mxu0 0.0
      %4808 = vmatpush1.msra.mxu0 %v4535
      %4809 = vmatprep.subr.mxu0 0.0
      %4810 = vmatpush1.msra.mxu0 %v4536
      %4811 = vmatprep.subr.mxu0 0.0
      %4812 = vmatpush1.msra.mxu0 %v4537
      %4813 = vmatprep.subr.mxu0 0.0
      %4814 = vmatpush1.msra.mxu0 %v4538
      %4815 = vmatprep.subr.mxu0 0.0
      %4816 = vmatpush1.msra.mxu0 %v4539
      %4817 = vmatprep.subr.mxu0 0.0
      %4818 = vmatpush1.msra.mxu0 %v4540
      %4819 = vmatprep.subr.mxu0 0.0
      %4820 = vmatpush1.msra.mxu0 %v4541
      %4821 = vmatprep.subr.mxu0 0.0
      %4822 = vmatpush1.msra.mxu0 %v4542
      %4823 = vmatprep.subr.mxu0 0.0
      %4824 = vmatpush1.msra.mxu0 %v4543
      %4825 = vmatprep.mubr.f32.mxu0 %v4415
      %4826 = vmatmul.mubr.f32.gmra.mrb[0].mxu0 %v4414
      %v4827 = vpop.f32.mrb[0].mxu0
      %v4828 = vadd.f32 %v4758, %v4827
      %v4829 = vpop.f32.mrb[0].mxu0
      %4830 = vdwg.mxu0
      %4831 = vst [vmem:[#allocation8] sm:$0x3] %v4828
    $region37: #{tpu_custom_call.1} parent=1 // pred_fallthru
      _
    // Predicated region
    $region38: #{tpu_custom_call.1} parent=1 // pred_check
      _
    $region39: #{tpu_custom_call.1} parent=1 // pred_check_branch
      %4833 = sbr.rel (0) target = $region41
    $region40: #{tpu_custom_call.1} parent=1 // pred_region
      %s4835 = ssub.s32 32, 32
      %4836 = vsyncadd [#allocation5], %s4835
      %s4838 = sshll.u32 [#allocation8], 4
      %s4839 = int_to_ptr.vmem [resolvable:$true] %s4838
      %4841 = dma.vmem_to_hbm [thread:$0]  %s4839, 32, %s5, [#allocation5]
    $region41: #{tpu_custom_call.1} parent=1 // pred_fallthru
      _
    // Predicated region
    $region42: #{tpu_custom_call.1} parent=1 // pred_check
      _
    $region43: #{tpu_custom_call.1} parent=1 // pred_check_branch
      %4843 = sbr.rel (0) target = $region45
    $region44: #{tpu_custom_call.1} parent=1 // pred_region
      %4844 = dma.done [#allocation5], 32
    $region45: #{tpu_custom_call.1} parent=1 // pred_fallthru
      _
    %4845 = vsyncpa [#allocation4], 1
    %4846 = vsyncpa [#allocation7], 1
    %4847 = vsyncpa [#allocation5], 1

// kernel: tpu_custom_call.1
$region0: #{tpu_custom_call.1}
  #allocation0 [shape = 'u32[]', space=smem, size = 0x4, offset = 0x4, fixed_abs, tag = 'smem constant byte address 0x4 - core index']
  #allocation1 [shape = 'u32[144,128]{1,0:T(1,128)}', space=vmem, size = 0x12000, scoped, tag = 'internal scratch']
  #allocation2 [shape = 'f32[2,256]{1,0:T(2,128)}', space=vmem, size = 0x800, scoped, tag = 'scratch operand']
  %s0 = inlined_call_operand.vmem [shape: f32[2,256,64], index: 0, kind: input, shape index: {}]
  %s1 = inlined_call_operand.hbm [shape: f32[256,1024], index: 1, kind: input, shape index: {}]
  %s2 = inlined_call_operand.vmem [shape: f32[1,1024], index: 2, kind: input, shape index: {}]
  %s3 = inlined_call_operand.hbm [shape: f32[1024,128], index: 3, kind: input, shape index: {}]
  %s4 = inlined_call_operand.vmem [shape: f32[1,128], index: 4, kind: input, shape index: {}]
  %s5 = inlined_call_operand.hbm [shape: f32[2,128], index: 5, kind: output, shape index: {}]
  %s6 = sld [smem:[#allocation0]]
  $region46: #{tpu_custom_call.1} parent=0
    _
  %s8 = ssub.s32 1, %s6
  %s9 = scalar_select 0, %s8, %s6
  $region1: #{tpu_custom_call.1} parent=0
    #allocation3 [shape = 'u8[1048576]{0}', space=vmem, size = 0x100000, scoped, tag = 'input window, operand 1, single buffered']
    #allocation4 [shape = 's32[1]{0}', space=sflag, size = 0x4, scoped, tag = 'scoped memory for tpu_custom_call.1']
    #allocation5 [shape = 's32[1]{0}', space=sflag, size = 0x4, scoped, tag = 'scoped memory for tpu_custom_call.1']
    #allocation6 [shape = 'u8[524288]{0}', space=vmem, size = 0x80000, scoped, tag = 'input window, operand 3, single buffered']
    #allocation7 [shape = 's32[1]{0}', space=sflag, size = 0x4, scoped, tag = 'scoped memory for tpu_custom_call.1']
    #allocation8 [shape = 'u8[1024]{0}', space=vmem, size = 0x400, scoped, tag = 'output window, operand 0, single buffered']
    %10 = vsyncpa [#allocation4], 0
    %11 = vsyncpa [#allocation7], 0
    %12 = vsyncpa [#allocation5], 0
    // Predicated region
    $region2: #{tpu_custom_call.1} parent=1 // pred_check
      _
    $region3: #{tpu_custom_call.1} parent=1 // pred_check_branch
      %14 = sbr.rel (0) target = $region5
    $region4: #{tpu_custom_call.1} parent=1 // pred_region
      _
    $region5: #{tpu_custom_call.1} parent=1 // pred_fallthru
      _
    // Predicated region
    $region6: #{tpu_custom_call.1} parent=1 // pred_check
      _
    $region7: #{tpu_custom_call.1} parent=1 // pred_check_branch
      %16 = sbr.rel (0) target = $region9
    $region8: #{tpu_custom_call.1} parent=1 // pred_region
      %s18 = ssub.s32 32768, 32768
      %19 = vsyncadd [#allocation4], %s18
      %s20 = sshll.u32 [#allocation3], 4
      %s21 = int_to_ptr.vmem [resolvable:$true] %s20
      %26 = dma.hbm_to_vmem [thread:$0]  %s1, 32768, %s21, [#allocation4], 1024, 1024, 64
    $region9: #{tpu_custom_call.1} parent=1 // pred_fallthru
      _
    // Predicated region
    $region10: #{tpu_custom_call.1} parent=1 // pred_check
      _
    $region11: #{tpu_custom_call.1} parent=1 // pred_check_branch
      %28 = sbr.rel (0) target = $region13
    $region12: #{tpu_custom_call.1} parent=1 // pred_region
      _
    $region13: #{tpu_custom_call.1} parent=1 // pred_fallthru
      _
    // Predicated region
    $region14: #{tpu_custom_call.1} parent=1 // pred_check
      _
    $region15: #{tpu_custom_call.1} parent=1 // pred_check_branch
      %30 = sbr.rel (0) target = $region17
    $region16: #{tpu_custom_call.1} parent=1 // pred_region
      %s32 = ssub.s32 16384, 16384
      %33 = vsyncadd [#allocation7], %s32
      %s34 = sshll.u32 [#allocation6], 4
      %s35 = int_to_ptr.vmem [resolvable:$true] %s34
      %40 = dma.hbm_to_vmem [thread:$0]  %s3, 16384, %s35, [#allocation7], 128, 128, 8
    $region17: #{tpu_custom_call.1} parent=1 // pred_fallthru
      _
    // Predicated region
    $region18: #{tpu_custom_call.1} parent=1 // pred_check
      _
    $region19: #{tpu_custom_call.1} parent=1 // pred_check_branch
      %42 = sbr.rel (0) target = $region21
    $region20: #{tpu_custom_call.1} parent=1 // pred_region
      _
    $region21: #{tpu_custom_call.1} parent=1 // pred_fallthru
      _
    // Predicated region
    $region22: #{tpu_custom_call.1} parent=1 // pred_check
      _
    $region23: #{tpu_custom_call.1} parent=1 // pred_check_branch
      %44 = sbr.rel (0) target = $region25
    $region24: #{tpu_custom_call.1} parent=1 // pred_region
      %45 = dma.done [#allocation4], 32768
    $region25: #{tpu_custom_call.1} parent=1 // pred_fallthru
      _
    // Predicated region
    $region26: #{tpu_custom_call.1} parent=1 // pred_check
      _
    $region27: #{tpu_custom_call.1} parent=1 // pred_check_branch
      %47 = sbr.rel (0) target = $region29
    $region28: #{tpu_custom_call.1} parent=1 // pred_region
      %48 = dma.done [#allocation7], 16384
    $region29: #{tpu_custom_call.1} parent=1 // pred_fallthru
      _
    %p49 = scmp.eq.s32.totalorder 0, 0
    // Predicated region
    $region30: #{tpu_custom_call.1} parent=1 // pred_check
      %p50 = pneg %p49
    $region31: #{tpu_custom_call.1} parent=1 // pred_check_branch
      %52 = sbr.rel (%p50) target = $region33
    $region32: #{tpu_custom_call.1} parent=1 // pred_region
      %53 = vst [vmem:[#allocation2] sm:$0xf] 0.0
    $region33: #{tpu_custom_call.1} parent=1 // pred_fallthru
      _
    %v54 = vld [vmem:[%s0] sm:$0xff]
    %v55 = vld [vmem:[%s0 + $0x8] sm:$0xff]
    %v56 = vld [vmem:[%s0 + $0x10] sm:$0xff]
    %v57 = vld [vmem:[%s0 + $0x18] sm:$0xff]
    %v58 = vld [vmem:[%s0 + $0x20] sm:$0xff]
    %v59 = vld [vmem:[%s0 + $0x28] sm:$0xff]
    %v60 = vld [vmem:[%s0 + $0x30] sm:$0xff]
    %v61 = vld [vmem:[%s0 + $0x38] sm:$0xff]
    %v62 = vld [vmem:[%s0 + $0x40] sm:$0xff]
    %v63 = vld [vmem:[%s0 + $0x48] sm:$0xff]
    %v64 = vld [vmem:[%s0 + $0x50] sm:$0xff]
    %v65 = vld [vmem:[%s0 + $0x58] sm:$0xff]
    %v66 = vld [vmem:[%s0 + $0x60] sm:$0xff]
    %v67 = vld [vmem:[%s0 + $0x68] sm:$0xff]
    %v68 = vld [vmem:[%s0 + $0x70] sm:$0xff]
    %v69 = vld [vmem:[%s0 + $0x78] sm:$0xff]
    %v70 = vld [vmem:[%s0 + $0x80] sm:$0xff]
    %v71 = vld [vmem:[%s0 + $0x88] sm:$0xff]
    %v72 = vld [vmem:[%s0 + $0x90] sm:$0xff]
    %v73 = vld [vmem:[%s0 + $0x98] sm:$0xff]
    %v74 = vld [vmem:[%s0 + $0xa0] sm:$0xff]
    %v75 = vld [vmem:[%s0 + $0xa8] sm:$0xff]
    %v76 = vld [vmem:[%s0 + $0xb0] sm:$0xff]
    %v77 = vld [vmem:[%s0 + $0xb8] sm:$0xff]
    %v78 = vld [vmem:[%s0 + $0xc0] sm:$0xff]
    %v79 = vld [vmem:[%s0 + $0xc8] sm:$0xff]
    %v80 = vld [vmem:[%s0 + $0xd0] sm:$0xff]
    %v81 = vld [vmem:[%s0 + $0xd8] sm:$0xff]
    %v82 = vld [vmem:[%s0 + $0xe0] sm:$0xff]
    %v83 = vld [vmem:[%s0 + $0xe8] sm:$0xff]
    %v84 = vld [vmem:[%s0 + $0xf0] sm:$0xff]
    %v85 = vld [vmem:[%s0 + $0xf8] sm:$0xff]
    %v86 = vld [vmem:[%s0 + $0x100] sm:$0xff]
    %v87 = vld [vmem:[%s0 + $0x108] sm:$0xff]
    %v88 = vld [vmem:[%s0 + $0x110] sm:$0xff]
    %v89 = vld [vmem:[%s0 + $0x118] sm:$0xff]
    %v90 = vld [vmem:[%s0 + $0x120] sm:$0xff]
    %v91 = vld [vmem:[%s0 + $0x128] sm:$0xff]
    %v92 = vld [vmem:[%s0 + $0x130] sm:$0xff]
    %v93 = vld [vmem:[%s0 + $0x138] sm:$0xff]
    %v94 = vld [vmem:[%s0 + $0x140] sm:$0xff]
    %v95 = vld [vmem:[%s0 + $0x148] sm:$0xff]
    %v96 = vld [vmem:[%s0 + $0x150] sm:$0xff]
    %v97 = vld [vmem:[%s0 + $0x158] sm:$0xff]
    %v98 = vld [vmem:[%s0 + $0x160] sm:$0xff]
    %v99 = vld [vmem:[%s0 + $0x168] sm:$0xff]
    %v100 = vld [vmem:[%s0 + $0x170] sm:$0xff]
    %v101 = vld [vmem:[%s0 + $0x178] sm:$0xff]
    %v102 = vld [vmem:[%s0 + $0x180] sm:$0xff]
    %v103 = vld [vmem:[%s0 + $0x188] sm:$0xff]
    %v104 = vld [vmem:[%s0 + $0x190] sm:$0xff]
    %v105 = vld [vmem:[%s0 + $0x198] sm:$0xff]
    %v106 = vld [vmem:[%s0 + $0x1a0] sm:$0xff]
    %v107 = vld [vmem:[%s0 + $0x1a8] sm:$0xff]
    %v108 = vld [vmem:[%s0 + $0x1b0] sm:$0xff]
    %v109 = vld [vmem:[%s0 + $0x1b8] sm:$0xff]
    %v110 = vld [vmem:[%s0 + $0x1c0] sm:$0xff]
    %v111 = vld [vmem:[%s0 + $0x1c8] sm:$0xff]
    %v112 = vld [vmem:[%s0 + $0x1d0] sm:$0xff]
    %v113 = vld [vmem:[%s0 + $0x1d8] sm:$0xff]
    %v114 = vld [vmem:[%s0 + $0x1e0] sm:$0xff]
    %v115 = vld [vmem:[%s0 + $0x1e8] sm:$0xff]
    %v116 = vld [vmem:[%s0 + $0x1f0] sm:$0xff]
    %v117 = vld [vmem:[%s0 + $0x1f8] sm:$0xff]
    %v118 = vld [vmem:[#allocation2] sm:$0xf]
    %vm119 = vcmask 523264
    %v120 = vsel %vm119, %v54, 0.0
    %121 = vadd.xlane.f32.xlu0 %v120
    %v122 = vpop.xlane.xlu0 %121
    %v123 = vsel %vm119, %v55, 0.0
    %124 = vadd.xlane.f32.xlu0 %v123
    %v125 = vpop.xlane.xlu0 %124
    %v126 = vsel %vm119, %v56, 0.0
    %127 = vadd.xlane.f32.xlu0 %v126
    %v128 = vpop.xlane.xlu0 %127
    %v129 = vsel %vm119, %v57, 0.0
    %130 = vadd.xlane.f32.xlu0 %v129
    %v131 = vpop.xlane.xlu0 %130
    %v132 = vsel %vm119, %v58, 0.0
    %133 = vadd.xlane.f32.xlu0 %v132
    %v134 = vpop.xlane.xlu0 %133
    %v135 = vsel %vm119, %v59, 0.0
    %136 = vadd.xlane.f32.xlu0 %v135
    %v137 = vpop.xlane.xlu0 %136
    %v138 = vsel %vm119, %v60, 0.0
    %139 = vadd.xlane.f32.xlu0 %v138
    %v140 = vpop.xlane.xlu0 %139
    %v141 = vsel %vm119, %v61, 0.0
    %142 = vadd.xlane.f32.xlu0 %v141
    %v143 = vpop.xlane.xlu0 %142
    %v144 = vsel %vm119, %v62, 0.0
    %145 = vadd.xlane.f32.xlu0 %v144
    %v146 = vpop.xlane.xlu0 %145
    %v147 = vsel %vm119, %v63, 0.0
    %148 = vadd.xlane.f32.xlu0 %v147
    %v149 = vpop.xlane.xlu0 %148
    %v150 = vsel %vm119, %v64, 0.0
    %151 = vadd.xlane.f32.xlu0 %v150
    %v152 = vpop.xlane.xlu0 %151
    %v153 = vsel %vm119, %v65, 0.0
    %154 = vadd.xlane.f32.xlu0 %v153
    %v155 = vpop.xlane.xlu0 %154
    %v156 = vsel %vm119, %v66, 0.0
    %157 = vadd.xlane.f32.xlu0 %v156
    %v158 = vpop.xlane.xlu0 %157
    %v159 = vsel %vm119, %v67, 0.0
    %160 = vadd.xlane.f32.xlu0 %v159
    %v161 = vpop.xlane.xlu0 %160
    %v162 = vsel %vm119, %v68, 0.0
    %163 = vadd.xlane.f32.xlu0 %v162
    %v164 = vpop.xlane.xlu0 %163
    %v165 = vsel %vm119, %v69, 0.0
    %166 = vadd.xlane.f32.xlu0 %v165
    %v167 = vpop.xlane.xlu0 %166
    %v168 = vsel %vm119, %v70, 0.0
    %169 = vadd.xlane.f32.xlu0 %v168
    %v170 = vpop.xlane.xlu0 %169
    %v171 = vsel %vm119, %v71, 0.0
    %172 = vadd.xlane.f32.xlu0 %v171
    %v173 = vpop.xlane.xlu0 %172
    %v174 = vsel %vm119, %v72, 0.0
    %175 = vadd.xlane.f32.xlu0 %v174
    %v176 = vpop.xlane.xlu0 %175
    %v177 = vsel %vm119, %v73, 0.0
    %178 = vadd.xlane.f32.xlu0 %v177
    %v179 = vpop.xlane.xlu0 %178
    %v180 = vsel %vm119, %v74, 0.0
    %181 = vadd.xlane.f32.xlu0 %v180
    %v182 = vpop.xlane.xlu0 %181
    %v183 = vsel %vm119, %v75, 0.0
    %184 = vadd.xlane.f32.xlu0 %v183
    %v185 = vpop.xlane.xlu0 %184
    %v186 = vsel %vm119, %v76, 0.0
    %187 = vadd.xlane.f32.xlu0 %v186
    %v188 = vpop.xlane.xlu0 %187
    %v189 = vsel %vm119, %v77, 0.0
    %190 = vadd.xlane.f32.xlu0 %v189
    %v191 = vpop.xlane.xlu0 %190
    %v192 = vsel %vm119, %v78, 0.0
    %193 = vadd.xlane.f32.xlu0 %v192
    %v194 = vpop.xlane.xlu0 %193
    %v195 = vsel %vm119, %v79, 0.0
    %196 = vadd.xlane.f32.xlu0 %v195
    %v197 = vpop.xlane.xlu0 %196
    %v198 = vsel %vm119, %v80, 0.0
    %199 = vadd.xlane.f32.xlu0 %v198
    %v200 = vpop.xlane.xlu0 %199
    %v201 = vsel %vm119, %v81, 0.0
    %202 = vadd.xlane.f32.xlu0 %v201
    %v203 = vpop.xlane.xlu0 %202
    %v204 = vsel %vm119, %v82, 0.0
    %205 = vadd.xlane.f32.xlu0 %v204
    %v206 = vpop.xlane.xlu0 %205
    %v207 = vsel %vm119, %v83, 0.0
    %208 = vadd.xlane.f32.xlu0 %v207
    %v209 = vpop.xlane.xlu0 %208
    %v210 = vsel %vm119, %v84, 0.0
    %211 = vadd.xlane.f32.xlu0 %v210
    %v212 = vpop.xlane.xlu0 %211
    %v213 = vsel %vm119, %v85, 0.0
    %214 = vadd.xlane.f32.xlu0 %v213
    %v215 = vpop.xlane.xlu0 %214
    %v216 = vsel %vm119, %v86, 0.0
    %217 = vadd.xlane.f32.xlu0 %v216
    %v218 = vpop.xlane.xlu0 %217
    %v219 = vsel %vm119, %v87, 0.0
    %220 = vadd.xlane.f32.xlu0 %v219
    %v221 = vpop.xlane.xlu0 %220
    %v222 = vsel %vm119, %v88, 0.0
    %223 = vadd.xlane.f32.xlu0 %v222
    %v224 = vpop.xlane.xlu0 %223
    %v225 = vsel %vm119, %v89, 0.0
    %226 = vadd.xlane.f32.xlu0 %v225
    %v227 = vpop.xlane.xlu0 %226
    %v228 = vsel %vm119, %v90, 0.0
    %229 = vadd.xlane.f32.xlu0 %v228
    %v230 = vpop.xlane.xlu0 %229
    %v231 = vsel %vm119, %v91, 0.0
    %232 = vadd.xlane.f32.xlu0 %v231
    %v233 = vpop.xlane.xlu0 %232
    %v234 = vsel %vm119, %v92, 0.0
    %235 = vadd.xlane.f32.xlu0 %v234
    %v236 = vpop.xlane.xlu0 %235
    %v237 = vsel %vm119, %v93, 0.0
    %238 = vadd.xlane.f32.xlu0 %v237
    %v239 = vpop.xlane.xlu0 %238
    %v240 = vsel %vm119, %v94, 0.0
    %241 = vadd.xlane.f32.xlu0 %v240
    %v242 = vpop.xlane.xlu0 %241
    %v243 = vsel %vm119, %v95, 0.0
    %244 = vadd.xlane.f32.xlu0 %v243
    %v245 = vpop.xlane.xlu0 %244
    %v246 = vsel %vm119, %v96, 0.0
    %247 = vadd.xlane.f32.xlu0 %v246
    %v248 = vpop.xlane.xlu0 %247
    %v249 = vsel %vm119, %v97, 0.0
    %250 = vadd.xlane.f32.xlu0 %v249
    %v251 = vpop.xlane.xlu0 %250
    %v252 = vsel %vm119, %v98, 0.0
    %253 = vadd.xlane.f32.xlu0 %v252
    %v254 = vpop.xlane.xlu0 %253
    %v255 = vsel %vm119, %v99, 0.0
    %256 = vadd.xlane.f32.xlu0 %v255
    %v257 = vpop.xlane.xlu0 %256
    %v258 = vsel %vm119, %v100, 0.0
    %259 = vadd.xlane.f32.xlu0 %v258
    %v260 = vpop.xlane.xlu0 %259
    %v261 = vsel %vm119, %v101, 0.0
    %262 = vadd.xlane.f32.xlu0 %v261
    %v263 = vpop.xlane.xlu0 %262
    %v264 = vsel %vm119, %v102, 0.0
    %265 = vadd.xlane.f32.xlu0 %v264
    %v266 = vpop.xlane.xlu0 %265
    %v267 = vsel %vm119, %v103, 0.0
    %268 = vadd.xlane.f32.xlu0 %v267
    %v269 = vpop.xlane.xlu0 %268
    %v270 = vsel %vm119, %v104, 0.0
    %271 = vadd.xlane.f32.xlu0 %v270
    %v272 = vpop.xlane.xlu0 %271
    %v273 = vsel %vm119, %v105, 0.0
    %274 = vadd.xlane.f32.xlu0 %v273
    %v275 = vpop.xlane.xlu0 %274
    %v276 = vsel %vm119, %v106, 0.0
    %277 = vadd.xlane.f32.xlu0 %v276
    %v278 = vpop.xlane.xlu0 %277
    %v279 = vsel %vm119, %v107, 0.0
    %280 = vadd.xlane.f32.xlu0 %v279
    %v281 = vpop.xlane.xlu0 %280
    %v282 = vsel %vm119, %v108, 0.0
    %283 = vadd.xlane.f32.xlu0 %v282
    %v284 = vpop.xlane.xlu0 %283
    %v285 = vsel %vm119, %v109, 0.0
    %286 = vadd.xlane.f32.xlu0 %v285
    %v287 = vpop.xlane.xlu0 %286
    %v288 = vsel %vm119, %v110, 0.0
    %289 = vadd.xlane.f32.xlu0 %v288
    %v290 = vpop.xlane.xlu0 %289
    %v291 = vsel %vm119, %v111, 0.0
    %292 = vadd.xlane.f32.xlu0 %v291
    %v293 = vpop.xlane.xlu0 %292
    %v294 = vsel %vm119, %v112, 0.0
    %295 = vadd.xlane.f32.xlu0 %v294
    %v296 = vpop.xlane.xlu0 %295
    %v297 = vsel %vm119, %v113, 0.0
    %298 = vadd.xlane.f32.xlu0 %v297
    %v299 = vpop.xlane.xlu0 %298
    %v300 = vsel %vm119, %v114, 0.0
    %301 = vadd.xlane.f32.xlu0 %v300
    %v302 = vpop.xlane.xlu0 %301
    %v303 = vsel %vm119, %v115, 0.0
    %304 = vadd.xlane.f32.xlu0 %v303
    %v305 = vpop.xlane.xlu0 %304
    %v306 = vsel %vm119, %v116, 0.0
    %307 = vadd.xlane.f32.xlu0 %v306
    %v308 = vpop.xlane.xlu0 %307
    %v309 = vsel %vm119, %v117, 0.0
    %310 = vadd.xlane.f32.xlu0 %v309
    %v311 = vpop.xlane.xlu0 %310
    %v377 = vunpack.c.l.s4 269488144
    %v378 = vunpack.c.0.s8 %v377
    %v379 = vlaneseq
    %v380 = vshrl.u32 %v379, 7
    %v381 = vsub.s32 %v378, %v380
    %v382 = vrot.slane %v122, %v381
    %v384 = vunpack.c.l.s4 842150450
    %v385 = vunpack.c.0.s8 %v384
    %v386 = vlaneseq
    %v387 = vshrl.u32 %v386, 7
    %v388 = vsub.s32 %v385, %v387
    %v389 = vrot.slane %v122, %v388
    %v391 = vunpack.c.l.s4 1414812756
    %v392 = vunpack.c.0.s8 %v391
    %v393 = vlaneseq
    %v394 = vshrl.u32 %v393, 7
    %v395 = vsub.s32 %v392, %v394
    %v396 = vrot.slane %v122, %v395
    %v398 = vunpack.c.l.s4 1987475062
    %v399 = vunpack.c.0.s8 %v398
    %v400 = vlaneseq
    %v401 = vshrl.u32 %v400, 7
    %v402 = vsub.s32 %v399, %v401
    %v403 = vrot.slane %v122, %v402
    %v405 = vunpack.c.l.s4 269488144
    %v406 = vunpack.c.0.s8 %v405
    %v407 = vlaneseq
    %v408 = vshrl.u32 %v407, 7
    %v409 = vsub.s32 %v406, %v408
    %v410 = vrot.slane %v125, %v409
    %v412 = vunpack.c.l.s4 842150450
    %v413 = vunpack.c.0.s8 %v412
    %v414 = vlaneseq
    %v415 = vshrl.u32 %v414, 7
    %v416 = vsub.s32 %v413, %v415
    %v417 = vrot.slane %v125, %v416
    %v419 = vunpack.c.l.s4 1414812756
    %v420 = vunpack.c.0.s8 %v419
    %v421 = vlaneseq
    %v422 = vshrl.u32 %v421, 7
    %v423 = vsub.s32 %v420, %v422
    %v424 = vrot.slane %v125, %v423
    %v426 = vunpack.c.l.s4 1987475062
    %v427 = vunpack.c.0.s8 %v426
    %v428 = vlaneseq
    %v429 = vshrl.u32 %v428, 7
    %v430 = vsub.s32 %v427, %v429
    %v431 = vrot.slane %v125, %v430
    %v433 = vunpack.c.l.s4 269488144
    %v434 = vunpack.c.0.s8 %v433
    %v435 = vlaneseq
    %v436 = vshrl.u32 %v435, 7
    %v437 = vsub.s32 %v434, %v436
    %v438 = vrot.slane %v128, %v437
    %v440 = vunpack.c.l.s4 842150450
    %v441 = vunpack.c.0.s8 %v440
    %v442 = vlaneseq
    %v443 = vshrl.u32 %v442, 7
    %v444 = vsub.s32 %v441, %v443
    %v445 = vrot.slane %v128, %v444
    %v447 = vunpack.c.l.s4 1414812756
    %v448 = vunpack.c.0.s8 %v447
    %v449 = vlaneseq
    %v450 = vshrl.u32 %v449, 7
    %v451 = vsub.s32 %v448, %v450
    %v452 = vrot.slane %v128, %v451
    %v454 = vunpack.c.l.s4 1987475062
    %v455 = vunpack.c.0.s8 %v454
    %v456 = vlaneseq
    %v457 = vshrl.u32 %v456, 7
    %v458 = vsub.s32 %v455, %v457
    %v459 = vrot.slane %v128, %v458
    %v461 = vunpack.c.l.s4 269488144
    %v462 = vunpack.c.0.s8 %v461
    %v463 = vlaneseq
    %v464 = vshrl.u32 %v463, 7
    %v465 = vsub.s32 %v462, %v464
    %v466 = vrot.slane %v131, %v465
    %v468 = vunpack.c.l.s4 842150450
    %v469 = vunpack.c.0.s8 %v468
    %v470 = vlaneseq
    %v471 = vshrl.u32 %v470, 7
    %v472 = vsub.s32 %v469, %v471
    %v473 = vrot.slane %v131, %v472
    %v475 = vunpack.c.l.s4 1414812756
    %v476 = vunpack.c.0.s8 %v475
    %v477 = vlaneseq
    %v478 = vshrl.u32 %v477, 7
    %v479 = vsub.s32 %v476, %v478
    %v480 = vrot.slane %v131, %v479
    %v482 = vunpack.c.l.s4 1987475062
    %v483 = vunpack.c.0.s8 %v482
    %v484 = vlaneseq
    %v485 = vshrl.u32 %v484, 7
    %v486 = vsub.s32 %v483, %v485
    %v487 = vrot.slane %v131, %v486
    %v489 = vunpack.c.l.s4 269488144
    %v490 = vunpack.c.0.s8 %v489
    %v491 = vlaneseq
    %v492 = vshrl.u32 %v491, 7
    %v493 = vsub.s32 %v490, %v492
    %v494 = vrot.slane %v134, %v493
    %v496 = vunpack.c.l.s4 842150450
    %v497 = vunpack.c.0.s8 %v496
    %v498 = vlaneseq
    %v499 = vshrl.u32 %v498, 7
    %v500 = vsub.s32 %v497, %v499
    %v501 = vrot.slane %v134, %v500
    %v503 = vunpack.c.l.s4 1414812756
    %v504 = vunpack.c.0.s8 %v503
    %v505 = vlaneseq
    %v506 = vshrl.u32 %v505, 7
    %v507 = vsub.s32 %v504, %v506
    %v508 = vrot.slane %v134, %v507
    %v510 = vunpack.c.l.s4 1987475062
    %v511 = vunpack.c.0.s8 %v510
    %v512 = vlaneseq
    %v513 = vshrl.u32 %v512, 7
    %v514 = vsub.s32 %v511, %v513
    %v515 = vrot.slane %v134, %v514
    %v517 = vunpack.c.l.s4 269488144
    %v518 = vunpack.c.0.s8 %v517
    %v519 = vlaneseq
    %v520 = vshrl.u32 %v519, 7
    %v521 = vsub.s32 %v518, %v520
    %v522 = vrot.slane %v137, %v521
    %v524 = vunpack.c.l.s4 842150450
    %v525 = vunpack.c.0.s8 %v524
    %v526 = vlaneseq
    %v527 = vshrl.u32 %v526, 7
    %v528 = vsub.s32 %v525, %v527
    %v529 = vrot.slane %v137, %v528
    %v531 = vunpack.c.l.s4 1414812756
    %v532 = vunpack.c.0.s8 %v531
    %v533 = vlaneseq
    %v534 = vshrl.u32 %v533, 7
    %v535 = vsub.s32 %v532, %v534
    %v536 = vrot.slane %v137, %v535
    %v538 = vunpack.c.l.s4 1987475062
    %v539 = vunpack.c.0.s8 %v538
    %v540 = vlaneseq
    %v541 = vshrl.u32 %v540, 7
    %v542 = vsub.s32 %v539, %v541
    %v543 = vrot.slane %v137, %v542
    %v545 = vunpack.c.l.s4 269488144
    %v546 = vunpack.c.0.s8 %v545
    %v547 = vlaneseq
    %v548 = vshrl.u32 %v547, 7
    %v549 = vsub.s32 %v546, %v548
    %v550 = vrot.slane %v140, %v549
    %v552 = vunpack.c.l.s4 842150450
    %v553 = vunpack.c.0.s8 %v552
    %v554 = vlaneseq
    %v555 = vshrl.u32 %v554, 7
    %v556 = vsub.s32 %v553, %v555
    %v557 = vrot.slane %v140, %v556
    %v559 = vunpack.c.l.s4 1414812756
    %v560 = vunpack.c.0.s8 %v559
    %v561 = vlaneseq
    %v562 = vshrl.u32 %v561, 7
    %v563 = vsub.s32 %v560, %v562
    %v564 = vrot.slane %v140, %v563
    %v566 = vunpack.c.l.s4 1987475062
    %v567 = vunpack.c.0.s8 %v566
    %v568 = vlaneseq
    %v569 = vshrl.u32 %v568, 7
    %v570 = vsub.s32 %v567, %v569
    %v571 = vrot.slane %v140, %v570
    %v573 = vunpack.c.l.s4 269488144
    %v574 = vunpack.c.0.s8 %v573
    %v575 = vlaneseq
    %v576 = vshrl.u32 %v575, 7
    %v577 = vsub.s32 %v574, %v576
    %v578 = vrot.slane %v143, %v577
    %v580 = vunpack.c.l.s4 842150450
    %v581 = vunpack.c.0.s8 %v580
    %v582 = vlaneseq
    %v583 = vshrl.u32 %v582, 7
    %v584 = vsub.s32 %v581, %v583
    %v585 = vrot.slane %v143, %v584
    %v587 = vunpack.c.l.s4 1414812756
    %v588 = vunpack.c.0.s8 %v587
    %v589 = vlaneseq
    %v590 = vshrl.u32 %v589, 7
    %v591 = vsub.s32 %v588, %v590
    %v592 = vrot.slane %v143, %v591
    %v594 = vunpack.c.l.s4 1987475062
    %v595 = vunpack.c.0.s8 %v594
    %v596 = vlaneseq
    %v597 = vshrl.u32 %v596, 7
    %v598 = vsub.s32 %v595, %v597
    %v599 = vrot.slane %v143, %v598
    %v601 = vunpack.c.l.s4 269488144
    %v602 = vunpack.c.0.s8 %v601
    %v603 = vlaneseq
    %v604 = vshrl.u32 %v603, 7
    %v605 = vsub.s32 %v602, %v604
    %v606 = vrot.slane %v146, %v605
    %v608 = vunpack.c.l.s4 842150450
    %v609 = vunpack.c.0.s8 %v608
    %v610 = vlaneseq
    %v611 = vshrl.u32 %v610, 7
    %v612 = vsub.s32 %v609, %v611
    %v613 = vrot.slane %v146, %v612
    %v615 = vunpack.c.l.s4 1414812756
    %v616 = vunpack.c.0.s8 %v615
    %v617 = vlaneseq
    %v618 = vshrl.u32 %v617, 7
    %v619 = vsub.s32 %v616, %v618
    %v620 = vrot.slane %v146, %v619
    %v622 = vunpack.c.l.s4 1987475062
    %v623 = vunpack.c.0.s8 %v622
    %v624 = vlaneseq
    %v625 = vshrl.u32 %v624, 7
    %v626 = vsub.s32 %v623, %v625
    %v627 = vrot.slane %v146, %v626
    %v629 = vunpack.c.l.s4 269488144
    %v630 = vunpack.c.0.s8 %v629
    %v631 = vlaneseq
    %v632 = vshrl.u32 %v631, 7
    %v633 = vsub.s32 %v630, %v632
    %v634 = vrot.slane %v149, %v633
    %v636 = vunpack.c.l.s4 842150450
    %v637 = vunpack.c.0.s8 %v636
    %v638 = vlaneseq
    %v639 = vshrl.u32 %v638, 7
    %v640 = vsub.s32 %v637, %v639
    %v641 = vrot.slane %v149, %v640
    %v643 = vunpack.c.l.s4 1414812756
    %v644 = vunpack.c.0.s8 %v643
    %v645 = vlaneseq
    %v646 = vshrl.u32 %v645, 7
    %v647 = vsub.s32 %v644, %v646
    %v648 = vrot.slane %v149, %v647
    %v650 = vunpack.c.l.s4 1987475062
    %v651 = vunpack.c.0.s8 %v650
    %v652 = vlaneseq
    %v653 = vshrl.u32 %v652, 7
    %v654 = vsub.s32 %v651, %v653
    %v655 = vrot.slane %v149, %v654
    %v657 = vunpack.c.l.s4 269488144
    %v658 = vunpack.c.0.s8 %v657
    %v659 = vlaneseq
    %v660 = vshrl.u32 %v659, 7
    %v661 = vsub.s32 %v658, %v660
    %v662 = vrot.slane %v152, %v661
    %v664 = vunpack.c.l.s4 842150450
    %v665 = vunpack.c.0.s8 %v664
    %v666 = vlaneseq
    %v667 = vshrl.u32 %v666, 7
    %v668 = vsub.s32 %v665, %v667
    %v669 = vrot.slane %v152, %v668
    %v671 = vunpack.c.l.s4 1414812756
    %v672 = vunpack.c.0.s8 %v671
    %v673 = vlaneseq
    %v674 = vshrl.u32 %v673, 7
    %v675 = vsub.s32 %v672, %v674
    %v676 = vrot.slane %v152, %v675
    %v678 = vunpack.c.l.s4 1987475062
    %v679 = vunpack.c.0.s8 %v678
    %v680 = vlaneseq
    %v681 = vshrl.u32 %v680, 7
    %v682 = vsub.s32 %v679, %v681
    %v683 = vrot.slane %v152, %v682
    %v685 = vunpack.c.l.s4 269488144
    %v686 = vunpack.c.0.s8 %v685
    %v687 = vlaneseq
    %v688 = vshrl.u32 %v687, 7
    %v689 = vsub.s32 %v686, %v688
    %v690 = vrot.slane %v155, %v689
    %v692 = vunpack.c.l.s4 842150450
    %v693 = vunpack.c.0.s8 %v692
    %v694 = vlaneseq
    %v695 = vshrl.u32 %v694, 7
    %v696 = vsub.s32 %v693, %v695
    %v697 = vrot.slane %v155, %v696
    %v699 = vunpack.c.l.s4 1414812756
    %v700 = vunpack.c.0.s8 %v699
    %v701 = vlaneseq
    %v702 = vshrl.u32 %v701, 7
    %v703 = vsub.s32 %v700, %v702
    %v704 = vrot.slane %v155, %v703
    %v706 = vunpack.c.l.s4 1987475062
    %v707 = vunpack.c.0.s8 %v706
    %v708 = vlaneseq
    %v709 = vshrl.u32 %v708, 7
    %v710 = vsub.s32 %v707, %v709
    %v711 = vrot.slane %v155, %v710
    %v713 = vunpack.c.l.s4 269488144
    %v714 = vunpack.c.0.s8 %v713
    %v715 = vlaneseq
    %v716 = vshrl.u32 %v715, 7
    %v717 = vsub.s32 %v714, %v716
    %v718 = vrot.slane %v158, %v717
    %v720 = vunpack.c.l.s4 842150450
    %v721 = vunpack.c.0.s8 %v720
    %v722 = vlaneseq
    %v723 = vshrl.u32 %v722, 7
    %v724 = vsub.s32 %v721, %v723
    %v725 = vrot.slane %v158, %v724
    %v727 = vunpack.c.l.s4 1414812756
    %v728 = vunpack.c.0.s8 %v727
    %v729 = vlaneseq
    %v730 = vshrl.u32 %v729, 7
    %v731 = vsub.s32 %v728, %v730
    %v732 = vrot.slane %v158, %v731
    %v734 = vunpack.c.l.s4 1987475062
    %v735 = vunpack.c.0.s8 %v734
    %v736 = vlaneseq
    %v737 = vshrl.u32 %v736, 7
    %v738 = vsub.s32 %v735, %v737
    %v739 = vrot.slane %v158, %v738
    %v741 = vunpack.c.l.s4 269488144
    %v742 = vunpack.c.0.s8 %v741
    %v743 = vlaneseq
    %v744 = vshrl.u32 %v743, 7
    %v745 = vsub.s32 %v742, %v744
    %v746 = vrot.slane %v161, %v745
    %v748 = vunpack.c.l.s4 842150450
    %v749 = vunpack.c.0.s8 %v748
    %v750 = vlaneseq
    %v751 = vshrl.u32 %v750, 7
    %v752 = vsub.s32 %v749, %v751
    %v753 = vrot.slane %v161, %v752
    %v755 = vunpack.c.l.s4 1414812756
    %v756 = vunpack.c.0.s8 %v755
    %v757 = vlaneseq
    %v758 = vshrl.u32 %v757, 7
    %v759 = vsub.s32 %v756, %v758
    %v760 = vrot.slane %v161, %v759
    %v762 = vunpack.c.l.s4 1987475062
    %v763 = vunpack.c.0.s8 %v762
    %v764 = vlaneseq
    %v765 = vshrl.u32 %v764, 7
    %v766 = vsub.s32 %v763, %v765
    %v767 = vrot.slane %v161, %v766
    %v769 = vunpack.c.l.s4 269488144
    %v770 = vunpack.c.0.s8 %v769
    %v771 = vlaneseq
    %v772 = vshrl.u32 %v771, 7
    %v773 = vsub.s32 %v770, %v772
    %v774 = vrot.slane %v164, %v773
    %v776 = vunpack.c.l.s4 842150450
    %v777 = vunpack.c.0.s8 %v776
    %v778 = vlaneseq
    %v779 = vshrl.u32 %v778, 7
    %v780 = vsub.s32 %v777, %v779
    %v781 = vrot.slane %v164, %v780
    %v783 = vunpack.c.l.s4 1414812756
    %v784 = vunpack.c.0.s8 %v783
    %v785 = vlaneseq
    %v786 = vshrl.u32 %v785, 7
    %v787 = vsub.s32 %v784, %v786
    %v788 = vrot.slane %v164, %v787
    %v790 = vunpack.c.l.s4 1987475062
    %v791 = vunpack.c.0.s8 %v790
    %v792 = vlaneseq
    %v793 = vshrl.u32 %v792, 7
    %v794 = vsub.s32 %v791, %v793
    %v795 = vrot.slane %v164, %v794
    %v797 = vunpack.c.l.s4 269488144
    %v798 = vunpack.c.0.s8 %v797
    %v799 = vlaneseq
    %v800 = vshrl.u32 %v799, 7
    %v801 = vsub.s32 %v798, %v800
    %v802 = vrot.slane %v167, %v801
    %v804 = vunpack.c.l.s4 842150450
    %v805 = vunpack.c.0.s8 %v804
    %v806 = vlaneseq
    %v807 = vshrl.u32 %v806, 7
    %v808 = vsub.s32 %v805, %v807
    %v809 = vrot.slane %v167, %v808
    %v811 = vunpack.c.l.s4 1414812756
    %v812 = vunpack.c.0.s8 %v811
    %v813 = vlaneseq
    %v814 = vshrl.u32 %v813, 7
    %v815 = vsub.s32 %v812, %v814
    %v816 = vrot.slane %v167, %v815
    %v818 = vunpack.c.l.s4 1987475062
    %v819 = vunpack.c.0.s8 %v818
    %v820 = vlaneseq
    %v821 = vshrl.u32 %v820, 7
    %v822 = vsub.s32 %v819, %v821
    %v823 = vrot.slane %v167, %v822
    %v825 = vunpack.c.l.s4 269488144
    %v826 = vunpack.c.0.s8 %v825
    %v827 = vlaneseq
    %v828 = vshrl.u32 %v827, 7
    %v829 = vsub.s32 %v826, %v828
    %v830 = vrot.slane %v170, %v829
    %v832 = vunpack.c.l.s4 842150450
    %v833 = vunpack.c.0.s8 %v832
    %v834 = vlaneseq
    %v835 = vshrl.u32 %v834, 7
    %v836 = vsub.s32 %v833, %v835
    %v837 = vrot.slane %v170, %v836
    %v839 = vunpack.c.l.s4 1414812756
    %v840 = vunpack.c.0.s8 %v839
    %v841 = vlaneseq
    %v842 = vshrl.u32 %v841, 7
    %v843 = vsub.s32 %v840, %v842
    %v844 = vrot.slane %v170, %v843
    %v846 = vunpack.c.l.s4 1987475062
    %v847 = vunpack.c.0.s8 %v846
    %v848 = vlaneseq
    %v849 = vshrl.u32 %v848, 7
    %v850 = vsub.s32 %v847, %v849
    %v851 = vrot.slane %v170, %v850
    %v853 = vunpack.c.l.s4 269488144
    %v854 = vunpack.c.0.s8 %v853
    %v855 = vlaneseq
    %v856 = vshrl.u32 %v855, 7
    %v857 = vsub.s32 %v854, %v856
    %v858 = vrot.slane %v173, %v857
    %v860 = vunpack.c.l.s4 842150450
    %v861 = vunpack.c.0.s8 %v860
    %v862 = vlaneseq
    %v863 = vshrl.u32 %v862, 7
    %v864 = vsub.s32 %v861, %v863
    %v865 = vrot.slane %v173, %v864
    %v867 = vunpack.c.l.s4 1414812756
    %v868 = vunpack.c.0.s8 %v867
    %v869 = vlaneseq
    %v870 = vshrl.u32 %v869, 7
    %v871 = vsub.s32 %v868, %v870
    %v872 = vrot.slane %v173, %v871
    %v874 = vunpack.c.l.s4 1987475062
    %v875 = vunpack.c.0.s8 %v874
    %v876 = vlaneseq
    %v877 = vshrl.u32 %v876, 7
    %v878 = vsub.s32 %v875, %v877
    %v879 = vrot.slane %v173, %v878
    %v881 = vunpack.c.l.s4 269488144
    %v882 = vunpack.c.0.s8 %v881
    %v883 = vlaneseq
    %v884 = vshrl.u32 %v883, 7
    %v885 = vsub.s32 %v882, %v884
    %v886 = vrot.slane %v176, %v885
    %v888 = vunpack.c.l.s4 842150450
    %v889 = vunpack.c.0.s8 %v888
    %v890 = vlaneseq
    %v891 = vshrl.u32 %v890, 7
    %v892 = vsub.s32 %v889, %v891
    %v893 = vrot.slane %v176, %v892
    %v895 = vunpack.c.l.s4 1414812756
    %v896 = vunpack.c.0.s8 %v895
    %v897 = vlaneseq
    %v898 = vshrl.u32 %v897, 7
    %v899 = vsub.s32 %v896, %v898
    %v900 = vrot.slane %v176, %v899
    %v902 = vunpack.c.l.s4 1987475062
    %v903 = vunpack.c.0.s8 %v902
    %v904 = vlaneseq
    %v905 = vshrl.u32 %v904, 7
    %v906 = vsub.s32 %v903, %v905
    %v907 = vrot.slane %v176, %v906
    %v909 = vunpack.c.l.s4 269488144
    %v910 = vunpack.c.0.s8 %v909
    %v911 = vlaneseq
    %v912 = vshrl.u32 %v911, 7
    %v913 = vsub.s32 %v910, %v912
    %v914 = vrot.slane %v179, %v913
    %v916 = vunpack.c.l.s4 842150450
    %v917 = vunpack.c.0.s8 %v916
    %v918 = vlaneseq
    %v919 = vshrl.u32 %v918, 7
    %v920 = vsub.s32 %v917, %v919
    %v921 = vrot.slane %v179, %v920
    %v923 = vunpack.c.l.s4 1414812756
    %v924 = vunpack.c.0.s8 %v923
    %v925 = vlaneseq
    %v926 = vshrl.u32 %v925, 7
    %v927 = vsub.s32 %v924, %v926
    %v928 = vrot.slane %v179, %v927
    %v930 = vunpack.c.l.s4 1987475062
    %v931 = vunpack.c.0.s8 %v930
    %v932 = vlaneseq
    %v933 = vshrl.u32 %v932, 7
    %v934 = vsub.s32 %v931, %v933
    %v935 = vrot.slane %v179, %v934
    %v937 = vunpack.c.l.s4 269488144
    %v938 = vunpack.c.0.s8 %v937
    %v939 = vlaneseq
    %v940 = vshrl.u32 %v939, 7
    %v941 = vsub.s32 %v938, %v940
    %v942 = vrot.slane %v182, %v941
    %v944 = vunpack.c.l.s4 842150450
    %v945 = vunpack.c.0.s8 %v944
    %v946 = vlaneseq
    %v947 = vshrl.u32 %v946, 7
    %v948 = vsub.s32 %v945, %v947
    %v949 = vrot.slane %v182, %v948
    %v951 = vunpack.c.l.s4 1414812756
    %v952 = vunpack.c.0.s8 %v951
    %v953 = vlaneseq
    %v954 = vshrl.u32 %v953, 7
    %v955 = vsub.s32 %v952, %v954
    %v956 = vrot.slane %v182, %v955
    %v958 = vunpack.c.l.s4 1987475062
    %v959 = vunpack.c.0.s8 %v958
    %v960 = vlaneseq
    %v961 = vshrl.u32 %v960, 7
    %v962 = vsub.s32 %v959, %v961
    %v963 = vrot.slane %v182, %v962
    %v965 = vunpack.c.l.s4 269488144
    %v966 = vunpack.c.0.s8 %v965
    %v967 = vlaneseq
    %v968 = vshrl.u32 %v967, 7
    %v969 = vsub.s32 %v966, %v968
    %v970 = vrot.slane %v185, %v969
    %v972 = vunpack.c.l.s4 842150450
    %v973 = vunpack.c.0.s8 %v972
    %v974 = vlaneseq
    %v975 = vshrl.u32 %v974, 7
    %v976 = vsub.s32 %v973, %v975
    %v977 = vrot.slane %v185, %v976
    %v979 = vunpack.c.l.s4 1414812756
    %v980 = vunpack.c.0.s8 %v979
    %v981 = vlaneseq
    %v982 = vshrl.u32 %v981, 7
    %v983 = vsub.s32 %v980, %v982
    %v984 = vrot.slane %v185, %v983
    %v986 = vunpack.c.l.s4 1987475062
    %v987 = vunpack.c.0.s8 %v986
    %v988 = vlaneseq
    %v989 = vshrl.u32 %v988, 7
    %v990 = vsub.s32 %v987, %v989
    %v991 = vrot.slane %v185, %v990
    %v993 = vunpack.c.l.s4 269488144
    %v994 = vunpack.c.0.s8 %v993
    %v995 = vlaneseq
    %v996 = vshrl.u32 %v995, 7
    %v997 = vsub.s32 %v994, %v996
    %v998 = vrot.slane %v188, %v997
    %v1000 = vunpack.c.l.s4 842150450
    %v1001 = vunpack.c.0.s8 %v1000
    %v1002 = vlaneseq
    %v1003 = vshrl.u32 %v1002, 7
    %v1004 = vsub.s32 %v1001, %v1003
    %v1005 = vrot.slane %v188, %v1004
    %v1007 = vunpack.c.l.s4 1414812756
    %v1008 = vunpack.c.0.s8 %v1007
    %v1009 = vlaneseq
    %v1010 = vshrl.u32 %v1009, 7
    %v1011 = vsub.s32 %v1008, %v1010
    %v1012 = vrot.slane %v188, %v1011
    %v1014 = vunpack.c.l.s4 1987475062
    %v1015 = vunpack.c.0.s8 %v1014
    %v1016 = vlaneseq
    %v1017 = vshrl.u32 %v1016, 7
    %v1018 = vsub.s32 %v1015, %v1017
    %v1019 = vrot.slane %v188, %v1018
    %v1021 = vunpack.c.l.s4 269488144
    %v1022 = vunpack.c.0.s8 %v1021
    %v1023 = vlaneseq
    %v1024 = vshrl.u32 %v1023, 7
    %v1025 = vsub.s32 %v1022, %v1024
    %v1026 = vrot.slane %v191, %v1025
    %v1028 = vunpack.c.l.s4 842150450
    %v1029 = vunpack.c.0.s8 %v1028
    %v1030 = vlaneseq
    %v1031 = vshrl.u32 %v1030, 7
    %v1032 = vsub.s32 %v1029, %v1031
    %v1033 = vrot.slane %v191, %v1032
    %v1035 = vunpack.c.l.s4 1414812756
    %v1036 = vunpack.c.0.s8 %v1035
    %v1037 = vlaneseq
    %v1038 = vshrl.u32 %v1037, 7
    %v1039 = vsub.s32 %v1036, %v1038
    %v1040 = vrot.slane %v191, %v1039
    %v1042 = vunpack.c.l.s4 1987475062
    %v1043 = vunpack.c.0.s8 %v1042
    %v1044 = vlaneseq
    %v1045 = vshrl.u32 %v1044, 7
    %v1046 = vsub.s32 %v1043, %v1045
    %v1047 = vrot.slane %v191, %v1046
    %v1049 = vunpack.c.l.s4 269488144
    %v1050 = vunpack.c.0.s8 %v1049
    %v1051 = vlaneseq
    %v1052 = vshrl.u32 %v1051, 7
    %v1053 = vsub.s32 %v1050, %v1052
    %v1054 = vrot.slane %v194, %v1053
    %v1056 = vunpack.c.l.s4 842150450
    %v1057 = vunpack.c.0.s8 %v1056
    %v1058 = vlaneseq
    %v1059 = vshrl.u32 %v1058, 7
    %v1060 = vsub.s32 %v1057, %v1059
    %v1061 = vrot.slane %v194, %v1060
    %v1063 = vunpack.c.l.s4 1414812756
    %v1064 = vunpack.c.0.s8 %v1063
    %v1065 = vlaneseq
    %v1066 = vshrl.u32 %v1065, 7
    %v1067 = vsub.s32 %v1064, %v1066
    %v1068 = vrot.slane %v194, %v1067
    %v1070 = vunpack.c.l.s4 1987475062
    %v1071 = vunpack.c.0.s8 %v1070
    %v1072 = vlaneseq
    %v1073 = vshrl.u32 %v1072, 7
    %v1074 = vsub.s32 %v1071, %v1073
    %v1075 = vrot.slane %v194, %v1074
    %v1077 = vunpack.c.l.s4 269488144
    %v1078 = vunpack.c.0.s8 %v1077
    %v1079 = vlaneseq
    %v1080 = vshrl.u32 %v1079, 7
    %v1081 = vsub.s32 %v1078, %v1080
    %v1082 = vrot.slane %v197, %v1081
    %v1084 = vunpack.c.l.s4 842150450
    %v1085 = vunpack.c.0.s8 %v1084
    %v1086 = vlaneseq
    %v1087 = vshrl.u32 %v1086, 7
    %v1088 = vsub.s32 %v1085, %v1087
    %v1089 = vrot.slane %v197, %v1088
    %v1091 = vunpack.c.l.s4 1414812756
    %v1092 = vunpack.c.0.s8 %v1091
    %v1093 = vlaneseq
    %v1094 = vshrl.u32 %v1093, 7
    %v1095 = vsub.s32 %v1092, %v1094
    %v1096 = vrot.slane %v197, %v1095
    %v1098 = vunpack.c.l.s4 1987475062
    %v1099 = vunpack.c.0.s8 %v1098
    %v1100 = vlaneseq
    %v1101 = vshrl.u32 %v1100, 7
    %v1102 = vsub.s32 %v1099, %v1101
    %v1103 = vrot.slane %v197, %v1102
    %v1105 = vunpack.c.l.s4 269488144
    %v1106 = vunpack.c.0.s8 %v1105
    %v1107 = vlaneseq
    %v1108 = vshrl.u32 %v1107, 7
    %v1109 = vsub.s32 %v1106, %v1108
    %v1110 = vrot.slane %v200, %v1109
    %v1112 = vunpack.c.l.s4 842150450
    %v1113 = vunpack.c.0.s8 %v1112
    %v1114 = vlaneseq
    %v1115 = vshrl.u32 %v1114, 7
    %v1116 = vsub.s32 %v1113, %v1115
    %v1117 = vrot.slane %v200, %v1116
    %v1119 = vunpack.c.l.s4 1414812756
    %v1120 = vunpack.c.0.s8 %v1119
    %v1121 = vlaneseq
    %v1122 = vshrl.u32 %v1121, 7
    %v1123 = vsub.s32 %v1120, %v1122
    %v1124 = vrot.slane %v200, %v1123
    %v1126 = vunpack.c.l.s4 1987475062
    %v1127 = vunpack.c.0.s8 %v1126
    %v1128 = vlaneseq
    %v1129 = vshrl.u32 %v1128, 7
    %v1130 = vsub.s32 %v1127, %v1129
    %v1131 = vrot.slane %v200, %v1130
    %v1133 = vunpack.c.l.s4 269488144
    %v1134 = vunpack.c.0.s8 %v1133
    %v1135 = vlaneseq
    %v1136 = vshrl.u32 %v1135, 7
    %v1137 = vsub.s32 %v1134, %v1136
    %v1138 = vrot.slane %v203, %v1137
    %v1140 = vunpack.c.l.s4 842150450
    %v1141 = vunpack.c.0.s8 %v1140
    %v1142 = vlaneseq
    %v1143 = vshrl.u32 %v1142, 7
    %v1144 = vsub.s32 %v1141, %v1143
    %v1145 = vrot.slane %v203, %v1144
    %v1147 = vunpack.c.l.s4 1414812756
    %v1148 = vunpack.c.0.s8 %v1147
    %v1149 = vlaneseq
    %v1150 = vshrl.u32 %v1149, 7
    %v1151 = vsub.s32 %v1148, %v1150
    %v1152 = vrot.slane %v203, %v1151
    %v1154 = vunpack.c.l.s4 1987475062
    %v1155 = vunpack.c.0.s8 %v1154
    %v1156 = vlaneseq
    %v1157 = vshrl.u32 %v1156, 7
    %v1158 = vsub.s32 %v1155, %v1157
    %v1159 = vrot.slane %v203, %v1158
    %v1161 = vunpack.c.l.s4 269488144
    %v1162 = vunpack.c.0.s8 %v1161
    %v1163 = vlaneseq
    %v1164 = vshrl.u32 %v1163, 7
    %v1165 = vsub.s32 %v1162, %v1164
    %v1166 = vrot.slane %v206, %v1165
    %v1168 = vunpack.c.l.s4 842150450
    %v1169 = vunpack.c.0.s8 %v1168
    %v1170 = vlaneseq
    %v1171 = vshrl.u32 %v1170, 7
    %v1172 = vsub.s32 %v1169, %v1171
    %v1173 = vrot.slane %v206, %v1172
    %v1175 = vunpack.c.l.s4 1414812756
    %v1176 = vunpack.c.0.s8 %v1175
    %v1177 = vlaneseq
    %v1178 = vshrl.u32 %v1177, 7
    %v1179 = vsub.s32 %v1176, %v1178
    %v1180 = vrot.slane %v206, %v1179
    %v1182 = vunpack.c.l.s4 1987475062
    %v1183 = vunpack.c.0.s8 %v1182
    %v1184 = vlaneseq
    %v1185 = vshrl.u32 %v1184, 7
    %v1186 = vsub.s32 %v1183, %v1185
    %v1187 = vrot.slane %v206, %v1186
    %v1189 = vunpack.c.l.s4 269488144
    %v1190 = vunpack.c.0.s8 %v1189
    %v1191 = vlaneseq
    %v1192 = vshrl.u32 %v1191, 7
    %v1193 = vsub.s32 %v1190, %v1192
    %v1194 = vrot.slane %v209, %v1193
    %v1196 = vunpack.c.l.s4 842150450
    %v1197 = vunpack.c.0.s8 %v1196
    %v1198 = vlaneseq
    %v1199 = vshrl.u32 %v1198, 7
    %v1200 = vsub.s32 %v1197, %v1199
    %v1201 = vrot.slane %v209, %v1200
    %v1203 = vunpack.c.l.s4 1414812756
    %v1204 = vunpack.c.0.s8 %v1203
    %v1205 = vlaneseq
    %v1206 = vshrl.u32 %v1205, 7
    %v1207 = vsub.s32 %v1204, %v1206
    %v1208 = vrot.slane %v209, %v1207
    %v1210 = vunpack.c.l.s4 1987475062
    %v1211 = vunpack.c.0.s8 %v1210
    %v1212 = vlaneseq
    %v1213 = vshrl.u32 %v1212, 7
    %v1214 = vsub.s32 %v1211, %v1213
    %v1215 = vrot.slane %v209, %v1214
    %v1217 = vunpack.c.l.s4 269488144
    %v1218 = vunpack.c.0.s8 %v1217
    %v1219 = vlaneseq
    %v1220 = vshrl.u32 %v1219, 7
    %v1221 = vsub.s32 %v1218, %v1220
    %v1222 = vrot.slane %v212, %v1221
    %v1224 = vunpack.c.l.s4 842150450
    %v1225 = vunpack.c.0.s8 %v1224
    %v1226 = vlaneseq
    %v1227 = vshrl.u32 %v1226, 7
    %v1228 = vsub.s32 %v1225, %v1227
    %v1229 = vrot.slane %v212, %v1228
    %v1231 = vunpack.c.l.s4 1414812756
    %v1232 = vunpack.c.0.s8 %v1231
    %v1233 = vlaneseq
    %v1234 = vshrl.u32 %v1233, 7
    %v1235 = vsub.s32 %v1232, %v1234
    %v1236 = vrot.slane %v212, %v1235
    %v1238 = vunpack.c.l.s4 1987475062
    %v1239 = vunpack.c.0.s8 %v1238
    %v1240 = vlaneseq
    %v1241 = vshrl.u32 %v1240, 7
    %v1242 = vsub.s32 %v1239, %v1241
    %v1243 = vrot.slane %v212, %v1242
    %v1245 = vunpack.c.l.s4 269488144
    %v1246 = vunpack.c.0.s8 %v1245
    %v1247 = vlaneseq
    %v1248 = vshrl.u32 %v1247, 7
    %v1249 = vsub.s32 %v1246, %v1248
    %v1250 = vrot.slane %v215, %v1249
    %v1252 = vunpack.c.l.s4 842150450
    %v1253 = vunpack.c.0.s8 %v1252
    %v1254 = vlaneseq
    %v1255 = vshrl.u32 %v1254, 7
    %v1256 = vsub.s32 %v1253, %v1255
    %v1257 = vrot.slane %v215, %v1256
    %v1259 = vunpack.c.l.s4 1414812756
    %v1260 = vunpack.c.0.s8 %v1259
    %v1261 = vlaneseq
    %v1262 = vshrl.u32 %v1261, 7
    %v1263 = vsub.s32 %v1260, %v1262
    %v1264 = vrot.slane %v215, %v1263
    %v1266 = vunpack.c.l.s4 1987475062
    %v1267 = vunpack.c.0.s8 %v1266
    %v1268 = vlaneseq
    %v1269 = vshrl.u32 %v1268, 7
    %v1270 = vsub.s32 %v1267, %v1269
    %v1271 = vrot.slane %v215, %v1270
    %v1273 = vunpack.c.l.s4 269488144
    %v1274 = vunpack.c.0.s8 %v1273
    %v1275 = vlaneseq
    %v1276 = vshrl.u32 %v1275, 7
    %v1277 = vsub.s32 %v1274, %v1276
    %v1278 = vrot.slane %v218, %v1277
    %v1280 = vunpack.c.l.s4 842150450
    %v1281 = vunpack.c.0.s8 %v1280
    %v1282 = vlaneseq
    %v1283 = vshrl.u32 %v1282, 7
    %v1284 = vsub.s32 %v1281, %v1283
    %v1285 = vrot.slane %v218, %v1284
    %v1287 = vunpack.c.l.s4 1414812756
    %v1288 = vunpack.c.0.s8 %v1287
    %v1289 = vlaneseq
    %v1290 = vshrl.u32 %v1289, 7
    %v1291 = vsub.s32 %v1288, %v1290
    %v1292 = vrot.slane %v218, %v1291
    %v1294 = vunpack.c.l.s4 1987475062
    %v1295 = vunpack.c.0.s8 %v1294
    %v1296 = vlaneseq
    %v1297 = vshrl.u32 %v1296, 7
    %v1298 = vsub.s32 %v1295, %v1297
    %v1299 = vrot.slane %v218, %v1298
    %v1301 = vunpack.c.l.s4 269488144
    %v1302 = vunpack.c.0.s8 %v1301
    %v1303 = vlaneseq
    %v1304 = vshrl.u32 %v1303, 7
    %v1305 = vsub.s32 %v1302, %v1304
    %v1306 = vrot.slane %v221, %v1305
    %v1308 = vunpack.c.l.s4 842150450
    %v1309 = vunpack.c.0.s8 %v1308
    %v1310 = vlaneseq
    %v1311 = vshrl.u32 %v1310, 7
    %v1312 = vsub.s32 %v1309, %v1311
    %v1313 = vrot.slane %v221, %v1312
    %v1315 = vunpack.c.l.s4 1414812756
    %v1316 = vunpack.c.0.s8 %v1315
    %v1317 = vlaneseq
    %v1318 = vshrl.u32 %v1317, 7
    %v1319 = vsub.s32 %v1316, %v1318
    %v1320 = vrot.slane %v221, %v1319
    %v1322 = vunpack.c.l.s4 1987475062
    %v1323 = vunpack.c.0.s8 %v1322
    %v1324 = vlaneseq
    %v1325 = vshrl.u32 %v1324, 7
    %v1326 = vsub.s32 %v1323, %v1325
    %v1327 = vrot.slane %v221, %v1326
    %v1329 = vunpack.c.l.s4 269488144
    %v1330 = vunpack.c.0.s8 %v1329
    %v1331 = vlaneseq
    %v1332 = vshrl.u32 %v1331, 7
    %v1333 = vsub.s32 %v1330, %v1332
    %v1334 = vrot.slane %v224, %v1333
    %v1336 = vunpack.c.l.s4 842150450
    %v1337 = vunpack.c.0.s8 %v1336
    %v1338 = vlaneseq
    %v1339 = vshrl.u32 %v1338, 7
    %v1340 = vsub.s32 %v1337, %v1339
    %v1341 = vrot.slane %v224, %v1340
    %v1343 = vunpack.c.l.s4 1414812756
    %v1344 = vunpack.c.0.s8 %v1343
    %v1345 = vlaneseq
    %v1346 = vshrl.u32 %v1345, 7
    %v1347 = vsub.s32 %v1344, %v1346
    %v1348 = vrot.slane %v224, %v1347
    %v1350 = vunpack.c.l.s4 1987475062
    %v1351 = vunpack.c.0.s8 %v1350
    %v1352 = vlaneseq
    %v1353 = vshrl.u32 %v1352, 7
    %v1354 = vsub.s32 %v1351, %v1353
    %v1355 = vrot.slane %v224, %v1354
    %v1357 = vunpack.c.l.s4 269488144
    %v1358 = vunpack.c.0.s8 %v1357
    %v1359 = vlaneseq
    %v1360 = vshrl.u32 %v1359, 7
    %v1361 = vsub.s32 %v1358, %v1360
    %v1362 = vrot.slane %v227, %v1361
    %v1364 = vunpack.c.l.s4 842150450
    %v1365 = vunpack.c.0.s8 %v1364
    %v1366 = vlaneseq
    %v1367 = vshrl.u32 %v1366, 7
    %v1368 = vsub.s32 %v1365, %v1367
    %v1369 = vrot.slane %v227, %v1368
    %v1371 = vunpack.c.l.s4 1414812756
    %v1372 = vunpack.c.0.s8 %v1371
    %v1373 = vlaneseq
    %v1374 = vshrl.u32 %v1373, 7
    %v1375 = vsub.s32 %v1372, %v1374
    %v1376 = vrot.slane %v227, %v1375
    %v1378 = vunpack.c.l.s4 1987475062
    %v1379 = vunpack.c.0.s8 %v1378
    %v1380 = vlaneseq
    %v1381 = vshrl.u32 %v1380, 7
    %v1382 = vsub.s32 %v1379, %v1381
    %v1383 = vrot.slane %v227, %v1382
    %v1385 = vunpack.c.l.s4 269488144
    %v1386 = vunpack.c.0.s8 %v1385
    %v1387 = vlaneseq
    %v1388 = vshrl.u32 %v1387, 7
    %v1389 = vsub.s32 %v1386, %v1388
    %v1390 = vrot.slane %v230, %v1389
    %v1392 = vunpack.c.l.s4 842150450
    %v1393 = vunpack.c.0.s8 %v1392
    %v1394 = vlaneseq
    %v1395 = vshrl.u32 %v1394, 7
    %v1396 = vsub.s32 %v1393, %v1395
    %v1397 = vrot.slane %v230, %v1396
    %v1399 = vunpack.c.l.s4 1414812756
    %v1400 = vunpack.c.0.s8 %v1399
    %v1401 = vlaneseq
    %v1402 = vshrl.u32 %v1401, 7
    %v1403 = vsub.s32 %v1400, %v1402
    %v1404 = vrot.slane %v230, %v1403
    %v1406 = vunpack.c.l.s4 1987475062
    %v1407 = vunpack.c.0.s8 %v1406
    %v1408 = vlaneseq
    %v1409 = vshrl.u32 %v1408, 7
    %v1410 = vsub.s32 %v1407, %v1409
    %v1411 = vrot.slane %v230, %v1410
    %v1413 = vunpack.c.l.s4 269488144
    %v1414 = vunpack.c.0.s8 %v1413
    %v1415 = vlaneseq
    %v1416 = vshrl.u32 %v1415, 7
    %v1417 = vsub.s32 %v1414, %v1416
    %v1418 = vrot.slane %v233, %v1417
    %v1420 = vunpack.c.l.s4 842150450
    %v1421 = vunpack.c.0.s8 %v1420
    %v1422 = vlaneseq
    %v1423 = vshrl.u32 %v1422, 7
    %v1424 = vsub.s32 %v1421, %v1423
    %v1425 = vrot.slane %v233, %v1424
    %v1427 = vunpack.c.l.s4 1414812756
    %v1428 = vunpack.c.0.s8 %v1427
    %v1429 = vlaneseq
    %v1430 = vshrl.u32 %v1429, 7
    %v1431 = vsub.s32 %v1428, %v1430
    %v1432 = vrot.slane %v233, %v1431
    %v1434 = vunpack.c.l.s4 1987475062
    %v1435 = vunpack.c.0.s8 %v1434
    %v1436 = vlaneseq
    %v1437 = vshrl.u32 %v1436, 7
    %v1438 = vsub.s32 %v1435, %v1437
    %v1439 = vrot.slane %v233, %v1438
    %v1441 = vunpack.c.l.s4 269488144
    %v1442 = vunpack.c.0.s8 %v1441
    %v1443 = vlaneseq
    %v1444 = vshrl.u32 %v1443, 7
    %v1445 = vsub.s32 %v1442, %v1444
    %v1446 = vrot.slane %v236, %v1445
    %v1448 = vunpack.c.l.s4 842150450
    %v1449 = vunpack.c.0.s8 %v1448
    %v1450 = vlaneseq
    %v1451 = vshrl.u32 %v1450, 7
    %v1452 = vsub.s32 %v1449, %v1451
    %v1453 = vrot.slane %v236, %v1452
    %v1455 = vunpack.c.l.s4 1414812756
    %v1456 = vunpack.c.0.s8 %v1455
    %v1457 = vlaneseq
    %v1458 = vshrl.u32 %v1457, 7
    %v1459 = vsub.s32 %v1456, %v1458
    %v1460 = vrot.slane %v236, %v1459
    %v1462 = vunpack.c.l.s4 1987475062
    %v1463 = vunpack.c.0.s8 %v1462
    %v1464 = vlaneseq
    %v1465 = vshrl.u32 %v1464, 7
    %v1466 = vsub.s32 %v1463, %v1465
    %v1467 = vrot.slane %v236, %v1466
    %v1469 = vunpack.c.l.s4 269488144
    %v1470 = vunpack.c.0.s8 %v1469
    %v1471 = vlaneseq
    %v1472 = vshrl.u32 %v1471, 7
    %v1473 = vsub.s32 %v1470, %v1472
    %v1474 = vrot.slane %v239, %v1473
    %v1476 = vunpack.c.l.s4 842150450
    %v1477 = vunpack.c.0.s8 %v1476
    %v1478 = vlaneseq
    %v1479 = vshrl.u32 %v1478, 7
    %v1480 = vsub.s32 %v1477, %v1479
    %v1481 = vrot.slane %v239, %v1480
    %v1483 = vunpack.c.l.s4 1414812756
    %v1484 = vunpack.c.0.s8 %v1483
    %v1485 = vlaneseq
    %v1486 = vshrl.u32 %v1485, 7
    %v1487 = vsub.s32 %v1484, %v1486
    %v1488 = vrot.slane %v239, %v1487
    %v1490 = vunpack.c.l.s4 1987475062
    %v1491 = vunpack.c.0.s8 %v1490
    %v1492 = vlaneseq
    %v1493 = vshrl.u32 %v1492, 7
    %v1494 = vsub.s32 %v1491, %v1493
    %v1495 = vrot.slane %v239, %v1494
    %v1497 = vunpack.c.l.s4 269488144
    %v1498 = vunpack.c.0.s8 %v1497
    %v1499 = vlaneseq
    %v1500 = vshrl.u32 %v1499, 7
    %v1501 = vsub.s32 %v1498, %v1500
    %v1502 = vrot.slane %v242, %v1501
    %v1504 = vunpack.c.l.s4 842150450
    %v1505 = vunpack.c.0.s8 %v1504
    %v1506 = vlaneseq
    %v1507 = vshrl.u32 %v1506, 7
    %v1508 = vsub.s32 %v1505, %v1507
    %v1509 = vrot.slane %v242, %v1508
    %v1511 = vunpack.c.l.s4 1414812756
    %v1512 = vunpack.c.0.s8 %v1511
    %v1513 = vlaneseq
    %v1514 = vshrl.u32 %v1513, 7
    %v1515 = vsub.s32 %v1512, %v1514
    %v1516 = vrot.slane %v242, %v1515
    %v1518 = vunpack.c.l.s4 1987475062
    %v1519 = vunpack.c.0.s8 %v1518
    %v1520 = vlaneseq
    %v1521 = vshrl.u32 %v1520, 7
    %v1522 = vsub.s32 %v1519, %v1521
    %v1523 = vrot.slane %v242, %v1522
    %v1525 = vunpack.c.l.s4 269488144
    %v1526 = vunpack.c.0.s8 %v1525
    %v1527 = vlaneseq
    %v1528 = vshrl.u32 %v1527, 7
    %v1529 = vsub.s32 %v1526, %v1528
    %v1530 = vrot.slane %v245, %v1529
    %v1532 = vunpack.c.l.s4 842150450
    %v1533 = vunpack.c.0.s8 %v1532
    %v1534 = vlaneseq
    %v1535 = vshrl.u32 %v1534, 7
    %v1536 = vsub.s32 %v1533, %v1535
    %v1537 = vrot.slane %v245, %v1536
    %v1539 = vunpack.c.l.s4 1414812756
    %v1540 = vunpack.c.0.s8 %v1539
    %v1541 = vlaneseq
    %v1542 = vshrl.u32 %v1541, 7
    %v1543 = vsub.s32 %v1540, %v1542
    %v1544 = vrot.slane %v245, %v1543
    %v1546 = vunpack.c.l.s4 1987475062
    %v1547 = vunpack.c.0.s8 %v1546
    %v1548 = vlaneseq
    %v1549 = vshrl.u32 %v1548, 7
    %v1550 = vsub.s32 %v1547, %v1549
    %v1551 = vrot.slane %v245, %v1550
    %v1553 = vunpack.c.l.s4 269488144
    %v1554 = vunpack.c.0.s8 %v1553
    %v1555 = vlaneseq
    %v1556 = vshrl.u32 %v1555, 7
    %v1557 = vsub.s32 %v1554, %v1556
    %v1558 = vrot.slane %v248, %v1557
    %v1560 = vunpack.c.l.s4 842150450
    %v1561 = vunpack.c.0.s8 %v1560
    %v1562 = vlaneseq
    %v1563 = vshrl.u32 %v1562, 7
    %v1564 = vsub.s32 %v1561, %v1563
    %v1565 = vrot.slane %v248, %v1564
    %v1567 = vunpack.c.l.s4 1414812756
    %v1568 = vunpack.c.0.s8 %v1567
    %v1569 = vlaneseq
    %v1570 = vshrl.u32 %v1569, 7
    %v1571 = vsub.s32 %v1568, %v1570
    %v1572 = vrot.slane %v248, %v1571
    %v1574 = vunpack.c.l.s4 1987475062
    %v1575 = vunpack.c.0.s8 %v1574
    %v1576 = vlaneseq
    %v1577 = vshrl.u32 %v1576, 7
    %v1578 = vsub.s32 %v1575, %v1577
    %v1579 = vrot.slane %v248, %v1578
    %v1581 = vunpack.c.l.s4 269488144
    %v1582 = vunpack.c.0.s8 %v1581
    %v1583 = vlaneseq
    %v1584 = vshrl.u32 %v1583, 7
    %v1585 = vsub.s32 %v1582, %v1584
    %v1586 = vrot.slane %v251, %v1585
    %v1588 = vunpack.c.l.s4 842150450
    %v1589 = vunpack.c.0.s8 %v1588
    %v1590 = vlaneseq
    %v1591 = vshrl.u32 %v1590, 7
    %v1592 = vsub.s32 %v1589, %v1591
    %v1593 = vrot.slane %v251, %v1592
    %v1595 = vunpack.c.l.s4 1414812756
    %v1596 = vunpack.c.0.s8 %v1595
    %v1597 = vlaneseq
    %v1598 = vshrl.u32 %v1597, 7
    %v1599 = vsub.s32 %v1596, %v1598
    %v1600 = vrot.slane %v251, %v1599
    %v1602 = vunpack.c.l.s4 1987475062
    %v1603 = vunpack.c.0.s8 %v1602
    %v1604 = vlaneseq
    %v1605 = vshrl.u32 %v1604, 7
    %v1606 = vsub.s32 %v1603, %v1605
    %v1607 = vrot.slane %v251, %v1606
    %v1609 = vunpack.c.l.s4 269488144
    %v1610 = vunpack.c.0.s8 %v1609
    %v1611 = vlaneseq
    %v1612 = vshrl.u32 %v1611, 7
    %v1613 = vsub.s32 %v1610, %v1612
    %v1614 = vrot.slane %v254, %v1613
    %v1616 = vunpack.c.l.s4 842150450
    %v1617 = vunpack.c.0.s8 %v1616
    %v1618 = vlaneseq
    %v1619 = vshrl.u32 %v1618, 7
    %v1620 = vsub.s32 %v1617, %v1619
    %v1621 = vrot.slane %v254, %v1620
    %v1623 = vunpack.c.l.s4 1414812756
    %v1624 = vunpack.c.0.s8 %v1623
    %v1625 = vlaneseq
    %v1626 = vshrl.u32 %v1625, 7
    %v1627 = vsub.s32 %v1624, %v1626
    %v1628 = vrot.slane %v254, %v1627
    %v1630 = vunpack.c.l.s4 1987475062
    %v1631 = vunpack.c.0.s8 %v1630
    %v1632 = vlaneseq
    %v1633 = vshrl.u32 %v1632, 7
    %v1634 = vsub.s32 %v1631, %v1633
    %v1635 = vrot.slane %v254, %v1634
    %v1637 = vunpack.c.l.s4 269488144
    %v1638 = vunpack.c.0.s8 %v1637
    %v1639 = vlaneseq
    %v1640 = vshrl.u32 %v1639, 7
    %v1641 = vsub.s32 %v1638, %v1640
    %v1642 = vrot.slane %v257, %v1641
    %v1644 = vunpack.c.l.s4 842150450
    %v1645 = vunpack.c.0.s8 %v1644
    %v1646 = vlaneseq
    %v1647 = vshrl.u32 %v1646, 7
    %v1648 = vsub.s32 %v1645, %v1647
    %v1649 = vrot.slane %v257, %v1648
    %v1651 = vunpack.c.l.s4 1414812756
    %v1652 = vunpack.c.0.s8 %v1651
    %v1653 = vlaneseq
    %v1654 = vshrl.u32 %v1653, 7
    %v1655 = vsub.s32 %v1652, %v1654
    %v1656 = vrot.slane %v257, %v1655
    %v1658 = vunpack.c.l.s4 1987475062
    %v1659 = vunpack.c.0.s8 %v1658
    %v1660 = vlaneseq
    %v1661 = vshrl.u32 %v1660, 7
    %v1662 = vsub.s32 %v1659, %v1661
    %v1663 = vrot.slane %v257, %v1662
    %v1665 = vunpack.c.l.s4 269488144
    %v1666 = vunpack.c.0.s8 %v1665
    %v1667 = vlaneseq
    %v1668 = vshrl.u32 %v1667, 7
    %v1669 = vsub.s32 %v1666, %v1668
    %v1670 = vrot.slane %v260, %v1669
    %v1672 = vunpack.c.l.s4 842150450
    %v1673 = vunpack.c.0.s8 %v1672
    %v1674 = vlaneseq
    %v1675 = vshrl.u32 %v1674, 7
    %v1676 = vsub.s32 %v1673, %v1675
    %v1677 = vrot.slane %v260, %v1676
    %v1679 = vunpack.c.l.s4 1414812756
    %v1680 = vunpack.c.0.s8 %v1679
    %v1681 = vlaneseq
    %v1682 = vshrl.u32 %v1681, 7
    %v1683 = vsub.s32 %v1680, %v1682
    %v1684 = vrot.slane %v260, %v1683
    %v1686 = vunpack.c.l.s4 1987475062
    %v1687 = vunpack.c.0.s8 %v1686
    %v1688 = vlaneseq
    %v1689 = vshrl.u32 %v1688, 7
    %v1690 = vsub.s32 %v1687, %v1689
    %v1691 = vrot.slane %v260, %v1690
    %v1693 = vunpack.c.l.s4 269488144
    %v1694 = vunpack.c.0.s8 %v1693
    %v1695 = vlaneseq
    %v1696 = vshrl.u32 %v1695, 7
    %v1697 = vsub.s32 %v1694, %v1696
    %v1698 = vrot.slane %v263, %v1697
    %v1700 = vunpack.c.l.s4 842150450
    %v1701 = vunpack.c.0.s8 %v1700
    %v1702 = vlaneseq
    %v1703 = vshrl.u32 %v1702, 7
    %v1704 = vsub.s32 %v1701, %v1703
    %v1705 = vrot.slane %v263, %v1704
    %v1707 = vunpack.c.l.s4 1414812756
    %v1708 = vunpack.c.0.s8 %v1707
    %v1709 = vlaneseq
    %v1710 = vshrl.u32 %v1709, 7
    %v1711 = vsub.s32 %v1708, %v1710
    %v1712 = vrot.slane %v263, %v1711
    %v1714 = vunpack.c.l.s4 1987475062
    %v1715 = vunpack.c.0.s8 %v1714
    %v1716 = vlaneseq
    %v1717 = vshrl.u32 %v1716, 7
    %v1718 = vsub.s32 %v1715, %v1717
    %v1719 = vrot.slane %v263, %v1718
    %v1721 = vunpack.c.l.s4 269488144
    %v1722 = vunpack.c.0.s8 %v1721
    %v1723 = vlaneseq
    %v1724 = vshrl.u32 %v1723, 7
    %v1725 = vsub.s32 %v1722, %v1724
    %v1726 = vrot.slane %v266, %v1725
    %v1728 = vunpack.c.l.s4 842150450
    %v1729 = vunpack.c.0.s8 %v1728
    %v1730 = vlaneseq
    %v1731 = vshrl.u32 %v1730, 7
    %v1732 = vsub.s32 %v1729, %v1731
    %v1733 = vrot.slane %v266, %v1732
    %v1735 = vunpack.c.l.s4 1414812756
    %v1736 = vunpack.c.0.s8 %v1735
    %v1737 = vlaneseq
    %v1738 = vshrl.u32 %v1737, 7
    %v1739 = vsub.s32 %v1736, %v1738
    %v1740 = vrot.slane %v266, %v1739
    %v1742 = vunpack.c.l.s4 1987475062
    %v1743 = vunpack.c.0.s8 %v1742
    %v1744 = vlaneseq
    %v1745 = vshrl.u32 %v1744, 7
    %v1746 = vsub.s32 %v1743, %v1745
    %v1747 = vrot.slane %v266, %v1746
    %v1749 = vunpack.c.l.s4 269488144
    %v1750 = vunpack.c.0.s8 %v1749
    %v1751 = vlaneseq
    %v1752 = vshrl.u32 %v1751, 7
    %v1753 = vsub.s32 %v1750, %v1752
    %v1754 = vrot.slane %v269, %v1753
    %v1756 = vunpack.c.l.s4 842150450
    %v1757 = vunpack.c.0.s8 %v1756
    %v1758 = vlaneseq
    %v1759 = vshrl.u32 %v1758, 7
    %v1760 = vsub.s32 %v1757, %v1759
    %v1761 = vrot.slane %v269, %v1760
    %v1763 = vunpack.c.l.s4 1414812756
    %v1764 = vunpack.c.0.s8 %v1763
    %v1765 = vlaneseq
    %v1766 = vshrl.u32 %v1765, 7
    %v1767 = vsub.s32 %v1764, %v1766
    %v1768 = vrot.slane %v269, %v1767
    %v1770 = vunpack.c.l.s4 1987475062
    %v1771 = vunpack.c.0.s8 %v1770
    %v1772 = vlaneseq
    %v1773 = vshrl.u32 %v1772, 7
    %v1774 = vsub.s32 %v1771, %v1773
    %v1775 = vrot.slane %v269, %v1774
    %v1777 = vunpack.c.l.s4 269488144
    %v1778 = vunpack.c.0.s8 %v1777
    %v1779 = vlaneseq
    %v1780 = vshrl.u32 %v1779, 7
    %v1781 = vsub.s32 %v1778, %v1780
    %v1782 = vrot.slane %v272, %v1781
    %v1784 = vunpack.c.l.s4 842150450
    %v1785 = vunpack.c.0.s8 %v1784
    %v1786 = vlaneseq
    %v1787 = vshrl.u32 %v1786, 7
    %v1788 = vsub.s32 %v1785, %v1787
    %v1789 = vrot.slane %v272, %v1788
    %v1791 = vunpack.c.l.s4 1414812756
    %v1792 = vunpack.c.0.s8 %v1791
    %v1793 = vlaneseq
    %v1794 = vshrl.u32 %v1793, 7
    %v1795 = vsub.s32 %v1792, %v1794
    %v1796 = vrot.slane %v272, %v1795
    %v1798 = vunpack.c.l.s4 1987475062
    %v1799 = vunpack.c.0.s8 %v1798
    %v1800 = vlaneseq
    %v1801 = vshrl.u32 %v1800, 7
    %v1802 = vsub.s32 %v1799, %v1801
    %v1803 = vrot.slane %v272, %v1802
    %v1805 = vunpack.c.l.s4 269488144
    %v1806 = vunpack.c.0.s8 %v1805
    %v1807 = vlaneseq
    %v1808 = vshrl.u32 %v1807, 7
    %v1809 = vsub.s32 %v1806, %v1808
    %v1810 = vrot.slane %v275, %v1809
    %v1812 = vunpack.c.l.s4 842150450
    %v1813 = vunpack.c.0.s8 %v1812
    %v1814 = vlaneseq
    %v1815 = vshrl.u32 %v1814, 7
    %v1816 = vsub.s32 %v1813, %v1815
    %v1817 = vrot.slane %v275, %v1816
    %v1819 = vunpack.c.l.s4 1414812756
    %v1820 = vunpack.c.0.s8 %v1819
    %v1821 = vlaneseq
    %v1822 = vshrl.u32 %v1821, 7
    %v1823 = vsub.s32 %v1820, %v1822
    %v1824 = vrot.slane %v275, %v1823
    %v1826 = vunpack.c.l.s4 1987475062
    %v1827 = vunpack.c.0.s8 %v1826
    %v1828 = vlaneseq
    %v1829 = vshrl.u32 %v1828, 7
    %v1830 = vsub.s32 %v1827, %v1829
    %v1831 = vrot.slane %v275, %v1830
    %v1833 = vunpack.c.l.s4 269488144
    %v1834 = vunpack.c.0.s8 %v1833
    %v1835 = vlaneseq
    %v1836 = vshrl.u32 %v1835, 7
    %v1837 = vsub.s32 %v1834, %v1836
    %v1838 = vrot.slane %v278, %v1837
    %v1840 = vunpack.c.l.s4 842150450
    %v1841 = vunpack.c.0.s8 %v1840
    %v1842 = vlaneseq
    %v1843 = vshrl.u32 %v1842, 7
    %v1844 = vsub.s32 %v1841, %v1843
    %v1845 = vrot.slane %v278, %v1844
    %v1847 = vunpack.c.l.s4 1414812756
    %v1848 = vunpack.c.0.s8 %v1847
    %v1849 = vlaneseq
    %v1850 = vshrl.u32 %v1849, 7
    %v1851 = vsub.s32 %v1848, %v1850
    %v1852 = vrot.slane %v278, %v1851
    %v1854 = vunpack.c.l.s4 1987475062
    %v1855 = vunpack.c.0.s8 %v1854
    %v1856 = vlaneseq
    %v1857 = vshrl.u32 %v1856, 7
    %v1858 = vsub.s32 %v1855, %v1857
    %v1859 = vrot.slane %v278, %v1858
    %v1861 = vunpack.c.l.s4 269488144
    %v1862 = vunpack.c.0.s8 %v1861
    %v1863 = vlaneseq
    %v1864 = vshrl.u32 %v1863, 7
    %v1865 = vsub.s32 %v1862, %v1864
    %v1866 = vrot.slane %v281, %v1865
    %v1868 = vunpack.c.l.s4 842150450
    %v1869 = vunpack.c.0.s8 %v1868
    %v1870 = vlaneseq
    %v1871 = vshrl.u32 %v1870, 7
    %v1872 = vsub.s32 %v1869, %v1871
    %v1873 = vrot.slane %v281, %v1872
    %v1875 = vunpack.c.l.s4 1414812756
    %v1876 = vunpack.c.0.s8 %v1875
    %v1877 = vlaneseq
    %v1878 = vshrl.u32 %v1877, 7
    %v1879 = vsub.s32 %v1876, %v1878
    %v1880 = vrot.slane %v281, %v1879
    %v1882 = vunpack.c.l.s4 1987475062
    %v1883 = vunpack.c.0.s8 %v1882
    %v1884 = vlaneseq
    %v1885 = vshrl.u32 %v1884, 7
    %v1886 = vsub.s32 %v1883, %v1885
    %v1887 = vrot.slane %v281, %v1886
    %v1889 = vunpack.c.l.s4 269488144
    %v1890 = vunpack.c.0.s8 %v1889
    %v1891 = vlaneseq
    %v1892 = vshrl.u32 %v1891, 7
    %v1893 = vsub.s32 %v1890, %v1892
    %v1894 = vrot.slane %v284, %v1893
    %v1896 = vunpack.c.l.s4 842150450
    %v1897 = vunpack.c.0.s8 %v1896
    %v1898 = vlaneseq
    %v1899 = vshrl.u32 %v1898, 7
    %v1900 = vsub.s32 %v1897, %v1899
    %v1901 = vrot.slane %v284, %v1900
    %v1903 = vunpack.c.l.s4 1414812756
    %v1904 = vunpack.c.0.s8 %v1903
    %v1905 = vlaneseq
    %v1906 = vshrl.u32 %v1905, 7
    %v1907 = vsub.s32 %v1904, %v1906
    %v1908 = vrot.slane %v284, %v1907
    %v1910 = vunpack.c.l.s4 1987475062
    %v1911 = vunpack.c.0.s8 %v1910
    %v1912 = vlaneseq
    %v1913 = vshrl.u32 %v1912, 7
    %v1914 = vsub.s32 %v1911, %v1913
    %v1915 = vrot.slane %v284, %v1914
    %v1917 = vunpack.c.l.s4 269488144
    %v1918 = vunpack.c.0.s8 %v1917
    %v1919 = vlaneseq
    %v1920 = vshrl.u32 %v1919, 7
    %v1921 = vsub.s32 %v1918, %v1920
    %v1922 = vrot.slane %v287, %v1921
    %v1924 = vunpack.c.l.s4 842150450
    %v1925 = vunpack.c.0.s8 %v1924
    %v1926 = vlaneseq
    %v1927 = vshrl.u32 %v1926, 7
    %v1928 = vsub.s32 %v1925, %v1927
    %v1929 = vrot.slane %v287, %v1928
    %v1931 = vunpack.c.l.s4 1414812756
    %v1932 = vunpack.c.0.s8 %v1931
    %v1933 = vlaneseq
    %v1934 = vshrl.u32 %v1933, 7
    %v1935 = vsub.s32 %v1932, %v1934
    %v1936 = vrot.slane %v287, %v1935
    %v1938 = vunpack.c.l.s4 1987475062
    %v1939 = vunpack.c.0.s8 %v1938
    %v1940 = vlaneseq
    %v1941 = vshrl.u32 %v1940, 7
    %v1942 = vsub.s32 %v1939, %v1941
    %v1943 = vrot.slane %v287, %v1942
    %v1945 = vunpack.c.l.s4 269488144
    %v1946 = vunpack.c.0.s8 %v1945
    %v1947 = vlaneseq
    %v1948 = vshrl.u32 %v1947, 7
    %v1949 = vsub.s32 %v1946, %v1948
    %v1950 = vrot.slane %v290, %v1949
    %v1952 = vunpack.c.l.s4 842150450
    %v1953 = vunpack.c.0.s8 %v1952
    %v1954 = vlaneseq
    %v1955 = vshrl.u32 %v1954, 7
    %v1956 = vsub.s32 %v1953, %v1955
    %v1957 = vrot.slane %v290, %v1956
    %v1959 = vunpack.c.l.s4 1414812756
    %v1960 = vunpack.c.0.s8 %v1959
    %v1961 = vlaneseq
    %v1962 = vshrl.u32 %v1961, 7
    %v1963 = vsub.s32 %v1960, %v1962
    %v1964 = vrot.slane %v290, %v1963
    %v1966 = vunpack.c.l.s4 1987475062
    %v1967 = vunpack.c.0.s8 %v1966
    %v1968 = vlaneseq
    %v1969 = vshrl.u32 %v1968, 7
    %v1970 = vsub.s32 %v1967, %v1969
    %v1971 = vrot.slane %v290, %v1970
    %v1973 = vunpack.c.l.s4 269488144
    %v1974 = vunpack.c.0.s8 %v1973
    %v1975 = vlaneseq
    %v1976 = vshrl.u32 %v1975, 7
    %v1977 = vsub.s32 %v1974, %v1976
    %v1978 = vrot.slane %v293, %v1977
    %v1980 = vunpack.c.l.s4 842150450
    %v1981 = vunpack.c.0.s8 %v1980
    %v1982 = vlaneseq
    %v1983 = vshrl.u32 %v1982, 7
    %v1984 = vsub.s32 %v1981, %v1983
    %v1985 = vrot.slane %v293, %v1984
    %v1987 = vunpack.c.l.s4 1414812756
    %v1988 = vunpack.c.0.s8 %v1987
    %v1989 = vlaneseq
    %v1990 = vshrl.u32 %v1989, 7
    %v1991 = vsub.s32 %v1988, %v1990
    %v1992 = vrot.slane %v293, %v1991
    %v1994 = vunpack.c.l.s4 1987475062
    %v1995 = vunpack.c.0.s8 %v1994
    %v1996 = vlaneseq
    %v1997 = vshrl.u32 %v1996, 7
    %v1998 = vsub.s32 %v1995, %v1997
    %v1999 = vrot.slane %v293, %v1998
    %v2001 = vunpack.c.l.s4 269488144
    %v2002 = vunpack.c.0.s8 %v2001
    %v2003 = vlaneseq
    %v2004 = vshrl.u32 %v2003, 7
    %v2005 = vsub.s32 %v2002, %v2004
    %v2006 = vrot.slane %v296, %v2005
    %v2008 = vunpack.c.l.s4 842150450
    %v2009 = vunpack.c.0.s8 %v2008
    %v2010 = vlaneseq
    %v2011 = vshrl.u32 %v2010, 7
    %v2012 = vsub.s32 %v2009, %v2011
    %v2013 = vrot.slane %v296, %v2012
    %v2015 = vunpack.c.l.s4 1414812756
    %v2016 = vunpack.c.0.s8 %v2015
    %v2017 = vlaneseq
    %v2018 = vshrl.u32 %v2017, 7
    %v2019 = vsub.s32 %v2016, %v2018
    %v2020 = vrot.slane %v296, %v2019
    %v2022 = vunpack.c.l.s4 1987475062
    %v2023 = vunpack.c.0.s8 %v2022
    %v2024 = vlaneseq
    %v2025 = vshrl.u32 %v2024, 7
    %v2026 = vsub.s32 %v2023, %v2025
    %v2027 = vrot.slane %v296, %v2026
    %v2029 = vunpack.c.l.s4 269488144
    %v2030 = vunpack.c.0.s8 %v2029
    %v2031 = vlaneseq
    %v2032 = vshrl.u32 %v2031, 7
    %v2033 = vsub.s32 %v2030, %v2032
    %v2034 = vrot.slane %v299, %v2033
    %v2036 = vunpack.c.l.s4 842150450
    %v2037 = vunpack.c.0.s8 %v2036
    %v2038 = vlaneseq
    %v2039 = vshrl.u32 %v2038, 7
    %v2040 = vsub.s32 %v2037, %v2039
    %v2041 = vrot.slane %v299, %v2040
    %v2043 = vunpack.c.l.s4 1414812756
    %v2044 = vunpack.c.0.s8 %v2043
    %v2045 = vlaneseq
    %v2046 = vshrl.u32 %v2045, 7
    %v2047 = vsub.s32 %v2044, %v2046
    %v2048 = vrot.slane %v299, %v2047
    %v2050 = vunpack.c.l.s4 1987475062
    %v2051 = vunpack.c.0.s8 %v2050
    %v2052 = vlaneseq
    %v2053 = vshrl.u32 %v2052, 7
    %v2054 = vsub.s32 %v2051, %v2053
    %v2055 = vrot.slane %v299, %v2054
    %v2057 = vunpack.c.l.s4 269488144
    %v2058 = vunpack.c.0.s8 %v2057
    %v2059 = vlaneseq
    %v2060 = vshrl.u32 %v2059, 7
    %v2061 = vsub.s32 %v2058, %v2060
    %v2062 = vrot.slane %v302, %v2061
    %v2064 = vunpack.c.l.s4 842150450
    %v2065 = vunpack.c.0.s8 %v2064
    %v2066 = vlaneseq
    %v2067 = vshrl.u32 %v2066, 7
    %v2068 = vsub.s32 %v2065, %v2067
    %v2069 = vrot.slane %v302, %v2068
    %v2071 = vunpack.c.l.s4 1414812756
    %v2072 = vunpack.c.0.s8 %v2071
    %v2073 = vlaneseq
    %v2074 = vshrl.u32 %v2073, 7
    %v2075 = vsub.s32 %v2072, %v2074
    %v2076 = vrot.slane %v302, %v2075
    %v2078 = vunpack.c.l.s4 1987475062
    %v2079 = vunpack.c.0.s8 %v2078
    %v2080 = vlaneseq
    %v2081 = vshrl.u32 %v2080, 7
    %v2082 = vsub.s32 %v2079, %v2081
    %v2083 = vrot.slane %v302, %v2082
    %v2085 = vunpack.c.l.s4 269488144
    %v2086 = vunpack.c.0.s8 %v2085
    %v2087 = vlaneseq
    %v2088 = vshrl.u32 %v2087, 7
    %v2089 = vsub.s32 %v2086, %v2088
    %v2090 = vrot.slane %v305, %v2089
    %v2092 = vunpack.c.l.s4 842150450
    %v2093 = vunpack.c.0.s8 %v2092
    %v2094 = vlaneseq
    %v2095 = vshrl.u32 %v2094, 7
    %v2096 = vsub.s32 %v2093, %v2095
    %v2097 = vrot.slane %v305, %v2096
    %v2099 = vunpack.c.l.s4 1414812756
    %v2100 = vunpack.c.0.s8 %v2099
    %v2101 = vlaneseq
    %v2102 = vshrl.u32 %v2101, 7
    %v2103 = vsub.s32 %v2100, %v2102
    %v2104 = vrot.slane %v305, %v2103
    %v2106 = vunpack.c.l.s4 1987475062
    %v2107 = vunpack.c.0.s8 %v2106
    %v2108 = vlaneseq
    %v2109 = vshrl.u32 %v2108, 7
    %v2110 = vsub.s32 %v2107, %v2109
    %v2111 = vrot.slane %v305, %v2110
    %v2113 = vunpack.c.l.s4 269488144
    %v2114 = vunpack.c.0.s8 %v2113
    %v2115 = vlaneseq
    %v2116 = vshrl.u32 %v2115, 7
    %v2117 = vsub.s32 %v2114, %v2116
    %v2118 = vrot.slane %v308, %v2117
    %v2120 = vunpack.c.l.s4 842150450
    %v2121 = vunpack.c.0.s8 %v2120
    %v2122 = vlaneseq
    %v2123 = vshrl.u32 %v2122, 7
    %v2124 = vsub.s32 %v2121, %v2123
    %v2125 = vrot.slane %v308, %v2124
    %v2127 = vunpack.c.l.s4 1414812756
    %v2128 = vunpack.c.0.s8 %v2127
    %v2129 = vlaneseq
    %v2130 = vshrl.u32 %v2129, 7
    %v2131 = vsub.s32 %v2128, %v2130
    %v2132 = vrot.slane %v308, %v2131
    %v2134 = vunpack.c.l.s4 1987475062
    %v2135 = vunpack.c.0.s8 %v2134
    %v2136 = vlaneseq
    %v2137 = vshrl.u32 %v2136, 7
    %v2138 = vsub.s32 %v2135, %v2137
    %v2139 = vrot.slane %v308, %v2138
    %v2141 = vunpack.c.l.s4 269488144
    %v2142 = vunpack.c.0.s8 %v2141
    %v2143 = vlaneseq
    %v2144 = vshrl.u32 %v2143, 7
    %v2145 = vsub.s32 %v2142, %v2144
    %v2146 = vrot.slane %v311, %v2145
    %v2148 = vunpack.c.l.s4 842150450
    %v2149 = vunpack.c.0.s8 %v2148
    %v2150 = vlaneseq
    %v2151 = vshrl.u32 %v2150, 7
    %v2152 = vsub.s32 %v2149, %v2151
    %v2153 = vrot.slane %v311, %v2152
    %v2155 = vunpack.c.l.s4 1414812756
    %v2156 = vunpack.c.0.s8 %v2155
    %v2157 = vlaneseq
    %v2158 = vshrl.u32 %v2157, 7
    %v2159 = vsub.s32 %v2156, %v2158
    %v2160 = vrot.slane %v311, %v2159
    %v2162 = vunpack.c.l.s4 1987475062
    %v2163 = vunpack.c.0.s8 %v2162
    %v2164 = vlaneseq
    %v2165 = vshrl.u32 %v2164, 7
    %v2166 = vsub.s32 %v2163, %v2165
    %v2167 = vrot.slane %v311, %v2166
    %v2168 = vcombine.low %v382, %v389
    %v2169 = vcombine.low %v396, %v403
    %v2171 = vunpack.c.l.s4 1983009808
    %v2172 = vunpack.c.0.s8 %v2171
    %v2173 = vlaneseq
    %v2174 = vshrl.u32 %v2173, 7
    %v2175 = vsub.s32 %v2172, %v2174
    %v2176 = vrot.slane %v2168, %v2175
    %v2178 = vunpack.c.l.s4 1983009808
    %v2179 = vunpack.c.0.s8 %v2178
    %v2180 = vlaneseq
    %v2181 = vshrl.u32 %v2180, 7
    %v2182 = vsub.s32 %v2179, %v2181
    %v2183 = vrot.slane %v2169, %v2182
    %v2184 = vcombine.low %v2176, %v2183
    %v2185 = vcombine.low %v410, %v417
    %v2186 = vcombine.low %v424, %v431
    %v2188 = vunpack.c.l.s4 1983009808
    %v2189 = vunpack.c.0.s8 %v2188
    %v2190 = vlaneseq
    %v2191 = vshrl.u32 %v2190, 7
    %v2192 = vsub.s32 %v2189, %v2191
    %v2193 = vrot.slane %v2185, %v2192
    %v2195 = vunpack.c.l.s4 1983009808
    %v2196 = vunpack.c.0.s8 %v2195
    %v2197 = vlaneseq
    %v2198 = vshrl.u32 %v2197, 7
    %v2199 = vsub.s32 %v2196, %v2198
    %v2200 = vrot.slane %v2186, %v2199
    %v2201 = vcombine.low %v2193, %v2200
    %v2202 = vcombine.low %v438, %v445
    %v2203 = vcombine.low %v452, %v459
    %v2205 = vunpack.c.l.s4 1983009808
    %v2206 = vunpack.c.0.s8 %v2205
    %v2207 = vlaneseq
    %v2208 = vshrl.u32 %v2207, 7
    %v2209 = vsub.s32 %v2206, %v2208
    %v2210 = vrot.slane %v2202, %v2209
    %v2212 = vunpack.c.l.s4 1983009808
    %v2213 = vunpack.c.0.s8 %v2212
    %v2214 = vlaneseq
    %v2215 = vshrl.u32 %v2214, 7
    %v2216 = vsub.s32 %v2213, %v2215
    %v2217 = vrot.slane %v2203, %v2216
    %v2218 = vcombine.low %v2210, %v2217
    %v2219 = vcombine.low %v466, %v473
    %v2220 = vcombine.low %v480, %v487
    %v2222 = vunpack.c.l.s4 1983009808
    %v2223 = vunpack.c.0.s8 %v2222
    %v2224 = vlaneseq
    %v2225 = vshrl.u32 %v2224, 7
    %v2226 = vsub.s32 %v2223, %v2225
    %v2227 = vrot.slane %v2219, %v2226
    %v2229 = vunpack.c.l.s4 1983009808
    %v2230 = vunpack.c.0.s8 %v2229
    %v2231 = vlaneseq
    %v2232 = vshrl.u32 %v2231, 7
    %v2233 = vsub.s32 %v2230, %v2232
    %v2234 = vrot.slane %v2220, %v2233
    %v2235 = vcombine.low %v2227, %v2234
    %v2236 = vcombine.low %v494, %v501
    %v2237 = vcombine.low %v508, %v515
    %v2239 = vunpack.c.l.s4 1983009808
    %v2240 = vunpack.c.0.s8 %v2239
    %v2241 = vlaneseq
    %v2242 = vshrl.u32 %v2241, 7
    %v2243 = vsub.s32 %v2240, %v2242
    %v2244 = vrot.slane %v2236, %v2243
    %v2246 = vunpack.c.l.s4 1983009808
    %v2247 = vunpack.c.0.s8 %v2246
    %v2248 = vlaneseq
    %v2249 = vshrl.u32 %v2248, 7
    %v2250 = vsub.s32 %v2247, %v2249
    %v2251 = vrot.slane %v2237, %v2250
    %v2252 = vcombine.low %v2244, %v2251
    %v2253 = vcombine.low %v522, %v529
    %v2254 = vcombine.low %v536, %v543
    %v2256 = vunpack.c.l.s4 1983009808
    %v2257 = vunpack.c.0.s8 %v2256
    %v2258 = vlaneseq
    %v2259 = vshrl.u32 %v2258, 7
    %v2260 = vsub.s32 %v2257, %v2259
    %v2261 = vrot.slane %v2253, %v2260
    %v2263 = vunpack.c.l.s4 1983009808
    %v2264 = vunpack.c.0.s8 %v2263
    %v2265 = vlaneseq
    %v2266 = vshrl.u32 %v2265, 7
    %v2267 = vsub.s32 %v2264, %v2266
    %v2268 = vrot.slane %v2254, %v2267
    %v2269 = vcombine.low %v2261, %v2268
    %v2270 = vcombine.low %v550, %v557
    %v2271 = vcombine.low %v564, %v571
    %v2273 = vunpack.c.l.s4 1983009808
    %v2274 = vunpack.c.0.s8 %v2273
    %v2275 = vlaneseq
    %v2276 = vshrl.u32 %v2275, 7
    %v2277 = vsub.s32 %v2274, %v2276
    %v2278 = vrot.slane %v2270, %v2277
    %v2280 = vunpack.c.l.s4 1983009808
    %v2281 = vunpack.c.0.s8 %v2280
    %v2282 = vlaneseq
    %v2283 = vshrl.u32 %v2282, 7
    %v2284 = vsub.s32 %v2281, %v2283
    %v2285 = vrot.slane %v2271, %v2284
    %v2286 = vcombine.low %v2278, %v2285
    %v2287 = vcombine.low %v578, %v585
    %v2288 = vcombine.low %v592, %v599
    %v2290 = vunpack.c.l.s4 1983009808
    %v2291 = vunpack.c.0.s8 %v2290
    %v2292 = vlaneseq
    %v2293 = vshrl.u32 %v2292, 7
    %v2294 = vsub.s32 %v2291, %v2293
    %v2295 = vrot.slane %v2287, %v2294
    %v2297 = vunpack.c.l.s4 1983009808
    %v2298 = vunpack.c.0.s8 %v2297
    %v2299 = vlaneseq
    %v2300 = vshrl.u32 %v2299, 7
    %v2301 = vsub.s32 %v2298, %v2300
    %v2302 = vrot.slane %v2288, %v2301
    %v2303 = vcombine.low %v2295, %v2302
    %v2304 = vcombine.low %v606, %v613
    %v2305 = vcombine.low %v620, %v627
    %v2307 = vunpack.c.l.s4 1983009808
    %v2308 = vunpack.c.0.s8 %v2307
    %v2309 = vlaneseq
    %v2310 = vshrl.u32 %v2309, 7
    %v2311 = vsub.s32 %v2308, %v2310
    %v2312 = vrot.slane %v2304, %v2311
    %v2314 = vunpack.c.l.s4 1983009808
    %v2315 = vunpack.c.0.s8 %v2314
    %v2316 = vlaneseq
    %v2317 = vshrl.u32 %v2316, 7
    %v2318 = vsub.s32 %v2315, %v2317
    %v2319 = vrot.slane %v2305, %v2318
    %v2320 = vcombine.low %v2312, %v2319
    %v2321 = vcombine.low %v634, %v641
    %v2322 = vcombine.low %v648, %v655
    %v2324 = vunpack.c.l.s4 1983009808
    %v2325 = vunpack.c.0.s8 %v2324
    %v2326 = vlaneseq
    %v2327 = vshrl.u32 %v2326, 7
    %v2328 = vsub.s32 %v2325, %v2327
    %v2329 = vrot.slane %v2321, %v2328
    %v2331 = vunpack.c.l.s4 1983009808
    %v2332 = vunpack.c.0.s8 %v2331
    %v2333 = vlaneseq
    %v2334 = vshrl.u32 %v2333, 7
    %v2335 = vsub.s32 %v2332, %v2334
    %v2336 = vrot.slane %v2322, %v2335
    %v2337 = vcombine.low %v2329, %v2336
    %v2338 = vcombine.low %v662, %v669
    %v2339 = vcombine.low %v676, %v683
    %v2341 = vunpack.c.l.s4 1983009808
    %v2342 = vunpack.c.0.s8 %v2341
    %v2343 = vlaneseq
    %v2344 = vshrl.u32 %v2343, 7
    %v2345 = vsub.s32 %v2342, %v2344
    %v2346 = vrot.slane %v2338, %v2345
    %v2348 = vunpack.c.l.s4 1983009808
    %v2349 = vunpack.c.0.s8 %v2348
    %v2350 = vlaneseq
    %v2351 = vshrl.u32 %v2350, 7
    %v2352 = vsub.s32 %v2349, %v2351
    %v2353 = vrot.slane %v2339, %v2352
    %v2354 = vcombine.low %v2346, %v2353
    %v2355 = vcombine.low %v690, %v697
    %v2356 = vcombine.low %v704, %v711
    %v2358 = vunpack.c.l.s4 1983009808
    %v2359 = vunpack.c.0.s8 %v2358
    %v2360 = vlaneseq
    %v2361 = vshrl.u32 %v2360, 7
    %v2362 = vsub.s32 %v2359, %v2361
    %v2363 = vrot.slane %v2355, %v2362
    %v2365 = vunpack.c.l.s4 1983009808
    %v2366 = vunpack.c.0.s8 %v2365
    %v2367 = vlaneseq
    %v2368 = vshrl.u32 %v2367, 7
    %v2369 = vsub.s32 %v2366, %v2368
    %v2370 = vrot.slane %v2356, %v2369
    %v2371 = vcombine.low %v2363, %v2370
    %v2372 = vcombine.low %v718, %v725
    %v2373 = vcombine.low %v732, %v739
    %v2375 = vunpack.c.l.s4 1983009808
    %v2376 = vunpack.c.0.s8 %v2375
    %v2377 = vlaneseq
    %v2378 = vshrl.u32 %v2377, 7
    %v2379 = vsub.s32 %v2376, %v2378
    %v2380 = vrot.slane %v2372, %v2379
    %v2382 = vunpack.c.l.s4 1983009808
    %v2383 = vunpack.c.0.s8 %v2382
    %v2384 = vlaneseq
    %v2385 = vshrl.u32 %v2384, 7
    %v2386 = vsub.s32 %v2383, %v2385
    %v2387 = vrot.slane %v2373, %v2386
    %v2388 = vcombine.low %v2380, %v2387
    %v2389 = vcombine.low %v746, %v753
    %v2390 = vcombine.low %v760, %v767
    %v2392 = vunpack.c.l.s4 1983009808
    %v2393 = vunpack.c.0.s8 %v2392
    %v2394 = vlaneseq
    %v2395 = vshrl.u32 %v2394, 7
    %v2396 = vsub.s32 %v2393, %v2395
    %v2397 = vrot.slane %v2389, %v2396
    %v2399 = vunpack.c.l.s4 1983009808
    %v2400 = vunpack.c.0.s8 %v2399
    %v2401 = vlaneseq
    %v2402 = vshrl.u32 %v2401, 7
    %v2403 = vsub.s32 %v2400, %v2402
    %v2404 = vrot.slane %v2390, %v2403
    %v2405 = vcombine.low %v2397, %v2404
    %v2406 = vcombine.low %v774, %v781
    %v2407 = vcombine.low %v788, %v795
    %v2409 = vunpack.c.l.s4 1983009808
    %v2410 = vunpack.c.0.s8 %v2409
    %v2411 = vlaneseq
    %v2412 = vshrl.u32 %v2411, 7
    %v2413 = vsub.s32 %v2410, %v2412
    %v2414 = vrot.slane %v2406, %v2413
    %v2416 = vunpack.c.l.s4 1983009808
    %v2417 = vunpack.c.0.s8 %v2416
    %v2418 = vlaneseq
    %v2419 = vshrl.u32 %v2418, 7
    %v2420 = vsub.s32 %v2417, %v2419
    %v2421 = vrot.slane %v2407, %v2420
    %v2422 = vcombine.low %v2414, %v2421
    %v2423 = vcombine.low %v802, %v809
    %v2424 = vcombine.low %v816, %v823
    %v2426 = vunpack.c.l.s4 1983009808
    %v2427 = vunpack.c.0.s8 %v2426
    %v2428 = vlaneseq
    %v2429 = vshrl.u32 %v2428, 7
    %v2430 = vsub.s32 %v2427, %v2429
    %v2431 = vrot.slane %v2423, %v2430
    %v2433 = vunpack.c.l.s4 1983009808
    %v2434 = vunpack.c.0.s8 %v2433
    %v2435 = vlaneseq
    %v2436 = vshrl.u32 %v2435, 7
    %v2437 = vsub.s32 %v2434, %v2436
    %v2438 = vrot.slane %v2424, %v2437
    %v2439 = vcombine.low %v2431, %v2438
    %v2440 = vcombine.low %v830, %v837
    %v2441 = vcombine.low %v844, %v851
    %v2443 = vunpack.c.l.s4 1983009808
    %v2444 = vunpack.c.0.s8 %v2443
    %v2445 = vlaneseq
    %v2446 = vshrl.u32 %v2445, 7
    %v2447 = vsub.s32 %v2444, %v2446
    %v2448 = vrot.slane %v2440, %v2447
    %v2450 = vunpack.c.l.s4 1983009808
    %v2451 = vunpack.c.0.s8 %v2450
    %v2452 = vlaneseq
    %v2453 = vshrl.u32 %v2452, 7
    %v2454 = vsub.s32 %v2451, %v2453
    %v2455 = vrot.slane %v2441, %v2454
    %v2456 = vcombine.low %v2448, %v2455
    %v2457 = vcombine.low %v858, %v865
    %v2458 = vcombine.low %v872, %v879
    %v2460 = vunpack.c.l.s4 1983009808
    %v2461 = vunpack.c.0.s8 %v2460
    %v2462 = vlaneseq
    %v2463 = vshrl.u32 %v2462, 7
    %v2464 = vsub.s32 %v2461, %v2463
    %v2465 = vrot.slane %v2457, %v2464
    %v2467 = vunpack.c.l.s4 1983009808
    %v2468 = vunpack.c.0.s8 %v2467
    %v2469 = vlaneseq
    %v2470 = vshrl.u32 %v2469, 7
    %v2471 = vsub.s32 %v2468, %v2470
    %v2472 = vrot.slane %v2458, %v2471
    %v2473 = vcombine.low %v2465, %v2472
    %v2474 = vcombine.low %v886, %v893
    %v2475 = vcombine.low %v900, %v907
    %v2477 = vunpack.c.l.s4 1983009808
    %v2478 = vunpack.c.0.s8 %v2477
    %v2479 = vlaneseq
    %v2480 = vshrl.u32 %v2479, 7
    %v2481 = vsub.s32 %v2478, %v2480
    %v2482 = vrot.slane %v2474, %v2481
    %v2484 = vunpack.c.l.s4 1983009808
    %v2485 = vunpack.c.0.s8 %v2484
    %v2486 = vlaneseq
    %v2487 = vshrl.u32 %v2486, 7
    %v2488 = vsub.s32 %v2485, %v2487
    %v2489 = vrot.slane %v2475, %v2488
    %v2490 = vcombine.low %v2482, %v2489
    %v2491 = vcombine.low %v914, %v921
    %v2492 = vcombine.low %v928, %v935
    %v2494 = vunpack.c.l.s4 1983009808
    %v2495 = vunpack.c.0.s8 %v2494
    %v2496 = vlaneseq
    %v2497 = vshrl.u32 %v2496, 7
    %v2498 = vsub.s32 %v2495, %v2497
    %v2499 = vrot.slane %v2491, %v2498
    %v2501 = vunpack.c.l.s4 1983009808
    %v2502 = vunpack.c.0.s8 %v2501
    %v2503 = vlaneseq
    %v2504 = vshrl.u32 %v2503, 7
    %v2505 = vsub.s32 %v2502, %v2504
    %v2506 = vrot.slane %v2492, %v2505
    %v2507 = vcombine.low %v2499, %v2506
    %v2508 = vcombine.low %v942, %v949
    %v2509 = vcombine.low %v956, %v963
    %v2511 = vunpack.c.l.s4 1983009808
    %v2512 = vunpack.c.0.s8 %v2511
    %v2513 = vlaneseq
    %v2514 = vshrl.u32 %v2513, 7
    %v2515 = vsub.s32 %v2512, %v2514
    %v2516 = vrot.slane %v2508, %v2515
    %v2518 = vunpack.c.l.s4 1983009808
    %v2519 = vunpack.c.0.s8 %v2518
    %v2520 = vlaneseq
    %v2521 = vshrl.u32 %v2520, 7
    %v2522 = vsub.s32 %v2519, %v2521
    %v2523 = vrot.slane %v2509, %v2522
    %v2524 = vcombine.low %v2516, %v2523
    %v2525 = vcombine.low %v970, %v977
    %v2526 = vcombine.low %v984, %v991
    %v2528 = vunpack.c.l.s4 1983009808
    %v2529 = vunpack.c.0.s8 %v2528
    %v2530 = vlaneseq
    %v2531 = vshrl.u32 %v2530, 7
    %v2532 = vsub.s32 %v2529, %v2531
    %v2533 = vrot.slane %v2525, %v2532
    %v2535 = vunpack.c.l.s4 1983009808
    %v2536 = vunpack.c.0.s8 %v2535
    %v2537 = vlaneseq
    %v2538 = vshrl.u32 %v2537, 7
    %v2539 = vsub.s32 %v2536, %v2538
    %v2540 = vrot.slane %v2526, %v2539
    %v2541 = vcombine.low %v2533, %v2540
    %v2542 = vcombine.low %v998, %v1005
    %v2543 = vcombine.low %v1012, %v1019
    %v2545 = vunpack.c.l.s4 1983009808
    %v2546 = vunpack.c.0.s8 %v2545
    %v2547 = vlaneseq
    %v2548 = vshrl.u32 %v2547, 7
    %v2549 = vsub.s32 %v2546, %v2548
    %v2550 = vrot.slane %v2542, %v2549
    %v2552 = vunpack.c.l.s4 1983009808
    %v2553 = vunpack.c.0.s8 %v2552
    %v2554 = vlaneseq
    %v2555 = vshrl.u32 %v2554, 7
    %v2556 = vsub.s32 %v2553, %v2555
    %v2557 = vrot.slane %v2543, %v2556
    %v2558 = vcombine.low %v2550, %v2557
    %v2559 = vcombine.low %v1026, %v1033
    %v2560 = vcombine.low %v1040, %v1047
    %v2562 = vunpack.c.l.s4 1983009808
    %v2563 = vunpack.c.0.s8 %v2562
    %v2564 = vlaneseq
    %v2565 = vshrl.u32 %v2564, 7
    %v2566 = vsub.s32 %v2563, %v2565
    %v2567 = vrot.slane %v2559, %v2566
    %v2569 = vunpack.c.l.s4 1983009808
    %v2570 = vunpack.c.0.s8 %v2569
    %v2571 = vlaneseq
    %v2572 = vshrl.u32 %v2571, 7
    %v2573 = vsub.s32 %v2570, %v2572
    %v2574 = vrot.slane %v2560, %v2573
    %v2575 = vcombine.low %v2567, %v2574
    %v2576 = vcombine.low %v1054, %v1061
    %v2577 = vcombine.low %v1068, %v1075
    %v2579 = vunpack.c.l.s4 1983009808
    %v2580 = vunpack.c.0.s8 %v2579
    %v2581 = vlaneseq
    %v2582 = vshrl.u32 %v2581, 7
    %v2583 = vsub.s32 %v2580, %v2582
    %v2584 = vrot.slane %v2576, %v2583
    %v2586 = vunpack.c.l.s4 1983009808
    %v2587 = vunpack.c.0.s8 %v2586
    %v2588 = vlaneseq
    %v2589 = vshrl.u32 %v2588, 7
    %v2590 = vsub.s32 %v2587, %v2589
    %v2591 = vrot.slane %v2577, %v2590
    %v2592 = vcombine.low %v2584, %v2591
    %v2593 = vcombine.low %v1082, %v1089
    %v2594 = vcombine.low %v1096, %v1103
    %v2596 = vunpack.c.l.s4 1983009808
    %v2597 = vunpack.c.0.s8 %v2596
    %v2598 = vlaneseq
    %v2599 = vshrl.u32 %v2598, 7
    %v2600 = vsub.s32 %v2597, %v2599
    %v2601 = vrot.slane %v2593, %v2600
    %v2603 = vunpack.c.l.s4 1983009808
    %v2604 = vunpack.c.0.s8 %v2603
    %v2605 = vlaneseq
    %v2606 = vshrl.u32 %v2605, 7
    %v2607 = vsub.s32 %v2604, %v2606
    %v2608 = vrot.slane %v2594, %v2607
    %v2609 = vcombine.low %v2601, %v2608
    %v2610 = vcombine.low %v1110, %v1117
    %v2611 = vcombine.low %v1124, %v1131
    %v2613 = vunpack.c.l.s4 1983009808
    %v2614 = vunpack.c.0.s8 %v2613
    %v2615 = vlaneseq
    %v2616 = vshrl.u32 %v2615, 7
    %v2617 = vsub.s32 %v2614, %v2616
    %v2618 = vrot.slane %v2610, %v2617
    %v2620 = vunpack.c.l.s4 1983009808
    %v2621 = vunpack.c.0.s8 %v2620
    %v2622 = vlaneseq
    %v2623 = vshrl.u32 %v2622, 7
    %v2624 = vsub.s32 %v2621, %v2623
    %v2625 = vrot.slane %v2611, %v2624
    %v2626 = vcombine.low %v2618, %v2625
    %v2627 = vcombine.low %v1138, %v1145
    %v2628 = vcombine.low %v1152, %v1159
    %v2630 = vunpack.c.l.s4 1983009808
    %v2631 = vunpack.c.0.s8 %v2630
    %v2632 = vlaneseq
    %v2633 = vshrl.u32 %v2632, 7
    %v2634 = vsub.s32 %v2631, %v2633
    %v2635 = vrot.slane %v2627, %v2634
    %v2637 = vunpack.c.l.s4 1983009808
    %v2638 = vunpack.c.0.s8 %v2637
    %v2639 = vlaneseq
    %v2640 = vshrl.u32 %v2639, 7
    %v2641 = vsub.s32 %v2638, %v2640
    %v2642 = vrot.slane %v2628, %v2641
    %v2643 = vcombine.low %v2635, %v2642
    %v2644 = vcombine.low %v1166, %v1173
    %v2645 = vcombine.low %v1180, %v1187
    %v2647 = vunpack.c.l.s4 1983009808
    %v2648 = vunpack.c.0.s8 %v2647
    %v2649 = vlaneseq
    %v2650 = vshrl.u32 %v2649, 7
    %v2651 = vsub.s32 %v2648, %v2650
    %v2652 = vrot.slane %v2644, %v2651
    %v2654 = vunpack.c.l.s4 1983009808
    %v2655 = vunpack.c.0.s8 %v2654
    %v2656 = vlaneseq
    %v2657 = vshrl.u32 %v2656, 7
    %v2658 = vsub.s32 %v2655, %v2657
    %v2659 = vrot.slane %v2645, %v2658
    %v2660 = vcombine.low %v2652, %v2659
    %v2661 = vcombine.low %v1194, %v1201
    %v2662 = vcombine.low %v1208, %v1215
    %v2664 = vunpack.c.l.s4 1983009808
    %v2665 = vunpack.c.0.s8 %v2664
    %v2666 = vlaneseq
    %v2667 = vshrl.u32 %v2666, 7
    %v2668 = vsub.s32 %v2665, %v2667
    %v2669 = vrot.slane %v2661, %v2668
    %v2671 = vunpack.c.l.s4 1983009808
    %v2672 = vunpack.c.0.s8 %v2671
    %v2673 = vlaneseq
    %v2674 = vshrl.u32 %v2673, 7
    %v2675 = vsub.s32 %v2672, %v2674
    %v2676 = vrot.slane %v2662, %v2675
    %v2677 = vcombine.low %v2669, %v2676
    %v2678 = vcombine.low %v1222, %v1229
    %v2679 = vcombine.low %v1236, %v1243
    %v2681 = vunpack.c.l.s4 1983009808
    %v2682 = vunpack.c.0.s8 %v2681
    %v2683 = vlaneseq
    %v2684 = vshrl.u32 %v2683, 7
    %v2685 = vsub.s32 %v2682, %v2684
    %v2686 = vrot.slane %v2678, %v2685
    %v2688 = vunpack.c.l.s4 1983009808
    %v2689 = vunpack.c.0.s8 %v2688
    %v2690 = vlaneseq
    %v2691 = vshrl.u32 %v2690, 7
    %v2692 = vsub.s32 %v2689, %v2691
    %v2693 = vrot.slane %v2679, %v2692
    %v2694 = vcombine.low %v2686, %v2693
    %v2695 = vcombine.low %v1250, %v1257
    %v2696 = vcombine.low %v1264, %v1271
    %v2698 = vunpack.c.l.s4 1983009808
    %v2699 = vunpack.c.0.s8 %v2698
    %v2700 = vlaneseq
    %v2701 = vshrl.u32 %v2700, 7
    %v2702 = vsub.s32 %v2699, %v2701
    %v2703 = vrot.slane %v2695, %v2702
    %v2705 = vunpack.c.l.s4 1983009808
    %v2706 = vunpack.c.0.s8 %v2705
    %v2707 = vlaneseq
    %v2708 = vshrl.u32 %v2707, 7
    %v2709 = vsub.s32 %v2706, %v2708
    %v2710 = vrot.slane %v2696, %v2709
    %v2711 = vcombine.low %v2703, %v2710
    %v2712 = vcombine.low %v1278, %v1285
    %v2713 = vcombine.low %v1292, %v1299
    %v2715 = vunpack.c.l.s4 1983009808
    %v2716 = vunpack.c.0.s8 %v2715
    %v2717 = vlaneseq
    %v2718 = vshrl.u32 %v2717, 7
    %v2719 = vsub.s32 %v2716, %v2718
    %v2720 = vrot.slane %v2712, %v2719
    %v2722 = vunpack.c.l.s4 1983009808
    %v2723 = vunpack.c.0.s8 %v2722
    %v2724 = vlaneseq
    %v2725 = vshrl.u32 %v2724, 7
    %v2726 = vsub.s32 %v2723, %v2725
    %v2727 = vrot.slane %v2713, %v2726
    %v2728 = vcombine.low %v2720, %v2727
    %v2729 = vcombine.low %v1306, %v1313
    %v2730 = vcombine.low %v1320, %v1327
    %v2732 = vunpack.c.l.s4 1983009808
    %v2733 = vunpack.c.0.s8 %v2732
    %v2734 = vlaneseq
    %v2735 = vshrl.u32 %v2734, 7
    %v2736 = vsub.s32 %v2733, %v2735
    %v2737 = vrot.slane %v2729, %v2736
    %v2739 = vunpack.c.l.s4 1983009808
    %v2740 = vunpack.c.0.s8 %v2739
    %v2741 = vlaneseq
    %v2742 = vshrl.u32 %v2741, 7
    %v2743 = vsub.s32 %v2740, %v2742
    %v2744 = vrot.slane %v2730, %v2743
    %v2745 = vcombine.low %v2737, %v2744
    %v2746 = vcombine.low %v1334, %v1341
    %v2747 = vcombine.low %v1348, %v1355
    %v2749 = vunpack.c.l.s4 1983009808
    %v2750 = vunpack.c.0.s8 %v2749
    %v2751 = vlaneseq
    %v2752 = vshrl.u32 %v2751, 7
    %v2753 = vsub.s32 %v2750, %v2752
    %v2754 = vrot.slane %v2746, %v2753
    %v2756 = vunpack.c.l.s4 1983009808
    %v2757 = vunpack.c.0.s8 %v2756
    %v2758 = vlaneseq
    %v2759 = vshrl.u32 %v2758, 7
    %v2760 = vsub.s32 %v2757, %v2759
    %v2761 = vrot.slane %v2747, %v2760
    %v2762 = vcombine.low %v2754, %v2761
    %v2763 = vcombine.low %v1362, %v1369
    %v2764 = vcombine.low %v1376, %v1383
    %v2766 = vunpack.c.l.s4 1983009808
    %v2767 = vunpack.c.0.s8 %v2766
    %v2768 = vlaneseq
    %v2769 = vshrl.u32 %v2768, 7
    %v2770 = vsub.s32 %v2767, %v2769
    %v2771 = vrot.slane %v2763, %v2770
    %v2773 = vunpack.c.l.s4 1983009808
    %v2774 = vunpack.c.0.s8 %v2773
    %v2775 = vlaneseq
    %v2776 = vshrl.u32 %v2775, 7
    %v2777 = vsub.s32 %v2774, %v2776
    %v2778 = vrot.slane %v2764, %v2777
    %v2779 = vcombine.low %v2771, %v2778
    %v2780 = vcombine.low %v1390, %v1397
    %v2781 = vcombine.low %v1404, %v1411
    %v2783 = vunpack.c.l.s4 1983009808
    %v2784 = vunpack.c.0.s8 %v2783
    %v2785 = vlaneseq
    %v2786 = vshrl.u32 %v2785, 7
    %v2787 = vsub.s32 %v2784, %v2786
    %v2788 = vrot.slane %v2780, %v2787
    %v2790 = vunpack.c.l.s4 1983009808
    %v2791 = vunpack.c.0.s8 %v2790
    %v2792 = vlaneseq
    %v2793 = vshrl.u32 %v2792, 7
    %v2794 = vsub.s32 %v2791, %v2793
    %v2795 = vrot.slane %v2781, %v2794
    %v2796 = vcombine.low %v2788, %v2795
    %v2797 = vcombine.low %v1418, %v1425
    %v2798 = vcombine.low %v1432, %v1439
    %v2800 = vunpack.c.l.s4 1983009808
    %v2801 = vunpack.c.0.s8 %v2800
    %v2802 = vlaneseq
    %v2803 = vshrl.u32 %v2802, 7
    %v2804 = vsub.s32 %v2801, %v2803
    %v2805 = vrot.slane %v2797, %v2804
    %v2807 = vunpack.c.l.s4 1983009808
    %v2808 = vunpack.c.0.s8 %v2807
    %v2809 = vlaneseq
    %v2810 = vshrl.u32 %v2809, 7
    %v2811 = vsub.s32 %v2808, %v2810
    %v2812 = vrot.slane %v2798, %v2811
    %v2813 = vcombine.low %v2805, %v2812
    %v2814 = vcombine.low %v1446, %v1453
    %v2815 = vcombine.low %v1460, %v1467
    %v2817 = vunpack.c.l.s4 1983009808
    %v2818 = vunpack.c.0.s8 %v2817
    %v2819 = vlaneseq
    %v2820 = vshrl.u32 %v2819, 7
    %v2821 = vsub.s32 %v2818, %v2820
    %v2822 = vrot.slane %v2814, %v2821
    %v2824 = vunpack.c.l.s4 1983009808
    %v2825 = vunpack.c.0.s8 %v2824
    %v2826 = vlaneseq
    %v2827 = vshrl.u32 %v2826, 7
    %v2828 = vsub.s32 %v2825, %v2827
    %v2829 = vrot.slane %v2815, %v2828
    %v2830 = vcombine.low %v2822, %v2829
    %v2831 = vcombine.low %v1474, %v1481
    %v2832 = vcombine.low %v1488, %v1495
    %v2834 = vunpack.c.l.s4 1983009808
    %v2835 = vunpack.c.0.s8 %v2834
    %v2836 = vlaneseq
    %v2837 = vshrl.u32 %v2836, 7
    %v2838 = vsub.s32 %v2835, %v2837
    %v2839 = vrot.slane %v2831, %v2838
    %v2841 = vunpack.c.l.s4 1983009808
    %v2842 = vunpack.c.0.s8 %v2841
    %v2843 = vlaneseq
    %v2844 = vshrl.u32 %v2843, 7
    %v2845 = vsub.s32 %v2842, %v2844
    %v2846 = vrot.slane %v2832, %v2845
    %v2847 = vcombine.low %v2839, %v2846
    %v2848 = vcombine.low %v1502, %v1509
    %v2849 = vcombine.low %v1516, %v1523
    %v2851 = vunpack.c.l.s4 1983009808
    %v2852 = vunpack.c.0.s8 %v2851
    %v2853 = vlaneseq
    %v2854 = vshrl.u32 %v2853, 7
    %v2855 = vsub.s32 %v2852, %v2854
    %v2856 = vrot.slane %v2848, %v2855
    %v2858 = vunpack.c.l.s4 1983009808
    %v2859 = vunpack.c.0.s8 %v2858
    %v2860 = vlaneseq
    %v2861 = vshrl.u32 %v2860, 7
    %v2862 = vsub.s32 %v2859, %v2861
    %v2863 = vrot.slane %v2849, %v2862
    %v2864 = vcombine.low %v2856, %v2863
    %v2865 = vcombine.low %v1530, %v1537
    %v2866 = vcombine.low %v1544, %v1551
    %v2868 = vunpack.c.l.s4 1983009808
    %v2869 = vunpack.c.0.s8 %v2868
    %v2870 = vlaneseq
    %v2871 = vshrl.u32 %v2870, 7
    %v2872 = vsub.s32 %v2869, %v2871
    %v2873 = vrot.slane %v2865, %v2872
    %v2875 = vunpack.c.l.s4 1983009808
    %v2876 = vunpack.c.0.s8 %v2875
    %v2877 = vlaneseq
    %v2878 = vshrl.u32 %v2877, 7
    %v2879 = vsub.s32 %v2876, %v2878
    %v2880 = vrot.slane %v2866, %v2879
    %v2881 = vcombine.low %v2873, %v2880
    %v2882 = vcombine.low %v1558, %v1565
    %v2883 = vcombine.low %v1572, %v1579
    %v2885 = vunpack.c.l.s4 1983009808
    %v2886 = vunpack.c.0.s8 %v2885
    %v2887 = vlaneseq
    %v2888 = vshrl.u32 %v2887, 7
    %v2889 = vsub.s32 %v2886, %v2888
    %v2890 = vrot.slane %v2882, %v2889
    %v2892 = vunpack.c.l.s4 1983009808
    %v2893 = vunpack.c.0.s8 %v2892
    %v2894 = vlaneseq
    %v2895 = vshrl.u32 %v2894, 7
    %v2896 = vsub.s32 %v2893, %v2895
    %v2897 = vrot.slane %v2883, %v2896
    %v2898 = vcombine.low %v2890, %v2897
    %v2899 = vcombine.low %v1586, %v1593
    %v2900 = vcombine.low %v1600, %v1607
    %v2902 = vunpack.c.l.s4 1983009808
    %v2903 = vunpack.c.0.s8 %v2902
    %v2904 = vlaneseq
    %v2905 = vshrl.u32 %v2904, 7
    %v2906 = vsub.s32 %v2903, %v2905
    %v2907 = vrot.slane %v2899, %v2906
    %v2909 = vunpack.c.l.s4 1983009808
    %v2910 = vunpack.c.0.s8 %v2909
    %v2911 = vlaneseq
    %v2912 = vshrl.u32 %v2911, 7
    %v2913 = vsub.s32 %v2910, %v2912
    %v2914 = vrot.slane %v2900, %v2913
    %v2915 = vcombine.low %v2907, %v2914
    %v2916 = vcombine.low %v1614, %v1621
    %v2917 = vcombine.low %v1628, %v1635
    %v2919 = vunpack.c.l.s4 1983009808
    %v2920 = vunpack.c.0.s8 %v2919
    %v2921 = vlaneseq
    %v2922 = vshrl.u32 %v2921, 7
    %v2923 = vsub.s32 %v2920, %v2922
    %v2924 = vrot.slane %v2916, %v2923
    %v2926 = vunpack.c.l.s4 1983009808
    %v2927 = vunpack.c.0.s8 %v2926
    %v2928 = vlaneseq
    %v2929 = vshrl.u32 %v2928, 7
    %v2930 = vsub.s32 %v2927, %v2929
    %v2931 = vrot.slane %v2917, %v2930
    %v2932 = vcombine.low %v2924, %v2931
    %v2933 = vcombine.low %v1642, %v1649
    %v2934 = vcombine.low %v1656, %v1663
    %v2936 = vunpack.c.l.s4 1983009808
    %v2937 = vunpack.c.0.s8 %v2936
    %v2938 = vlaneseq
    %v2939 = vshrl.u32 %v2938, 7
    %v2940 = vsub.s32 %v2937, %v2939
    %v2941 = vrot.slane %v2933, %v2940
    %v2943 = vunpack.c.l.s4 1983009808
    %v2944 = vunpack.c.0.s8 %v2943
    %v2945 = vlaneseq
    %v2946 = vshrl.u32 %v2945, 7
    %v2947 = vsub.s32 %v2944, %v2946
    %v2948 = vrot.slane %v2934, %v2947
    %v2949 = vcombine.low %v2941, %v2948
    %v2950 = vcombine.low %v1670, %v1677
    %v2951 = vcombine.low %v1684, %v1691
    %v2953 = vunpack.c.l.s4 1983009808
    %v2954 = vunpack.c.0.s8 %v2953
    %v2955 = vlaneseq
    %v2956 = vshrl.u32 %v2955, 7
    %v2957 = vsub.s32 %v2954, %v2956
    %v2958 = vrot.slane %v2950, %v2957
    %v2960 = vunpack.c.l.s4 1983009808
    %v2961 = vunpack.c.0.s8 %v2960
    %v2962 = vlaneseq
    %v2963 = vshrl.u32 %v2962, 7
    %v2964 = vsub.s32 %v2961, %v2963
    %v2965 = vrot.slane %v2951, %v2964
    %v2966 = vcombine.low %v2958, %v2965
    %v2967 = vcombine.low %v1698, %v1705
    %v2968 = vcombine.low %v1712, %v1719
    %v2970 = vunpack.c.l.s4 1983009808
    %v2971 = vunpack.c.0.s8 %v2970
    %v2972 = vlaneseq
    %v2973 = vshrl.u32 %v2972, 7
    %v2974 = vsub.s32 %v2971, %v2973
    %v2975 = vrot.slane %v2967, %v2974
    %v2977 = vunpack.c.l.s4 1983009808
    %v2978 = vunpack.c.0.s8 %v2977
    %v2979 = vlaneseq
    %v2980 = vshrl.u32 %v2979, 7
    %v2981 = vsub.s32 %v2978, %v2980
    %v2982 = vrot.slane %v2968, %v2981
    %v2983 = vcombine.low %v2975, %v2982
    %v2984 = vcombine.low %v1726, %v1733
    %v2985 = vcombine.low %v1740, %v1747
    %v2987 = vunpack.c.l.s4 1983009808
    %v2988 = vunpack.c.0.s8 %v2987
    %v2989 = vlaneseq
    %v2990 = vshrl.u32 %v2989, 7
    %v2991 = vsub.s32 %v2988, %v2990
    %v2992 = vrot.slane %v2984, %v2991
    %v2994 = vunpack.c.l.s4 1983009808
    %v2995 = vunpack.c.0.s8 %v2994
    %v2996 = vlaneseq
    %v2997 = vshrl.u32 %v2996, 7
    %v2998 = vsub.s32 %v2995, %v2997
    %v2999 = vrot.slane %v2985, %v2998
    %v3000 = vcombine.low %v2992, %v2999
    %v3001 = vcombine.low %v1754, %v1761
    %v3002 = vcombine.low %v1768, %v1775
    %v3004 = vunpack.c.l.s4 1983009808
    %v3005 = vunpack.c.0.s8 %v3004
    %v3006 = vlaneseq
    %v3007 = vshrl.u32 %v3006, 7
    %v3008 = vsub.s32 %v3005, %v3007
    %v3009 = vrot.slane %v3001, %v3008
    %v3011 = vunpack.c.l.s4 1983009808
    %v3012 = vunpack.c.0.s8 %v3011
    %v3013 = vlaneseq
    %v3014 = vshrl.u32 %v3013, 7
    %v3015 = vsub.s32 %v3012, %v3014
    %v3016 = vrot.slane %v3002, %v3015
    %v3017 = vcombine.low %v3009, %v3016
    %v3018 = vcombine.low %v1782, %v1789
    %v3019 = vcombine.low %v1796, %v1803
    %v3021 = vunpack.c.l.s4 1983009808
    %v3022 = vunpack.c.0.s8 %v3021
    %v3023 = vlaneseq
    %v3024 = vshrl.u32 %v3023, 7
    %v3025 = vsub.s32 %v3022, %v3024
    %v3026 = vrot.slane %v3018, %v3025
    %v3028 = vunpack.c.l.s4 1983009808
    %v3029 = vunpack.c.0.s8 %v3028
    %v3030 = vlaneseq
    %v3031 = vshrl.u32 %v3030, 7
    %v3032 = vsub.s32 %v3029, %v3031
    %v3033 = vrot.slane %v3019, %v3032
    %v3034 = vcombine.low %v3026, %v3033
    %v3035 = vcombine.low %v1810, %v1817
    %v3036 = vcombine.low %v1824, %v1831
    %v3038 = vunpack.c.l.s4 1983009808
    %v3039 = vunpack.c.0.s8 %v3038
    %v3040 = vlaneseq
    %v3041 = vshrl.u32 %v3040, 7
    %v3042 = vsub.s32 %v3039, %v3041
    %v3043 = vrot.slane %v3035, %v3042
    %v3045 = vunpack.c.l.s4 1983009808
    %v3046 = vunpack.c.0.s8 %v3045
    %v3047 = vlaneseq
    %v3048 = vshrl.u32 %v3047, 7
    %v3049 = vsub.s32 %v3046, %v3048
    %v3050 = vrot.slane %v3036, %v3049
    %v3051 = vcombine.low %v3043, %v3050
    %v3052 = vcombine.low %v1838, %v1845
    %v3053 = vcombine.low %v1852, %v1859
    %v3055 = vunpack.c.l.s4 1983009808
    %v3056 = vunpack.c.0.s8 %v3055
    %v3057 = vlaneseq
    %v3058 = vshrl.u32 %v3057, 7
    %v3059 = vsub.s32 %v3056, %v3058
    %v3060 = vrot.slane %v3052, %v3059
    %v3062 = vunpack.c.l.s4 1983009808
    %v3063 = vunpack.c.0.s8 %v3062
    %v3064 = vlaneseq
    %v3065 = vshrl.u32 %v3064, 7
    %v3066 = vsub.s32 %v3063, %v3065
    %v3067 = vrot.slane %v3053, %v3066
    %v3068 = vcombine.low %v3060, %v3067
    %v3069 = vcombine.low %v1866, %v1873
    %v3070 = vcombine.low %v1880, %v1887
    %v3072 = vunpack.c.l.s4 1983009808
    %v3073 = vunpack.c.0.s8 %v3072
    %v3074 = vlaneseq
    %v3075 = vshrl.u32 %v3074, 7
    %v3076 = vsub.s32 %v3073, %v3075
    %v3077 = vrot.slane %v3069, %v3076
    %v3079 = vunpack.c.l.s4 1983009808
    %v3080 = vunpack.c.0.s8 %v3079
    %v3081 = vlaneseq
    %v3082 = vshrl.u32 %v3081, 7
    %v3083 = vsub.s32 %v3080, %v3082
    %v3084 = vrot.slane %v3070, %v3083
    %v3085 = vcombine.low %v3077, %v3084
    %v3086 = vcombine.low %v1894, %v1901
    %v3087 = vcombine.low %v1908, %v1915
    %v3089 = vunpack.c.l.s4 1983009808
    %v3090 = vunpack.c.0.s8 %v3089
    %v3091 = vlaneseq
    %v3092 = vshrl.u32 %v3091, 7
    %v3093 = vsub.s32 %v3090, %v3092
    %v3094 = vrot.slane %v3086, %v3093
    %v3096 = vunpack.c.l.s4 1983009808
    %v3097 = vunpack.c.0.s8 %v3096
    %v3098 = vlaneseq
    %v3099 = vshrl.u32 %v3098, 7
    %v3100 = vsub.s32 %v3097, %v3099
    %v3101 = vrot.slane %v3087, %v3100
    %v3102 = vcombine.low %v3094, %v3101
    %v3103 = vcombine.low %v1922, %v1929
    %v3104 = vcombine.low %v1936, %v1943
    %v3106 = vunpack.c.l.s4 1983009808
    %v3107 = vunpack.c.0.s8 %v3106
    %v3108 = vlaneseq
    %v3109 = vshrl.u32 %v3108, 7
    %v3110 = vsub.s32 %v3107, %v3109
    %v3111 = vrot.slane %v3103, %v3110
    %v3113 = vunpack.c.l.s4 1983009808
    %v3114 = vunpack.c.0.s8 %v3113
    %v3115 = vlaneseq
    %v3116 = vshrl.u32 %v3115, 7
    %v3117 = vsub.s32 %v3114, %v3116
    %v3118 = vrot.slane %v3104, %v3117
    %v3119 = vcombine.low %v3111, %v3118
    %v3120 = vcombine.low %v1950, %v1957
    %v3121 = vcombine.low %v1964, %v1971
    %v3123 = vunpack.c.l.s4 1983009808
    %v3124 = vunpack.c.0.s8 %v3123
    %v3125 = vlaneseq
    %v3126 = vshrl.u32 %v3125, 7
    %v3127 = vsub.s32 %v3124, %v3126
    %v3128 = vrot.slane %v3120, %v3127
    %v3130 = vunpack.c.l.s4 1983009808
    %v3131 = vunpack.c.0.s8 %v3130
    %v3132 = vlaneseq
    %v3133 = vshrl.u32 %v3132, 7
    %v3134 = vsub.s32 %v3131, %v3133
    %v3135 = vrot.slane %v3121, %v3134
    %v3136 = vcombine.low %v3128, %v3135
    %v3137 = vcombine.low %v1978, %v1985
    %v3138 = vcombine.low %v1992, %v1999
    %v3140 = vunpack.c.l.s4 1983009808
    %v3141 = vunpack.c.0.s8 %v3140
    %v3142 = vlaneseq
    %v3143 = vshrl.u32 %v3142, 7
    %v3144 = vsub.s32 %v3141, %v3143
    %v3145 = vrot.slane %v3137, %v3144
    %v3147 = vunpack.c.l.s4 1983009808
    %v3148 = vunpack.c.0.s8 %v3147
    %v3149 = vlaneseq
    %v3150 = vshrl.u32 %v3149, 7
    %v3151 = vsub.s32 %v3148, %v3150
    %v3152 = vrot.slane %v3138, %v3151
    %v3153 = vcombine.low %v3145, %v3152
    %v3154 = vcombine.low %v2006, %v2013
    %v3155 = vcombine.low %v2020, %v2027
    %v3157 = vunpack.c.l.s4 1983009808
    %v3158 = vunpack.c.0.s8 %v3157
    %v3159 = vlaneseq
    %v3160 = vshrl.u32 %v3159, 7
    %v3161 = vsub.s32 %v3158, %v3160
    %v3162 = vrot.slane %v3154, %v3161
    %v3164 = vunpack.c.l.s4 1983009808
    %v3165 = vunpack.c.0.s8 %v3164
    %v3166 = vlaneseq
    %v3167 = vshrl.u32 %v3166, 7
    %v3168 = vsub.s32 %v3165, %v3167
    %v3169 = vrot.slane %v3155, %v3168
    %v3170 = vcombine.low %v3162, %v3169
    %v3171 = vcombine.low %v2034, %v2041
    %v3172 = vcombine.low %v2048, %v2055
    %v3174 = vunpack.c.l.s4 1983009808
    %v3175 = vunpack.c.0.s8 %v3174
    %v3176 = vlaneseq
    %v3177 = vshrl.u32 %v3176, 7
    %v3178 = vsub.s32 %v3175, %v3177
    %v3179 = vrot.slane %v3171, %v3178
    %v3181 = vunpack.c.l.s4 1983009808
    %v3182 = vunpack.c.0.s8 %v3181
    %v3183 = vlaneseq
    %v3184 = vshrl.u32 %v3183, 7
    %v3185 = vsub.s32 %v3182, %v3184
    %v3186 = vrot.slane %v3172, %v3185
    %v3187 = vcombine.low %v3179, %v3186
    %v3188 = vcombine.low %v2062, %v2069
    %v3189 = vcombine.low %v2076, %v2083
    %v3191 = vunpack.c.l.s4 1983009808
    %v3192 = vunpack.c.0.s8 %v3191
    %v3193 = vlaneseq
    %v3194 = vshrl.u32 %v3193, 7
    %v3195 = vsub.s32 %v3192, %v3194
    %v3196 = vrot.slane %v3188, %v3195
    %v3198 = vunpack.c.l.s4 1983009808
    %v3199 = vunpack.c.0.s8 %v3198
    %v3200 = vlaneseq
    %v3201 = vshrl.u32 %v3200, 7
    %v3202 = vsub.s32 %v3199, %v3201
    %v3203 = vrot.slane %v3189, %v3202
    %v3204 = vcombine.low %v3196, %v3203
    %v3205 = vcombine.low %v2090, %v2097
    %v3206 = vcombine.low %v2104, %v2111
    %v3208 = vunpack.c.l.s4 1983009808
    %v3209 = vunpack.c.0.s8 %v3208
    %v3210 = vlaneseq
    %v3211 = vshrl.u32 %v3210, 7
    %v3212 = vsub.s32 %v3209, %v3211
    %v3213 = vrot.slane %v3205, %v3212
    %v3215 = vunpack.c.l.s4 1983009808
    %v3216 = vunpack.c.0.s8 %v3215
    %v3217 = vlaneseq
    %v3218 = vshrl.u32 %v3217, 7
    %v3219 = vsub.s32 %v3216, %v3218
    %v3220 = vrot.slane %v3206, %v3219
    %v3221 = vcombine.low %v3213, %v3220
    %v3222 = vcombine.low %v2118, %v2125
    %v3223 = vcombine.low %v2132, %v2139
    %v3225 = vunpack.c.l.s4 1983009808
    %v3226 = vunpack.c.0.s8 %v3225
    %v3227 = vlaneseq
    %v3228 = vshrl.u32 %v3227, 7
    %v3229 = vsub.s32 %v3226, %v3228
    %v3230 = vrot.slane %v3222, %v3229
    %v3232 = vunpack.c.l.s4 1983009808
    %v3233 = vunpack.c.0.s8 %v3232
    %v3234 = vlaneseq
    %v3235 = vshrl.u32 %v3234, 7
    %v3236 = vsub.s32 %v3233, %v3235
    %v3237 = vrot.slane %v3223, %v3236
    %v3238 = vcombine.low %v3230, %v3237
    %v3239 = vcombine.low %v2146, %v2153
    %v3240 = vcombine.low %v2160, %v2167
    %v3242 = vunpack.c.l.s4 1983009808
    %v3243 = vunpack.c.0.s8 %v3242
    %v3244 = vlaneseq
    %v3245 = vshrl.u32 %v3244, 7
    %v3246 = vsub.s32 %v3243, %v3245
    %v3247 = vrot.slane %v3239, %v3246
    %v3249 = vunpack.c.l.s4 1983009808
    %v3250 = vunpack.c.0.s8 %v3249
    %v3251 = vlaneseq
    %v3252 = vshrl.u32 %v3251, 7
    %v3253 = vsub.s32 %v3250, %v3252
    %v3254 = vrot.slane %v3240, %v3253
    %v3255 = vcombine.low %v3247, %v3254
    %3256 = vset.pattern.permute.xlu0 0
    %3257 = vperm.xlu0 %3256, %v2184
    %v3258 = vpop.permute.xlu0 %3257
    %3259 = vset.pattern.permute.xlu0 0
    %3260 = vperm.xlu0 %3259, %v2201
    %v3261 = vpop.permute.xlu0 %3260
    %3262 = vset.pattern.permute.xlu0 0
    %3263 = vperm.xlu0 %3262, %v2218
    %v3264 = vpop.permute.xlu0 %3263
    %3265 = vset.pattern.permute.xlu0 0
    %3266 = vperm.xlu0 %3265, %v2235
    %v3267 = vpop.permute.xlu0 %3266
    %3268 = vset.pattern.permute.xlu0 0
    %3269 = vperm.xlu0 %3268, %v2252
    %v3270 = vpop.permute.xlu0 %3269
    %3271 = vset.pattern.permute.xlu0 0
    %3272 = vperm.xlu0 %3271, %v2269
    %v3273 = vpop.permute.xlu0 %3272
    %3274 = vset.pattern.permute.xlu0 0
    %3275 = vperm.xlu0 %3274, %v2286
    %v3276 = vpop.permute.xlu0 %3275
    %3277 = vset.pattern.permute.xlu0 0
    %3278 = vperm.xlu0 %3277, %v2303
    %v3279 = vpop.permute.xlu0 %3278
    %3280 = vset.pattern.permute.xlu0 0
    %3281 = vperm.xlu0 %3280, %v2320
    %v3282 = vpop.permute.xlu0 %3281
    %3283 = vset.pattern.permute.xlu0 0
    %3284 = vperm.xlu0 %3283, %v2337
    %v3285 = vpop.permute.xlu0 %3284
    %3286 = vset.pattern.permute.xlu0 0
    %3287 = vperm.xlu0 %3286, %v2354
    %v3288 = vpop.permute.xlu0 %3287
    %3289 = vset.pattern.permute.xlu0 0
    %3290 = vperm.xlu0 %3289, %v2371
    %v3291 = vpop.permute.xlu0 %3290
    %3292 = vset.pattern.permute.xlu0 0
    %3293 = vperm.xlu0 %3292, %v2388
    %v3294 = vpop.permute.xlu0 %3293
    %3295 = vset.pattern.permute.xlu0 0
    %3296 = vperm.xlu0 %3295, %v2405
    %v3297 = vpop.permute.xlu0 %3296
    %3298 = vset.pattern.permute.xlu0 0
    %3299 = vperm.xlu0 %3298, %v2422
    %v3300 = vpop.permute.xlu0 %3299
    %3301 = vset.pattern.permute.xlu0 0
    %3302 = vperm.xlu0 %3301, %v2439
    %v3303 = vpop.permute.xlu0 %3302
    %3304 = vset.pattern.permute.xlu0 0
    %3305 = vperm.xlu0 %3304, %v2456
    %v3306 = vpop.permute.xlu0 %3305
    %3307 = vset.pattern.permute.xlu0 0
    %3308 = vperm.xlu0 %3307, %v2473
    %v3309 = vpop.permute.xlu0 %3308
    %3310 = vset.pattern.permute.xlu0 0
    %3311 = vperm.xlu0 %3310, %v2490
    %v3312 = vpop.permute.xlu0 %3311
    %3313 = vset.pattern.permute.xlu0 0
    %3314 = vperm.xlu0 %3313, %v2507
    %v3315 = vpop.permute.xlu0 %3314
    %3316 = vset.pattern.permute.xlu0 0
    %3317 = vperm.xlu0 %3316, %v2524
    %v3318 = vpop.permute.xlu0 %3317
    %3319 = vset.pattern.permute.xlu0 0
    %3320 = vperm.xlu0 %3319, %v2541
    %v3321 = vpop.permute.xlu0 %3320
    %3322 = vset.pattern.permute.xlu0 0
    %3323 = vperm.xlu0 %3322, %v2558
    %v3324 = vpop.permute.xlu0 %3323
    %3325 = vset.pattern.permute.xlu0 0
    %3326 = vperm.xlu0 %3325, %v2575
    %v3327 = vpop.permute.xlu0 %3326
    %3328 = vset.pattern.permute.xlu0 0
    %3329 = vperm.xlu0 %3328, %v2592
    %v3330 = vpop.permute.xlu0 %3329
    %3331 = vset.pattern.permute.xlu0 0
    %3332 = vperm.xlu0 %3331, %v2609
    %v3333 = vpop.permute.xlu0 %3332
    %3334 = vset.pattern.permute.xlu0 0
    %3335 = vperm.xlu0 %3334, %v2626
    %v3336 = vpop.permute.xlu0 %3335
    %3337 = vset.pattern.permute.xlu0 0
    %3338 = vperm.xlu0 %3337, %v2643
    %v3339 = vpop.permute.xlu0 %3338
    %3340 = vset.pattern.permute.xlu0 0
    %3341 = vperm.xlu0 %3340, %v2660
    %v3342 = vpop.permute.xlu0 %3341
    %3343 = vset.pattern.permute.xlu0 0
    %3344 = vperm.xlu0 %3343, %v2677
    %v3345 = vpop.permute.xlu0 %3344
    %3346 = vset.pattern.permute.xlu0 0
    %3347 = vperm.xlu0 %3346, %v2694
    %v3348 = vpop.permute.xlu0 %3347
    %3349 = vset.pattern.permute.xlu0 0
    %3350 = vperm.xlu0 %3349, %v2711
    %v3351 = vpop.permute.xlu0 %3350
    %3352 = vset.pattern.permute.xlu0 0
    %3353 = vperm.xlu0 %3352, %v2728
    %v3354 = vpop.permute.xlu0 %3353
    %3355 = vset.pattern.permute.xlu0 0
    %3356 = vperm.xlu0 %3355, %v2745
    %v3357 = vpop.permute.xlu0 %3356
    %3358 = vset.pattern.permute.xlu0 0
    %3359 = vperm.xlu0 %3358, %v2762
    %v3360 = vpop.permute.xlu0 %3359
    %3361 = vset.pattern.permute.xlu0 0
    %3362 = vperm.xlu0 %3361, %v2779
    %v3363 = vpop.permute.xlu0 %3362
    %3364 = vset.pattern.permute.xlu0 0
    %3365 = vperm.xlu0 %3364, %v2796
    %v3366 = vpop.permute.xlu0 %3365
    %3367 = vset.pattern.permute.xlu0 0
    %3368 = vperm.xlu0 %3367, %v2813
    %v3369 = vpop.permute.xlu0 %3368
    %3370 = vset.pattern.permute.xlu0 0
    %3371 = vperm.xlu0 %3370, %v2830
    %v3372 = vpop.permute.xlu0 %3371
    %3373 = vset.pattern.permute.xlu0 0
    %3374 = vperm.xlu0 %3373, %v2847
    %v3375 = vpop.permute.xlu0 %3374
    %3376 = vset.pattern.permute.xlu0 0
    %3377 = vperm.xlu0 %3376, %v2864
    %v3378 = vpop.permute.xlu0 %3377
    %3379 = vset.pattern.permute.xlu0 0
    %3380 = vperm.xlu0 %3379, %v2881
    %v3381 = vpop.permute.xlu0 %3380
    %3382 = vset.pattern.permute.xlu0 0
    %3383 = vperm.xlu0 %3382, %v2898
    %v3384 = vpop.permute.xlu0 %3383
    %3385 = vset.pattern.permute.xlu0 0
    %3386 = vperm.xlu0 %3385, %v2915
    %v3387 = vpop.permute.xlu0 %3386
    %3388 = vset.pattern.permute.xlu0 0
    %3389 = vperm.xlu0 %3388, %v2932
    %v3390 = vpop.permute.xlu0 %3389
    %3391 = vset.pattern.permute.xlu0 0
    %3392 = vperm.xlu0 %3391, %v2949
    %v3393 = vpop.permute.xlu0 %3392
    %3394 = vset.pattern.permute.xlu0 0
    %3395 = vperm.xlu0 %3394, %v2966
    %v3396 = vpop.permute.xlu0 %3395
    %3397 = vset.pattern.permute.xlu0 0
    %3398 = vperm.xlu0 %3397, %v2983
    %v3399 = vpop.permute.xlu0 %3398
    %3400 = vset.pattern.permute.xlu0 0
    %3401 = vperm.xlu0 %3400, %v3000
    %v3402 = vpop.permute.xlu0 %3401
    %3403 = vset.pattern.permute.xlu0 0
    %3404 = vperm.xlu0 %3403, %v3017
    %v3405 = vpop.permute.xlu0 %3404
    %3406 = vset.pattern.permute.xlu0 0
    %3407 = vperm.xlu0 %3406, %v3034
    %v3408 = vpop.permute.xlu0 %3407
    %3409 = vset.pattern.permute.xlu0 0
    %3410 = vperm.xlu0 %3409, %v3051
    %v3411 = vpop.permute.xlu0 %3410
    %3412 = vset.pattern.permute.xlu0 0
    %3413 = vperm.xlu0 %3412, %v3068
    %v3414 = vpop.permute.xlu0 %3413
    %3415 = vset.pattern.permute.xlu0 0
    %3416 = vperm.xlu0 %3415, %v3085
    %v3417 = vpop.permute.xlu0 %3416
    %3418 = vset.pattern.permute.xlu0 0
    %3419 = vperm.xlu0 %3418, %v3102
    %v3420 = vpop.permute.xlu0 %3419
    %3421 = vset.pattern.permute.xlu0 0
    %3422 = vperm.xlu0 %3421, %v3119
    %v3423 = vpop.permute.xlu0 %3422
    %3424 = vset.pattern.permute.xlu0 0
    %3425 = vperm.xlu0 %3424, %v3136
    %v3426 = vpop.permute.xlu0 %3425
    %3427 = vset.pattern.permute.xlu0 0
    %3428 = vperm.xlu0 %3427, %v3153
    %v3429 = vpop.permute.xlu0 %3428
    %3430 = vset.pattern.permute.xlu0 0
    %3431 = vperm.xlu0 %3430, %v3170
    %v3432 = vpop.permute.xlu0 %3431
    %3433 = vset.pattern.permute.xlu0 0
    %3434 = vperm.xlu0 %3433, %v3187
    %v3435 = vpop.permute.xlu0 %3434
    %3436 = vset.pattern.permute.xlu0 0
    %3437 = vperm.xlu0 %3436, %v3204
    %v3438 = vpop.permute.xlu0 %3437
    %3439 = vset.pattern.permute.xlu0 0
    %3440 = vperm.xlu0 %3439, %v3221
    %v3441 = vpop.permute.xlu0 %3440
    %3442 = vset.pattern.permute.xlu0 0
    %3443 = vperm.xlu0 %3442, %v3238
    %v3444 = vpop.permute.xlu0 %3443
    %3445 = vset.pattern.permute.xlu0 0
    %3446 = vperm.xlu0 %3445, %v3255
    %v3447 = vpop.permute.xlu0 %3446
    %v3448 = vlaneseq
    %v3449 = vand.u32 %v3448, 127
    %v3450 = vlaneseq
    %v3451 = vshrl.u32 %v3450, 7
    %v3452 = vsub.s32 %v3449, %v3451
    %v3453 = vrot.slane %v3258, %v3452
    %v3454 = vadd.s32 %v3449, 4294967288
    %v3455 = vlaneseq
    %v3456 = vshrl.u32 %v3455, 7
    %v3457 = vsub.s32 %v3454, %v3456
    %v3458 = vrot.slane %v3261, %v3457
    %vm3459 = vcmask 130112
    %v3460 = vsel %vm3459, %v3458, %v3453
    %v3461 = vadd.s32 %v3449, 4294967280
    %v3462 = vlaneseq
    %v3463 = vshrl.u32 %v3462, 7
    %v3464 = vsub.s32 %v3461, %v3463
    %v3465 = vrot.slane %v3264, %v3464
    %vm3466 = vcmask 195712
    %v3467 = vsel %vm3466, %v3465, %v3460
    %v3468 = vadd.s32 %v3449, 4294967272
    %v3469 = vlaneseq
    %v3470 = vshrl.u32 %v3469, 7
    %v3471 = vsub.s32 %v3468, %v3470
    %v3472 = vrot.slane %v3267, %v3471
    %vm3473 = vcmask 261312
    %v3474 = vsel %vm3473, %v3472, %v3467
    %v3475 = vadd.s32 %v3449, 4294967264
    %v3476 = vlaneseq
    %v3477 = vshrl.u32 %v3476, 7
    %v3478 = vsub.s32 %v3475, %v3477
    %v3479 = vrot.slane %v3270, %v3478
    %vm3480 = vcmask 326912
    %v3481 = vsel %vm3480, %v3479, %v3474
    %v3482 = vadd.s32 %v3449, 4294967256
    %v3483 = vlaneseq
    %v3484 = vshrl.u32 %v3483, 7
    %v3485 = vsub.s32 %v3482, %v3484
    %v3486 = vrot.slane %v3273, %v3485
    %vm3487 = vcmask 392512
    %v3488 = vsel %vm3487, %v3486, %v3481
    %v3489 = vadd.s32 %v3449, 4294967248
    %v3490 = vlaneseq
    %v3491 = vshrl.u32 %v3490, 7
    %v3492 = vsub.s32 %v3489, %v3491
    %v3493 = vrot.slane %v3276, %v3492
    %vm3494 = vcmask 458112
    %v3495 = vsel %vm3494, %v3493, %v3488
    %v3496 = vadd.s32 %v3449, 4294967240
    %v3497 = vlaneseq
    %v3498 = vshrl.u32 %v3497, 7
    %v3499 = vsub.s32 %v3496, %v3498
    %v3500 = vrot.slane %v3279, %v3499
    %vm3501 = vcmask 523712
    %v3502 = vsel %vm3501, %v3500, %v3495
    %v3503 = vadd.s32 %v3449, 4294967232
    %v3504 = vlaneseq
    %v3505 = vshrl.u32 %v3504, 7
    %v3506 = vsub.s32 %v3503, %v3505
    %v3507 = vrot.slane %v3282, %v3506
    %vm3508 = vcmask 589312
    %v3509 = vsel %vm3508, %v3507, %v3502
    %v3510 = vadd.s32 %v3449, 4294967224
    %v3511 = vlaneseq
    %v3512 = vshrl.u32 %v3511, 7
    %v3513 = vsub.s32 %v3510, %v3512
    %v3514 = vrot.slane %v3285, %v3513
    %vm3515 = vcmask 654912
    %v3516 = vsel %vm3515, %v3514, %v3509
    %v3517 = vadd.s32 %v3449, 4294967216
    %v3518 = vlaneseq
    %v3519 = vshrl.u32 %v3518, 7
    %v3520 = vsub.s32 %v3517, %v3519
    %v3521 = vrot.slane %v3288, %v3520
    %vm3522 = vcmask 720512
    %v3523 = vsel %vm3522, %v3521, %v3516
    %v3524 = vadd.s32 %v3449, 4294967208
    %v3525 = vlaneseq
    %v3526 = vshrl.u32 %v3525, 7
    %v3527 = vsub.s32 %v3524, %v3526
    %v3528 = vrot.slane %v3291, %v3527
    %vm3529 = vcmask 786112
    %v3530 = vsel %vm3529, %v3528, %v3523
    %v3531 = vadd.s32 %v3449, 4294967200
    %v3532 = vlaneseq
    %v3533 = vshrl.u32 %v3532, 7
    %v3534 = vsub.s32 %v3531, %v3533
    %v3535 = vrot.slane %v3294, %v3534
    %vm3536 = vcmask 851712
    %v3537 = vsel %vm3536, %v3535, %v3530
    %v3538 = vadd.s32 %v3449, 4294967192
    %v3539 = vlaneseq
    %v3540 = vshrl.u32 %v3539, 7
    %v3541 = vsub.s32 %v3538, %v3540
    %v3542 = vrot.slane %v3297, %v3541
    %vm3543 = vcmask 917312
    %v3544 = vsel %vm3543, %v3542, %v3537
    %v3545 = vadd.s32 %v3449, 4294967184
    %v3546 = vlaneseq
    %v3547 = vshrl.u32 %v3546, 7
    %v3548 = vsub.s32 %v3545, %v3547
    %v3549 = vrot.slane %v3300, %v3548
    %vm3550 = vcmask 982912
    %v3551 = vsel %vm3550, %v3549, %v3544
    %v3552 = vadd.s32 %v3449, 4294967176
    %v3553 = vlaneseq
    %v3554 = vshrl.u32 %v3553, 7
    %v3555 = vsub.s32 %v3552, %v3554
    %v3556 = vrot.slane %v3303, %v3555
    %vm3557 = vcmask 1048512
    %v3558 = vsel %vm3557, %v3556, %v3551
    %v3559 = vlaneseq
    %v3560 = vshrl.u32 %v3559, 7
    %v3561 = vsub.s32 %v3449, %v3560
    %v3562 = vrot.slane %v3306, %v3561
    %v3563 = vlaneseq
    %v3564 = vshrl.u32 %v3563, 7
    %v3565 = vsub.s32 %v3454, %v3564
    %v3566 = vrot.slane %v3309, %v3565
    %v3567 = vsel %vm3459, %v3566, %v3562
    %v3568 = vlaneseq
    %v3569 = vshrl.u32 %v3568, 7
    %v3570 = vsub.s32 %v3461, %v3569
    %v3571 = vrot.slane %v3312, %v3570
    %v3572 = vsel %vm3466, %v3571, %v3567
    %v3573 = vlaneseq
    %v3574 = vshrl.u32 %v3573, 7
    %v3575 = vsub.s32 %v3468, %v3574
    %v3576 = vrot.slane %v3315, %v3575
    %v3577 = vsel %vm3473, %v3576, %v3572
    %v3578 = vlaneseq
    %v3579 = vshrl.u32 %v3578, 7
    %v3580 = vsub.s32 %v3475, %v3579
    %v3581 = vrot.slane %v3318, %v3580
    %v3582 = vsel %vm3480, %v3581, %v3577
    %v3583 = vlaneseq
    %v3584 = vshrl.u32 %v3583, 7
    %v3585 = vsub.s32 %v3482, %v3584
    %v3586 = vrot.slane %v3321, %v3585
    %v3587 = vsel %vm3487, %v3586, %v3582
    %v3588 = vlaneseq
    %v3589 = vshrl.u32 %v3588, 7
    %v3590 = vsub.s32 %v3489, %v3589
    %v3591 = vrot.slane %v3324, %v3590
    %v3592 = vsel %vm3494, %v3591, %v3587
    %v3593 = vlaneseq
    %v3594 = vshrl.u32 %v3593, 7
    %v3595 = vsub.s32 %v3496, %v3594
    %v3596 = vrot.slane %v3327, %v3595
    %v3597 = vsel %vm3501, %v3596, %v3592
    %v3598 = vlaneseq
    %v3599 = vshrl.u32 %v3598, 7
    %v3600 = vsub.s32 %v3503, %v3599
    %v3601 = vrot.slane %v3330, %v3600
    %v3602 = vsel %vm3508, %v3601, %v3597
    %v3603 = vlaneseq
    %v3604 = vshrl.u32 %v3603, 7
    %v3605 = vsub.s32 %v3510, %v3604
    %v3606 = vrot.slane %v3333, %v3605
    %v3607 = vsel %vm3515, %v3606, %v3602
    %v3608 = vlaneseq
    %v3609 = vshrl.u32 %v3608, 7
    %v3610 = vsub.s32 %v3517, %v3609
    %v3611 = vrot.slane %v3336, %v3610
    %v3612 = vsel %vm3522, %v3611, %v3607
    %v3613 = vlaneseq
    %v3614 = vshrl.u32 %v3613, 7
    %v3615 = vsub.s32 %v3524, %v3614
    %v3616 = vrot.slane %v3339, %v3615
    %v3617 = vsel %vm3529, %v3616, %v3612
    %v3618 = vlaneseq
    %v3619 = vshrl.u32 %v3618, 7
    %v3620 = vsub.s32 %v3531, %v3619
    %v3621 = vrot.slane %v3342, %v3620
    %v3622 = vsel %vm3536, %v3621, %v3617
    %v3623 = vlaneseq
    %v3624 = vshrl.u32 %v3623, 7
    %v3625 = vsub.s32 %v3538, %v3624
    %v3626 = vrot.slane %v3345, %v3625
    %v3627 = vsel %vm3543, %v3626, %v3622
    %v3628 = vlaneseq
    %v3629 = vshrl.u32 %v3628, 7
    %v3630 = vsub.s32 %v3545, %v3629
    %v3631 = vrot.slane %v3348, %v3630
    %v3632 = vsel %vm3550, %v3631, %v3627
    %v3633 = vlaneseq
    %v3634 = vshrl.u32 %v3633, 7
    %v3635 = vsub.s32 %v3552, %v3634
    %v3636 = vrot.slane %v3351, %v3635
    %v3637 = vsel %vm3557, %v3636, %v3632
    %v3638 = vlaneseq
    %v3639 = vshrl.u32 %v3638, 7
    %v3640 = vsub.s32 %v3449, %v3639
    %v3641 = vrot.slane %v3354, %v3640
    %v3642 = vlaneseq
    %v3643 = vshrl.u32 %v3642, 7
    %v3644 = vsub.s32 %v3454, %v3643
    %v3645 = vrot.slane %v3357, %v3644
    %v3646 = vsel %vm3459, %v3645, %v3641
    %v3647 = vlaneseq
    %v3648 = vshrl.u32 %v3647, 7
    %v3649 = vsub.s32 %v3461, %v3648
    %v3650 = vrot.slane %v3360, %v3649
    %v3651 = vsel %vm3466, %v3650, %v3646
    %v3652 = vlaneseq
    %v3653 = vshrl.u32 %v3652, 7
    %v3654 = vsub.s32 %v3468, %v3653
    %v3655 = vrot.slane %v3363, %v3654
    %v3656 = vsel %vm3473, %v3655, %v3651
    %v3657 = vlaneseq
    %v3658 = vshrl.u32 %v3657, 7
    %v3659 = vsub.s32 %v3475, %v3658
    %v3660 = vrot.slane %v3366, %v3659
    %v3661 = vsel %vm3480, %v3660, %v3656
    %v3662 = vlaneseq
    %v3663 = vshrl.u32 %v3662, 7
    %v3664 = vsub.s32 %v3482, %v3663
    %v3665 = vrot.slane %v3369, %v3664
    %v3666 = vsel %vm3487, %v3665, %v3661
    %v3667 = vlaneseq
    %v3668 = vshrl.u32 %v3667, 7
    %v3669 = vsub.s32 %v3489, %v3668
    %v3670 = vrot.slane %v3372, %v3669
    %v3671 = vsel %vm3494, %v3670, %v3666
    %v3672 = vlaneseq
    %v3673 = vshrl.u32 %v3672, 7
    %v3674 = vsub.s32 %v3496, %v3673
    %v3675 = vrot.slane %v3375, %v3674
    %v3676 = vsel %vm3501, %v3675, %v3671
    %v3677 = vlaneseq
    %v3678 = vshrl.u32 %v3677, 7
    %v3679 = vsub.s32 %v3503, %v3678
    %v3680 = vrot.slane %v3378, %v3679
    %v3681 = vsel %vm3508, %v3680, %v3676
    %v3682 = vlaneseq
    %v3683 = vshrl.u32 %v3682, 7
    %v3684 = vsub.s32 %v3510, %v3683
    %v3685 = vrot.slane %v3381, %v3684
    %v3686 = vsel %vm3515, %v3685, %v3681
    %v3687 = vlaneseq
    %v3688 = vshrl.u32 %v3687, 7
    %v3689 = vsub.s32 %v3517, %v3688
    %v3690 = vrot.slane %v3384, %v3689
    %v3691 = vsel %vm3522, %v3690, %v3686
    %v3692 = vlaneseq
    %v3693 = vshrl.u32 %v3692, 7
    %v3694 = vsub.s32 %v3524, %v3693
    %v3695 = vrot.slane %v3387, %v3694
    %v3696 = vsel %vm3529, %v3695, %v3691
    %v3697 = vlaneseq
    %v3698 = vshrl.u32 %v3697, 7
    %v3699 = vsub.s32 %v3531, %v3698
    %v3700 = vrot.slane %v3390, %v3699
    %v3701 = vsel %vm3536, %v3700, %v3696
    %v3702 = vlaneseq
    %v3703 = vshrl.u32 %v3702, 7
    %v3704 = vsub.s32 %v3538, %v3703
    %v3705 = vrot.slane %v3393, %v3704
    %v3706 = vsel %vm3543, %v3705, %v3701
    %v3707 = vlaneseq
    %v3708 = vshrl.u32 %v3707, 7
    %v3709 = vsub.s32 %v3545, %v3708
    %v3710 = vrot.slane %v3396, %v3709
    %v3711 = vsel %vm3550, %v3710, %v3706
    %v3712 = vlaneseq
    %v3713 = vshrl.u32 %v3712, 7
    %v3714 = vsub.s32 %v3552, %v3713
    %v3715 = vrot.slane %v3399, %v3714
    %v3716 = vsel %vm3557, %v3715, %v3711
    %v3717 = vlaneseq
    %v3718 = vshrl.u32 %v3717, 7
    %v3719 = vsub.s32 %v3449, %v3718
    %v3720 = vrot.slane %v3402, %v3719
    %v3721 = vlaneseq
    %v3722 = vshrl.u32 %v3721, 7
    %v3723 = vsub.s32 %v3454, %v3722
    %v3724 = vrot.slane %v3405, %v3723
    %v3725 = vsel %vm3459, %v3724, %v3720
    %v3726 = vlaneseq
    %v3727 = vshrl.u32 %v3726, 7
    %v3728 = vsub.s32 %v3461, %v3727
    %v3729 = vrot.slane %v3408, %v3728
    %v3730 = vsel %vm3466, %v3729, %v3725
    %v3731 = vlaneseq
    %v3732 = vshrl.u32 %v3731, 7
    %v3733 = vsub.s32 %v3468, %v3732
    %v3734 = vrot.slane %v3411, %v3733
    %v3735 = vsel %vm3473, %v3734, %v3730
    %v3736 = vlaneseq
    %v3737 = vshrl.u32 %v3736, 7
    %v3738 = vsub.s32 %v3475, %v3737
    %v3739 = vrot.slane %v3414, %v3738
    %v3740 = vsel %vm3480, %v3739, %v3735
    %v3741 = vlaneseq
    %v3742 = vshrl.u32 %v3741, 7
    %v3743 = vsub.s32 %v3482, %v3742
    %v3744 = vrot.slane %v3417, %v3743
    %v3745 = vsel %vm3487, %v3744, %v3740
    %v3746 = vlaneseq
    %v3747 = vshrl.u32 %v3746, 7
    %v3748 = vsub.s32 %v3489, %v3747
    %v3749 = vrot.slane %v3420, %v3748
    %v3750 = vsel %vm3494, %v3749, %v3745
    %v3751 = vlaneseq
    %v3752 = vshrl.u32 %v3751, 7
    %v3753 = vsub.s32 %v3496, %v3752
    %v3754 = vrot.slane %v3423, %v3753
    %v3755 = vsel %vm3501, %v3754, %v3750
    %v3756 = vlaneseq
    %v3757 = vshrl.u32 %v3756, 7
    %v3758 = vsub.s32 %v3503, %v3757
    %v3759 = vrot.slane %v3426, %v3758
    %v3760 = vsel %vm3508, %v3759, %v3755
    %v3761 = vlaneseq
    %v3762 = vshrl.u32 %v3761, 7
    %v3763 = vsub.s32 %v3510, %v3762
    %v3764 = vrot.slane %v3429, %v3763
    %v3765 = vsel %vm3515, %v3764, %v3760
    %v3766 = vlaneseq
    %v3767 = vshrl.u32 %v3766, 7
    %v3768 = vsub.s32 %v3517, %v3767
    %v3769 = vrot.slane %v3432, %v3768
    %v3770 = vsel %vm3522, %v3769, %v3765
    %v3771 = vlaneseq
    %v3772 = vshrl.u32 %v3771, 7
    %v3773 = vsub.s32 %v3524, %v3772
    %v3774 = vrot.slane %v3435, %v3773
    %v3775 = vsel %vm3529, %v3774, %v3770
    %v3776 = vlaneseq
    %v3777 = vshrl.u32 %v3776, 7
    %v3778 = vsub.s32 %v3531, %v3777
    %v3779 = vrot.slane %v3438, %v3778
    %v3780 = vsel %vm3536, %v3779, %v3775
    %v3781 = vlaneseq
    %v3782 = vshrl.u32 %v3781, 7
    %v3783 = vsub.s32 %v3538, %v3782
    %v3784 = vrot.slane %v3441, %v3783
    %v3785 = vsel %vm3543, %v3784, %v3780
    %v3786 = vlaneseq
    %v3787 = vshrl.u32 %v3786, 7
    %v3788 = vsub.s32 %v3545, %v3787
    %v3789 = vrot.slane %v3444, %v3788
    %v3790 = vsel %vm3550, %v3789, %v3785
    %v3791 = vlaneseq
    %v3792 = vshrl.u32 %v3791, 7
    %v3793 = vsub.s32 %v3552, %v3792
    %v3794 = vrot.slane %v3447, %v3793
    %v3795 = vsel %vm3557, %v3794, %v3790
    %vm3796 = vcmask 1041409
    %v3797 = vsel %vm3796, %v3716, %v3558
    %v3798 = vsel %vm3796, %v3795, %v3637
    %v3799 = vcombine.low %v3797, %v3798
    %v3801 = vunpack.c.l.s4 1983009808
    %v3802 = vunpack.c.0.s8 %v3801
    %v3803 = vlaneseq
    %v3804 = vshrl.u32 %v3803, 7
    %v3805 = vsub.s32 %v3802, %v3804
    %v3806 = vrot.slane %v3799, %v3805
    %v3808 = vadd.f32 %v118, %v3806
    %3809 = vst [vmem:[#allocation2] sm:$0xf] %v3808
    // Predicated region
    $region34: #{tpu_custom_call.1} parent=1 // pred_check
      %p3810 = pneg %p49
    $region35: #{tpu_custom_call.1} parent=1 // pred_check_branch
      %3812 = sbr.rel (%p3810) target = $region37
    $region36: #{tpu_custom_call.1} parent=1 // pred_region
      %v3813 = vld [vmem:[#allocation2] sm:$0xf]
      %v3814 = vmul.f32 %v3813, 0.015625
      %v3815 = vld [vmem:[#allocation3] sm:$0xff]
      %v3816 = vld [vmem:[#allocation3 + $0x8] sm:$0xff]
      %v3817 = vld [vmem:[#allocation3 + $0x10] sm:$0xff]
      %v3818 = vld [vmem:[#allocation3 + $0x18] sm:$0xff]
      %v3819 = vld [vmem:[#allocation3 + $0x20] sm:$0xff]
      %v3820 = vld [vmem:[#allocation3 + $0x28] sm:$0xff]
      %v3821 = vld [vmem:[#allocation3 + $0x30] sm:$0xff]
      %v3822 = vld [vmem:[#allocation3 + $0x38] sm:$0xff]
      %v3823 = vld [vmem:[#allocation3 + $0x40] sm:$0xff]
      %v3824 = vld [vmem:[#allocation3 + $0x48] sm:$0xff]
      %v3825 = vld [vmem:[#allocation3 + $0x50] sm:$0xff]
      %v3826 = vld [vmem:[#allocation3 + $0x58] sm:$0xff]
      %v3827 = vld [vmem:[#allocation3 + $0x60] sm:$0xff]
      %v3828 = vld [vmem:[#allocation3 + $0x68] sm:$0xff]
      %v3829 = vld [vmem:[#allocation3 + $0x70] sm:$0xff]
      %v3830 = vld [vmem:[#allocation3 + $0x78] sm:$0xff]
      %v3831 = vld [vmem:[#allocation3 + $0x80] sm:$0xff]
      %v3832 = vld [vmem:[#allocation3 + $0x88] sm:$0xff]
      %v3833 = vld [vmem:[#allocation3 + $0x90] sm:$0xff]
      %v3834 = vld [vmem:[#allocation3 + $0x98] sm:$0xff]
      %v3835 = vld [vmem:[#allocation3 + $0xa0] sm:$0xff]
      %v3836 = vld [vmem:[#allocation3 + $0xa8] sm:$0xff]
      %v3837 = vld [vmem:[#allocation3 + $0xb0] sm:$0xff]
      %v3838 = vld [vmem:[#allocation3 + $0xb8] sm:$0xff]
      %v3839 = vld [vmem:[#allocation3 + $0xc0] sm:$0xff]
      %v3840 = vld [vmem:[#allocation3 + $0xc8] sm:$0xff]
      %v3841 = vld [vmem:[#allocation3 + $0xd0] sm:$0xff]
      %v3842 = vld [vmem:[#allocation3 + $0xd8] sm:$0xff]
      %v3843 = vld [vmem:[#allocation3 + $0xe0] sm:$0xff]
      %v3844 = vld [vmem:[#allocation3 + $0xe8] sm:$0xff]
      %v3845 = vld [vmem:[#allocation3 + $0xf0] sm:$0xff]
      %v3846 = vld [vmem:[#allocation3 + $0xf8] sm:$0xff]
      %v3847 = vld [vmem:[#allocation3 + $0x100] sm:$0xff]
      %v3848 = vld [vmem:[#allocation3 + $0x108] sm:$0xff]
      %v3849 = vld [vmem:[#allocation3 + $0x110] sm:$0xff]
      %v3850 = vld [vmem:[#allocation3 + $0x118] sm:$0xff]
      %v3851 = vld [vmem:[#allocation3 + $0x120] sm:$0xff]
      %v3852 = vld [vmem:[#allocation3 + $0x128] sm:$0xff]
      %v3853 = vld [vmem:[#allocation3 + $0x130] sm:$0xff]
      %v3854 = vld [vmem:[#allocation3 + $0x138] sm:$0xff]
      %v3855 = vld [vmem:[#allocation3 + $0x140] sm:$0xff]
      %v3856 = vld [vmem:[#allocation3 + $0x148] sm:$0xff]
      %v3857 = vld [vmem:[#allocation3 + $0x150] sm:$0xff]
      %v3858 = vld [vmem:[#allocation3 + $0x158] sm:$0xff]
      %v3859 = vld [vmem:[#allocation3 + $0x160] sm:$0xff]
      %v3860 = vld [vmem:[#allocation3 + $0x168] sm:$0xff]
      %v3861 = vld [vmem:[#allocation3 + $0x170] sm:$0xff]
      %v3862 = vld [vmem:[#allocation3 + $0x178] sm:$0xff]
      %v3863 = vld [vmem:[#allocation3 + $0x180] sm:$0xff]
      %v3864 = vld [vmem:[#allocation3 + $0x188] sm:$0xff]
      %v3865 = vld [vmem:[#allocation3 + $0x190] sm:$0xff]
      %v3866 = vld [vmem:[#allocation3 + $0x198] sm:$0xff]
      %v3867 = vld [vmem:[#allocation3 + $0x1a0] sm:$0xff]
      %v3868 = vld [vmem:[#allocation3 + $0x1a8] sm:$0xff]
      %v3869 = vld [vmem:[#allocation3 + $0x1b0] sm:$0xff]
      %v3870 = vld [vmem:[#allocation3 + $0x1b8] sm:$0xff]
      %v3871 = vld [vmem:[#allocation3 + $0x1c0] sm:$0xff]
      %v3872 = vld [vmem:[#allocation3 + $0x1c8] sm:$0xff]
      %v3873 = vld [vmem:[#allocation3 + $0x1d0] sm:$0xff]
      %v3874 = vld [vmem:[#allocation3 + $0x1d8] sm:$0xff]
      %v3875 = vld [vmem:[#allocation3 + $0x1e0] sm:$0xff]
      %v3876 = vld [vmem:[#allocation3 + $0x1e8] sm:$0xff]
      %v3877 = vld [vmem:[#allocation3 + $0x1f0] sm:$0xff]
      %v3878 = vld [vmem:[#allocation3 + $0x1f8] sm:$0xff]
      %v3879 = vld [vmem:[#allocation3 + $0x200] sm:$0xff]
      %v3880 = vld [vmem:[#allocation3 + $0x208] sm:$0xff]
      %v3881 = vld [vmem:[#allocation3 + $0x210] sm:$0xff]
      %v3882 = vld [vmem:[#allocation3 + $0x218] sm:$0xff]
      %v3883 = vld [vmem:[#allocation3 + $0x220] sm:$0xff]
      %v3884 = vld [vmem:[#allocation3 + $0x228] sm:$0xff]
      %v3885 = vld [vmem:[#allocation3 + $0x230] sm:$0xff]
      %v3886 = vld [vmem:[#allocation3 + $0x238] sm:$0xff]
      %v3887 = vld [vmem:[#allocation3 + $0x240] sm:$0xff]
      %v3888 = vld [vmem:[#allocation3 + $0x248] sm:$0xff]
      %v3889 = vld [vmem:[#allocation3 + $0x250] sm:$0xff]
      %v3890 = vld [vmem:[#allocation3 + $0x258] sm:$0xff]
      %v3891 = vld [vmem:[#allocation3 + $0x260] sm:$0xff]
      %v3892 = vld [vmem:[#allocation3 + $0x268] sm:$0xff]
      %v3893 = vld [vmem:[#allocation3 + $0x270] sm:$0xff]
      %v3894 = vld [vmem:[#allocation3 + $0x278] sm:$0xff]
      %v3895 = vld [vmem:[#allocation3 + $0x280] sm:$0xff]
      %v3896 = vld [vmem:[#allocation3 + $0x288] sm:$0xff]
      %v3897 = vld [vmem:[#allocation3 + $0x290] sm:$0xff]
      %v3898 = vld [vmem:[#allocation3 + $0x298] sm:$0xff]
      %v3899 = vld [vmem:[#allocation3 + $0x2a0] sm:$0xff]
      %v3900 = vld [vmem:[#allocation3 + $0x2a8] sm:$0xff]
      %v3901 = vld [vmem:[#allocation3 + $0x2b0] sm:$0xff]
      %v3902 = vld [vmem:[#allocation3 + $0x2b8] sm:$0xff]
      %v3903 = vld [vmem:[#allocation3 + $0x2c0] sm:$0xff]
      %v3904 = vld [vmem:[#allocation3 + $0x2c8] sm:$0xff]
      %v3905 = vld [vmem:[#allocation3 + $0x2d0] sm:$0xff]
      %v3906 = vld [vmem:[#allocation3 + $0x2d8] sm:$0xff]
      %v3907 = vld [vmem:[#allocation3 + $0x2e0] sm:$0xff]
      %v3908 = vld [vmem:[#allocation3 + $0x2e8] sm:$0xff]
      %v3909 = vld [vmem:[#allocation3 + $0x2f0] sm:$0xff]
      %v3910 = vld [vmem:[#allocation3 + $0x2f8] sm:$0xff]
      %v3911 = vld [vmem:[#allocation3 + $0x300] sm:$0xff]
      %v3912 = vld [vmem:[#allocation3 + $0x308] sm:$0xff]
      %v3913 = vld [vmem:[#allocation3 + $0x310] sm:$0xff]
      %v3914 = vld [vmem:[#allocation3 + $0x318] sm:$0xff]
      %v3915 = vld [vmem:[#allocation3 + $0x320] sm:$0xff]
      %v3916 = vld [vmem:[#allocation3 + $0x328] sm:$0xff]
      %v3917 = vld [vmem:[#allocation3 + $0x330] sm:$0xff]
      %v3918 = vld [vmem:[#allocation3 + $0x338] sm:$0xff]
      %v3919 = vld [vmem:[#allocation3 + $0x340] sm:$0xff]
      %v3920 = vld [vmem:[#allocation3 + $0x348] sm:$0xff]
      %v3921 = vld [vmem:[#allocation3 + $0x350] sm:$0xff]
      %v3922 = vld [vmem:[#allocation3 + $0x358] sm:$0xff]
      %v3923 = vld [vmem:[#allocation3 + $0x360] sm:$0xff]
      %v3924 = vld [vmem:[#allocation3 + $0x368] sm:$0xff]
      %v3925 = vld [vmem:[#allocation3 + $0x370] sm:$0xff]
      %v3926 = vld [vmem:[#allocation3 + $0x378] sm:$0xff]
      %v3927 = vld [vmem:[#allocation3 + $0x380] sm:$0xff]
      %v3928 = vld [vmem:[#allocation3 + $0x388] sm:$0xff]
      %v3929 = vld [vmem:[#allocation3 + $0x390] sm:$0xff]
      %v3930 = vld [vmem:[#allocation3 + $0x398] sm:$0xff]
      %v3931 = vld [vmem:[#allocation3 + $0x3a0] sm:$0xff]
      %v3932 = vld [vmem:[#allocation3 + $0x3a8] sm:$0xff]
      %v3933 = vld [vmem:[#allocation3 + $0x3b0] sm:$0xff]
      %v3934 = vld [vmem:[#allocation3 + $0x3b8] sm:$0xff]
      %v3935 = vld [vmem:[#allocation3 + $0x3c0] sm:$0xff]
      %v3936 = vld [vmem:[#allocation3 + $0x3c8] sm:$0xff]
      %v3937 = vld [vmem:[#allocation3 + $0x3d0] sm:$0xff]
      %v3938 = vld [vmem:[#allocation3 + $0x3d8] sm:$0xff]
      %v3939 = vld [vmem:[#allocation3 + $0x3e0] sm:$0xff]
      %v3940 = vld [vmem:[#allocation3 + $0x3e8] sm:$0xff]
      %v3941 = vld [vmem:[#allocation3 + $0x3f0] sm:$0xff]
      %v3942 = vld [vmem:[#allocation3 + $0x3f8] sm:$0xff]
      %v3943 = vld [vmem:[#allocation3 + $0x400] sm:$0xff]
      %v3944 = vld [vmem:[#allocation3 + $0x408] sm:$0xff]
      %v3945 = vld [vmem:[#allocation3 + $0x410] sm:$0xff]
      %v3946 = vld [vmem:[#allocation3 + $0x418] sm:$0xff]
      %v3947 = vld [vmem:[#allocation3 + $0x420] sm:$0xff]
      %v3948 = vld [vmem:[#allocation3 + $0x428] sm:$0xff]
      %v3949 = vld [vmem:[#allocation3 + $0x430] sm:$0xff]
      %v3950 = vld [vmem:[#allocation3 + $0x438] sm:$0xff]
      %v3951 = vld [vmem:[#allocation3 + $0x440] sm:$0xff]
      %v3952 = vld [vmem:[#allocation3 + $0x448] sm:$0xff]
      %v3953 = vld [vmem:[#allocation3 + $0x450] sm:$0xff]
      %v3954 = vld [vmem:[#allocation3 + $0x458] sm:$0xff]
      %v3955 = vld [vmem:[#allocation3 + $0x460] sm:$0xff]
      %v3956 = vld [vmem:[#allocation3 + $0x468] sm:$0xff]
      %v3957 = vld [vmem:[#allocation3 + $0x470] sm:$0xff]
      %v3958 = vld [vmem:[#allocation3 + $0x478] sm:$0xff]
      %v3959 = vld [vmem:[#allocation3 + $0x480] sm:$0xff]
      %v3960 = vld [vmem:[#allocation3 + $0x488] sm:$0xff]
      %v3961 = vld [vmem:[#allocation3 + $0x490] sm:$0xff]
      %v3962 = vld [vmem:[#allocation3 + $0x498] sm:$0xff]
      %v3963 = vld [vmem:[#allocation3 + $0x4a0] sm:$0xff]
      %v3964 = vld [vmem:[#allocation3 + $0x4a8] sm:$0xff]
      %v3965 = vld [vmem:[#allocation3 + $0x4b0] sm:$0xff]
      %v3966 = vld [vmem:[#allocation3 + $0x4b8] sm:$0xff]
      %v3967 = vld [vmem:[#allocation3 + $0x4c0] sm:$0xff]
      %v3968 = vld [vmem:[#allocation3 + $0x4c8] sm:$0xff]
      %v3969 = vld [vmem:[#allocation3 + $0x4d0] sm:$0xff]
      %v3970 = vld [vmem:[#allocation3 + $0x4d8] sm:$0xff]
      %v3971 = vld [vmem:[#allocation3 + $0x4e0] sm:$0xff]
      %v3972 = vld [vmem:[#allocation3 + $0x4e8] sm:$0xff]
      %v3973 = vld [vmem:[#allocation3 + $0x4f0] sm:$0xff]
      %v3974 = vld [vmem:[#allocation3 + $0x4f8] sm:$0xff]
      %v3975 = vld [vmem:[#allocation3 + $0x500] sm:$0xff]
      %v3976 = vld [vmem:[#allocation3 + $0x508] sm:$0xff]
      %v3977 = vld [vmem:[#allocation3 + $0x510] sm:$0xff]
      %v3978 = vld [vmem:[#allocation3 + $0x518] sm:$0xff]
      %v3979 = vld [vmem:[#allocation3 + $0x520] sm:$0xff]
      %v3980 = vld [vmem:[#allocation3 + $0x528] sm:$0xff]
      %v3981 = vld [vmem:[#allocation3 + $0x530] sm:$0xff]
      %v3982 = vld [vmem:[#allocation3 + $0x538] sm:$0xff]
      %v3983 = vld [vmem:[#allocation3 + $0x540] sm:$0xff]
      %v3984 = vld [vmem:[#allocation3 + $0x548] sm:$0xff]
      %v3985 = vld [vmem:[#allocation3 + $0x550] sm:$0xff]
      %v3986 = vld [vmem:[#allocation3 + $0x558] sm:$0xff]
      %v3987 = vld [vmem:[#allocation3 + $0x560] sm:$0xff]
      %v3988 = vld [vmem:[#allocation3 + $0x568] sm:$0xff]
      %v3989 = vld [vmem:[#allocation3 + $0x570] sm:$0xff]
      %v3990 = vld [vmem:[#allocation3 + $0x578] sm:$0xff]
      %v3991 = vld [vmem:[#allocation3 + $0x580] sm:$0xff]
      %v3992 = vld [vmem:[#allocation3 + $0x588] sm:$0xff]
      %v3993 = vld [vmem:[#allocation3 + $0x590] sm:$0xff]
      %v3994 = vld [vmem:[#allocation3 + $0x598] sm:$0xff]
      %v3995 = vld [vmem:[#allocation3 + $0x5a0] sm:$0xff]
      %v3996 = vld [vmem:[#allocation3 + $0x5a8] sm:$0xff]
      %v3997 = vld [vmem:[#allocation3 + $0x5b0] sm:$0xff]
      %v3998 = vld [vmem:[#allocation3 + $0x5b8] sm:$0xff]
      %v3999 = vld [vmem:[#allocation3 + $0x5c0] sm:$0xff]
      %v4000 = vld [vmem:[#allocation3 + $0x5c8] sm:$0xff]
      %v4001 = vld [vmem:[#allocation3 + $0x5d0] sm:$0xff]
      %v4002 = vld [vmem:[#allocation3 + $0x5d8] sm:$0xff]
      %v4003 = vld [vmem:[#allocation3 + $0x5e0] sm:$0xff]
      %v4004 = vld [vmem:[#allocation3 + $0x5e8] sm:$0xff]
      %v4005 = vld [vmem:[#allocation3 + $0x5f0] sm:$0xff]
      %v4006 = vld [vmem:[#allocation3 + $0x5f8] sm:$0xff]
      %v4007 = vld [vmem:[#allocation3 + $0x600] sm:$0xff]
      %v4008 = vld [vmem:[#allocation3 + $0x608] sm:$0xff]
      %v4009 = vld [vmem:[#allocation3 + $0x610] sm:$0xff]
      %v4010 = vld [vmem:[#allocation3 + $0x618] sm:$0xff]
      %v4011 = vld [vmem:[#allocation3 + $0x620] sm:$0xff]
      %v4012 = vld [vmem:[#allocation3 + $0x628] sm:$0xff]
      %v4013 = vld [vmem:[#allocation3 + $0x630] sm:$0xff]
      %v4014 = vld [vmem:[#allocation3 + $0x638] sm:$0xff]
      %v4015 = vld [vmem:[#allocation3 + $0x640] sm:$0xff]
      %v4016 = vld [vmem:[#allocation3 + $0x648] sm:$0xff]
      %v4017 = vld [vmem:[#allocation3 + $0x650] sm:$0xff]
      %v4018 = vld [vmem:[#allocation3 + $0x658] sm:$0xff]
      %v4019 = vld [vmem:[#allocation3 + $0x660] sm:$0xff]
      %v4020 = vld [vmem:[#allocation3 + $0x668] sm:$0xff]
      %v4021 = vld [vmem:[#allocation3 + $0x670] sm:$0xff]
      %v4022 = vld [vmem:[#allocation3 + $0x678] sm:$0xff]
      %v4023 = vld [vmem:[#allocation3 + $0x680] sm:$0xff]
      %v4024 = vld [vmem:[#allocation3 + $0x688] sm:$0xff]
      %v4025 = vld [vmem:[#allocation3 + $0x690] sm:$0xff]
      %v4026 = vld [vmem:[#allocation3 + $0x698] sm:$0xff]
      %v4027 = vld [vmem:[#allocation3 + $0x6a0] sm:$0xff]
      %v4028 = vld [vmem:[#allocation3 + $0x6a8] sm:$0xff]
      %v4029 = vld [vmem:[#allocation3 + $0x6b0] sm:$0xff]
      %v4030 = vld [vmem:[#allocation3 + $0x6b8] sm:$0xff]
      %v4031 = vld [vmem:[#allocation3 + $0x6c0] sm:$0xff]
      %v4032 = vld [vmem:[#allocation3 + $0x6c8] sm:$0xff]
      %v4033 = vld [vmem:[#allocation3 + $0x6d0] sm:$0xff]
      %v4034 = vld [vmem:[#allocation3 + $0x6d8] sm:$0xff]
      %v4035 = vld [vmem:[#allocation3 + $0x6e0] sm:$0xff]
      %v4036 = vld [vmem:[#allocation3 + $0x6e8] sm:$0xff]
      %v4037 = vld [vmem:[#allocation3 + $0x6f0] sm:$0xff]
      %v4038 = vld [vmem:[#allocation3 + $0x6f8] sm:$0xff]
      %v4039 = vld [vmem:[#allocation3 + $0x700] sm:$0xff]
      %v4040 = vld [vmem:[#allocation3 + $0x708] sm:$0xff]
      %v4041 = vld [vmem:[#allocation3 + $0x710] sm:$0xff]
      %v4042 = vld [vmem:[#allocation3 + $0x718] sm:$0xff]
      %v4043 = vld [vmem:[#allocation3 + $0x720] sm:$0xff]
      %v4044 = vld [vmem:[#allocation3 + $0x728] sm:$0xff]
      %v4045 = vld [vmem:[#allocation3 + $0x730] sm:$0xff]
      %v4046 = vld [vmem:[#allocation3 + $0x738] sm:$0xff]
      %v4047 = vld [vmem:[#allocation3 + $0x740] sm:$0xff]
      %v4048 = vld [vmem:[#allocation3 + $0x748] sm:$0xff]
      %v4049 = vld [vmem:[#allocation3 + $0x750] sm:$0xff]
      %v4050 = vld [vmem:[#allocation3 + $0x758] sm:$0xff]
      %v4051 = vld [vmem:[#allocation3 + $0x760] sm:$0xff]
      %v4052 = vld [vmem:[#allocation3 + $0x768] sm:$0xff]
      %v4053 = vld [vmem:[#allocation3 + $0x770] sm:$0xff]
      %v4054 = vld [vmem:[#allocation3 + $0x778] sm:$0xff]
      %v4055 = vld [vmem:[#allocation3 + $0x780] sm:$0xff]
      %v4056 = vld [vmem:[#allocation3 + $0x788] sm:$0xff]
      %v4057 = vld [vmem:[#allocation3 + $0x790] sm:$0xff]
      %v4058 = vld [vmem:[#allocation3 + $0x798] sm:$0xff]
      %v4059 = vld [vmem:[#allocation3 + $0x7a0] sm:$0xff]
      %v4060 = vld [vmem:[#allocation3 + $0x7a8] sm:$0xff]
      %v4061 = vld [vmem:[#allocation3 + $0x7b0] sm:$0xff]
      %v4062 = vld [vmem:[#allocation3 + $0x7b8] sm:$0xff]
      %v4063 = vld [vmem:[#allocation3 + $0x7c0] sm:$0xff]
      %v4064 = vld [vmem:[#allocation3 + $0x7c8] sm:$0xff]
      %v4065 = vld [vmem:[#allocation3 + $0x7d0] sm:$0xff]
      %v4066 = vld [vmem:[#allocation3 + $0x7d8] sm:$0xff]
      %v4067 = vld [vmem:[#allocation3 + $0x7e0] sm:$0xff]
      %v4068 = vld [vmem:[#allocation3 + $0x7e8] sm:$0xff]
      %v4069 = vld [vmem:[#allocation3 + $0x7f0] sm:$0xff]
      %v4070 = vld [vmem:[#allocation3 + $0x7f8] sm:$0xff]
      %v4071 = vld [vmem:[%s2] sm:$0xff]
      %v4073 = vlaneseq
      %v4074 = vshrl.u32 %v4073, 7
      %v4075 = vsub.s32 0, %v4074
      %v4076 = vrot.slane %v4071, %v4075
      %v4077 = vlaneseq
      %v4078 = vshrl.u32 %v4077, 7
      %v4079 = vsub.s32 1, %v4078
      %v4080 = vrot.slane %v4071, %v4079
      %v4081 = vlaneseq
      %v4082 = vshrl.u32 %v4081, 7
      %v4083 = vsub.s32 2, %v4082
      %v4084 = vrot.slane %v4071, %v4083
      %v4085 = vlaneseq
      %v4086 = vshrl.u32 %v4085, 7
      %v4087 = vsub.s32 3, %v4086
      %v4088 = vrot.slane %v4071, %v4087
      %v4089 = vlaneseq
      %v4090 = vshrl.u32 %v4089, 7
      %v4091 = vsub.s32 4, %v4090
      %v4092 = vrot.slane %v4071, %v4091
      %v4093 = vlaneseq
      %v4094 = vshrl.u32 %v4093, 7
      %v4095 = vsub.s32 5, %v4094
      %v4096 = vrot.slane %v4071, %v4095
      %v4097 = vlaneseq
      %v4098 = vshrl.u32 %v4097, 7
      %v4099 = vsub.s32 6, %v4098
      %v4100 = vrot.slane %v4071, %v4099
      %v4101 = vlaneseq
      %v4102 = vshrl.u32 %v4101, 7
      %v4103 = vsub.s32 7, %v4102
      %v4104 = vrot.slane %v4071, %v4103
      %v4115 = vunpack.c.l.s4 1983009808
      %v4116 = vunpack.c.0.s8 %v4115
      %v4117 = vlaneseq
      %v4118 = vshrl.u32 %v4117, 7
      %v4119 = vsub.s32 %v4116, %v4118
      %v4120 = vrot.slane %v3814, %v4119
      %v4121 = vcombine.high %v4120, %v4120
      %4124 = vmatprep.subr.mxu0 %v3816
      %4125 = vmatpush1.msra.mxu0 %v3815
      %4126 = vmatprep.subr.mxu0 %v3824
      %4127 = vmatpush1.msra.mxu0 %v3823
      %4128 = vmatprep.subr.mxu0 %v3832
      %4129 = vmatpush1.msra.mxu0 %v3831
      %4130 = vmatprep.subr.mxu0 %v3840
      %4131 = vmatpush1.msra.mxu0 %v3839
      %4132 = vmatprep.subr.mxu0 %v3848
      %4133 = vmatpush1.msra.mxu0 %v3847
      %4134 = vmatprep.subr.mxu0 %v3856
      %4135 = vmatpush1.msra.mxu0 %v3855
      %4136 = vmatprep.subr.mxu0 %v3864
      %4137 = vmatpush1.msra.mxu0 %v3863
      %4138 = vmatprep.subr.mxu0 %v3872
      %4139 = vmatpush1.msra.mxu0 %v3871
      %4140 = vmatprep.subr.mxu0 %v3880
      %4141 = vmatpush1.msra.mxu0 %v3879
      %4142 = vmatprep.subr.mxu0 %v3888
      %4143 = vmatpush1.msra.mxu0 %v3887
      %4144 = vmatprep.subr.mxu0 %v3896
      %4145 = vmatpush1.msra.mxu0 %v3895
      %4146 = vmatprep.subr.mxu0 %v3904
      %4147 = vmatpush1.msra.mxu0 %v3903
      %4148 = vmatprep.subr.mxu0 %v3912
      %4149 = vmatpush1.msra.mxu0 %v3911
      %4150 = vmatprep.subr.mxu0 %v3920
      %4151 = vmatpush1.msra.mxu0 %v3919
      %4152 = vmatprep.subr.mxu0 %v3928
      %4153 = vmatpush1.msra.mxu0 %v3927
      %4154 = vmatprep.subr.mxu0 %v3936
      %4155 = vmatpush1.msra.mxu0 %v3935
      %4156 = vmatprep.subr.mxu0 %v3944
      %4157 = vmatpush1.msra.mxu0 %v3943
      %4158 = vmatprep.subr.mxu0 %v3952
      %4159 = vmatpush1.msra.mxu0 %v3951
      %4160 = vmatprep.subr.mxu0 %v3960
      %4161 = vmatpush1.msra.mxu0 %v3959
      %4162 = vmatprep.subr.mxu0 %v3968
      %4163 = vmatpush1.msra.mxu0 %v3967
      %4164 = vmatprep.subr.mxu0 %v3976
      %4165 = vmatpush1.msra.mxu0 %v3975
      %4166 = vmatprep.subr.mxu0 %v3984
      %4167 = vmatpush1.msra.mxu0 %v3983
      %4168 = vmatprep.subr.mxu0 %v3992
      %4169 = vmatpush1.msra.mxu0 %v3991
      %4170 = vmatprep.subr.mxu0 %v4000
      %4171 = vmatpush1.msra.mxu0 %v3999
      %4172 = vmatprep.subr.mxu0 %v4008
      %4173 = vmatpush1.msra.mxu0 %v4007
      %4174 = vmatprep.subr.mxu0 %v4016
      %4175 = vmatpush1.msra.mxu0 %v4015
      %4176 = vmatprep.subr.mxu0 %v4024
      %4177 = vmatpush1.msra.mxu0 %v4023
      %4178 = vmatprep.subr.mxu0 %v4032
      %4179 = vmatpush1.msra.mxu0 %v4031
      %4180 = vmatprep.subr.mxu0 %v4040
      %4181 = vmatpush1.msra.mxu0 %v4039
      %4182 = vmatprep.subr.mxu0 %v4048
      %4183 = vmatpush1.msra.mxu0 %v4047
      %4184 = vmatprep.subr.mxu0 %v4056
      %4185 = vmatpush1.msra.mxu0 %v4055
      %4186 = vmatprep.subr.mxu0 %v4064
      %4187 = vmatpush1.msra.mxu0 %v4063
      %4188 = vmatprep.mubr.f32.mxu0 %v4121
      %4189 = vmatmul.mubr.f32.gmra.mrb[0].mxu0 %v4120
      %v4190 = vpop.f32.mrb[0].mxu0
      %v4191 = vadd.f32 %v4076, %v4190
      %v4192 = vpop.f32.mrb[0].mxu0
      %v4193 = vadd.f32 %v4080, %v4192
      %4194 = vdwg.mxu0
      %4195 = vmatprep.subr.mxu0 %v3818
      %4196 = vmatpush1.msra.mxu0 %v3817
      %4197 = vmatprep.subr.mxu0 %v3826
      %4198 = vmatpush1.msra.mxu0 %v3825
      %4199 = vmatprep.subr.mxu0 %v3834
      %4200 = vmatpush1.msra.mxu0 %v3833
      %4201 = vmatprep.subr.mxu0 %v3842
      %4202 = vmatpush1.msra.mxu0 %v3841
      %4203 = vmatprep.subr.mxu0 %v3850
      %4204 = vmatpush1.msra.mxu0 %v3849
      %4205 = vmatprep.subr.mxu0 %v3858
      %4206 = vmatpush1.msra.mxu0 %v3857
      %4207 = vmatprep.subr.mxu0 %v3866
      %4208 = vmatpush1.msra.mxu0 %v3865
      %4209 = vmatprep.subr.mxu0 %v3874
      %4210 = vmatpush1.msra.mxu0 %v3873
      %4211 = vmatprep.subr.mxu0 %v3882
      %4212 = vmatpush1.msra.mxu0 %v3881
      %4213 = vmatprep.subr.mxu0 %v3890
      %4214 = vmatpush1.msra.mxu0 %v3889
      %4215 = vmatprep.subr.mxu0 %v3898
      %4216 = vmatpush1.msra.mxu0 %v3897
      %4217 = vmatprep.subr.mxu0 %v3906
      %4218 = vmatpush1.msra.mxu0 %v3905
      %4219 = vmatprep.subr.mxu0 %v3914
      %4220 = vmatpush1.msra.mxu0 %v3913
      %4221 = vmatprep.subr.mxu0 %v3922
      %4222 = vmatpush1.msra.mxu0 %v3921
      %4223 = vmatprep.subr.mxu0 %v3930
      %4224 = vmatpush1.msra.mxu0 %v3929
      %4225 = vmatprep.subr.mxu0 %v3938
      %4226 = vmatpush1.msra.mxu0 %v3937
      %4227 = vmatprep.subr.mxu0 %v3946
      %4228 = vmatpush1.msra.mxu0 %v3945
      %4229 = vmatprep.subr.mxu0 %v3954
      %4230 = vmatpush1.msra.mxu0 %v3953
      %4231 = vmatprep.subr.mxu0 %v3962
      %4232 = vmatpush1.msra.mxu0 %v3961
      %4233 = vmatprep.subr.mxu0 %v3970
      %4234 = vmatpush1.msra.mxu0 %v3969
      %4235 = vmatprep.subr.mxu0 %v3978
      %4236 = vmatpush1.msra.mxu0 %v3977
      %4237 = vmatprep.subr.mxu0 %v3986
      %4238 = vmatpush1.msra.mxu0 %v3985
      %4239 = vmatprep.subr.mxu0 %v3994
      %4240 = vmatpush1.msra.mxu0 %v3993
      %4241 = vmatprep.subr.mxu0 %v4002
      %4242 = vmatpush1.msra.mxu0 %v4001
      %4243 = vmatprep.subr.mxu0 %v4010
      %4244 = vmatpush1.msra.mxu0 %v4009
      %4245 = vmatprep.subr.mxu0 %v4018
      %4246 = vmatpush1.msra.mxu0 %v4017
      %4247 = vmatprep.subr.mxu0 %v4026
      %4248 = vmatpush1.msra.mxu0 %v4025
      %4249 = vmatprep.subr.mxu0 %v4034
      %4250 = vmatpush1.msra.mxu0 %v4033
      %4251 = vmatprep.subr.mxu0 %v4042
      %4252 = vmatpush1.msra.mxu0 %v4041
      %4253 = vmatprep.subr.mxu0 %v4050
      %4254 = vmatpush1.msra.mxu0 %v4049
      %4255 = vmatprep.subr.mxu0 %v4058
      %4256 = vmatpush1.msra.mxu0 %v4057
      %4257 = vmatprep.subr.mxu0 %v4066
      %4258 = vmatpush1.msra.mxu0 %v4065
      %4259 = vmatprep.mubr.f32.mxu0 %v4121
      %4260 = vmatmul.mubr.f32.gmra.mrb[0].mxu0 %v4120
      %v4261 = vpop.f32.mrb[0].mxu0
      %v4262 = vadd.f32 %v4084, %v4261
      %v4263 = vpop.f32.mrb[0].mxu0
      %v4264 = vadd.f32 %v4088, %v4263
      %4265 = vdwg.mxu0
      %4266 = vmatprep.subr.mxu0 %v3820
      %4267 = vmatpush1.msra.mxu0 %v3819
      %4268 = vmatprep.subr.mxu0 %v3828
      %4269 = vmatpush1.msra.mxu0 %v3827
      %4270 = vmatprep.subr.mxu0 %v3836
      %4271 = vmatpush1.msra.mxu0 %v3835
      %4272 = vmatprep.subr.mxu0 %v3844
      %4273 = vmatpush1.msra.mxu0 %v3843
      %4274 = vmatprep.subr.mxu0 %v3852
      %4275 = vmatpush1.msra.mxu0 %v3851
      %4276 = vmatprep.subr.mxu0 %v3860
      %4277 = vmatpush1.msra.mxu0 %v3859
      %4278 = vmatprep.subr.mxu0 %v3868
      %4279 = vmatpush1.msra.mxu0 %v3867
      %4280 = vmatprep.subr.mxu0 %v3876
      %4281 = vmatpush1.msra.mxu0 %v3875
      %4282 = vmatprep.subr.mxu0 %v3884
      %4283 = vmatpush1.msra.mxu0 %v3883
      %4284 = vmatprep.subr.mxu0 %v3892
      %4285 = vmatpush1.msra.mxu0 %v3891
      %4286 = vmatprep.subr.mxu0 %v3900
      %4287 = vmatpush1.msra.mxu0 %v3899
      %4288 = vmatprep.subr.mxu0 %v3908
      %4289 = vmatpush1.msra.mxu0 %v3907
      %4290 = vmatprep.subr.mxu0 %v3916
      %4291 = vmatpush1.msra.mxu0 %v3915
      %4292 = vmatprep.subr.mxu0 %v3924
      %4293 = vmatpush1.msra.mxu0 %v3923
      %4294 = vmatprep.subr.mxu0 %v3932
      %4295 = vmatpush1.msra.mxu0 %v3931
      %4296 = vmatprep.subr.mxu0 %v3940
      %4297 = vmatpush1.msra.mxu0 %v3939
      %4298 = vmatprep.subr.mxu0 %v3948
      %4299 = vmatpush1.msra.mxu0 %v3947
      %4300 = vmatprep.subr.mxu0 %v3956
      %4301 = vmatpush1.msra.mxu0 %v3955
      %4302 = vmatprep.subr.mxu0 %v3964
      %4303 = vmatpush1.msra.mxu0 %v3963
      %4304 = vmatprep.subr.mxu0 %v3972
      %4305 = vmatpush1.msra.mxu0 %v3971
      %4306 = vmatprep.subr.mxu0 %v3980
      %4307 = vmatpush1.msra.mxu0 %v3979
      %4308 = vmatprep.subr.mxu0 %v3988
      %4309 = vmatpush1.msra.mxu0 %v3987
      %4310 = vmatprep.subr.mxu0 %v3996
      %4311 = vmatpush1.msra.mxu0 %v3995
      %4312 = vmatprep.subr.mxu0 %v4004
      %4313 = vmatpush1.msra.mxu0 %v4003
      %4314 = vmatprep.subr.mxu0 %v4012
      %4315 = vmatpush1.msra.mxu0 %v4011
      %4316 = vmatprep.subr.mxu0 %v4020
      %4317 = vmatpush1.msra.mxu0 %v4019
      %4318 = vmatprep.subr.mxu0 %v4028
      %4319 = vmatpush1.msra.mxu0 %v4027
      %4320 = vmatprep.subr.mxu0 %v4036
      %4321 = vmatpush1.msra.mxu0 %v4035
      %4322 = vmatprep.subr.mxu0 %v4044
      %4323 = vmatpush1.msra.mxu0 %v4043
      %4324 = vmatprep.subr.mxu0 %v4052
      %4325 = vmatpush1.msra.mxu0 %v4051
      %4326 = vmatprep.subr.mxu0 %v4060
      %4327 = vmatpush1.msra.mxu0 %v4059
      %4328 = vmatprep.subr.mxu0 %v4068
      %4329 = vmatpush1.msra.mxu0 %v4067
      %4330 = vmatprep.mubr.f32.mxu0 %v4121
      %4331 = vmatmul.mubr.f32.gmra.mrb[0].mxu0 %v4120
      %v4332 = vpop.f32.mrb[0].mxu0
      %v4333 = vadd.f32 %v4092, %v4332
      %v4334 = vpop.f32.mrb[0].mxu0
      %v4335 = vadd.f32 %v4096, %v4334
      %4336 = vdwg.mxu0
      %4337 = vmatprep.subr.mxu0 %v3822
      %4338 = vmatpush1.msra.mxu0 %v3821
      %4339 = vmatprep.subr.mxu0 %v3830
      %4340 = vmatpush1.msra.mxu0 %v3829
      %4341 = vmatprep.subr.mxu0 %v3838
      %4342 = vmatpush1.msra.mxu0 %v3837
      %4343 = vmatprep.subr.mxu0 %v3846
      %4344 = vmatpush1.msra.mxu0 %v3845
      %4345 = vmatprep.subr.mxu0 %v3854
      %4346 = vmatpush1.msra.mxu0 %v3853
      %4347 = vmatprep.subr.mxu0 %v3862
      %4348 = vmatpush1.msra.mxu0 %v3861
      %4349 = vmatprep.subr.mxu0 %v3870
      %4350 = vmatpush1.msra.mxu0 %v3869
      %4351 = vmatprep.subr.mxu0 %v3878
      %4352 = vmatpush1.msra.mxu0 %v3877
      %4353 = vmatprep.subr.mxu0 %v3886
      %4354 = vmatpush1.msra.mxu0 %v3885
      %4355 = vmatprep.subr.mxu0 %v3894
      %4356 = vmatpush1.msra.mxu0 %v3893
      %4357 = vmatprep.subr.mxu0 %v3902
      %4358 = vmatpush1.msra.mxu0 %v3901
      %4359 = vmatprep.subr.mxu0 %v3910
      %4360 = vmatpush1.msra.mxu0 %v3909
      %4361 = vmatprep.subr.mxu0 %v3918
      %4362 = vmatpush1.msra.mxu0 %v3917
      %4363 = vmatprep.subr.mxu0 %v3926
      %4364 = vmatpush1.msra.mxu0 %v3925
      %4365 = vmatprep.subr.mxu0 %v3934
      %4366 = vmatpush1.msra.mxu0 %v3933
      %4367 = vmatprep.subr.mxu0 %v3942
      %4368 = vmatpush1.msra.mxu0 %v3941
      %4369 = vmatprep.subr.mxu0 %v3950
      %4370 = vmatpush1.msra.mxu0 %v3949
      %4371 = vmatprep.subr.mxu0 %v3958
      %4372 = vmatpush1.msra.mxu0 %v3957
      %4373 = vmatprep.subr.mxu0 %v3966
      %4374 = vmatpush1.msra.mxu0 %v3965
      %4375 = vmatprep.subr.mxu0 %v3974
      %4376 = vmatpush1.msra.mxu0 %v3973
      %4377 = vmatprep.subr.mxu0 %v3982
      %4378 = vmatpush1.msra.mxu0 %v3981
      %4379 = vmatprep.subr.mxu0 %v3990
      %4380 = vmatpush1.msra.mxu0 %v3989
      %4381 = vmatprep.subr.mxu0 %v3998
      %4382 = vmatpush1.msra.mxu0 %v3997
      %4383 = vmatprep.subr.mxu0 %v4006
      %4384 = vmatpush1.msra.mxu0 %v4005
      %4385 = vmatprep.subr.mxu0 %v4014
      %4386 = vmatpush1.msra.mxu0 %v4013
      %4387 = vmatprep.subr.mxu0 %v4022
      %4388 = vmatpush1.msra.mxu0 %v4021
      %4389 = vmatprep.subr.mxu0 %v4030
      %4390 = vmatpush1.msra.mxu0 %v4029
      %4391 = vmatprep.subr.mxu0 %v4038
      %4392 = vmatpush1.msra.mxu0 %v4037
      %4393 = vmatprep.subr.mxu0 %v4046
      %4394 = vmatpush1.msra.mxu0 %v4045
      %4395 = vmatprep.subr.mxu0 %v4054
      %4396 = vmatpush1.msra.mxu0 %v4053
      %4397 = vmatprep.subr.mxu0 %v4062
      %4398 = vmatpush1.msra.mxu0 %v4061
      %4399 = vmatprep.subr.mxu0 %v4070
      %4400 = vmatpush1.msra.mxu0 %v4069
      %4401 = vmatprep.mubr.f32.mxu0 %v4121
      %4402 = vmatmul.mubr.f32.gmra.mrb[0].mxu0 %v4120
      %v4403 = vpop.f32.mrb[0].mxu0
      %v4404 = vadd.f32 %v4100, %v4403
      %v4405 = vpop.f32.mrb[0].mxu0
      %v4406 = vadd.f32 %v4104, %v4405
      %4407 = vdwg.mxu0
      %v4408 = vmax.f32 %v4191, 0.0
      %v4409 = vmax.f32 %v4193, 0.0
      %v4410 = vmax.f32 %v4262, 0.0
      %v4411 = vmax.f32 %v4264, 0.0
      %v4412 = vmax.f32 %v4333, 0.0
      %v4413 = vmax.f32 %v4335, 0.0
      %v4414 = vmax.f32 %v4404, 0.0
      %v4415 = vmax.f32 %v4406, 0.0
      %v4416 = vld [vmem:[#allocation6] sm:$0xff]
      %v4417 = vld [vmem:[#allocation6 + $0x8] sm:$0xff]
      %v4418 = vld [vmem:[#allocation6 + $0x10] sm:$0xff]
      %v4419 = vld [vmem:[#allocation6 + $0x18] sm:$0xff]
      %v4420 = vld [vmem:[#allocation6 + $0x20] sm:$0xff]
      %v4421 = vld [vmem:[#allocation6 + $0x28] sm:$0xff]
      %v4422 = vld [vmem:[#allocation6 + $0x30] sm:$0xff]
      %v4423 = vld [vmem:[#allocation6 + $0x38] sm:$0xff]
      %v4424 = vld [vmem:[#allocation6 + $0x40] sm:$0xff]
      %v4425 = vld [vmem:[#allocation6 + $0x48] sm:$0xff]
      %v4426 = vld [vmem:[#allocation6 + $0x50] sm:$0xff]
      %v4427 = vld [vmem:[#allocation6 + $0x58] sm:$0xff]
      %v4428 = vld [vmem:[#allocation6 + $0x60] sm:$0xff]
      %v4429 = vld [vmem:[#allocation6 + $0x68] sm:$0xff]
      %v4430 = vld [vmem:[#allocation6 + $0x70] sm:$0xff]
      %v4431 = vld [vmem:[#allocation6 + $0x78] sm:$0xff]
      %v4432 = vld [vmem:[#allocation6 + $0x80] sm:$0xff]
      %v4433 = vld [vmem:[#allocation6 + $0x88] sm:$0xff]
      %v4434 = vld [vmem:[#allocation6 + $0x90] sm:$0xff]
      %v4435 = vld [vmem:[#allocation6 + $0x98] sm:$0xff]
      %v4436 = vld [vmem:[#allocation6 + $0xa0] sm:$0xff]
      %v4437 = vld [vmem:[#allocation6 + $0xa8] sm:$0xff]
      %v4438 = vld [vmem:[#allocation6 + $0xb0] sm:$0xff]
      %v4439 = vld [vmem:[#allocation6 + $0xb8] sm:$0xff]
      %v4440 = vld [vmem:[#allocation6 + $0xc0] sm:$0xff]
      %v4441 = vld [vmem:[#allocation6 + $0xc8] sm:$0xff]
      %v4442 = vld [vmem:[#allocation6 + $0xd0] sm:$0xff]
      %v4443 = vld [vmem:[#allocation6 + $0xd8] sm:$0xff]
      %v4444 = vld [vmem:[#allocation6 + $0xe0] sm:$0xff]
      %v4445 = vld [vmem:[#allocation6 + $0xe8] sm:$0xff]
      %v4446 = vld [vmem:[#allocation6 + $0xf0] sm:$0xff]
      %v4447 = vld [vmem:[#allocation6 + $0xf8] sm:$0xff]
      %v4448 = vld [vmem:[#allocation6 + $0x100] sm:$0xff]
      %v4449 = vld [vmem:[#allocation6 + $0x108] sm:$0xff]
      %v4450 = vld [vmem:[#allocation6 + $0x110] sm:$0xff]
      %v4451 = vld [vmem:[#allocation6 + $0x118] sm:$0xff]
      %v4452 = vld [vmem:[#allocation6 + $0x120] sm:$0xff]
      %v4453 = vld [vmem:[#allocation6 + $0x128] sm:$0xff]
      %v4454 = vld [vmem:[#allocation6 + $0x130] sm:$0xff]
      %v4455 = vld [vmem:[#allocation6 + $0x138] sm:$0xff]
      %v4456 = vld [vmem:[#allocation6 + $0x140] sm:$0xff]
      %v4457 = vld [vmem:[#allocation6 + $0x148] sm:$0xff]
      %v4458 = vld [vmem:[#allocation6 + $0x150] sm:$0xff]
      %v4459 = vld [vmem:[#allocation6 + $0x158] sm:$0xff]
      %v4460 = vld [vmem:[#allocation6 + $0x160] sm:$0xff]
      %v4461 = vld [vmem:[#allocation6 + $0x168] sm:$0xff]
      %v4462 = vld [vmem:[#allocation6 + $0x170] sm:$0xff]
      %v4463 = vld [vmem:[#allocation6 + $0x178] sm:$0xff]
      %v4464 = vld [vmem:[#allocation6 + $0x180] sm:$0xff]
      %v4465 = vld [vmem:[#allocation6 + $0x188] sm:$0xff]
      %v4466 = vld [vmem:[#allocation6 + $0x190] sm:$0xff]
      %v4467 = vld [vmem:[#allocation6 + $0x198] sm:$0xff]
      %v4468 = vld [vmem:[#allocation6 + $0x1a0] sm:$0xff]
      %v4469 = vld [vmem:[#allocation6 + $0x1a8] sm:$0xff]
      %v4470 = vld [vmem:[#allocation6 + $0x1b0] sm:$0xff]
      %v4471 = vld [vmem:[#allocation6 + $0x1b8] sm:$0xff]
      %v4472 = vld [vmem:[#allocation6 + $0x1c0] sm:$0xff]
      %v4473 = vld [vmem:[#allocation6 + $0x1c8] sm:$0xff]
      %v4474 = vld [vmem:[#allocation6 + $0x1d0] sm:$0xff]
      %v4475 = vld [vmem:[#allocation6 + $0x1d8] sm:$0xff]
      %v4476 = vld [vmem:[#allocation6 + $0x1e0] sm:$0xff]
      %v4477 = vld [vmem:[#allocation6 + $0x1e8] sm:$0xff]
      %v4478 = vld [vmem:[#allocation6 + $0x1f0] sm:$0xff]
      %v4479 = vld [vmem:[#allocation6 + $0x1f8] sm:$0xff]
      %v4480 = vld [vmem:[#allocation6 + $0x200] sm:$0xff]
      %v4481 = vld [vmem:[#allocation6 + $0x208] sm:$0xff]
      %v4482 = vld [vmem:[#allocation6 + $0x210] sm:$0xff]
      %v4483 = vld [vmem:[#allocation6 + $0x218] sm:$0xff]
      %v4484 = vld [vmem:[#allocation6 + $0x220] sm:$0xff]
      %v4485 = vld [vmem:[#allocation6 + $0x228] sm:$0xff]
      %v4486 = vld [vmem:[#allocation6 + $0x230] sm:$0xff]
      %v4487 = vld [vmem:[#allocation6 + $0x238] sm:$0xff]
      %v4488 = vld [vmem:[#allocation6 + $0x240] sm:$0xff]
      %v4489 = vld [vmem:[#allocation6 + $0x248] sm:$0xff]
      %v4490 = vld [vmem:[#allocation6 + $0x250] sm:$0xff]
      %v4491 = vld [vmem:[#allocation6 + $0x258] sm:$0xff]
      %v4492 = vld [vmem:[#allocation6 + $0x260] sm:$0xff]
      %v4493 = vld [vmem:[#allocation6 + $0x268] sm:$0xff]
      %v4494 = vld [vmem:[#allocation6 + $0x270] sm:$0xff]
      %v4495 = vld [vmem:[#allocation6 + $0x278] sm:$0xff]
      %v4496 = vld [vmem:[#allocation6 + $0x280] sm:$0xff]
      %v4497 = vld [vmem:[#allocation6 + $0x288] sm:$0xff]
      %v4498 = vld [vmem:[#allocation6 + $0x290] sm:$0xff]
      %v4499 = vld [vmem:[#allocation6 + $0x298] sm:$0xff]
      %v4500 = vld [vmem:[#allocation6 + $0x2a0] sm:$0xff]
      %v4501 = vld [vmem:[#allocation6 + $0x2a8] sm:$0xff]
      %v4502 = vld [vmem:[#allocation6 + $0x2b0] sm:$0xff]
      %v4503 = vld [vmem:[#allocation6 + $0x2b8] sm:$0xff]
      %v4504 = vld [vmem:[#allocation6 + $0x2c0] sm:$0xff]
      %v4505 = vld [vmem:[#allocation6 + $0x2c8] sm:$0xff]
      %v4506 = vld [vmem:[#allocation6 + $0x2d0] sm:$0xff]
      %v4507 = vld [vmem:[#allocation6 + $0x2d8] sm:$0xff]
      %v4508 = vld [vmem:[#allocation6 + $0x2e0] sm:$0xff]
      %v4509 = vld [vmem:[#allocation6 + $0x2e8] sm:$0xff]
      %v4510 = vld [vmem:[#allocation6 + $0x2f0] sm:$0xff]
      %v4511 = vld [vmem:[#allocation6 + $0x2f8] sm:$0xff]
      %v4512 = vld [vmem:[#allocation6 + $0x300] sm:$0xff]
      %v4513 = vld [vmem:[#allocation6 + $0x308] sm:$0xff]
      %v4514 = vld [vmem:[#allocation6 + $0x310] sm:$0xff]
      %v4515 = vld [vmem:[#allocation6 + $0x318] sm:$0xff]
      %v4516 = vld [vmem:[#allocation6 + $0x320] sm:$0xff]
      %v4517 = vld [vmem:[#allocation6 + $0x328] sm:$0xff]
      %v4518 = vld [vmem:[#allocation6 + $0x330] sm:$0xff]
      %v4519 = vld [vmem:[#allocation6 + $0x338] sm:$0xff]
      %v4520 = vld [vmem:[#allocation6 + $0x340] sm:$0xff]
      %v4521 = vld [vmem:[#allocation6 + $0x348] sm:$0xff]
      %v4522 = vld [vmem:[#allocation6 + $0x350] sm:$0xff]
      %v4523 = vld [vmem:[#allocation6 + $0x358] sm:$0xff]
      %v4524 = vld [vmem:[#allocation6 + $0x360] sm:$0xff]
      %v4525 = vld [vmem:[#allocation6 + $0x368] sm:$0xff]
      %v4526 = vld [vmem:[#allocation6 + $0x370] sm:$0xff]
      %v4527 = vld [vmem:[#allocation6 + $0x378] sm:$0xff]
      %v4528 = vld [vmem:[#allocation6 + $0x380] sm:$0xff]
      %v4529 = vld [vmem:[#allocation6 + $0x388] sm:$0xff]
      %v4530 = vld [vmem:[#allocation6 + $0x390] sm:$0xff]
      %v4531 = vld [vmem:[#allocation6 + $0x398] sm:$0xff]
      %v4532 = vld [vmem:[#allocation6 + $0x3a0] sm:$0xff]
      %v4533 = vld [vmem:[#allocation6 + $0x3a8] sm:$0xff]
      %v4534 = vld [vmem:[#allocation6 + $0x3b0] sm:$0xff]
      %v4535 = vld [vmem:[#allocation6 + $0x3b8] sm:$0xff]
      %v4536 = vld [vmem:[#allocation6 + $0x3c0] sm:$0xff]
      %v4537 = vld [vmem:[#allocation6 + $0x3c8] sm:$0xff]
      %v4538 = vld [vmem:[#allocation6 + $0x3d0] sm:$0xff]
      %v4539 = vld [vmem:[#allocation6 + $0x3d8] sm:$0xff]
      %v4540 = vld [vmem:[#allocation6 + $0x3e0] sm:$0xff]
      %v4541 = vld [vmem:[#allocation6 + $0x3e8] sm:$0xff]
      %v4542 = vld [vmem:[#allocation6 + $0x3f0] sm:$0xff]
      %v4543 = vld [vmem:[#allocation6 + $0x3f8] sm:$0xff]
      %v4544 = vld [vmem:[%s4] sm:$0x1]
      %v4546 = vlaneseq
      %v4547 = vshrl.u32 %v4546, 7
      %v4548 = vsub.s32 0, %v4547
      %v4549 = vrot.slane %v4544, %v4548
      %4551 = vmatprep.subr.mxu0 0.0
      %4552 = vmatpush1.msra.mxu0 %v4416
      %4553 = vmatprep.subr.mxu0 0.0
      %4554 = vmatpush1.msra.mxu0 %v4417
      %4555 = vmatprep.subr.mxu0 0.0
      %4556 = vmatpush1.msra.mxu0 %v4418
      %4557 = vmatprep.subr.mxu0 0.0
      %4558 = vmatpush1.msra.mxu0 %v4419
      %4559 = vmatprep.subr.mxu0 0.0
      %4560 = vmatpush1.msra.mxu0 %v4420
      %4561 = vmatprep.subr.mxu0 0.0
      %4562 = vmatpush1.msra.mxu0 %v4421
      %4563 = vmatprep.subr.mxu0 0.0
      %4564 = vmatpush1.msra.mxu0 %v4422
      %4565 = vmatprep.subr.mxu0 0.0
      %4566 = vmatpush1.msra.mxu0 %v4423
      %4567 = vmatprep.subr.mxu0 0.0
      %4568 = vmatpush1.msra.mxu0 %v4424
      %4569 = vmatprep.subr.mxu0 0.0
      %4570 = vmatpush1.msra.mxu0 %v4425
      %4571 = vmatprep.subr.mxu0 0.0
      %4572 = vmatpush1.msra.mxu0 %v4426
      %4573 = vmatprep.subr.mxu0 0.0
      %4574 = vmatpush1.msra.mxu0 %v4427
      %4575 = vmatprep.subr.mxu0 0.0
      %4576 = vmatpush1.msra.mxu0 %v4428
      %4577 = vmatprep.subr.mxu0 0.0
      %4578 = vmatpush1.msra.mxu0 %v4429
      %4579 = vmatprep.subr.mxu0 0.0
      %4580 = vmatpush1.msra.mxu0 %v4430
      %4581 = vmatprep.subr.mxu0 0.0
      %4582 = vmatpush1.msra.mxu0 %v4431
      %4583 = vmatprep.subr.mxu0 0.0
      %4584 = vmatpush1.msra.mxu0 %v4432
      %4585 = vmatprep.subr.mxu0 0.0
      %4586 = vmatpush1.msra.mxu0 %v4433
      %4587 = vmatprep.subr.mxu0 0.0
      %4588 = vmatpush1.msra.mxu0 %v4434
      %4589 = vmatprep.subr.mxu0 0.0
      %4590 = vmatpush1.msra.mxu0 %v4435
      %4591 = vmatprep.subr.mxu0 0.0
      %4592 = vmatpush1.msra.mxu0 %v4436
      %4593 = vmatprep.subr.mxu0 0.0
      %4594 = vmatpush1.msra.mxu0 %v4437
      %4595 = vmatprep.subr.mxu0 0.0
      %4596 = vmatpush1.msra.mxu0 %v4438
      %4597 = vmatprep.subr.mxu0 0.0
      %4598 = vmatpush1.msra.mxu0 %v4439
      %4599 = vmatprep.subr.mxu0 0.0
      %4600 = vmatpush1.msra.mxu0 %v4440
      %4601 = vmatprep.subr.mxu0 0.0
      %4602 = vmatpush1.msra.mxu0 %v4441
      %4603 = vmatprep.subr.mxu0 0.0
      %4604 = vmatpush1.msra.mxu0 %v4442
      %4605 = vmatprep.subr.mxu0 0.0
      %4606 = vmatpush1.msra.mxu0 %v4443
      %4607 = vmatprep.subr.mxu0 0.0
      %4608 = vmatpush1.msra.mxu0 %v4444
      %4609 = vmatprep.subr.mxu0 0.0
      %4610 = vmatpush1.msra.mxu0 %v4445
      %4611 = vmatprep.subr.mxu0 0.0
      %4612 = vmatpush1.msra.mxu0 %v4446
      %4613 = vmatprep.subr.mxu0 0.0
      %4614 = vmatpush1.msra.mxu0 %v4447
      %4615 = vmatprep.mubr.f32.mxu0 %v4409
      %4616 = vmatmul.mubr.f32.gmra.mrb[0].mxu0 %v4408
      %v4617 = vpop.f32.mrb[0].mxu0
      %v4618 = vadd.f32 %v4549, %v4617
      %v4619 = vpop.f32.mrb[0].mxu0
      %4620 = vdwg.mxu0
      %4621 = vmatprep.subr.mxu0 0.0
      %4622 = vmatpush1.msra.mxu0 %v4448
      %4623 = vmatprep.subr.mxu0 0.0
      %4624 = vmatpush1.msra.mxu0 %v4449
      %4625 = vmatprep.subr.mxu0 0.0
      %4626 = vmatpush1.msra.mxu0 %v4450
      %4627 = vmatprep.subr.mxu0 0.0
      %4628 = vmatpush1.msra.mxu0 %v4451
      %4629 = vmatprep.subr.mxu0 0.0
      %4630 = vmatpush1.msra.mxu0 %v4452
      %4631 = vmatprep.subr.mxu0 0.0
      %4632 = vmatpush1.msra.mxu0 %v4453
      %4633 = vmatprep.subr.mxu0 0.0
      %4634 = vmatpush1.msra.mxu0 %v4454
      %4635 = vmatprep.subr.mxu0 0.0
      %4636 = vmatpush1.msra.mxu0 %v4455
      %4637 = vmatprep.subr.mxu0 0.0
      %4638 = vmatpush1.msra.mxu0 %v4456
      %4639 = vmatprep.subr.mxu0 0.0
      %4640 = vmatpush1.msra.mxu0 %v4457
      %4641 = vmatprep.subr.mxu0 0.0
      %4642 = vmatpush1.msra.mxu0 %v4458
      %4643 = vmatprep.subr.mxu0 0.0
      %4644 = vmatpush1.msra.mxu0 %v4459
      %4645 = vmatprep.subr.mxu0 0.0
      %4646 = vmatpush1.msra.mxu0 %v4460
      %4647 = vmatprep.subr.mxu0 0.0
      %4648 = vmatpush1.msra.mxu0 %v4461
      %4649 = vmatprep.subr.mxu0 0.0
      %4650 = vmatpush1.msra.mxu0 %v4462
      %4651 = vmatprep.subr.mxu0 0.0
      %4652 = vmatpush1.msra.mxu0 %v4463
      %4653 = vmatprep.subr.mxu0 0.0
      %4654 = vmatpush1.msra.mxu0 %v4464
      %4655 = vmatprep.subr.mxu0 0.0
      %4656 = vmatpush1.msra.mxu0 %v4465
      %4657 = vmatprep.subr.mxu0 0.0
      %4658 = vmatpush1.msra.mxu0 %v4466
      %4659 = vmatprep.subr.mxu0 0.0
      %4660 = vmatpush1.msra.mxu0 %v4467
      %4661 = vmatprep.subr.mxu0 0.0
      %4662 = vmatpush1.msra.mxu0 %v4468
      %4663 = vmatprep.subr.mxu0 0.0
      %4664 = vmatpush1.msra.mxu0 %v4469
      %4665 = vmatprep.subr.mxu0 0.0
      %4666 = vmatpush1.msra.mxu0 %v4470
      %4667 = vmatprep.subr.mxu0 0.0
      %4668 = vmatpush1.msra.mxu0 %v4471
      %4669 = vmatprep.subr.mxu0 0.0
      %4670 = vmatpush1.msra.mxu0 %v4472
      %4671 = vmatprep.subr.mxu0 0.0
      %4672 = vmatpush1.msra.mxu0 %v4473
      %4673 = vmatprep.subr.mxu0 0.0
      %4674 = vmatpush1.msra.mxu0 %v4474
      %4675 = vmatprep.subr.mxu0 0.0
      %4676 = vmatpush1.msra.mxu0 %v4475
      %4677 = vmatprep.subr.mxu0 0.0
      %4678 = vmatpush1.msra.mxu0 %v4476
      %4679 = vmatprep.subr.mxu0 0.0
      %4680 = vmatpush1.msra.mxu0 %v4477
      %4681 = vmatprep.subr.mxu0 0.0
      %4682 = vmatpush1.msra.mxu0 %v4478
      %4683 = vmatprep.subr.mxu0 0.0
      %4684 = vmatpush1.msra.mxu0 %v4479
      %4685 = vmatprep.mubr.f32.mxu0 %v4411
      %4686 = vmatmul.mubr.f32.gmra.mrb[0].mxu0 %v4410
      %v4687 = vpop.f32.mrb[0].mxu0
      %v4688 = vadd.f32 %v4618, %v4687
      %v4689 = vpop.f32.mrb[0].mxu0
      %4690 = vdwg.mxu0
      %4691 = vmatprep.subr.mxu0 0.0
      %4692 = vmatpush1.msra.mxu0 %v4480
      %4693 = vmatprep.subr.mxu0 0.0
      %4694 = vmatpush1.msra.mxu0 %v4481
      %4695 = vmatprep.subr.mxu0 0.0
      %4696 = vmatpush1.msra.mxu0 %v4482
      %4697 = vmatprep.subr.mxu0 0.0
      %4698 = vmatpush1.msra.mxu0 %v4483
      %4699 = vmatprep.subr.mxu0 0.0
      %4700 = vmatpush1.msra.mxu0 %v4484
      %4701 = vmatprep.subr.mxu0 0.0
      %4702 = vmatpush1.msra.mxu0 %v4485
      %4703 = vmatprep.subr.mxu0 0.0
      %4704 = vmatpush1.msra.mxu0 %v4486
      %4705 = vmatprep.subr.mxu0 0.0
      %4706 = vmatpush1.msra.mxu0 %v4487
      %4707 = vmatprep.subr.mxu0 0.0
      %4708 = vmatpush1.msra.mxu0 %v4488
      %4709 = vmatprep.subr.mxu0 0.0
      %4710 = vmatpush1.msra.mxu0 %v4489
      %4711 = vmatprep.subr.mxu0 0.0
      %4712 = vmatpush1.msra.mxu0 %v4490
      %4713 = vmatprep.subr.mxu0 0.0
      %4714 = vmatpush1.msra.mxu0 %v4491
      %4715 = vmatprep.subr.mxu0 0.0
      %4716 = vmatpush1.msra.mxu0 %v4492
      %4717 = vmatprep.subr.mxu0 0.0
      %4718 = vmatpush1.msra.mxu0 %v4493
      %4719 = vmatprep.subr.mxu0 0.0
      %4720 = vmatpush1.msra.mxu0 %v4494
      %4721 = vmatprep.subr.mxu0 0.0
      %4722 = vmatpush1.msra.mxu0 %v4495
      %4723 = vmatprep.subr.mxu0 0.0
      %4724 = vmatpush1.msra.mxu0 %v4496
      %4725 = vmatprep.subr.mxu0 0.0
      %4726 = vmatpush1.msra.mxu0 %v4497
      %4727 = vmatprep.subr.mxu0 0.0
      %4728 = vmatpush1.msra.mxu0 %v4498
      %4729 = vmatprep.subr.mxu0 0.0
      %4730 = vmatpush1.msra.mxu0 %v4499
      %4731 = vmatprep.subr.mxu0 0.0
      %4732 = vmatpush1.msra.mxu0 %v4500
      %4733 = vmatprep.subr.mxu0 0.0
      %4734 = vmatpush1.msra.mxu0 %v4501
      %4735 = vmatprep.subr.mxu0 0.0
      %4736 = vmatpush1.msra.mxu0 %v4502
      %4737 = vmatprep.subr.mxu0 0.0
      %4738 = vmatpush1.msra.mxu0 %v4503
      %4739 = vmatprep.subr.mxu0 0.0
      %4740 = vmatpush1.msra.mxu0 %v4504
      %4741 = vmatprep.subr.mxu0 0.0
      %4742 = vmatpush1.msra.mxu0 %v4505
      %4743 = vmatprep.subr.mxu0 0.0
      %4744 = vmatpush1.msra.mxu0 %v4506
      %4745 = vmatprep.subr.mxu0 0.0
      %4746 = vmatpush1.msra.mxu0 %v4507
      %4747 = vmatprep.subr.mxu0 0.0
      %4748 = vmatpush1.msra.mxu0 %v4508
      %4749 = vmatprep.subr.mxu0 0.0
      %4750 = vmatpush1.msra.mxu0 %v4509
      %4751 = vmatprep.subr.mxu0 0.0
      %4752 = vmatpush1.msra.mxu0 %v4510
      %4753 = vmatprep.subr.mxu0 0.0
      %4754 = vmatpush1.msra.mxu0 %v4511
      %4755 = vmatprep.mubr.f32.mxu0 %v4413
      %4756 = vmatmul.mubr.f32.gmra.mrb[0].mxu0 %v4412
      %v4757 = vpop.f32.mrb[0].mxu0
      %v4758 = vadd.f32 %v4688, %v4757
      %v4759 = vpop.f32.mrb[0].mxu0
      %4760 = vdwg.mxu0
      %4761 = vmatprep.subr.mxu0 0.0
      %4762 = vmatpush1.msra.mxu0 %v4512
      %4763 = vmatprep.subr.mxu0 0.0
      %4764 = vmatpush1.msra.mxu0 %v4513
      %4765 = vmatprep.subr.mxu0 0.0
      %4766 = vmatpush1.msra.mxu0 %v4514
      %4767 = vmatprep.subr.mxu0 0.0
      %4768 = vmatpush1.msra.mxu0 %v4515
      %4769 = vmatprep.subr.mxu0 0.0
      %4770 = vmatpush1.msra.mxu0 %v4516
      %4771 = vmatprep.subr.mxu0 0.0
      %4772 = vmatpush1.msra.mxu0 %v4517
      %4773 = vmatprep.subr.mxu0 0.0
      %4774 = vmatpush1.msra.mxu0 %v4518
      %4775 = vmatprep.subr.mxu0 0.0
      %4776 = vmatpush1.msra.mxu0 %v4519
      %4777 = vmatprep.subr.mxu0 0.0
      %4778 = vmatpush1.msra.mxu0 %v4520
      %4779 = vmatprep.subr.mxu0 0.0
      %4780 = vmatpush1.msra.mxu0 %v4521
      %4781 = vmatprep.subr.mxu0 0.0
      %4782 = vmatpush1.msra.mxu0 %v4522
      %4783 = vmatprep.subr.mxu0 0.0
      %4784 = vmatpush1.msra.mxu0 %v4523
      %4785 = vmatprep.subr.mxu0 0.0
      %4786 = vmatpush1.msra.mxu0 %v4524
      %4787 = vmatprep.subr.mxu0 0.0
      %4788 = vmatpush1.msra.mxu0 %v4525
      %4789 = vmatprep.subr.mxu0 0.0
      %4790 = vmatpush1.msra.mxu0 %v4526
      %4791 = vmatprep.subr.mxu0 0.0
      %4792 = vmatpush1.msra.mxu0 %v4527
      %4793 = vmatprep.subr.mxu0 0.0
      %4794 = vmatpush1.msra.mxu0 %v4528
      %4795 = vmatprep.subr.mxu0 0.0
      %4796 = vmatpush1.msra.mxu0 %v4529
      %4797 = vmatprep.subr.mxu0 0.0
      %4798 = vmatpush1.msra.mxu0 %v4530
      %4799 = vmatprep.subr.mxu0 0.0
      %4800 = vmatpush1.msra.mxu0 %v4531
      %4801 = vmatprep.subr.mxu0 0.0
      %4802 = vmatpush1.msra.mxu0 %v4532
      %4803 = vmatprep.subr.mxu0 0.0
      %4804 = vmatpush1.msra.mxu0 %v4533
      %4805 = vmatprep.subr.mxu0 0.0
      %4806 = vmatpush1.msra.mxu0 %v4534
      %4807 = vmatprep.subr.mxu0 0.0
      %4808 = vmatpush1.msra.mxu0 %v4535
      %4809 = vmatprep.subr.mxu0 0.0
      %4810 = vmatpush1.msra.mxu0 %v4536
      %4811 = vmatprep.subr.mxu0 0.0
      %4812 = vmatpush1.msra.mxu0 %v4537
      %4813 = vmatprep.subr.mxu0 0.0
      %4814 = vmatpush1.msra.mxu0 %v4538
      %4815 = vmatprep.subr.mxu0 0.0
      %4816 = vmatpush1.msra.mxu0 %v4539
      %4817 = vmatprep.subr.mxu0 0.0
      %4818 = vmatpush1.msra.mxu0 %v4540
      %4819 = vmatprep.subr.mxu0 0.0
      %4820 = vmatpush1.msra.mxu0 %v4541
      %4821 = vmatprep.subr.mxu0 0.0
      %4822 = vmatpush1.msra.mxu0 %v4542
      %4823 = vmatprep.subr.mxu0 0.0
      %4824 = vmatpush1.msra.mxu0 %v4543
      %4825 = vmatprep.mubr.f32.mxu0 %v4415
      %4826 = vmatmul.mubr.f32.gmra.mrb[0].mxu0 %v4414
      %v4827 = vpop.f32.mrb[0].mxu0
      %v4828 = vadd.f32 %v4758, %v4827
      %v4829 = vpop.f32.mrb[0].mxu0
      %4830 = vdwg.mxu0
      %4831 = vst [vmem:[#allocation8] sm:$0x3] %v4828
    $region37: #{tpu_custom_call.1} parent=1 // pred_fallthru
      _
    // Predicated region
    $region38: #{tpu_custom_call.1} parent=1 // pred_check
      _
    $region39: #{tpu_custom_call.1} parent=1 // pred_check_branch
      %4833 = sbr.rel (0) target = $region41
    $region40: #{tpu_custom_call.1} parent=1 // pred_region
      %s4835 = ssub.s32 32, 32
      %4836 = vsyncadd [#allocation5], %s4835
      %s4838 = sshll.u32 [#allocation8], 4
      %s4839 = int_to_ptr.vmem [resolvable:$true] %s4838
      %4841 = dma.vmem_to_hbm [thread:$0]  %s4839, 32, %s5, [#allocation5]
    $region41: #{tpu_custom_call.1} parent=1 // pred_fallthru
      _
    // Predicated region
    $region42: #{tpu_custom_call.1} parent=1 // pred_check
      _
    $region43: #{tpu_custom_call.1} parent=1 // pred_check_branch
      %4843 = sbr.rel (0) target = $region45
    $region44: #{tpu_custom_call.1} parent=1 // pred_region
      %4844 = dma.done [#allocation5], 32
    $region45: #{tpu_custom_call.1} parent=1 // pred_fallthru
      _
    %4845 = vsyncpa [#allocation4], 1
    %4846 = vsyncpa [#allocation7], 1
    %4847 = vsyncpa [#allocation5], 1

</llo_original>
